<compile_context>
chip_gen: v7x
topology: tpu7x:2x2x1
jax: 0.10.0
libtpu: 0.0.40
codegen_flags: <defaults>
</compile_context>

<pallas_src>
import functools

import jax
import jax.numpy as jnp
from jax.experimental import pallas as pl
from jax.experimental.pallas import tpu as pltpu

_EPS = 1e-5


# ----------------------------- in-kernel helpers -----------------------------

def _dot(a, b):
    return jnp.dot(a, b, preferred_element_type=jnp.float32)


def _ln(x, g, b, eps):
    mu = jnp.mean(x, axis=-1, keepdims=True)
    var = jnp.mean(jnp.square(x - mu), axis=-1, keepdims=True)
    return (x - mu) * jax.lax.rsqrt(var + eps) * g + b


def _w(ref3d):
    """Load one (X, Y) weight tile from a (1, X, Y) layer-blocked ref, as f32."""
    return ref3d[0].astype(jnp.float32)


# ----------------------------- Pallas kernels -----------------------------

def _embed_kernel(p_ref, w_ref, small_ref, o_ref, *, eps):
    """Folded (Conv2d ∘ Flatten ∘ Linear) matmul + bias + LayerNorm."""
    sm = small_ref[...].astype(jnp.float32)              # (3, D): bias, ln_g, ln_b
    y = _dot(p_ref[...], w_ref[...].astype(jnp.float32)) + sm[0:1, :]
    o_ref[...] = _ln(y, sm[1:2, :], sm[2:3, :], eps).astype(o_ref.dtype)


def _encoder_stack_kernel(x_ref, wv_ref, wo_ref, w1_ref, b1_ref, w2_ref,
                          small_ref, o_ref, act_ref, *, eps):
    """All post-norm TransformerEncoderLayers, one grid step per layer.

    With seq_len = 1, self-attention == out_proj(v_proj(x)) exactly.
    small rows: 0=bv 1=bo 2=lin2_b 3=g1 4=b1 5=g2 6=b2 7=enc_norm_g 8=enc_norm_b
    """
    l = pl.program_id(0)
    nl = pl.num_programs(0)

    @pl.when(l == 0)
    def _():
        act_ref[...] = x_ref[...].astype(jnp.float32)

    x = act_ref[...]
    sm = small_ref[0].astype(jnp.float32)                 # (9, D)
    bv, bo, c2 = sm[0:1, :], sm[1:2, :], sm[2:3, :]
    g1, b1n, g2, b2n = sm[3:4, :], sm[4:5, :], sm[5:6, :], sm[6:7, :]
    fg, fb = sm[7:8, :], sm[8:9, :]

    sa = _dot(_dot(x, _w(wv_ref)) + bv, _w(wo_ref)) + bo
    h = _ln(x + sa, g1, b1n, eps)
    # FFN: (B, dim_ff) intermediate lives only in VMEM/vregs.
    ff = jnp.maximum(_dot(h, _w(w1_ref)) + b1_ref[0], 0.0)
    ff = _dot(ff, _w(w2_ref)) + c2
    act_ref[...] = _ln(h + ff, g2, b2n, eps)

    @pl.when(l == nl - 1)
    def _():
        # Final encoder LayerNorm, folded into the last layer's step.
        o_ref[...] = _ln(act_ref[...], fg, fb, eps).astype(o_ref.dtype)


def _decoder_stack_kernel(t0_ref, mem_ref, wvs_ref, wos_ref, wvc_ref, woc_ref,
                          w1_ref, b1_ref, w2_ref, small_ref, fcw_ref, fcb_ref,
                          o_ref, act_ref, *, eps):
    """All post-norm TransformerDecoderLayers + final norm + fc head.

    small rows: 0=bvs 1=bos 2=bvc 3=boc 4=lin2_b 5=g1 6=b1 7=g2 8=b2 9=g3 10=b3
                11=dec_norm_g 12=dec_norm_b
    """
    l = pl.program_id(0)
    nl = pl.num_programs(0)

    @pl.when(l == 0)
    def _():
        act_ref[...] = t0_ref[...].astype(jnp.float32)

    t = act_ref[...]
    m = mem_ref[...].astype(jnp.float32)
    sm = small_ref[0].astype(jnp.float32)                 # (13, D)
    bvs, bos = sm[0:1, :], sm[1:2, :]
    bvc, boc = sm[2:3, :], sm[3:4, :]
    c2 = sm[4:5, :]
    g1, b1n = sm[5:6, :], sm[6:7, :]
    g2, b2n = sm[7:8, :], sm[8:9, :]
    g3, b3n = sm[9:10, :], sm[10:11, :]
    fg, fb = sm[11:12, :], sm[12:13, :]

    sa = _dot(_dot(t, _w(wvs_ref)) + bvs, _w(wos_ref)) + bos
    h1 = _ln(t + sa, g1, b1n, eps)
    ca = _dot(_dot(m, _w(wvc_ref)) + bvc, _w(woc_ref)) + boc
    h2 = _ln(h1 + ca, g2, b2n, eps)
    ff = jnp.maximum(_dot(h2, _w(w1_ref)) + b1_ref[0], 0.0)
    ff = _dot(ff, _w(w2_ref)) + c2
    act_ref[...] = _ln(h2 + ff, g3, b3n, eps)

    @pl.when(l == nl - 1)
    def _():
        # Final decoder norm + mean over the length-1 sequence (identity) + fc.
        y = _ln(act_ref[...], fg, fb, eps)
        o_ref[...] = (_dot(y, fcw_ref[...]) + fcb_ref[...]).astype(o_ref.dtype)


# ----------------------------- parameters -----------------------------

def init_params(key, num_classes, patch_size, hidden_dim, num_heads, num_layers,
                image_size, num_decoder_layers=6, dim_ff=2048):
    """Raw parameters in PyTorch layout (as nn.Module would hold them)."""
    keys = iter(jax.random.split(key, 256))

    def nk():
        return next(keys)

    def lin(o, i):
        return (jax.random.normal(nk(), (o, i), jnp.float32) * 0.02,
                jnp.zeros((o,), jnp.float32))

    def ln():
        return jnp.ones((hidden_dim,), jnp.float32), jnp.zeros((hidden_dim,), jnp.float32)

    def mha_p():
        w, b = lin(3 * hidden_dim, hidden_dim)
        ow, ob = lin(hidden_dim, hidden_dim)
        return {"in_proj_w": w, "in_proj_b": b, "out_proj_w": ow, "out_proj_b": ob}

    def enc_layer_p():
        l1w, l1b = lin(dim_ff, hidden_dim)
        l2w, l2b = lin(hidden_dim, dim_ff)
        n1g, n1b = ln()
        n2g, n2b = ln()
        return {"self_attn": mha_p(),
                "linear1_w": l1w, "linear1_b": l1b,
                "linear2_w": l2w, "linear2_b": l2b,
                "norm1_g": n1g, "norm1_b": n1b,
                "norm2_g": n2g, "norm2_b": n2b}

    def dec_layer_p():
        d = enc_layer_p()
        d["cross_attn"] = mha_p()
        d["norm3_g"], d["norm3_b"] = ln()
        return d

    n_patches = (image_size // patch_size) ** 2
    conv_w = jax.random.normal(nk(), (hidden_dim, 3, patch_size, patch_size),
                               jnp.float32) * 0.02
    conv_b = jnp.zeros((hidden_dim,), jnp.float32)
    emb_w, emb_b = lin(hidden_dim, hidden_dim * n_patches)
    emb_ln_g, emb_ln_b = ln()
    enc_norm_g, enc_norm_b = ln()
    dec_norm_g, dec_norm_b = ln()
    fc_w, fc_b = lin(num_classes, hidden_dim)
    return {
        "conv_w": conv_w, "conv_b": conv_b,
        "emb_w": emb_w, "emb_b": emb_b,
        "emb_ln_g": emb_ln_g, "emb_ln_b": emb_ln_b,
        "encoder_layers": [enc_layer_p() for _ in range(num_layers)],
        "decoder_layers": [dec_layer_p() for _ in range(num_decoder_layers)],
        "enc_norm_g": enc_norm_g, "enc_norm_b": enc_norm_b,
        "dec_norm_g": dec_norm_g, "dec_norm_b": dec_norm_b,
        "fc_w": fc_w, "fc_b": fc_b,
    }


def prepare_params(params, patch_size, image_size, weight_dtype=jnp.bfloat16):
    """One-time weight prep: fold/transpose/stack/pack (NOT per forward pass).

    Big matrices are stored in `weight_dtype` (bf16) to halve HBM streaming;
    all vector params are packed into one small f32 array per stack.
    """
    D = params["fc_w"].shape[1]
    p = patch_size
    hp = wp = image_size // p
    NP = hp * wp
    C = params["conv_w"].shape[1]
    wd = weight_dtype

    # ---- embedding: fold Conv2d + channel-major Flatten + Linear into one matmul
    conv_wt = params["conv_w"].reshape(D, C * p * p).T            # (C*p*p, D)
    # nn.Flatten of (B, D, hp, wp) is channel-major (flat index d*NP + n).
    emb_w_3d = params["emb_w"].reshape(D, D, NP).transpose(2, 1, 0)  # [n, d, j]
    w_fold = jnp.einsum("kd,ndj->nkj", conv_wt, emb_w_3d).reshape(NP * C * p * p, D)
    b_fold = jnp.einsum("d,ndj->j", params["conv_b"], emb_w_3d) + params["emb_b"]
    emb_small = jnp.stack([b_fold, params["emb_ln_g"], params["emb_ln_b"]], axis=0)

    def v_path(mha):
        # Only the V / out-proj path of nn.MultiheadAttention is live for L=S=1;
        # head split + merge of V is the identity.
        wv = mha["in_proj_w"][2 * D:3 * D, :].T
        bv = mha["in_proj_b"][2 * D:3 * D]
        wo = mha["out_proj_w"].T
        bo = mha["out_proj_b"]
        return wv, bv, wo, bo

    # ---- encoder stack (stack per-layer weights along a leading layer axis)
    e_wv, e_wo, e_w1, e_b1, e_w2, e_small = [], [], [], [], [], []
    for lp in params["encoder_layers"]:
        wv, bv, wo, bo = v_path(lp["self_attn"])
        e_wv.append(wv)
        e_wo.append(wo)
        e_w1.append(lp["linear1_w"].T)                  # (D, F)
        e_b1.append(lp["linear1_b"].reshape(1, -1))     # (1, F)
        e_w2.append(lp["linear2_w"].T)                  # (F, D)
        e_small.append(jnp.stack([
            bv, bo, lp["linear2_b"],
            lp["norm1_g"], lp["norm1_b"],
            lp["norm2_g"], lp["norm2_b"],
            params["enc_norm_g"], params["enc_norm_b"]], axis=0))  # (9, D)
    enc = {"wv": jnp.stack(e_wv).astype(wd),
           "wo": jnp.stack(e_wo).astype(wd),
           "w1": jnp.stack(e_w1).astype(wd),
           "b1": jnp.stack(e_b1).astype(jnp.float32),
           "w2": jnp.stack(e_w2).astype(wd),
           "small": jnp.stack(e_small).astype(jnp.float32)}

    # ---- decoder stack
    d_wvs, d_wos, d_wvc, d_woc = [], [], [], []
    d_w1, d_b1, d_w2, d_small = [], [], [], []
    for lp in params["decoder_layers"]:
        wvs, bvs, wos, bos = v_path(lp["self_attn"])
        wvc, bvc, woc, boc = v_path(lp["cross_attn"])
        d_wvs.append(wvs)
        d_wos.append(wos)
        d_wvc.append(wvc)
        d_woc.append(woc)
        d_w1.append(lp["linear1_w"].T)
        d_b1.append(lp["linear1_b"].reshape(1, -1))
        d_w2.append(lp["linear2_w"].T)
        d_small.append(jnp.stack([
            bvs, bos, bvc, boc, lp["linear2_b"],
            lp["norm1_g"], lp["norm1_b"],
            lp["norm2_g"], lp["norm2_b"],
            lp["norm3_g"], lp["norm3_b"],
            params["dec_norm_g"], params["dec_norm_b"]], axis=0))  # (13, D)
    dec = {"wvs": jnp.stack(d_wvs).astype(wd),
           "wos": jnp.stack(d_wos).astype(wd),
           "wvc": jnp.stack(d_wvc).astype(wd),
           "woc": jnp.stack(d_woc).astype(wd),
           "w1": jnp.stack(d_w1).astype(wd),
           "b1": jnp.stack(d_b1).astype(jnp.float32),
           "w2": jnp.stack(d_w2).astype(wd),
           "small": jnp.stack(d_small).astype(jnp.float32)}

    return {"emb_w": w_fold.astype(wd),
            "emb_small": emb_small.astype(jnp.float32),
            "enc": enc, "dec": dec,
            "fc_w": params["fc_w"].T.astype(jnp.float32),          # (D, n_cls)
            "fc_b": params["fc_b"].reshape(1, -1).astype(jnp.float32)}


# ----------------------------- forward -----------------------------

def vit_forward(x, prep, *, patch_size):
    B, C, H, W = x.shape
    p = patch_size
    hp, wp = H // p, W // p
    NP = hp * wp
    D = prep["fc_w"].shape[0]
    ncls = prep["fc_w"].shape[1]
    F = prep["enc"]["w1"].shape[2]

    # Patch extraction (pure input-layout transform, tiny):
    # (B, C, H, W) -> (B, NP*C*p*p) with per-row ordering (n, c, ph, pw)
    # matching the folded embedding weight.
    patches = (x.reshape(B, C, hp, p, wp, p)
                 .transpose(0, 2, 4, 1, 3, 5)
                 .reshape(B, NP * C * p * p))

    # ---- 1) embedding: folded matmul + bias + LayerNorm (grid-less call) ----
    emb = pl.pallas_call(
        functools.partial(_embed_kernel, eps=_EPS),
        out_shape=jax.ShapeDtypeStruct((B, D), jnp.float32),
    )(patches, prep["emb_w"], prep["emb_small"])

    # ---- 2) encoder stack: one call, grid over layers, activation in VMEM ----
    enc = prep["enc"]
    Le = enc["wv"].shape[0]
    mem = pl.pallas_call(
        functools.partial(_encoder_stack_kernel, eps=_EPS),
        out_shape=jax.ShapeDtypeStruct((B, D), jnp.float32),
        grid=(Le,),
        in_specs=[
            pl.BlockSpec((B, D), lambda l: (0, 0)),          # emb (resident)
            pl.BlockSpec((1, D, D), lambda l: (l, 0, 0)),    # self-attn V proj
            pl.BlockSpec((1, D, D), lambda l: (l, 0, 0)),    # self-attn out proj
            pl.BlockSpec((1, D, F), lambda l: (l, 0, 0)),    # linear1 W
            pl.BlockSpec((1, 1, F), lambda l: (l, 0, 0)),    # linear1 b
            pl.BlockSpec((1, F, D), lambda l: (l, 0, 0)),    # linear2 W
            pl.BlockSpec((1, 9, D), lambda l: (l, 0, 0)),    # packed small params
        ],
        out_specs=pl.BlockSpec((B, D), lambda l: (0, 0)),
        scratch_shapes=[pltpu.VMEM((B, D), jnp.float32)],
        compiler_params=pltpu.CompilerParams(dimension_semantics=("arbitrary",)),
    )(emb, enc["wv"], enc["wo"], enc["w1"], enc["b1"], enc["w2"], enc["small"])

    # ---- 3) decoder stack + final norm + mean(dim=1) + fc (one call) ----
    dec = prep["dec"]
    Ld = dec["wvs"].shape[0]
    logits = pl.pallas_call(
        functools.partial(_decoder_stack_kernel, eps=_EPS),
        out_shape=jax.ShapeDtypeStruct((B, ncls), jnp.float32),
        grid=(Ld,),
        in_specs=[
            pl.BlockSpec((B, D), lambda l: (0, 0)),          # tgt0 = emb
            pl.BlockSpec((B, D), lambda l: (0, 0)),          # encoder memory
            pl.BlockSpec((1, D, D), lambda l: (l, 0, 0)),    # self-attn V proj
            pl.BlockSpec((1, D, D), lambda l: (l, 0, 0)),    # self-attn out proj
            pl.BlockSpec((1, D, D), lambda l: (l, 0, 0)),    # cross-attn V proj
            pl.BlockSpec((1, D, D), lambda l: (l, 0, 0)),    # cross-attn out proj
            pl.BlockSpec((1, D, F), lambda l: (l, 0, 0)),    # linear1 W
            pl.BlockSpec((1, 1, F), lambda l: (l, 0, 0)),    # linear1 b
            pl.BlockSpec((1, F, D), lambda l: (l, 0, 0)),    # linear2 W
            pl.BlockSpec((1, 13, D), lambda l: (l, 0, 0)),   # packed small params
            pl.BlockSpec((D, ncls), lambda l: (0, 0)),       # fc W (resident)
            pl.BlockSpec((1, ncls), lambda l: (0, 0)),       # fc b (resident)
        ],
        out_specs=pl.BlockSpec((B, ncls), lambda l: (0, 0)),
        scratch_shapes=[pltpu.VMEM((B, D), jnp.float32)],
        compiler_params=pltpu.CompilerParams(dimension_semantics=("arbitrary",)),
    )(emb, mem, dec["wvs"], dec["wos"], dec["wvc"], dec["woc"],
      dec["w1"], dec["b1"], dec["w2"], dec["small"], prep["fc_w"], prep["fc_b"])
    return logits


if __name__ == "__main__":
    num_classes = 10
    patch_size = 4
    hidden_dim = 32
    num_heads = 4      # mathematically irrelevant for seq_len = 1 (V head split/merge = identity)
    num_layers = 2
    image_size = 16
    batch = 2

    key = jax.random.PRNGKey(0)
    kp, kx = jax.random.split(key)
    raw_params = init_params(kp, num_classes, patch_size, hidden_dim, num_heads,
                             num_layers, image_size)
    prep = prepare_params(raw_params, patch_size, image_size)
    x = jax.random.normal(kx, (batch, 3, image_size, image_size), jnp.float32)

    fwd = jax.jit(functools.partial(vit_forward, patch_size=patch_size))
    logits = jax.block_until_ready(fwd(x, prep))
    assert logits.shape == (batch, num_classes)
    assert bool(jnp.all(jnp.isfinite(logits)))
    print("KERNEL_OK")
</pallas_src>

<mosaic_0001>
module attributes {stable_mosaic.version = 11 : i64} {
  func.func @_embed_kernel(%arg0: memref<2x768xf32, #tpu.memory_space<vmem>>, %arg1: memref<768x32xbf16, #tpu.memory_space<vmem>>, %arg2: memref<3x32xf32, #tpu.memory_space<vmem>>, %arg3: memref<2x32xf32, #tpu.memory_space<vmem>>) attributes {dimension_semantics = [], scalar_prefetch = 0 : i64, scratch_operands = 0 : i64, tpu.core_type = #tpu.core_type<tc>} {
    %c0 = arith.constant 0 : index
    %c0_0 = arith.constant 0 : index
    %0 = vector.load %arg2[%c0, %c0_0] : memref<3x32xf32, #tpu.memory_space<vmem>>, vector<3x32xf32>
    %c0_1 = arith.constant 0 : index
    %c0_2 = arith.constant 0 : index
    %1 = vector.load %arg0[%c0_1, %c0_2] : memref<2x768xf32, #tpu.memory_space<vmem>>, vector<2x768xf32>
    %c0_3 = arith.constant 0 : index
    %c0_4 = arith.constant 0 : index
    %2 = vector.load %arg1[%c0_3, %c0_4] : memref<768x32xbf16, #tpu.memory_space<vmem>>, vector<768x32xbf16>
    %3 = arith.extf %2 : vector<768x32xbf16> to vector<768x32xf32>
    %cst = arith.constant dense<0.000000e+00> : vector<2x32xf32>
    %4 = tpu.matmul %1, %3, %cst {dimension_numbers = #tpu.dot_dimension_numbers<[1], [0], [0], [1], [0, 0, 1, 1], [], []>} : vector<2x768xf32>, vector<768x32xf32>, vector<2x32xf32> -> vector<2x32xf32>
    %5 = vector.extract_strided_slice %0 {offsets = [0, 0], sizes = [1, 32], strides = [1, 1]} : vector<3x32xf32> to vector<1x32xf32>
    %6 = vector.broadcast %5 : vector<1x32xf32> to vector<2x32xf32>
    %7 = arith.addf %4, %6 : vector<2x32xf32>
    %8 = vector.extract_strided_slice %0 {offsets = [1, 0], sizes = [1, 32], strides = [1, 1]} : vector<3x32xf32> to vector<1x32xf32>
    %9 = vector.extract_strided_slice %0 {offsets = [2, 0], sizes = [1, 32], strides = [1, 1]} : vector<3x32xf32> to vector<1x32xf32>
    %cst_5 = arith.constant dense<0.000000e+00> : vector<2xf32>
    %10 = vector.multi_reduction <add>, %7, %cst_5 [1] : vector<2x32xf32> to vector<2xf32>
    %11 = vector.shape_cast %10 : vector<2xf32> to vector<2x1xf32>
    %cst_6 = arith.constant 3.200000e+01 : f32
    %12 = vector.broadcast %cst_6 : f32 to vector<2x1xf32>
    %13 = arith.divf %11, %12 : vector<2x1xf32>
    %14 = vector.broadcast %13 : vector<2x1xf32> to vector<2x32xf32>
    %15 = arith.subf %7, %14 : vector<2x32xf32>
    %16 = arith.mulf %15, %15 : vector<2x32xf32>
    %cst_7 = arith.constant dense<0.000000e+00> : vector<2xf32>
    %17 = vector.multi_reduction <add>, %16, %cst_7 [1] : vector<2x32xf32> to vector<2xf32>
    %18 = vector.shape_cast %17 : vector<2xf32> to vector<2x1xf32>
    %cst_8 = arith.constant 3.200000e+01 : f32
    %19 = vector.broadcast %cst_8 : f32 to vector<2x1xf32>
    %20 = arith.divf %18, %19 : vector<2x1xf32>
    %21 = vector.broadcast %13 : vector<2x1xf32> to vector<2x32xf32>
    %22 = arith.subf %7, %21 : vector<2x32xf32>
    %cst_9 = arith.constant 9.99999974E-6 : f32
    %23 = vector.broadcast %cst_9 : f32 to vector<2x1xf32>
    %24 = arith.addf %20, %23 : vector<2x1xf32>
    %25 = math.rsqrt %24 : vector<2x1xf32>
    %26 = vector.broadcast %25 : vector<2x1xf32> to vector<2x32xf32>
    %27 = arith.mulf %22, %26 : vector<2x32xf32>
    %28 = vector.broadcast %8 : vector<1x32xf32> to vector<2x32xf32>
    %29 = arith.mulf %27, %28 : vector<2x32xf32>
    %30 = vector.broadcast %9 : vector<1x32xf32> to vector<2x32xf32>
    %31 = arith.addf %29, %30 : vector<2x32xf32>
    %c0_10 = arith.constant 0 : index
    %c0_11 = arith.constant 0 : index
    %32 = vector.load %arg3[%c0_10, %c0_11] : memref<2x32xf32, #tpu.memory_space<vmem>>, vector<2x32xf32>
    tpu.vector_store %arg3[%c0_10, %c0_11], %31 {strides = array<i32>} : memref<2x32xf32, #tpu.memory_space<vmem>>, vector<2x32xf32>,
    return
  }
}

module attributes {stable_mosaic.version = 11 : i64} {
  func.func @_encoder_stack_kernel(%arg0: i32, %arg1: memref<2x32xf32, #tpu.memory_space<vmem>>, %arg2: memref<1x32x32xbf16, #tpu.memory_space<vmem>>, %arg3: memref<1x32x32xbf16, #tpu.memory_space<vmem>>, %arg4: memref<1x32x2048xbf16, #tpu.memory_space<vmem>>, %arg5: memref<1x1x2048xf32, #tpu.memory_space<vmem>>, %arg6: memref<1x2048x32xbf16, #tpu.memory_space<vmem>>, %arg7: memref<1x9x32xf32, #tpu.memory_space<vmem>>, %arg8: memref<2x32xf32, #tpu.memory_space<vmem>>, %arg9: memref<2x32xf32, #tpu.memory_space<vmem>>) attributes {dimension_semantics = [#tpu.dimension_semantics<arbitrary>], iteration_bounds = array<i64: 2>, scalar_prefetch = 0 : i64, scratch_operands = 1 : i64, tpu.core_type = #tpu.core_type<tc>, window_params = [{pipeline_mode = #tpu.pipeline_mode<synchronous>, transform_indices = @transform_0, window_bounds = array<i64: 2, 32>}, {transform_indices = @transform_1, window_bounds = array<i64: 1, 32, 32>}, {transform_indices = @transform_2, window_bounds = array<i64: 1, 32, 32>}, {transform_indices = @transform_3, window_bounds = array<i64: 1, 32, 2048>}, {transform_indices = @transform_4, window_bounds = array<i64: 1, 1, 2048>}, {transform_indices = @transform_5, window_bounds = array<i64: 1, 2048, 32>}, {transform_indices = @transform_6, window_bounds = array<i64: 1, 9, 32>}, {pipeline_mode = #tpu.pipeline_mode<synchronous>, transform_indices = @transform_7, window_bounds = array<i64: 2, 32>}]} {
    %c0_i32 = arith.constant 0 : i32
    %0 = arith.cmpi eq, %arg0, %c0_i32 : i32
    %1 = arith.extui %0 : i1 to i32
    %c0_i32_0 = arith.constant 0 : i32
    %2 = arith.cmpi ne, %1, %c0_i32_0 : i32
    scf.if %2 {
      %c0_37 = arith.constant 0 : index
      %c0_38 = arith.constant 0 : index
      %93 = vector.load %arg1[%c0_37, %c0_38] : memref<2x32xf32, #tpu.memory_space<vmem>>, vector<2x32xf32>
      %c0_39 = arith.constant 0 : index
      %c0_40 = arith.constant 0 : index
      %94 = vector.load %arg9[%c0_39, %c0_40] : memref<2x32xf32, #tpu.memory_space<vmem>>, vector<2x32xf32>
      tpu.vector_store %arg9[%c0_39, %c0_40], %93 {strides = array<i32>} : memref<2x32xf32, #tpu.memory_space<vmem>>, vector<2x32xf32>,
    } else {
    }
    %c0 = arith.constant 0 : index
    %c0_1 = arith.constant 0 : index
    %3 = vector.load %arg9[%c0, %c0_1] : memref<2x32xf32, #tpu.memory_space<vmem>>, vector<2x32xf32>
    %c0_2 = arith.constant 0 : index
    %c0_3 = arith.constant 0 : index
    %c0_4 = arith.constant 0 : index
    %4 = vector.load %arg7[%c0_2, %c0_3, %c0_4] : memref<1x9x32xf32, #tpu.memory_space<vmem>>, vector<1x9x32xf32>
    %5 = vector.shape_cast %4 : vector<1x9x32xf32> to vector<9x32xf32>
    %6 = vector.extract_strided_slice %5 {offsets = [0, 0], sizes = [1, 32], strides = [1, 1]} : vector<9x32xf32> to vector<1x32xf32>
    %7 = vector.extract_strided_slice %5 {offsets = [1, 0], sizes = [1, 32], strides = [1, 1]} : vector<9x32xf32> to vector<1x32xf32>
    %8 = vector.extract_strided_slice %5 {offsets = [2, 0], sizes = [1, 32], strides = [1, 1]} : vector<9x32xf32> to vector<1x32xf32>
    %9 = vector.extract_strided_slice %5 {offsets = [3, 0], sizes = [1, 32], strides = [1, 1]} : vector<9x32xf32> to vector<1x32xf32>
    %10 = vector.extract_strided_slice %5 {offsets = [4, 0], sizes = [1, 32], strides = [1, 1]} : vector<9x32xf32> to vector<1x32xf32>
    %11 = vector.extract_strided_slice %5 {offsets = [5, 0], sizes = [1, 32], strides = [1, 1]} : vector<9x32xf32> to vector<1x32xf32>
    %12 = vector.extract_strided_slice %5 {offsets = [6, 0], sizes = [1, 32], strides = [1, 1]} : vector<9x32xf32> to vector<1x32xf32>
    %13 = vector.extract_strided_slice %5 {offsets = [7, 0], sizes = [1, 32], strides = [1, 1]} : vector<9x32xf32> to vector<1x32xf32>
    %14 = vector.extract_strided_slice %5 {offsets = [8, 0], sizes = [1, 32], strides = [1, 1]} : vector<9x32xf32> to vector<1x32xf32>
    %c0_5 = arith.constant 0 : index
    %c0_6 = arith.constant 0 : index
    %c0_7 = arith.constant 0 : index
    %15 = vector.load %arg2[%c0_5, %c0_6, %c0_7] : memref<1x32x32xbf16, #tpu.memory_space<vmem>>, vector<1x32x32xbf16>
    %16 = vector.shape_cast %15 : vector<1x32x32xbf16> to vector<32x32xbf16>
    %17 = arith.extf %16 : vector<32x32xbf16> to vector<32x32xf32>
    %cst = arith.constant dense<0.000000e+00> : vector<2x32xf32>
    %18 = tpu.matmul %3, %17, %cst {dimension_numbers = #tpu.dot_dimension_numbers<[1], [0], [0], [1], [0, 0, 1, 1], [], []>} : vector<2x32xf32>, vector<32x32xf32>, vector<2x32xf32> -> vector<2x32xf32>
    %19 = vector.broadcast %6 : vector<1x32xf32> to vector<2x32xf32>
    %20 = arith.addf %18, %19 : vector<2x32xf32>
    %c0_8 = arith.constant 0 : index
    %c0_9 = arith.constant 0 : index
    %c0_10 = arith.constant 0 : index
    %21 = vector.load %arg3[%c0_8, %c0_9, %c0_10] : memref<1x32x32xbf16, #tpu.memory_space<vmem>>, vector<1x32x32xbf16>
    %22 = vector.shape_cast %21 : vector<1x32x32xbf16> to vector<32x32xbf16>
    %23 = arith.extf %22 : vector<32x32xbf16> to vector<32x32xf32>
    %cst_11 = arith.constant dense<0.000000e+00> : vector<2x32xf32>
    %24 = tpu.matmul %20, %23, %cst_11 {dimension_numbers = #tpu.dot_dimension_numbers<[1], [0], [0], [1], [0, 0, 1, 1], [], []>} : vector<2x32xf32>, vector<32x32xf32>, vector<2x32xf32> -> vector<2x32xf32>
    %25 = vector.broadcast %7 : vector<1x32xf32> to vector<2x32xf32>
    %26 = arith.addf %24, %25 : vector<2x32xf32>
    %27 = arith.addf %3, %26 : vector<2x32xf32>
    %cst_12 = arith.constant dense<0.000000e+00> : vector<2xf32>
    %28 = vector.multi_reduction <add>, %27, %cst_12 [1] : vector<2x32xf32> to vector<2xf32>
    %29 = vector.shape_cast %28 : vector<2xf32> to vector<2x1xf32>
    %cst_13 = arith.constant 3.200000e+01 : f32
    %30 = vector.broadcast %cst_13 : f32 to vector<2x1xf32>
    %31 = arith.divf %29, %30 : vector<2x1xf32>
    %32 = vector.broadcast %31 : vector<2x1xf32> to vector<2x32xf32>
    %33 = arith.subf %27, %32 : vector<2x32xf32>
    %34 = arith.mulf %33, %33 : vector<2x32xf32>
    %cst_14 = arith.constant dense<0.000000e+00> : vector<2xf32>
    %35 = vector.multi_reduction <add>, %34, %cst_14 [1] : vector<2x32xf32> to vector<2xf32>
    %36 = vector.shape_cast %35 : vector<2xf32> to vector<2x1xf32>
    %cst_15 = arith.constant 3.200000e+01 : f32
    %37 = vector.broadcast %cst_15 : f32 to vector<2x1xf32>
    %38 = arith.divf %36, %37 : vector<2x1xf32>
    %39 = vector.broadcast %31 : vector<2x1xf32> to vector<2x32xf32>
    %40 = arith.subf %27, %39 : vector<2x32xf32>
    %cst_16 = arith.constant 9.99999974E-6 : f32
    %41 = vector.broadcast %cst_16 : f32 to vector<2x1xf32>
    %42 = arith.addf %38, %41 : vector<2x1xf32>
    %43 = math.rsqrt %42 : vector<2x1xf32>
    %44 = vector.broadcast %43 : vector<2x1xf32> to vector<2x32xf32>
    %45 = arith.mulf %40, %44 : vector<2x32xf32>
    %46 = vector.broadcast %9 : vector<1x32xf32> to vector<2x32xf32>
    %47 = arith.mulf %45, %46 : vector<2x32xf32>
    %48 = vector.broadcast %10 : vector<1x32xf32> to vector<2x32xf32>
    %49 = arith.addf %47, %48 : vector<2x32xf32>
    %c0_17 = arith.constant 0 : index
    %c0_18 = arith.constant 0 : index
    %c0_19 = arith.constant 0 : index
    %50 = vector.load %arg4[%c0_17, %c0_18, %c0_19] : memref<1x32x2048xbf16, #tpu.memory_space<vmem>>, vector<1x32x2048xbf16>
    %51 = vector.shape_cast %50 : vector<1x32x2048xbf16> to vector<32x2048xbf16>
    %52 = arith.extf %51 : vector<32x2048xbf16> to vector<32x2048xf32>
    %cst_20 = arith.constant dense<0.000000e+00> : vector<2x2048xf32>
    %53 = tpu.matmul %49, %52, %cst_20 {dimension_numbers = #tpu.dot_dimension_numbers<[1], [0], [0], [1], [0, 0, 1, 1], [], []>} : vector<2x32xf32>, vector<32x2048xf32>, vector<2x2048xf32> -> vector<2x2048xf32>
    %c0_21 = arith.constant 0 : index
    %c0_22 = arith.constant 0 : index
    %c0_23 = arith.constant 0 : index
    %54 = vector.load %arg5[%c0_21, %c0_22, %c0_23] : memref<1x1x2048xf32, #tpu.memory_space<vmem>>, vector<1x1x2048xf32>
    %55 = vector.shape_cast %54 : vector<1x1x2048xf32> to vector<1x2048xf32>
    %56 = vector.broadcast %55 : vector<1x2048xf32> to vector<2x2048xf32>
    %57 = arith.addf %53, %56 : vector<2x2048xf32>
    %cst_24 = arith.constant 0.000000e+00 : f32
    %58 = vector.broadcast %cst_24 : f32 to vector<2x2048xf32>
    %59 = arith.maximumf %57, %58 : vector<2x2048xf32>
    %c0_25 = arith.constant 0 : index
    %c0_26 = arith.constant 0 : index
    %c0_27 = arith.constant 0 : index
    %60 = vector.load %arg6[%c0_25, %c0_26, %c0_27] : memref<1x2048x32xbf16, #tpu.memory_space<vmem>>, vector<1x2048x32xbf16>
    %61 = vector.shape_cast %60 : vector<1x2048x32xbf16> to vector<2048x32xbf16>
    %62 = arith.extf %61 : vector<2048x32xbf16> to vector<2048x32xf32>
    %cst_28 = arith.constant dense<0.000000e+00> : vector<2x32xf32>
    %63 = tpu.matmul %59, %62, %cst_28 {dimension_numbers = #tpu.dot_dimension_numbers<[1], [0], [0], [1], [0, 0, 1, 1], [], []>} : vector<2x2048xf32>, vector<2048x32xf32>, vector<2x32xf32> -> vector<2x32xf32>
    %64 = vector.broadcast %8 : vector<1x32xf32> to vector<2x32xf32>
    %65 = arith.addf %63, %64 : vector<2x32xf32>
    %66 = arith.addf %49, %65 : vector<2x32xf32>
    %cst_29 = arith.constant dense<0.000000e+00> : vector<2xf32>
    %67 = vector.multi_reduction <add>, %66, %cst_29 [1] : vector<2x32xf32> to vector<2xf32>
    %68 = vector.shape_cast %67 : vector<2xf32> to vector<2x1xf32>
    %cst_30 = arith.constant 3.200000e+01 : f32
    %69 = vector.broadcast %cst_30 : f32 to vector<2x1xf32>
    %70 = arith.divf %68, %69 : vector<2x1xf32>
    %71 = vector.broadcast %70 : vector<2x1xf32> to vector<2x32xf32>
    %72 = arith.subf %66, %71 : vector<2x32xf32>
    %73 = arith.mulf %72, %72 : vector<2x32xf32>
    %cst_31 = arith.constant dense<0.000000e+00> : vector<2xf32>
    %74 = vector.multi_reduction <add>, %73, %cst_31 [1] : vector<2x32xf32> to vector<2xf32>
    %75 = vector.shape_cast %74 : vector<2xf32> to vector<2x1xf32>
    %cst_32 = arith.constant 3.200000e+01 : f32
    %76 = vector.broadcast %cst_32 : f32 to vector<2x1xf32>
    %77 = arith.divf %75, %76 : vector<2x1xf32>
    %78 = vector.broadcast %70 : vector<2x1xf32> to vector<2x32xf32>
    %79 = arith.subf %66, %78 : vector<2x32xf32>
    %cst_33 = arith.constant 9.99999974E-6 : f32
    %80 = vector.broadcast %cst_33 : f32 to vector<2x1xf32>
    %81 = arith.addf %77, %80 : vector<2x1xf32>
    %82 = math.rsqrt %81 : vector<2x1xf32>
    %83 = vector.broadcast %82 : vector<2x1xf32> to vector<2x32xf32>
    %84 = arith.mulf %79, %83 : vector<2x32xf32>
    %85 = vector.broadcast %11 : vector<1x32xf32> to vector<2x32xf32>
    %86 = arith.mulf %84, %85 : vector<2x32xf32>
    %87 = vector.broadcast %12 : vector<1x32xf32> to vector<2x32xf32>
    %88 = arith.addf %86, %87 : vector<2x32xf32>
    %c0_34 = arith.constant 0 : index
    %c0_35 = arith.constant 0 : index
    %89 = vector.load %arg9[%c0_34, %c0_35] : memref<2x32xf32, #tpu.memory_space<vmem>>, vector<2x32xf32>
    tpu.vector_store %arg9[%c0_34, %c0_35], %88 {strides = array<i32>} : memref<2x32xf32, #tpu.memory_space<vmem>>, vector<2x32xf32>,
    %c1_i32 = arith.constant 1 : i32
    %90 = arith.cmpi eq, %arg0, %c1_i32 : i32
    %91 = arith.extui %90 : i1 to i32
    %c0_i32_36 = arith.constant 0 : i32
    %92 = arith.cmpi ne, %91, %c0_i32_36 : i32
    scf.if %92 {
      %c0_37 = arith.constant 0 : index
      %c0_38 = arith.constant 0 : index
      %93 = vector.load %arg9[%c0_37, %c0_38] : memref<2x32xf32, #tpu.memory_space<vmem>>, vector<2x32xf32>
      %cst_39 = arith.constant dense<0.000000e+00> : vector<2xf32>
      %94 = vector.multi_reduction <add>, %93, %cst_39 [1] : vector<2x32xf32> to vector<2xf32>
      %95 = vector.shape_cast %94 : vector<2xf32> to vector<2x1xf32>
      %cst_40 = arith.constant 3.200000e+01 : f32
      %96 = vector.broadcast %cst_40 : f32 to vector<2x1xf32>
      %97 = arith.divf %95, %96 : vector<2x1xf32>
      %98 = vector.broadcast %97 : vector<2x1xf32> to vector<2x32xf32>
      %99 = arith.subf %93, %98 : vector<2x32xf32>
      %100 = arith.mulf %99, %99 : vector<2x32xf32>
      %cst_41 = arith.constant dense<0.000000e+00> : vector<2xf32>
      %101 = vector.multi_reduction <add>, %100, %cst_41 [1] : vector<2x32xf32> to vector<2xf32>
      %102 = vector.shape_cast %101 : vector<2xf32> to vector<2x1xf32>
      %cst_42 = arith.constant 3.200000e+01 : f32
      %103 = vector.broadcast %cst_42 : f32 to vector<2x1xf32>
      %104 = arith.divf %102, %103 : vector<2x1xf32>
      %105 = vector.broadcast %97 : vector<2x1xf32> to vector<2x32xf32>
      %106 = arith.subf %93, %105 : vector<2x32xf32>
      %cst_43 = arith.constant 9.99999974E-6 : f32
      %107 = vector.broadcast %cst_43 : f32 to vector<2x1xf32>
      %108 = arith.addf %104, %107 : vector<2x1xf32>
      %109 = math.rsqrt %108 : vector<2x1xf32>
      %110 = vector.broadcast %109 : vector<2x1xf32> to vector<2x32xf32>
      %111 = arith.mulf %106, %110 : vector<2x32xf32>
      %112 = vector.broadcast %13 : vector<1x32xf32> to vector<2x32xf32>
      %113 = arith.mulf %111, %112 : vector<2x32xf32>
      %114 = vector.broadcast %14 : vector<1x32xf32> to vector<2x32xf32>
      %115 = arith.addf %113, %114 : vector<2x32xf32>
      %c0_44 = arith.constant 0 : index
      %c0_45 = arith.constant 0 : index
      %116 = vector.load %arg8[%c0_44, %c0_45] : memref<2x32xf32, #tpu.memory_space<vmem>>, vector<2x32xf32>
      tpu.vector_store %arg8[%c0_44, %c0_45], %115 {strides = array<i32>} : memref<2x32xf32, #tpu.memory_space<vmem>>, vector<2x32xf32>,
    } else {
    }
    return
  }
  func.func @transform_0(%arg0: i32) -> (i32, i32) {
    %c0_i32 = arith.constant 0 : i32
    %c0_i32_0 = arith.constant 0 : i32
    %c0_i32_1 = arith.constant 0 : i32
    return %c0_i32, %c0_i32_0 : i32, i32
  }
  func.func @transform_1(%arg0: i32) -> (i32, i32, i32) {
    %c0_i32 = arith.constant 0 : i32
    %c0_i32_0 = arith.constant 0 : i32
    %c0_i32_1 = arith.constant 0 : i32
    return %arg0, %c0_i32, %c0_i32_0 : i32, i32, i32
  }
  func.func @transform_2(%arg0: i32) -> (i32, i32, i32) {
    %c0_i32 = arith.constant 0 : i32
    %c0_i32_0 = arith.constant 0 : i32
    %c0_i32_1 = arith.constant 0 : i32
    return %arg0, %c0_i32, %c0_i32_0 : i32, i32, i32
  }
  func.func @transform_3(%arg0: i32) -> (i32, i32, i32) {
    %c0_i32 = arith.constant 0 : i32
    %c0_i32_0 = arith.constant 0 : i32
    %c0_i32_1 = arith.constant 0 : i32
    return %arg0, %c0_i32, %c0_i32_0 : i32, i32, i32
  }
  func.func @transform_4(%arg0: i32) -> (i32, i32, i32) {
    %c0_i32 = arith.constant 0 : i32
    %c0_i32_0 = arith.constant 0 : i32
    %c0_i32_1 = arith.constant 0 : i32
    return %arg0, %c0_i32, %c0_i32_0 : i32, i32, i32
  }
  func.func @transform_5(%arg0: i32) -> (i32, i32, i32) {
    %c0_i32 = arith.constant 0 : i32
    %c0_i32_0 = arith.constant 0 : i32
    %c0_i32_1 = arith.constant 0 : i32
    return %arg0, %c0_i32, %c0_i32_0 : i32, i32, i32
  }
  func.func @transform_6(%arg0: i32) -> (i32, i32, i32) {
    %c0_i32 = arith.constant 0 : i32
    %c0_i32_0 = arith.constant 0 : i32
    %c0_i32_1 = arith.constant 0 : i32
    return %arg0, %c0_i32, %c0_i32_0 : i32, i32, i32
  }
  func.func @transform_7(%arg0: i32) -> (i32, i32) {
    %c0_i32 = arith.constant 0 : i32
    %c0_i32_0 = arith.constant 0 : i32
    %c0_i32_1 = arith.constant 0 : i32
    return %c0_i32, %c0_i32_0 : i32, i32
  }
}

module attributes {stable_mosaic.version = 11 : i64} {
  func.func @_decoder_stack_kernel(%arg0: i32, %arg1: memref<2x32xf32, #tpu.memory_space<vmem>>, %arg2: memref<2x32xf32, #tpu.memory_space<vmem>>, %arg3: memref<1x32x32xbf16, #tpu.memory_space<vmem>>, %arg4: memref<1x32x32xbf16, #tpu.memory_space<vmem>>, %arg5: memref<1x32x32xbf16, #tpu.memory_space<vmem>>, %arg6: memref<1x32x32xbf16, #tpu.memory_space<vmem>>, %arg7: memref<1x32x2048xbf16, #tpu.memory_space<vmem>>, %arg8: memref<1x1x2048xf32, #tpu.memory_space<vmem>>, %arg9: memref<1x2048x32xbf16, #tpu.memory_space<vmem>>, %arg10: memref<1x13x32xf32, #tpu.memory_space<vmem>>, %arg11: memref<32x10xf32, #tpu.memory_space<vmem>>, %arg12: memref<1x10xf32, #tpu.memory_space<vmem>>, %arg13: memref<2x10xf32, #tpu.memory_space<vmem>>, %arg14: memref<2x32xf32, #tpu.memory_space<vmem>>) attributes {dimension_semantics = [#tpu.dimension_semantics<arbitrary>], iteration_bounds = array<i64: 6>, scalar_prefetch = 0 : i64, scratch_operands = 1 : i64, tpu.core_type = #tpu.core_type<tc>, window_params = [{pipeline_mode = #tpu.pipeline_mode<synchronous>, transform_indices = @transform_0, window_bounds = array<i64: 2, 32>}, {pipeline_mode = #tpu.pipeline_mode<synchronous>, transform_indices = @transform_1, window_bounds = array<i64: 2, 32>}, {transform_indices = @transform_2, window_bounds = array<i64: 1, 32, 32>}, {transform_indices = @transform_3, window_bounds = array<i64: 1, 32, 32>}, {transform_indices = @transform_4, window_bounds = array<i64: 1, 32, 32>}, {transform_indices = @transform_5, window_bounds = array<i64: 1, 32, 32>}, {transform_indices = @transform_6, window_bounds = array<i64: 1, 32, 2048>}, {transform_indices = @transform_7, window_bounds = array<i64: 1, 1, 2048>}, {transform_indices = @transform_8, window_bounds = array<i64: 1, 2048, 32>}, {transform_indices = @transform_9, window_bounds = array<i64: 1, 13, 32>}, {pipeline_mode = #tpu.pipeline_mode<synchronous>, transform_indices = @transform_10, window_bounds = array<i64: 32, 10>}, {pipeline_mode = #tpu.pipeline_mode<synchronous>, transform_indices = @transform_11, window_bounds = array<i64: 1, 10>}, {pipeline_mode = #tpu.pipeline_mode<synchronous>, transform_indices = @transform_12, window_bounds = array<i64: 2, 10>}]} {
    %c0_i32 = arith.constant 0 : i32
    %0 = arith.cmpi eq, %arg0, %c0_i32 : i32
    %1 = arith.extui %0 : i1 to i32
    %c0_i32_0 = arith.constant 0 : i32
    %2 = arith.cmpi ne, %1, %c0_i32_0 : i32
    scf.if %2 {
      %c0_52 = arith.constant 0 : index
      %c0_53 = arith.constant 0 : index
      %133 = vector.load %arg1[%c0_52, %c0_53] : memref<2x32xf32, #tpu.memory_space<vmem>>, vector<2x32xf32>
      %c0_54 = arith.constant 0 : index
      %c0_55 = arith.constant 0 : index
      %134 = vector.load %arg14[%c0_54, %c0_55] : memref<2x32xf32, #tpu.memory_space<vmem>>, vector<2x32xf32>
      tpu.vector_store %arg14[%c0_54, %c0_55], %133 {strides = array<i32>} : memref<2x32xf32, #tpu.memory_space<vmem>>, vector<2x32xf32>,
    } else {
    }
    %c0 = arith.constant 0 : index
    %c0_1 = arith.constant 0 : index
    %3 = vector.load %arg14[%c0, %c0_1] : memref<2x32xf32, #tpu.memory_space<vmem>>, vector<2x32xf32>
    %c0_2 = arith.constant 0 : index
    %c0_3 = arith.constant 0 : index
    %4 = vector.load %arg2[%c0_2, %c0_3] : memref<2x32xf32, #tpu.memory_space<vmem>>, vector<2x32xf32>
    %c0_4 = arith.constant 0 : index
    %c0_5 = arith.constant 0 : index
    %c0_6 = arith.constant 0 : index
    %5 = vector.load %arg10[%c0_4, %c0_5, %c0_6] : memref<1x13x32xf32, #tpu.memory_space<vmem>>, vector<1x13x32xf32>
    %6 = vector.shape_cast %5 : vector<1x13x32xf32> to vector<13x32xf32>
    %7 = vector.extract_strided_slice %6 {offsets = [0, 0], sizes = [1, 32], strides = [1, 1]} : vector<13x32xf32> to vector<1x32xf32>
    %8 = vector.extract_strided_slice %6 {offsets = [1, 0], sizes = [1, 32], strides = [1, 1]} : vector<13x32xf32> to vector<1x32xf32>
    %9 = vector.extract_strided_slice %6 {offsets = [2, 0], sizes = [1, 32], strides = [1, 1]} : vector<13x32xf32> to vector<1x32xf32>
    %10 = vector.extract_strided_slice %6 {offsets = [3, 0], sizes = [1, 32], strides = [1, 1]} : vector<13x32xf32> to vector<1x32xf32>
    %11 = vector.extract_strided_slice %6 {offsets = [4, 0], sizes = [1, 32], strides = [1, 1]} : vector<13x32xf32> to vector<1x32xf32>
    %12 = vector.extract_strided_slice %6 {offsets = [5, 0], sizes = [1, 32], strides = [1, 1]} : vector<13x32xf32> to vector<1x32xf32>
    %13 = vector.extract_strided_slice %6 {offsets = [6, 0], sizes = [1, 32], strides = [1, 1]} : vector<13x32xf32> to vector<1x32xf32>
    %14 = vector.extract_strided_slice %6 {offsets = [7, 0], sizes = [1, 32], strides = [1, 1]} : vector<13x32xf32> to vector<1x32xf32>
    %15 = vector.extract_strided_slice %6 {offsets = [8, 0], sizes = [1, 32], strides = [1, 1]} : vector<13x32xf32> to vector<1x32xf32>
    %16 = vector.extract_strided_slice %6 {offsets = [9, 0], sizes = [1, 32], strides = [1, 1]} : vector<13x32xf32> to vector<1x32xf32>
    %17 = vector.extract_strided_slice %6 {offsets = [10, 0], sizes = [1, 32], strides = [1, 1]} : vector<13x32xf32> to vector<1x32xf32>
    %18 = vector.extract_strided_slice %6 {offsets = [11, 0], sizes = [1, 32], strides = [1, 1]} : vector<13x32xf32> to vector<1x32xf32>
    %19 = vector.extract_strided_slice %6 {offsets = [12, 0], sizes = [1, 32], strides = [1, 1]} : vector<13x32xf32> to vector<1x32xf32>
    %c0_7 = arith.constant 0 : index
    %c0_8 = arith.constant 0 : index
    %c0_9 = arith.constant 0 : index
    %20 = vector.load %arg3[%c0_7, %c0_8, %c0_9] : memref<1x32x32xbf16, #tpu.memory_space<vmem>>, vector<1x32x32xbf16>
    %21 = vector.shape_cast %20 : vector<1x32x32xbf16> to vector<32x32xbf16>
    %22 = arith.extf %21 : vector<32x32xbf16> to vector<32x32xf32>
    %cst = arith.constant dense<0.000000e+00> : vector<2x32xf32>
    %23 = tpu.matmul %3, %22, %cst {dimension_numbers = #tpu.dot_dimension_numbers<[1], [0], [0], [1], [0, 0, 1, 1], [], []>} : vector<2x32xf32>, vector<32x32xf32>, vector<2x32xf32> -> vector<2x32xf32>
    %24 = vector.broadcast %7 : vector<1x32xf32> to vector<2x32xf32>
    %25 = arith.addf %23, %24 : vector<2x32xf32>
    %c0_10 = arith.constant 0 : index
    %c0_11 = arith.constant 0 : index
    %c0_12 = arith.constant 0 : index
    %26 = vector.load %arg4[%c0_10, %c0_11, %c0_12] : memref<1x32x32xbf16, #tpu.memory_space<vmem>>, vector<1x32x32xbf16>
    %27 = vector.shape_cast %26 : vector<1x32x32xbf16> to vector<32x32xbf16>
    %28 = arith.extf %27 : vector<32x32xbf16> to vector<32x32xf32>
    %cst_13 = arith.constant dense<0.000000e+00> : vector<2x32xf32>
    %29 = tpu.matmul %25, %28, %cst_13 {dimension_numbers = #tpu.dot_dimension_numbers<[1], [0], [0], [1], [0, 0, 1, 1], [], []>} : vector<2x32xf32>, vector<32x32xf32>, vector<2x32xf32> -> vector<2x32xf32>
    %30 = vector.broadcast %8 : vector<1x32xf32> to vector<2x32xf32>
    %31 = arith.addf %29, %30 : vector<2x32xf32>
    %32 = arith.addf %3, %31 : vector<2x32xf32>
    %cst_14 = arith.constant dense<0.000000e+00> : vector<2xf32>
    %33 = vector.multi_reduction <add>, %32, %cst_14 [1] : vector<2x32xf32> to vector<2xf32>
    %34 = vector.shape_cast %33 : vector<2xf32> to vector<2x1xf32>
    %cst_15 = arith.constant 3.200000e+01 : f32
    %35 = vector.broadcast %cst_15 : f32 to vector<2x1xf32>
    %36 = arith.divf %34, %35 : vector<2x1xf32>
    %37 = vector.broadcast %36 : vector<2x1xf32> to vector<2x32xf32>
    %38 = arith.subf %32, %37 : vector<2x32xf32>
    %39 = arith.mulf %38, %38 : vector<2x32xf32>
    %cst_16 = arith.constant dense<0.000000e+00> : vector<2xf32>
    %40 = vector.multi_reduction <add>, %39, %cst_16 [1] : vector<2x32xf32> to vector<2xf32>
    %41 = vector.shape_cast %40 : vector<2xf32> to vector<2x1xf32>
    %cst_17 = arith.constant 3.200000e+01 : f32
    %42 = vector.broadcast %cst_17 : f32 to vector<2x1xf32>
    %43 = arith.divf %41, %42 : vector<2x1xf32>
    %44 = vector.broadcast %36 : vector<2x1xf32> to vector<2x32xf32>
    %45 = arith.subf %32, %44 : vector<2x32xf32>
    %cst_18 = arith.constant 9.99999974E-6 : f32
    %46 = vector.broadcast %cst_18 : f32 to vector<2x1xf32>
    %47 = arith.addf %43, %46 : vector<2x1xf32>
    %48 = math.rsqrt %47 : vector<2x1xf32>
    %49 = vector.broadcast %48 : vector<2x1xf32> to vector<2x32xf32>
    %50 = arith.mulf %45, %49 : vector<2x32xf32>
    %51 = vector.broadcast %12 : vector<1x32xf32> to vector<2x32xf32>
    %52 = arith.mulf %50, %51 : vector<2x32xf32>
    %53 = vector.broadcast %13 : vector<1x32xf32> to vector<2x32xf32>
    %54 = arith.addf %52, %53 : vector<2x32xf32>
    %c0_19 = arith.constant 0 : index
    %c0_20 = arith.constant 0 : index
    %c0_21 = arith.constant 0 : index
    %55 = vector.load %arg5[%c0_19, %c0_20, %c0_21] : memref<1x32x32xbf16, #tpu.memory_space<vmem>>, vector<1x32x32xbf16>
    %56 = vector.shape_cast %55 : vector<1x32x32xbf16> to vector<32x32xbf16>
    %57 = arith.extf %56 : vector<32x32xbf16> to vector<32x32xf32>
    %cst_22 = arith.constant dense<0.000000e+00> : vector<2x32xf32>
    %58 = tpu.matmul %4, %57, %cst_22 {dimension_numbers = #tpu.dot_dimension_numbers<[1], [0], [0], [1], [0, 0, 1, 1], [], []>} : vector<2x32xf32>, vector<32x32xf32>, vector<2x32xf32> -> vector<2x32xf32>
    %59 = vector.broadcast %9 : vector<1x32xf32> to vector<2x32xf32>
    %60 = arith.addf %58, %59 : vector<2x32xf32>
    %c0_23 = arith.constant 0 : index
    %c0_24 = arith.constant 0 : index
    %c0_25 = arith.constant 0 : index
    %61 = vector.load %arg6[%c0_23, %c0_24, %c0_25] : memref<1x32x32xbf16, #tpu.memory_space<vmem>>, vector<1x32x32xbf16>
    %62 = vector.shape_cast %61 : vector<1x32x32xbf16> to vector<32x32xbf16>
    %63 = arith.extf %62 : vector<32x32xbf16> to vector<32x32xf32>
    %cst_26 = arith.constant dense<0.000000e+00> : vector<2x32xf32>
    %64 = tpu.matmul %60, %63, %cst_26 {dimension_numbers = #tpu.dot_dimension_numbers<[1], [0], [0], [1], [0, 0, 1, 1], [], []>} : vector<2x32xf32>, vector<32x32xf32>, vector<2x32xf32> -> vector<2x32xf32>
    %65 = vector.broadcast %10 : vector<1x32xf32> to vector<2x32xf32>
    %66 = arith.addf %64, %65 : vector<2x32xf32>
    %67 = arith.addf %54, %66 : vector<2x32xf32>
    %cst_27 = arith.constant dense<0.000000e+00> : vector<2xf32>
    %68 = vector.multi_reduction <add>, %67, %cst_27 [1] : vector<2x32xf32> to vector<2xf32>
    %69 = vector.shape_cast %68 : vector<2xf32> to vector<2x1xf32>
    %cst_28 = arith.constant 3.200000e+01 : f32
    %70 = vector.broadcast %cst_28 : f32 to vector<2x1xf32>
    %71 = arith.divf %69, %70 : vector<2x1xf32>
    %72 = vector.broadcast %71 : vector<2x1xf32> to vector<2x32xf32>
    %73 = arith.subf %67, %72 : vector<2x32xf32>
    %74 = arith.mulf %73, %73 : vector<2x32xf32>
    %cst_29 = arith.constant dense<0.000000e+00> : vector<2xf32>
    %75 = vector.multi_reduction <add>, %74, %cst_29 [1] : vector<2x32xf32> to vector<2xf32>
    %76 = vector.shape_cast %75 : vector<2xf32> to vector<2x1xf32>
    %cst_30 = arith.constant 3.200000e+01 : f32
    %77 = vector.broadcast %cst_30 : f32 to vector<2x1xf32>
    %78 = arith.divf %76, %77 : vector<2x1xf32>
    %79 = vector.broadcast %71 : vector<2x1xf32> to vector<2x32xf32>
    %80 = arith.subf %67, %79 : vector<2x32xf32>
    %cst_31 = arith.constant 9.99999974E-6 : f32
    %81 = vector.broadcast %cst_31 : f32 to vector<2x1xf32>
    %82 = arith.addf %78, %81 : vector<2x1xf32>
    %83 = math.rsqrt %82 : vector<2x1xf32>
    %84 = vector.broadcast %83 : vector<2x1xf32> to vector<2x32xf32>
    %85 = arith.mulf %80, %84 : vector<2x32xf32>
    %86 = vector.broadcast %14 : vector<1x32xf32> to vector<2x32xf32>
    %87 = arith.mulf %85, %86 : vector<2x32xf32>
    %88 = vector.broadcast %15 : vector<1x32xf32> to vector<2x32xf32>
    %89 = arith.addf %87, %88 : vector<2x32xf32>
    %c0_32 = arith.constant 0 : index
    %c0_33 = arith.constant 0 : index
    %c0_34 = arith.constant 0 : index
    %90 = vector.load %arg7[%c0_32, %c0_33, %c0_34] : memref<1x32x2048xbf16, #tpu.memory_space<vmem>>, vector<1x32x2048xbf16>
    %91 = vector.shape_cast %90 : vector<1x32x2048xbf16> to vector<32x2048xbf16>
    %92 = arith.extf %91 : vector<32x2048xbf16> to vector<32x2048xf32>
    %cst_35 = arith.constant dense<0.000000e+00> : vector<2x2048xf32>
    %93 = tpu.matmul %89, %92, %cst_35 {dimension_numbers = #tpu.dot_dimension_numbers<[1], [0], [0], [1], [0, 0, 1, 1], [], []>} : vector<2x32xf32>, vector<32x2048xf32>, vector<2x2048xf32> -> vector<2x2048xf32>
    %c0_36 = arith.constant 0 : index
    %c0_37 = arith.constant 0 : index
    %c0_38 = arith.constant 0 : index
    %94 = vector.load %arg8[%c0_36, %c0_37, %c0_38] : memref<1x1x2048xf32, #tpu.memory_space<vmem>>, vector<1x1x2048xf32>
    %95 = vector.shape_cast %94 : vector<1x1x2048xf32> to vector<1x2048xf32>
    %96 = vector.broadcast %95 : vector<1x2048xf32> to vector<2x2048xf32>
    %97 = arith.addf %93, %96 : vector<2x2048xf32>
    %cst_39 = arith.constant 0.000000e+00 : f32
    %98 = vector.broadcast %cst_39 : f32 to vector<2x2048xf32>
    %99 = arith.maximumf %97, %98 : vector<2x2048xf32>
    %c0_40 = arith.constant 0 : index
    %c0_41 = arith.constant 0 : index
    %c0_42 = arith.constant 0 : index
    %100 = vector.load %arg9[%c0_40, %c0_41, %c0_42] : memref<1x2048x32xbf16, #tpu.memory_space<vmem>>, vector<1x2048x32xbf16>
    %101 = vector.shape_cast %100 : vector<1x2048x32xbf16> to vector<2048x32xbf16>
    %102 = arith.extf %101 : vector<2048x32xbf16> to vector<2048x32xf32>
    %cst_43 = arith.constant dense<0.000000e+00> : vector<2x32xf32>
    %103 = tpu.matmul %99, %102, %cst_43 {dimension_numbers = #tpu.dot_dimension_numbers<[1], [0], [0], [1], [0, 0, 1, 1], [], []>} : vector<2x2048xf32>, vector<2048x32xf32>, vector<2x32xf32> -> vector<2x32xf32>
    %104 = vector.broadcast %11 : vector<1x32xf32> to vector<2x32xf32>
    %105 = arith.addf %103, %104 : vector<2x32xf32>
    %106 = arith.addf %89, %105 : vector<2x32xf32>
    %cst_44 = arith.constant dense<0.000000e+00> : vector<2xf32>
    %107 = vector.multi_reduction <add>, %106, %cst_44 [1] : vector<2x32xf32> to vector<2xf32>
    %108 = vector.shape_cast %107 : vector<2xf32> to vector<2x1xf32>
    %cst_45 = arith.constant 3.200000e+01 : f32
    %109 = vector.broadcast %cst_45 : f32 to vector<2x1xf32>
    %110 = arith.divf %108, %109 : vector<2x1xf32>
    %111 = vector.broadcast %110 : vector<2x1xf32> to vector<2x32xf32>
    %112 = arith.subf %106, %111 : vector<2x32xf32>
    %113 = arith.mulf %112, %112 : vector<2x32xf32>
    %cst_46 = arith.constant dense<0.000000e+00> : vector<2xf32>
    %114 = vector.multi_reduction <add>, %113, %cst_46 [1] : vector<2x32xf32> to vector<2xf32>
    %115 = vector.shape_cast %114 : vector<2xf32> to vector<2x1xf32>
    %cst_47 = arith.constant 3.200000e+01 : f32
    %116 = vector.broadcast %cst_47 : f32 to vector<2x1xf32>
    %117 = arith.divf %115, %116 : vector<2x1xf32>
    %118 = vector.broadcast %110 : vector<2x1xf32> to vector<2x32xf32>
    %119 = arith.subf %106, %118 : vector<2x32xf32>
    %cst_48 = arith.constant 9.99999974E-6 : f32
    %120 = vector.broadcast %cst_48 : f32 to vector<2x1xf32>
    %121 = arith.addf %117, %120 : vector<2x1xf32>
    %122 = math.rsqrt %121 : vector<2x1xf32>
    %123 = vector.broadcast %122 : vector<2x1xf32> to vector<2x32xf32>
    %124 = arith.mulf %119, %123 : vector<2x32xf32>
    %125 = vector.broadcast %16 : vector<1x32xf32> to vector<2x32xf32>
    %126 = arith.mulf %124, %125 : vector<2x32xf32>
    %127 = vector.broadcast %17 : vector<1x32xf32> to vector<2x32xf32>
    %128 = arith.addf %126, %127 : vector<2x32xf32>
    %c0_49 = arith.constant 0 : index
    %c0_50 = arith.constant 0 : index
    %129 = vector.load %arg14[%c0_49, %c0_50] : memref<2x32xf32, #tpu.memory_space<vmem>>, vector<2x32xf32>
    tpu.vector_store %arg14[%c0_49, %c0_50], %128 {strides = array<i32>} : memref<2x32xf32, #tpu.memory_space<vmem>>, vector<2x32xf32>,
    %c5_i32 = arith.constant 5 : i32
    %130 = arith.cmpi eq, %arg0, %c5_i32 : i32
    %131 = arith.extui %130 : i1 to i32
    %c0_i32_51 = arith.constant 0 : i32
    %132 = arith.cmpi ne, %131, %c0_i32_51 : i32
    scf.if %132 {
      %c0_52 = arith.constant 0 : index
      %c0_53 = arith.constant 0 : index
      %133 = vector.load %arg14[%c0_52, %c0_53] : memref<2x32xf32, #tpu.memory_space<vmem>>, vector<2x32xf32>
      %cst_54 = arith.constant dense<0.000000e+00> : vector<2xf32>
      %134 = vector.multi_reduction <add>, %133, %cst_54 [1] : vector<2x32xf32> to vector<2xf32>
      %135 = vector.shape_cast %134 : vector<2xf32> to vector<2x1xf32>
      %cst_55 = arith.constant 3.200000e+01 : f32
      %136 = vector.broadcast %cst_55 : f32 to vector<2x1xf32>
      %137 = arith.divf %135, %136 : vector<2x1xf32>
      %138 = vector.broadcast %137 : vector<2x1xf32> to vector<2x32xf32>
      %139 = arith.subf %133, %138 : vector<2x32xf32>
      %140 = arith.mulf %139, %139 : vector<2x32xf32>
      %cst_56 = arith.constant dense<0.000000e+00> : vector<2xf32>
      %141 = vector.multi_reduction <add>, %140, %cst_56 [1] : vector<2x32xf32> to vector<2xf32>
      %142 = vector.shape_cast %141 : vector<2xf32> to vector<2x1xf32>
      %cst_57 = arith.constant 3.200000e+01 : f32
      %143 = vector.broadcast %cst_57 : f32 to vector<2x1xf32>
      %144 = arith.divf %142, %143 : vector<2x1xf32>
      %145 = vector.broadcast %137 : vector<2x1xf32> to vector<2x32xf32>
      %146 = arith.subf %133, %145 : vector<2x32xf32>
      %cst_58 = arith.constant 9.99999974E-6 : f32
      %147 = vector.broadcast %cst_58 : f32 to vector<2x1xf32>
      %148 = arith.addf %144, %147 : vector<2x1xf32>
      %149 = math.rsqrt %148 : vector<2x1xf32>
      %150 = vector.broadcast %149 : vector<2x1xf32> to vector<2x32xf32>
      %151 = arith.mulf %146, %150 : vector<2x32xf32>
      %152 = vector.broadcast %18 : vector<1x32xf32> to vector<2x32xf32>
      %153 = arith.mulf %151, %152 : vector<2x32xf32>
      %154 = vector.broadcast %19 : vector<1x32xf32> to vector<2x32xf32>
      %155 = arith.addf %153, %154 : vector<2x32xf32>
      %c0_59 = arith.constant 0 : index
      %c0_60 = arith.constant 0 : index
      %156 = vector.load %arg11[%c0_59, %c0_60] : memref<32x10xf32, #tpu.memory_space<vmem>>, vector<32x10xf32>
      %cst_61 = arith.constant dense<0.000000e+00> : vector<2x10xf32>
      %157 = tpu.matmul %155, %156, %cst_61 {dimension_numbers = #tpu.dot_dimension_numbers<[1], [0], [0], [1], [0, 0, 1, 1], [], []>} : vector<2x32xf32>, vector<32x10xf32>, vector<2x10xf32> -> vector<2x10xf32>
      %c0_62 = arith.constant 0 : index
      %c0_63 = arith.constant 0 : index
      %158 = vector.load %arg12[%c0_62, %c0_63] : memref<1x10xf32, #tpu.memory_space<vmem>>, vector<1x10xf32>
      %159 = vector.broadcast %158 : vector<1x10xf32> to vector<2x10xf32>
      %160 = arith.addf %157, %159 : vector<2x10xf32>
      %c0_64 = arith.constant 0 : index
      %c0_65 = arith.constant 0 : index
      %161 = vector.load %arg13[%c0_64, %c0_65] : memref<2x10xf32, #tpu.memory_space<vmem>>, vector<2x10xf32>
      tpu.vector_store %arg13[%c0_64, %c0_65], %160 {strides = array<i32>} : memref<2x10xf32, #tpu.memory_space<vmem>>, vector<2x10xf32>,
    } else {
    }
    return
  }
  func.func @transform_0(%arg0: i32) -> (i32, i32) {
    %c0_i32 = arith.constant 0 : i32
    %c0_i32_0 = arith.constant 0 : i32
    %c0_i32_1 = arith.constant 0 : i32
    return %c0_i32, %c0_i32_0 : i32, i32
  }
  func.func @transform_1(%arg0: i32) -> (i32, i32) {
    %c0_i32 = arith.constant 0 : i32
    %c0_i32_0 = arith.constant 0 : i32
    %c0_i32_1 = arith.constant 0 : i32
    return %c0_i32, %c0_i32_0 : i32, i32
  }
  func.func @transform_2(%arg0: i32) -> (i32, i32, i32) {
    %c0_i32 = arith.constant 0 : i32
    %c0_i32_0 = arith.constant 0 : i32
    %c0_i32_1 = arith.constant 0 : i32
    return %arg0, %c0_i32, %c0_i32_0 : i32, i32, i32
  }
  func.func @transform_3(%arg0: i32) -> (i32, i32, i32) {
    %c0_i32 = arith.constant 0 : i32
    %c0_i32_0 = arith.constant 0 : i32
    %c0_i32_1 = arith.constant 0 : i32
    return %arg0, %c0_i32, %c0_i32_0 : i32, i32, i32
  }
  func.func @transform_4(%arg0: i32) -> (i32, i32, i32) {
    %c0_i32 = arith.constant 0 : i32
    %c0_i32_0 = arith.constant 0 : i32
    %c0_i32_1 = arith.constant 0 : i32
    return %arg0, %c0_i32, %c0_i32_0 : i32, i32, i32
  }
  func.func @transform_5(%arg0: i32) -> (i32, i32, i32) {
    %c0_i32 = arith.constant 0 : i32
    %c0_i32_0 = arith.constant 0 : i32
    %c0_i32_1 = arith.constant 0 : i32
    return %arg0, %c0_i32, %c0_i32_0 : i32, i32, i32
  }
  func.func @transform_6(%arg0: i32) -> (i32, i32, i32) {
    %c0_i32 = arith.constant 0 : i32
    %c0_i32_0 = arith.constant 0 : i32
    %c0_i32_1 = arith.constant 0 : i32
    return %arg0, %c0_i32, %c0_i32_0 : i32, i32, i32
  }
  func.func @transform_7(%arg0: i32) -> (i32, i32, i32) {
    %c0_i32 = arith.constant 0 : i32
    %c0_i32_0 = arith.constant 0 : i32
    %c0_i32_1 = arith.constant 0 : i32
    return %arg0, %c0_i32, %c0_i32_0 : i32, i32, i32
  }
  func.func @transform_8(%arg0: i32) -> (i32, i32, i32) {
    %c0_i32 = arith.constant 0 : i32
    %c0_i32_0 = arith.constant 0 : i32
    %c0_i32_1 = arith.constant 0 : i32
    return %arg0, %c0_i32, %c0_i32_0 : i32, i32, i32
  }
  func.func @transform_9(%arg0: i32) -> (i32, i32, i32) {
    %c0_i32 = arith.constant 0 : i32
    %c0_i32_0 = arith.constant 0 : i32
    %c0_i32_1 = arith.constant 0 : i32
    return %arg0, %c0_i32, %c0_i32_0 : i32, i32, i32
  }
  func.func @transform_10(%arg0: i32) -> (i32, i32) {
    %c0_i32 = arith.constant 0 : i32
    %c0_i32_0 = arith.constant 0 : i32
    %c0_i32_1 = arith.constant 0 : i32
    return %c0_i32, %c0_i32_0 : i32, i32
  }
  func.func @transform_11(%arg0: i32) -> (i32, i32) {
    %c0_i32 = arith.constant 0 : i32
    %c0_i32_0 = arith.constant 0 : i32
    %c0_i32_1 = arith.constant 0 : i32
    return %c0_i32, %c0_i32_0 : i32, i32
  }
  func.func @transform_12(%arg0: i32) -> (i32, i32) {
    %c0_i32 = arith.constant 0 : i32
    %c0_i32_0 = arith.constant 0 : i32
    %c0_i32_1 = arith.constant 0 : i32
    return %c0_i32, %c0_i32_0 : i32, i32
  }
}

</mosaic_0001>

<llo_original>
// kernel: vit_forward.3
$region0: #{vit_forward.3}
  #allocation0 [shape = 'u32[]', space=smem, size = 0x4, offset = 0x4, fixed_abs, tag = 'smem constant byte address 0x4 - core index']
  #allocation1 [shape = 'u32[144,128]{1,0:T(1,128)}', space=vmem, size = 0x12000, scoped, tag = 'internal scratch']
  %s0 = inlined_call_operand.vmem [shape: f32[2,768], index: 0, kind: input, shape index: {}]
  %s1 = inlined_call_operand.vmem [shape: bf16[768,32], index: 1, kind: input, shape index: {}]
  %s2 = inlined_call_operand.hbm [shape: f32[3,32], index: 2, kind: input, shape index: {}]
  %s3 = inlined_call_operand.vmem [shape: f32[2,32], index: 3, kind: output, shape index: {}]
  %s4 = sld [smem:[#allocation0]]
  $region26: #{vit_forward.3} parent=0
    _
  %s6 = ssub.s32 1, %s4
  %s7 = scalar_select 0, %s6, %s4
  $region1: #{vit_forward.3} parent=0
    #allocation2 [shape = 'u8[2048]{0}', space=vmem, size = 0x800, scoped, tag = 'input window, operand 2, single buffered']
    #allocation3 [shape = 's32[1]{0}', space=sflag, size = 0x4, scoped, tag = 'scoped memory for vit_forward.3']
    %8 = vsyncpa [#allocation3], 0
    // Predicated region
    $region2: #{vit_forward.3} parent=1 // pred_check
      _
    $region3: #{vit_forward.3} parent=1 // pred_check_branch
      %10 = sbr.rel (0) target = $region5
    $region4: #{vit_forward.3} parent=1 // pred_region
      _
    $region5: #{vit_forward.3} parent=1 // pred_fallthru
      _
    // Predicated region
    $region6: #{vit_forward.3} parent=1 // pred_check
      _
    $region7: #{vit_forward.3} parent=1 // pred_check_branch
      %12 = sbr.rel (0) target = $region9
    $region8: #{vit_forward.3} parent=1 // pred_region
      _
    $region9: #{vit_forward.3} parent=1 // pred_fallthru
      _
    // Predicated region
    $region10: #{vit_forward.3} parent=1 // pred_check
      _
    $region11: #{vit_forward.3} parent=1 // pred_check_branch
      %14 = sbr.rel (0) target = $region13
    $region12: #{vit_forward.3} parent=1 // pred_region
      %s16 = ssub.s32 64, 64
      %17 = vsyncadd [#allocation3], %s16
      %s19 = sshll.u32 [#allocation2], 4
      %s20 = int_to_ptr.vmem [resolvable:$true] %s19
      %22 = dma.hbm_to_vmem [thread:$0]  %s2, 64, %s20, [#allocation3]
    $region13: #{vit_forward.3} parent=1 // pred_fallthru
      _
    // Predicated region
    $region14: #{vit_forward.3} parent=1 // pred_check
      _
    $region15: #{vit_forward.3} parent=1 // pred_check_branch
      %24 = sbr.rel (0) target = $region17
    $region16: #{vit_forward.3} parent=1 // pred_region
      %25 = dma.done [#allocation3], 64
    $region17: #{vit_forward.3} parent=1 // pred_fallthru
      _
    %v26 = vld [vmem:[#allocation2] sm:$0x7]
    %v27 = vld [vmem:[%s0] sm:$0xff]
    %v28 = vld [vmem:[%s0 + $0x8] sm:$0xf]
    %v29 = vld [vmem:[%s1] sm:$0xf]
    %v30 = vld [vmem:[%s1 + $0x4] sm:$0xf]
    %v31 = vld [vmem:[%s1 + $0x8] sm:$0xf]
    %v32 = vld [vmem:[%s1 + $0xc] sm:$0xf]
    %v33 = vld [vmem:[%s1 + $0x10] sm:$0xf]
    %v34 = vld [vmem:[%s1 + $0x14] sm:$0xf]
    %v35 = vld [vmem:[%s1 + $0x18] sm:$0xf]
    %v36 = vld [vmem:[%s1 + $0x1c] sm:$0xf]
    %v37 = vld [vmem:[%s1 + $0x20] sm:$0xf]
    %v38 = vld [vmem:[%s1 + $0x24] sm:$0xf]
    %v39 = vld [vmem:[%s1 + $0x28] sm:$0xf]
    %v40 = vld [vmem:[%s1 + $0x2c] sm:$0xf]
    %v41 = vld [vmem:[%s1 + $0x30] sm:$0xf]
    %v42 = vld [vmem:[%s1 + $0x34] sm:$0xf]
    %v43 = vld [vmem:[%s1 + $0x38] sm:$0xf]
    %v44 = vld [vmem:[%s1 + $0x3c] sm:$0xf]
    %v45 = vld [vmem:[%s1 + $0x40] sm:$0xf]
    %v46 = vld [vmem:[%s1 + $0x44] sm:$0xf]
    %v47 = vld [vmem:[%s1 + $0x48] sm:$0xf]
    %v48 = vld [vmem:[%s1 + $0x4c] sm:$0xf]
    %v49 = vld [vmem:[%s1 + $0x50] sm:$0xf]
    %v50 = vld [vmem:[%s1 + $0x54] sm:$0xf]
    %v51 = vld [vmem:[%s1 + $0x58] sm:$0xf]
    %v52 = vld [vmem:[%s1 + $0x5c] sm:$0xf]
    %v53 = vld [vmem:[%s1 + $0x60] sm:$0xf]
    %v54 = vld [vmem:[%s1 + $0x64] sm:$0xf]
    %v55 = vld [vmem:[%s1 + $0x68] sm:$0xf]
    %v56 = vld [vmem:[%s1 + $0x6c] sm:$0xf]
    %v57 = vld [vmem:[%s1 + $0x70] sm:$0xf]
    %v58 = vld [vmem:[%s1 + $0x74] sm:$0xf]
    %v59 = vld [vmem:[%s1 + $0x78] sm:$0xf]
    %v60 = vld [vmem:[%s1 + $0x7c] sm:$0xf]
    %v61 = vld [vmem:[%s1 + $0x80] sm:$0xf]
    %v62 = vld [vmem:[%s1 + $0x84] sm:$0xf]
    %v63 = vld [vmem:[%s1 + $0x88] sm:$0xf]
    %v64 = vld [vmem:[%s1 + $0x8c] sm:$0xf]
    %v65 = vld [vmem:[%s1 + $0x90] sm:$0xf]
    %v66 = vld [vmem:[%s1 + $0x94] sm:$0xf]
    %v67 = vld [vmem:[%s1 + $0x98] sm:$0xf]
    %v68 = vld [vmem:[%s1 + $0x9c] sm:$0xf]
    %v69 = vld [vmem:[%s1 + $0xa0] sm:$0xf]
    %v70 = vld [vmem:[%s1 + $0xa4] sm:$0xf]
    %v71 = vld [vmem:[%s1 + $0xa8] sm:$0xf]
    %v72 = vld [vmem:[%s1 + $0xac] sm:$0xf]
    %v73 = vld [vmem:[%s1 + $0xb0] sm:$0xf]
    %v74 = vld [vmem:[%s1 + $0xb4] sm:$0xf]
    %v75 = vld [vmem:[%s1 + $0xb8] sm:$0xf]
    %v76 = vld [vmem:[%s1 + $0xbc] sm:$0xf]
    %v77 = vld [vmem:[%s1 + $0xc0] sm:$0xf]
    %v78 = vld [vmem:[%s1 + $0xc4] sm:$0xf]
    %v79 = vld [vmem:[%s1 + $0xc8] sm:$0xf]
    %v80 = vld [vmem:[%s1 + $0xcc] sm:$0xf]
    %v81 = vld [vmem:[%s1 + $0xd0] sm:$0xf]
    %v82 = vld [vmem:[%s1 + $0xd4] sm:$0xf]
    %v83 = vld [vmem:[%s1 + $0xd8] sm:$0xf]
    %v84 = vld [vmem:[%s1 + $0xdc] sm:$0xf]
    %v85 = vld [vmem:[%s1 + $0xe0] sm:$0xf]
    %v86 = vld [vmem:[%s1 + $0xe4] sm:$0xf]
    %v87 = vld [vmem:[%s1 + $0xe8] sm:$0xf]
    %v88 = vld [vmem:[%s1 + $0xec] sm:$0xf]
    %v89 = vld [vmem:[%s1 + $0xf0] sm:$0xf]
    %v90 = vld [vmem:[%s1 + $0xf4] sm:$0xf]
    %v91 = vld [vmem:[%s1 + $0xf8] sm:$0xf]
    %v92 = vld [vmem:[%s1 + $0xfc] sm:$0xf]
    %v93 = vld [vmem:[%s1 + $0x100] sm:$0xf]
    %v94 = vld [vmem:[%s1 + $0x104] sm:$0xf]
    %v95 = vld [vmem:[%s1 + $0x108] sm:$0xf]
    %v96 = vld [vmem:[%s1 + $0x10c] sm:$0xf]
    %v97 = vld [vmem:[%s1 + $0x110] sm:$0xf]
    %v98 = vld [vmem:[%s1 + $0x114] sm:$0xf]
    %v99 = vld [vmem:[%s1 + $0x118] sm:$0xf]
    %v100 = vld [vmem:[%s1 + $0x11c] sm:$0xf]
    %v101 = vld [vmem:[%s1 + $0x120] sm:$0xf]
    %v102 = vld [vmem:[%s1 + $0x124] sm:$0xf]
    %v103 = vld [vmem:[%s1 + $0x128] sm:$0xf]
    %v104 = vld [vmem:[%s1 + $0x12c] sm:$0xf]
    %v105 = vld [vmem:[%s1 + $0x130] sm:$0xf]
    %v106 = vld [vmem:[%s1 + $0x134] sm:$0xf]
    %v107 = vld [vmem:[%s1 + $0x138] sm:$0xf]
    %v108 = vld [vmem:[%s1 + $0x13c] sm:$0xf]
    %v109 = vld [vmem:[%s1 + $0x140] sm:$0xf]
    %v110 = vld [vmem:[%s1 + $0x144] sm:$0xf]
    %v111 = vld [vmem:[%s1 + $0x148] sm:$0xf]
    %v112 = vld [vmem:[%s1 + $0x14c] sm:$0xf]
    %v113 = vld [vmem:[%s1 + $0x150] sm:$0xf]
    %v114 = vld [vmem:[%s1 + $0x154] sm:$0xf]
    %v115 = vld [vmem:[%s1 + $0x158] sm:$0xf]
    %v116 = vld [vmem:[%s1 + $0x15c] sm:$0xf]
    %v117 = vld [vmem:[%s1 + $0x160] sm:$0xf]
    %v118 = vld [vmem:[%s1 + $0x164] sm:$0xf]
    %v119 = vld [vmem:[%s1 + $0x168] sm:$0xf]
    %v120 = vld [vmem:[%s1 + $0x16c] sm:$0xf]
    %v121 = vld [vmem:[%s1 + $0x170] sm:$0xf]
    %v122 = vld [vmem:[%s1 + $0x174] sm:$0xf]
    %v123 = vld [vmem:[%s1 + $0x178] sm:$0xf]
    %v124 = vld [vmem:[%s1 + $0x17c] sm:$0xf]
    %v125 = vunpack.c.l.bf16 %v29
    %v126 = vunpack.c.l.bf16 %v30
    %v127 = vunpack.c.l.bf16 %v31
    %v128 = vunpack.c.l.bf16 %v32
    %v129 = vunpack.c.l.bf16 %v33
    %v130 = vunpack.c.l.bf16 %v34
    %v131 = vunpack.c.l.bf16 %v35
    %v132 = vunpack.c.l.bf16 %v36
    %v133 = vunpack.c.l.bf16 %v37
    %v134 = vunpack.c.l.bf16 %v38
    %v135 = vunpack.c.l.bf16 %v39
    %v136 = vunpack.c.l.bf16 %v40
    %v137 = vunpack.c.l.bf16 %v41
    %v138 = vunpack.c.l.bf16 %v42
    %v139 = vunpack.c.l.bf16 %v43
    %v140 = vunpack.c.l.bf16 %v44
    %v141 = vunpack.c.l.bf16 %v45
    %v142 = vunpack.c.l.bf16 %v46
    %v143 = vunpack.c.l.bf16 %v47
    %v144 = vunpack.c.l.bf16 %v48
    %v145 = vunpack.c.l.bf16 %v49
    %v146 = vunpack.c.l.bf16 %v50
    %v147 = vunpack.c.l.bf16 %v51
    %v148 = vunpack.c.l.bf16 %v52
    %v149 = vunpack.c.l.bf16 %v53
    %v150 = vunpack.c.l.bf16 %v54
    %v151 = vunpack.c.l.bf16 %v55
    %v152 = vunpack.c.l.bf16 %v56
    %v153 = vunpack.c.l.bf16 %v57
    %v154 = vunpack.c.l.bf16 %v58
    %v155 = vunpack.c.l.bf16 %v59
    %v156 = vunpack.c.l.bf16 %v60
    %v157 = vunpack.c.l.bf16 %v61
    %v158 = vunpack.c.l.bf16 %v62
    %v159 = vunpack.c.l.bf16 %v63
    %v160 = vunpack.c.l.bf16 %v64
    %v161 = vunpack.c.l.bf16 %v65
    %v162 = vunpack.c.l.bf16 %v66
    %v163 = vunpack.c.l.bf16 %v67
    %v164 = vunpack.c.l.bf16 %v68
    %v165 = vunpack.c.l.bf16 %v69
    %v166 = vunpack.c.l.bf16 %v70
    %v167 = vunpack.c.l.bf16 %v71
    %v168 = vunpack.c.l.bf16 %v72
    %v169 = vunpack.c.l.bf16 %v73
    %v170 = vunpack.c.l.bf16 %v74
    %v171 = vunpack.c.l.bf16 %v75
    %v172 = vunpack.c.l.bf16 %v76
    %v173 = vunpack.c.l.bf16 %v77
    %v174 = vunpack.c.l.bf16 %v78
    %v175 = vunpack.c.l.bf16 %v79
    %v176 = vunpack.c.l.bf16 %v80
    %v177 = vunpack.c.l.bf16 %v81
    %v178 = vunpack.c.l.bf16 %v82
    %v179 = vunpack.c.l.bf16 %v83
    %v180 = vunpack.c.l.bf16 %v84
    %v181 = vunpack.c.l.bf16 %v85
    %v182 = vunpack.c.l.bf16 %v86
    %v183 = vunpack.c.l.bf16 %v87
    %v184 = vunpack.c.l.bf16 %v88
    %v185 = vunpack.c.l.bf16 %v89
    %v186 = vunpack.c.l.bf16 %v90
    %v187 = vunpack.c.l.bf16 %v91
    %v188 = vunpack.c.l.bf16 %v92
    %v189 = vunpack.c.l.bf16 %v93
    %v190 = vunpack.c.l.bf16 %v94
    %v191 = vunpack.c.l.bf16 %v95
    %v192 = vunpack.c.l.bf16 %v96
    %v193 = vunpack.c.l.bf16 %v97
    %v194 = vunpack.c.l.bf16 %v98
    %v195 = vunpack.c.l.bf16 %v99
    %v196 = vunpack.c.l.bf16 %v100
    %v197 = vunpack.c.l.bf16 %v101
    %v198 = vunpack.c.l.bf16 %v102
    %v199 = vunpack.c.l.bf16 %v103
    %v200 = vunpack.c.l.bf16 %v104
    %v201 = vunpack.c.l.bf16 %v105
    %v202 = vunpack.c.l.bf16 %v106
    %v203 = vunpack.c.l.bf16 %v107
    %v204 = vunpack.c.l.bf16 %v108
    %v205 = vunpack.c.l.bf16 %v109
    %v206 = vunpack.c.l.bf16 %v110
    %v207 = vunpack.c.l.bf16 %v111
    %v208 = vunpack.c.l.bf16 %v112
    %v209 = vunpack.c.l.bf16 %v113
    %v210 = vunpack.c.l.bf16 %v114
    %v211 = vunpack.c.l.bf16 %v115
    %v212 = vunpack.c.l.bf16 %v116
    %v213 = vunpack.c.l.bf16 %v117
    %v214 = vunpack.c.l.bf16 %v118
    %v215 = vunpack.c.l.bf16 %v119
    %v216 = vunpack.c.l.bf16 %v120
    %v217 = vunpack.c.l.bf16 %v121
    %v218 = vunpack.c.l.bf16 %v122
    %v219 = vunpack.c.l.bf16 %v123
    %v220 = vunpack.c.l.bf16 %v124
    %v221 = vlaneseq
    %v222 = vshrl.u32 %v221, 7
    %v223 = vsub.s32 0, %v222
    %v224 = vrot.slane %v26, %v223
    %v227 = vcombine.high %v27, %v27
    %v229 = vunpack.c.l.s4 1983009808
    %v230 = vunpack.c.0.s8 %v229
    %v231 = vlaneseq
    %v232 = vshrl.u32 %v231, 7
    %v233 = vsub.s32 %v230, %v232
    %v234 = vrot.slane %v27, %v233
    %v236 = vunpack.c.l.s4 1983009808
    %v237 = vunpack.c.0.s8 %v236
    %v238 = vlaneseq
    %v239 = vshrl.u32 %v238, 7
    %v240 = vsub.s32 %v237, %v239
    %v241 = vrot.slane %v227, %v240
    %v242 = vcombine.high %v234, %v234
    %v243 = vcombine.high %v241, %v241
    %v245 = vunpack.c.l.s4 1983009808
    %v246 = vunpack.c.0.s8 %v245
    %v247 = vlaneseq
    %v248 = vshrl.u32 %v247, 7
    %v249 = vsub.s32 %v246, %v248
    %v250 = vrot.slane %v28, %v249
    %v251 = vcombine.high %v250, %v250
    %258 = vmatprep.subr.mxu0 0.0
    %259 = vmatpush1.msra.mxu0 %v125
    %260 = vmatprep.subr.mxu0 0.0
    %261 = vmatpush1.msra.mxu0 %v126
    %262 = vmatprep.subr.mxu0 0.0
    %263 = vmatpush1.msra.mxu0 %v127
    %264 = vmatprep.subr.mxu0 0.0
    %265 = vmatpush1.msra.mxu0 %v128
    %266 = vmatprep.subr.mxu0 0.0
    %267 = vmatpush1.msra.mxu0 %v129
    %268 = vmatprep.subr.mxu0 0.0
    %269 = vmatpush1.msra.mxu0 %v130
    %270 = vmatprep.subr.mxu0 0.0
    %271 = vmatpush1.msra.mxu0 %v131
    %272 = vmatprep.subr.mxu0 0.0
    %273 = vmatpush1.msra.mxu0 %v132
    %274 = vmatprep.subr.mxu0 0.0
    %275 = vmatpush1.msra.mxu0 %v133
    %276 = vmatprep.subr.mxu0 0.0
    %277 = vmatpush1.msra.mxu0 %v134
    %278 = vmatprep.subr.mxu0 0.0
    %279 = vmatpush1.msra.mxu0 %v135
    %280 = vmatprep.subr.mxu0 0.0
    %281 = vmatpush1.msra.mxu0 %v136
    %282 = vmatprep.subr.mxu0 0.0
    %283 = vmatpush1.msra.mxu0 %v137
    %284 = vmatprep.subr.mxu0 0.0
    %285 = vmatpush1.msra.mxu0 %v138
    %286 = vmatprep.subr.mxu0 0.0
    %287 = vmatpush1.msra.mxu0 %v139
    %288 = vmatprep.subr.mxu0 0.0
    %289 = vmatpush1.msra.mxu0 %v140
    %290 = vmatprep.subr.mxu0 0.0
    %291 = vmatpush1.msra.mxu0 %v141
    %292 = vmatprep.subr.mxu0 0.0
    %293 = vmatpush1.msra.mxu0 %v142
    %294 = vmatprep.subr.mxu0 0.0
    %295 = vmatpush1.msra.mxu0 %v143
    %296 = vmatprep.subr.mxu0 0.0
    %297 = vmatpush1.msra.mxu0 %v144
    %298 = vmatprep.subr.mxu0 0.0
    %299 = vmatpush1.msra.mxu0 %v145
    %300 = vmatprep.subr.mxu0 0.0
    %301 = vmatpush1.msra.mxu0 %v146
    %302 = vmatprep.subr.mxu0 0.0
    %303 = vmatpush1.msra.mxu0 %v147
    %304 = vmatprep.subr.mxu0 0.0
    %305 = vmatpush1.msra.mxu0 %v148
    %306 = vmatprep.subr.mxu0 0.0
    %307 = vmatpush1.msra.mxu0 %v149
    %308 = vmatprep.subr.mxu0 0.0
    %309 = vmatpush1.msra.mxu0 %v150
    %310 = vmatprep.subr.mxu0 0.0
    %311 = vmatpush1.msra.mxu0 %v151
    %312 = vmatprep.subr.mxu0 0.0
    %313 = vmatpush1.msra.mxu0 %v152
    %314 = vmatprep.subr.mxu0 0.0
    %315 = vmatpush1.msra.mxu0 %v153
    %316 = vmatprep.subr.mxu0 0.0
    %317 = vmatpush1.msra.mxu0 %v154
    %318 = vmatprep.subr.mxu0 0.0
    %319 = vmatpush1.msra.mxu0 %v155
    %320 = vmatprep.subr.mxu0 0.0
    %321 = vmatpush1.msra.mxu0 %v156
    %322 = vmatprep.mubr.f32.mxu0 %v242
    %323 = vmatmul.mubr.f32.gmra.mrb[0].mxu0 %v234
    %v324 = vpop.f32.mrb[0].mxu0
    %v325 = vadd.f32 %v224, %v324
    %v326 = vpop.f32.mrb[0].mxu0
    %327 = vdwg.mxu0
    %328 = vmatprep.subr.mxu0 0.0
    %329 = vmatpush1.msra.mxu0 %v157
    %330 = vmatprep.subr.mxu0 0.0
    %331 = vmatpush1.msra.mxu0 %v158
    %332 = vmatprep.subr.mxu0 0.0
    %333 = vmatpush1.msra.mxu0 %v159
    %334 = vmatprep.subr.mxu0 0.0
    %335 = vmatpush1.msra.mxu0 %v160
    %336 = vmatprep.subr.mxu0 0.0
    %337 = vmatpush1.msra.mxu0 %v161
    %338 = vmatprep.subr.mxu0 0.0
    %339 = vmatpush1.msra.mxu0 %v162
    %340 = vmatprep.subr.mxu0 0.0
    %341 = vmatpush1.msra.mxu0 %v163
    %342 = vmatprep.subr.mxu0 0.0
    %343 = vmatpush1.msra.mxu0 %v164
    %344 = vmatprep.subr.mxu0 0.0
    %345 = vmatpush1.msra.mxu0 %v165
    %346 = vmatprep.subr.mxu0 0.0
    %347 = vmatpush1.msra.mxu0 %v166
    %348 = vmatprep.subr.mxu0 0.0
    %349 = vmatpush1.msra.mxu0 %v167
    %350 = vmatprep.subr.mxu0 0.0
    %351 = vmatpush1.msra.mxu0 %v168
    %352 = vmatprep.subr.mxu0 0.0
    %353 = vmatpush1.msra.mxu0 %v169
    %354 = vmatprep.subr.mxu0 0.0
    %355 = vmatpush1.msra.mxu0 %v170
    %356 = vmatprep.subr.mxu0 0.0
    %357 = vmatpush1.msra.mxu0 %v171
    %358 = vmatprep.subr.mxu0 0.0
    %359 = vmatpush1.msra.mxu0 %v172
    %360 = vmatprep.subr.mxu0 0.0
    %361 = vmatpush1.msra.mxu0 %v173
    %362 = vmatprep.subr.mxu0 0.0
    %363 = vmatpush1.msra.mxu0 %v174
    %364 = vmatprep.subr.mxu0 0.0
    %365 = vmatpush1.msra.mxu0 %v175
    %366 = vmatprep.subr.mxu0 0.0
    %367 = vmatpush1.msra.mxu0 %v176
    %368 = vmatprep.subr.mxu0 0.0
    %369 = vmatpush1.msra.mxu0 %v177
    %370 = vmatprep.subr.mxu0 0.0
    %371 = vmatpush1.msra.mxu0 %v178
    %372 = vmatprep.subr.mxu0 0.0
    %373 = vmatpush1.msra.mxu0 %v179
    %374 = vmatprep.subr.mxu0 0.0
    %375 = vmatpush1.msra.mxu0 %v180
    %376 = vmatprep.subr.mxu0 0.0
    %377 = vmatpush1.msra.mxu0 %v181
    %378 = vmatprep.subr.mxu0 0.0
    %379 = vmatpush1.msra.mxu0 %v182
    %380 = vmatprep.subr.mxu0 0.0
    %381 = vmatpush1.msra.mxu0 %v183
    %382 = vmatprep.subr.mxu0 0.0
    %383 = vmatpush1.msra.mxu0 %v184
    %384 = vmatprep.subr.mxu0 0.0
    %385 = vmatpush1.msra.mxu0 %v185
    %386 = vmatprep.subr.mxu0 0.0
    %387 = vmatpush1.msra.mxu0 %v186
    %388 = vmatprep.subr.mxu0 0.0
    %389 = vmatpush1.msra.mxu0 %v187
    %390 = vmatprep.subr.mxu0 0.0
    %391 = vmatpush1.msra.mxu0 %v188
    %392 = vmatprep.mubr.f32.mxu0 %v243
    %393 = vmatmul.mubr.f32.gmra.mrb[0].mxu0 %v241
    %v394 = vpop.f32.mrb[0].mxu0
    %v395 = vadd.f32 %v325, %v394
    %v396 = vpop.f32.mrb[0].mxu0
    %397 = vdwg.mxu0
    %398 = vmatprep.subr.mxu0 0.0
    %399 = vmatpush1.msra.mxu0 %v189
    %400 = vmatprep.subr.mxu0 0.0
    %401 = vmatpush1.msra.mxu0 %v190
    %402 = vmatprep.subr.mxu0 0.0
    %403 = vmatpush1.msra.mxu0 %v191
    %404 = vmatprep.subr.mxu0 0.0
    %405 = vmatpush1.msra.mxu0 %v192
    %406 = vmatprep.subr.mxu0 0.0
    %407 = vmatpush1.msra.mxu0 %v193
    %408 = vmatprep.subr.mxu0 0.0
    %409 = vmatpush1.msra.mxu0 %v194
    %410 = vmatprep.subr.mxu0 0.0
    %411 = vmatpush1.msra.mxu0 %v195
    %412 = vmatprep.subr.mxu0 0.0
    %413 = vmatpush1.msra.mxu0 %v196
    %414 = vmatprep.subr.mxu0 0.0
    %415 = vmatpush1.msra.mxu0 %v197
    %416 = vmatprep.subr.mxu0 0.0
    %417 = vmatpush1.msra.mxu0 %v198
    %418 = vmatprep.subr.mxu0 0.0
    %419 = vmatpush1.msra.mxu0 %v199
    %420 = vmatprep.subr.mxu0 0.0
    %421 = vmatpush1.msra.mxu0 %v200
    %422 = vmatprep.subr.mxu0 0.0
    %423 = vmatpush1.msra.mxu0 %v201
    %424 = vmatprep.subr.mxu0 0.0
    %425 = vmatpush1.msra.mxu0 %v202
    %426 = vmatprep.subr.mxu0 0.0
    %427 = vmatpush1.msra.mxu0 %v203
    %428 = vmatprep.subr.mxu0 0.0
    %429 = vmatpush1.msra.mxu0 %v204
    %430 = vmatprep.subr.mxu0 0.0
    %431 = vmatpush1.msra.mxu0 %v205
    %432 = vmatprep.subr.mxu0 0.0
    %433 = vmatpush1.msra.mxu0 %v206
    %434 = vmatprep.subr.mxu0 0.0
    %435 = vmatpush1.msra.mxu0 %v207
    %436 = vmatprep.subr.mxu0 0.0
    %437 = vmatpush1.msra.mxu0 %v208
    %438 = vmatprep.subr.mxu0 0.0
    %439 = vmatpush1.msra.mxu0 %v209
    %440 = vmatprep.subr.mxu0 0.0
    %441 = vmatpush1.msra.mxu0 %v210
    %442 = vmatprep.subr.mxu0 0.0
    %443 = vmatpush1.msra.mxu0 %v211
    %444 = vmatprep.subr.mxu0 0.0
    %445 = vmatpush1.msra.mxu0 %v212
    %446 = vmatprep.subr.mxu0 0.0
    %447 = vmatpush1.msra.mxu0 %v213
    %448 = vmatprep.subr.mxu0 0.0
    %449 = vmatpush1.msra.mxu0 %v214
    %450 = vmatprep.subr.mxu0 0.0
    %451 = vmatpush1.msra.mxu0 %v215
    %452 = vmatprep.subr.mxu0 0.0
    %453 = vmatpush1.msra.mxu0 %v216
    %454 = vmatprep.subr.mxu0 0.0
    %455 = vmatpush1.msra.mxu0 %v217
    %456 = vmatprep.subr.mxu0 0.0
    %457 = vmatpush1.msra.mxu0 %v218
    %458 = vmatprep.subr.mxu0 0.0
    %459 = vmatpush1.msra.mxu0 %v219
    %460 = vmatprep.subr.mxu0 0.0
    %461 = vmatpush1.msra.mxu0 %v220
    %462 = vmatprep.mubr.f32.mxu0 %v251
    %463 = vmatmul.mubr.f32.gmra.mrb[0].mxu0 %v250
    %v464 = vpop.f32.mrb[0].mxu0
    %v465 = vadd.f32 %v395, %v464
    %v466 = vpop.f32.mrb[0].mxu0
    %467 = vdwg.mxu0
    %vm468 = vcmask 254976
    %v469 = vsel %vm468, %v465, 0.0
    %470 = vadd.xlane.f32.xlu0 %v469
    %v471 = vpop.xlane.xlu0 %470
    %v472 = vrcp.pop 32.0
    %v473 = vmul.f32 %v471, %v472
    %v474 = vsub.f32 %v465, %v473
    %v475 = vmul.f32 %v474, %v474
    %v476 = vsel %vm468, %v475, 0.0
    %477 = vadd.xlane.f32.xlu0 %v476
    %v478 = vpop.xlane.xlu0 %477
    %v479 = vmul.f32 %v478, %v472
    %v480 = vadd.f32 %v479, 1e-05
    %v481 = vrsqrt.pop %v480
    %v482 = vmul.f32 %v474, %v481
    %v483 = vlaneseq
    %v484 = vshrl.u32 %v483, 7
    %v485 = vsub.s32 1, %v484
    %v486 = vrot.slane %v26, %v485
    %v487 = vmul.f32 %v482, %v486
    %v488 = vlaneseq
    %v489 = vshrl.u32 %v488, 7
    %v490 = vsub.s32 2, %v489
    %v491 = vrot.slane %v26, %v490
    %v492 = vadd.f32 %v487, %v491
    %493 = vst.msk [vmem:[%s3] sm:$0x3] %vm468, %v492
    // Predicated region
    $region18: #{vit_forward.3} parent=1 // pred_check
      _
    $region19: #{vit_forward.3} parent=1 // pred_check_branch
      %495 = sbr.rel (0) target = $region21
    $region20: #{vit_forward.3} parent=1 // pred_region
      _
    $region21: #{vit_forward.3} parent=1 // pred_fallthru
      _
    // Predicated region
    $region22: #{vit_forward.3} parent=1 // pred_check
      _
    $region23: #{vit_forward.3} parent=1 // pred_check_branch
      %497 = sbr.rel (0) target = $region25
    $region24: #{vit_forward.3} parent=1 // pred_region
      _
    $region25: #{vit_forward.3} parent=1 // pred_fallthru
      _
    %498 = vsyncpa [#allocation3], 1

// kernel: vit_forward.4
$region0: #{vit_forward.4}
  #allocation0 [shape = 'u32[]', space=smem, size = 0x4, offset = 0x4, fixed_abs, tag = 'smem constant byte address 0x4 - core index']
  #allocation1 [shape = 'u32[144,128]{1,0:T(1,128)}', space=vmem, size = 0x12000, scoped, tag = 'internal scratch']
  #allocation2 [shape = 'f32[2,32]{1,0:T(2,128)}', space=vmem, size = 0x400, scoped, tag = 'scratch operand']
  %s0 = inlined_call_operand.vmem [shape: f32[2,32], index: 0, kind: input, shape index: {}]
  %s1 = inlined_call_operand.hbm [shape: bf16[2,32,32], index: 1, kind: input, shape index: {}]
  %s2 = inlined_call_operand.hbm [shape: bf16[2,32,32], index: 2, kind: input, shape index: {}]
  %s3 = inlined_call_operand.hbm [shape: bf16[2,32,2048], index: 3, kind: input, shape index: {}]
  %s4 = inlined_call_operand.hbm [shape: f32[2,1,2048], index: 4, kind: input, shape index: {}]
  %s5 = inlined_call_operand.vmem [shape: bf16[2,2048,32], index: 5, kind: input, shape index: {}]
  %s6 = inlined_call_operand.vmem [shape: f32[2,9,32], index: 6, kind: input, shape index: {}]
  %s7 = inlined_call_operand.vmem [shape: f32[2,32], index: 7, kind: output, shape index: {}]
  %s8 = sld [smem:[#allocation0]]
  $region85: #{vit_forward.4} parent=0
    _
  %s10 = ssub.s32 1, %s8
  %s11 = scalar_select 0, %s10, %s8
  $region1: #{vit_forward.4} parent=0
    #allocation3 [shape = 'u8[16384]{0}', space=vmem, size = 0x4000, scoped, tag = 'input window, operand 1']
    #allocation4 [shape = 's32[2]{0}', space=sflag, size = 0x8, scoped, tag = 'scoped memory for vit_forward.4']
    #allocation5 [shape = 'u8[16384]{0}', space=vmem, size = 0x4000, scoped, tag = 'input window, operand 2']
    #allocation6 [shape = 's32[2]{0}', space=sflag, size = 0x8, scoped, tag = 'scoped memory for vit_forward.4']
    #allocation7 [shape = 'u8[262144]{0}', space=vmem, size = 0x40000, scoped, tag = 'input window, operand 3']
    #allocation8 [shape = 'u8[16384]{0}', space=vmem, size = 0x4000, scoped, tag = 'input window, operand 4']
    #allocation9 [shape = 's32[2]{0}', space=sflag, size = 0x8, scoped, tag = 'scoped memory for vit_forward.4']
    %12 = vsyncpa [#allocation4], 0
    %s13 = scalar_lea.sflag [#allocation4], 1
    %14 = vsyncpa %s13, 0
    %15 = vsyncpa [#allocation6], 0
    %s16 = scalar_lea.sflag [#allocation6], 1
    %17 = vsyncpa %s16, 0
    %18 = vsyncpa [#allocation9], 0
    %s19 = scalar_lea.sflag [#allocation9], 1
    %20 = vsyncpa %s19, 0
    loop: start=0, step=1, limit=4
    $region2: #{vit_forward.4} parent=1 // loop_pre_header
      _
    $region3: #{vit_forward.4} parent=1 // loop_header
      %s22 = sphi 0, %s26
      %p23 = scmp.ge.s32.totalorder %s22, 4
      %s30 = sphi 0, %s30
      %s32 = sphi 0, %s30
      %s33 = sphi 0, %s32
      %s47 = sphi 0, %s33
      %s53 = sphi 0, %s55
      %s56 = sphi 0, %s53
      %s57 = sphi 0, %s56
      %s73 = sphi 0, %s57
      %s79 = sphi 0, %s81
      %s82 = sphi 0, %s79
      %s83 = sphi 0, %s82
      %s99 = sphi 0, %s83
      %s105 = sphi 0, %s107
      %s108 = sphi 0, %s105
      %s109 = sphi 0, %s108
      %s125 = sphi 0, %s109
      %s131 = sphi 0, %s133
      %s134 = sphi 0, %s131
      %s135 = sphi 0, %s134
      %s151 = sphi 0, %s135
      %s157 = sphi 0, %s159
      %s160 = sphi 0, %s157
      %s161 = sphi 0, %s160
      %s177 = sphi 0, %s161
      %s183 = sphi 0, %s185
      %s186 = sphi 0, %s183
      %s187 = sphi 0, %s186
      %s203 = sphi 0, %s187
      %s207 = sphi 0, %s207
      %s209 = sphi 0, %s207
      %s210 = sphi 0, %s209
      %s224 = sphi 0, %s210
    $region4: #{vit_forward.4} parent=1 // loop_header_branch
      %25 = sbr.rel (%p23) target = $region8
    $region5: #{vit_forward.4} parent=1 // loop_body
      %s27 = ssub.s32 %s22, 1
      %s28 = ssub.s32 %s22, 2
      %s29 = sadd.s32 %s22, 1
      %s31 = sadd.s32 %s30, 1
      %p34 = scmp.eq.s32.totalorder %s22, 1
      %p35 = scmp.ne.s32.totalorder %s30, %s32
      %p36 = scmp.eq.s32.totalorder %s22, 0
      %p37 = por %p35, %p36
      %p38 = scmp.ne.s32.totalorder %s30, %s32
      %p39 = scmp.eq.s32.totalorder %s27, 1
      %p40 = por %p38, %p39
      %p41 = scmp.ne.s32.totalorder %s32, %s33
      %p42 = scmp.eq.s32.totalorder %s27, 0
      %p43 = por %p41, %p42
      %p44 = scmp.ne.s32.totalorder %s32, %s33
      %p45 = scmp.eq.s32.totalorder %s28, 1
      %p46 = por %p44, %p45
      %p48 = scmp.ne.s32.totalorder %s33, %s47
      %p49 = scmp.eq.s32.totalorder %s28, 0
      %p50 = por %p48, %p49
      %s51 = ssub.s32 %s22, %s29
      %p52 = scmp.eq.s32.totalorder %s51, 0
      %s54 = sadd.s32 %s53, 1
      %s55 = scalar_select %p52, %s53, %s54
      %p58 = pneg %p52
      %p59 = scmp.eq.s32.totalorder %s22, 1
      %p60 = por %p58, %p59
      %p61 = scmp.ne.s32.totalorder %s53, %s56
      %p62 = scmp.eq.s32.totalorder %s22, 0
      %p63 = por %p61, %p62
      %p64 = scmp.ne.s32.totalorder %s53, %s56
      %p65 = scmp.eq.s32.totalorder %s27, 1
      %p66 = por %p64, %p65
      %p67 = scmp.ne.s32.totalorder %s56, %s57
      %p68 = scmp.eq.s32.totalorder %s27, 0
      %p69 = por %p67, %p68
      %p70 = scmp.ne.s32.totalorder %s56, %s57
      %p71 = scmp.eq.s32.totalorder %s28, 1
      %p72 = por %p70, %p71
      %p74 = scmp.ne.s32.totalorder %s57, %s73
      %p75 = scmp.eq.s32.totalorder %s28, 0
      %p76 = por %p74, %p75
      %s77 = ssub.s32 %s22, %s29
      %p78 = scmp.eq.s32.totalorder %s77, 0
      %s80 = sadd.s32 %s79, 1
      %s81 = scalar_select %p78, %s79, %s80
      %p84 = pneg %p78
      %p85 = scmp.eq.s32.totalorder %s22, 1
      %p86 = por %p84, %p85
      %p87 = scmp.ne.s32.totalorder %s79, %s82
      %p88 = scmp.eq.s32.totalorder %s22, 0
      %p89 = por %p87, %p88
      %p90 = scmp.ne.s32.totalorder %s79, %s82
      %p91 = scmp.eq.s32.totalorder %s27, 1
      %p92 = por %p90, %p91
      %p93 = scmp.ne.s32.totalorder %s82, %s83
      %p94 = scmp.eq.s32.totalorder %s27, 0
      %p95 = por %p93, %p94
      %p96 = scmp.ne.s32.totalorder %s82, %s83
      %p97 = scmp.eq.s32.totalorder %s28, 1
      %p98 = por %p96, %p97
      %p100 = scmp.ne.s32.totalorder %s83, %s99
      %p101 = scmp.eq.s32.totalorder %s28, 0
      %p102 = por %p100, %p101
      %s103 = ssub.s32 %s22, %s29
      %p104 = scmp.eq.s32.totalorder %s103, 0
      %s106 = sadd.s32 %s105, 1
      %s107 = scalar_select %p104, %s105, %s106
      %p110 = pneg %p104
      %p111 = scmp.eq.s32.totalorder %s22, 1
      %p112 = por %p110, %p111
      %p113 = scmp.ne.s32.totalorder %s105, %s108
      %p114 = scmp.eq.s32.totalorder %s22, 0
      %p115 = por %p113, %p114
      %p116 = scmp.ne.s32.totalorder %s105, %s108
      %p117 = scmp.eq.s32.totalorder %s27, 1
      %p118 = por %p116, %p117
      %p119 = scmp.ne.s32.totalorder %s108, %s109
      %p120 = scmp.eq.s32.totalorder %s27, 0
      %p121 = por %p119, %p120
      %p122 = scmp.ne.s32.totalorder %s108, %s109
      %p123 = scmp.eq.s32.totalorder %s28, 1
      %p124 = por %p122, %p123
      %p126 = scmp.ne.s32.totalorder %s109, %s125
      %p127 = scmp.eq.s32.totalorder %s28, 0
      %p128 = por %p126, %p127
      %s129 = ssub.s32 %s22, %s29
      %p130 = scmp.eq.s32.totalorder %s129, 0
      %s132 = sadd.s32 %s131, 1
      %s133 = scalar_select %p130, %s131, %s132
      %p136 = pneg %p130
      %p137 = scmp.eq.s32.totalorder %s22, 1
      %p138 = por %p136, %p137
      %p139 = scmp.ne.s32.totalorder %s131, %s134
      %p140 = scmp.eq.s32.totalorder %s22, 0
      %p141 = por %p139, %p140
      %p142 = scmp.ne.s32.totalorder %s131, %s134
      %p143 = scmp.eq.s32.totalorder %s27, 1
      %p144 = por %p142, %p143
      %p145 = scmp.ne.s32.totalorder %s134, %s135
      %p146 = scmp.eq.s32.totalorder %s27, 0
      %p147 = por %p145, %p146
      %p148 = scmp.ne.s32.totalorder %s134, %s135
      %p149 = scmp.eq.s32.totalorder %s28, 1
      %p150 = por %p148, %p149
      %p152 = scmp.ne.s32.totalorder %s135, %s151
      %p153 = scmp.eq.s32.totalorder %s28, 0
      %p154 = por %p152, %p153
      %s155 = ssub.s32 %s22, %s29
      %p156 = scmp.eq.s32.totalorder %s155, 0
      %s158 = sadd.s32 %s157, 1
      %s159 = scalar_select %p156, %s157, %s158
      %p162 = pneg %p156
      %p163 = scmp.eq.s32.totalorder %s22, 1
      %p164 = por %p162, %p163
      %p165 = scmp.ne.s32.totalorder %s157, %s160
      %p166 = scmp.eq.s32.totalorder %s22, 0
      %p167 = por %p165, %p166
      %p168 = scmp.ne.s32.totalorder %s157, %s160
      %p169 = scmp.eq.s32.totalorder %s27, 1
      %p170 = por %p168, %p169
      %p171 = scmp.ne.s32.totalorder %s160, %s161
      %p172 = scmp.eq.s32.totalorder %s27, 0
      %p173 = por %p171, %p172
      %p174 = scmp.ne.s32.totalorder %s160, %s161
      %p175 = scmp.eq.s32.totalorder %s28, 1
      %p176 = por %p174, %p175
      %p178 = scmp.ne.s32.totalorder %s161, %s177
      %p179 = scmp.eq.s32.totalorder %s28, 0
      %p180 = por %p178, %p179
      %s181 = ssub.s32 %s22, %s29
      %p182 = scmp.eq.s32.totalorder %s181, 0
      %s184 = sadd.s32 %s183, 1
      %s185 = scalar_select %p182, %s183, %s184
      %p188 = pneg %p182
      %p189 = scmp.eq.s32.totalorder %s22, 1
      %p190 = por %p188, %p189
      %p191 = scmp.ne.s32.totalorder %s183, %s186
      %p192 = scmp.eq.s32.totalorder %s22, 0
      %p193 = por %p191, %p192
      %p194 = scmp.ne.s32.totalorder %s183, %s186
      %p195 = scmp.eq.s32.totalorder %s27, 1
      %p196 = por %p194, %p195
      %p197 = scmp.ne.s32.totalorder %s186, %s187
      %p198 = scmp.eq.s32.totalorder %s27, 0
      %p199 = por %p197, %p198
      %p200 = scmp.ne.s32.totalorder %s186, %s187
      %p201 = scmp.eq.s32.totalorder %s28, 1
      %p202 = por %p200, %p201
      %p204 = scmp.ne.s32.totalorder %s187, %s203
      %p205 = scmp.eq.s32.totalorder %s28, 0
      %p206 = por %p204, %p205
      %s208 = sadd.s32 %s207, 1
      %p211 = scmp.eq.s32.totalorder %s22, 1
      %p212 = scmp.ne.s32.totalorder %s207, %s209
      %p213 = scmp.eq.s32.totalorder %s22, 0
      %p214 = por %p212, %p213
      %p215 = scmp.ne.s32.totalorder %s207, %s209
      %p216 = scmp.eq.s32.totalorder %s27, 1
      %p217 = por %p215, %p216
      %p218 = scmp.ne.s32.totalorder %s209, %s210
      %p219 = scmp.eq.s32.totalorder %s27, 0
      %p220 = por %p218, %p219
      %p221 = scmp.ne.s32.totalorder %s209, %s210
      %p222 = scmp.eq.s32.totalorder %s28, 1
      %p223 = por %p221, %p222
      %p225 = scmp.ne.s32.totalorder %s210, %s224
      %p226 = scmp.eq.s32.totalorder %s28, 0
      %p227 = por %p225, %p226
      %p228 = scmp.le.s32.totalorder 1, %s22
      %p229 = scmp.lt.s32.totalorder %s22, 3
      %p230 = pnand %p228, %p229
      %p231 = pneg %p230
      // Predicated region
      $region9: #{vit_forward.4} parent=5 // pred_check
        _
      $region10: #{vit_forward.4} parent=5 // pred_check_branch
        %233 = sbr.rel (%p230) target = $region12
      $region11: #{vit_forward.4} parent=5 // pred_region
        %s234 = ssub.s32 %s22, 1
        // Predicated region
        $region13: #{vit_forward.4} parent=11 // pred_check
          %p235 = pneg %p43
        $region14: #{vit_forward.4} parent=11 // pred_check_branch
          %237 = sbr.rel (%p235) target = $region16
        $region15: #{vit_forward.4} parent=11 // pred_region
          _
        $region16: #{vit_forward.4} parent=11 // pred_fallthru
          _
      $region12: #{vit_forward.4} parent=5 // pred_fallthru
        _
      %p238 = scmp.lt.s32.totalorder %s22, 2
      // Predicated region
      $region17: #{vit_forward.4} parent=5 // pred_check
        %p239 = pneg %p238
      $region18: #{vit_forward.4} parent=5 // pred_check_branch
        %241 = sbr.rel (%p239) target = $region20
      $region19: #{vit_forward.4} parent=5 // pred_region
        // Predicated region
        $region21: #{vit_forward.4} parent=19 // pred_check
          %p242 = pneg %p63
        $region22: #{vit_forward.4} parent=19 // pred_check_branch
          %244 = sbr.rel (%p242) target = $region24
        $region23: #{vit_forward.4} parent=19 // pred_region
          %s245 = sand.u32 %s53, 1
          %s246 = scalar_lea.sflag [#allocation4], %s245
          %s247 = sand.u32 %s53, 1
          %s248 = smul.addr %s247, 16
          %s249 = scalar_lea.vmem [#allocation3], %s248
          %s251 = ssub.s32 256, 256
          %252 = vsyncadd %s246, %s251
          %s253 = smul.addr %s22, 4
          %s254 = smul.addr %s253, 64
          %s255 = scalar_lea.hbm %s1, %s254
          %s256 = sshll.u32 %s249, 4
          %s257 = int_to_ptr.vmem [resolvable:$true] %s256
          %262 = dma.hbm_to_vmem [thread:$0]  %s255, 256, %s257, %s246, 64, 64, 4
        $region24: #{vit_forward.4} parent=19 // pred_fallthru
          _
        // Predicated region
        $region25: #{vit_forward.4} parent=19 // pred_check
          %p263 = pneg %p89
        $region26: #{vit_forward.4} parent=19 // pred_check_branch
          %265 = sbr.rel (%p263) target = $region28
        $region27: #{vit_forward.4} parent=19 // pred_region
          %s266 = sand.u32 %s22, 1
          %s267 = scalar_lea.sflag [#allocation6], %s266
          %s268 = sand.u32 %s79, 1
          %s269 = smul.addr %s268, 16
          %s270 = scalar_lea.vmem [#allocation5], %s269
          %s272 = ssub.s32 256, 256
          %273 = vsyncadd %s267, %s272
          %s274 = smul.addr %s22, 4
          %s275 = smul.addr %s274, 64
          %s276 = scalar_lea.hbm %s2, %s275
          %s277 = sshll.u32 %s270, 4
          %s278 = int_to_ptr.vmem [resolvable:$true] %s277
          %283 = dma.hbm_to_vmem [thread:$0]  %s276, 256, %s278, %s267, 64, 64, 4
        $region28: #{vit_forward.4} parent=19 // pred_fallthru
          _
        // Predicated region
        $region29: #{vit_forward.4} parent=19 // pred_check
          %p284 = pneg %p115
        $region30: #{vit_forward.4} parent=19 // pred_check_branch
          %286 = sbr.rel (%p284) target = $region32
        $region31: #{vit_forward.4} parent=19 // pred_region
          %s287 = sand.u32 %s22, 1
          %s288 = scalar_lea.sflag [#allocation6], %s287
          %s289 = sand.u32 %s105, 1
          %s290 = smul.addr %s289, 256
          %s291 = scalar_lea.vmem [#allocation7], %s290
          %s293 = ssub.s32 4096, 4096
          %294 = vsyncadd %s288, %s293
          %s295 = smul.addr %s22, 64
          %s296 = smul.addr %s295, 64
          %s297 = scalar_lea.hbm %s3, %s296
          %s298 = sshll.u32 %s291, 4
          %s299 = int_to_ptr.vmem [resolvable:$true] %s298
          %304 = dma.hbm_to_vmem [thread:$0]  %s297, 4096, %s299, %s288, 1024, 1024, 64
        $region32: #{vit_forward.4} parent=19 // pred_fallthru
          _
        // Predicated region
        $region33: #{vit_forward.4} parent=19 // pred_check
          %p305 = pneg %p141
        $region34: #{vit_forward.4} parent=19 // pred_check_branch
          %307 = sbr.rel (%p305) target = $region36
        $region35: #{vit_forward.4} parent=19 // pred_region
          %s308 = sand.u32 %s131, 1
          %s309 = scalar_lea.sflag [#allocation9], %s308
          %s310 = sand.u32 %s131, 1
          %s311 = smul.addr %s310, 16
          %s312 = scalar_lea.vmem [#allocation8], %s311
          %s314 = ssub.s32 256, 256
          %315 = vsyncadd %s309, %s314
          %s316 = smul.addr %s22, 16
          %s317 = smul.addr %s316, 16
          %s318 = scalar_lea.hbm %s4, %s317
          %s320 = sshll.u32 %s312, 4
          %s321 = int_to_ptr.vmem [resolvable:$true] %s320
          %323 = dma.hbm_to_vmem [thread:$0]  %s318, 256, %s321, %s309
        $region36: #{vit_forward.4} parent=19 // pred_fallthru
          _
        // Predicated region
        $region37: #{vit_forward.4} parent=19 // pred_check
          %p324 = pneg %p167
        $region38: #{vit_forward.4} parent=19 // pred_check_branch
          %326 = sbr.rel (%p324) target = $region40
        $region39: #{vit_forward.4} parent=19 // pred_region
          %p327 = scmp.lt.s32.totalorder %s22, 1
          %s328 = scalar_select %p327, %s22, 1
          %s329 = smul.addr %s328, 256
          %s330 = smul.addr %s329, 4
          %s331 = scalar_lea.vmem %s5, %s330
        $region40: #{vit_forward.4} parent=19 // pred_fallthru
          _
        // Predicated region
        $region41: #{vit_forward.4} parent=19 // pred_check
          %p332 = pneg %p193
        $region42: #{vit_forward.4} parent=19 // pred_check_branch
          %334 = sbr.rel (%p332) target = $region44
        $region43: #{vit_forward.4} parent=19 // pred_region
          %p335 = scmp.lt.s32.totalorder %s22, 1
          %s336 = scalar_select %p335, %s22, 1
          %s337 = smul.addr %s336, 2
          %s338 = smul.addr %s337, 8
          %s339 = scalar_lea.vmem %s6, %s338
        $region44: #{vit_forward.4} parent=19 // pred_fallthru
          _
      $region20: #{vit_forward.4} parent=5 // pred_fallthru
        _
      %p340 = scmp.le.s32.totalorder 1, %s22
      %p341 = scmp.lt.s32.totalorder %s22, 3
      %p342 = pnand %p340, %p341
      %p343 = pneg %p342
      // Predicated region
      $region45: #{vit_forward.4} parent=5 // pred_check
        _
      $region46: #{vit_forward.4} parent=5 // pred_check_branch
        %345 = sbr.rel (%p342) target = $region48
      $region47: #{vit_forward.4} parent=5 // pred_region
        %s346 = ssub.s32 %s22, 1
        %s347 = sand.u32 %s56, 1
        %s348 = scalar_lea.sflag [#allocation4], %s347
        %s349 = sand.u32 %s56, 1
        %s350 = smul.addr %s349, 16
        %s351 = scalar_lea.vmem [#allocation3], %s350
        // Predicated region
        $region49: #{vit_forward.4} parent=47 // pred_check
          %p352 = pneg %p69
        $region50: #{vit_forward.4} parent=47 // pred_check_branch
          %354 = sbr.rel (%p352) target = $region52
        $region51: #{vit_forward.4} parent=47 // pred_region
          %355 = dma.done %s348, 256
        $region52: #{vit_forward.4} parent=47 // pred_fallthru
          _
        %s356 = sand.u32 %s27, 1
        %s357 = scalar_lea.sflag [#allocation6], %s356
        %s358 = sand.u32 %s82, 1
        %s359 = smul.addr %s358, 16
        %s360 = scalar_lea.vmem [#allocation5], %s359
        // Predicated region
        $region53: #{vit_forward.4} parent=47 // pred_check
          %p361 = pneg %p95
        $region54: #{vit_forward.4} parent=47 // pred_check_branch
          %363 = sbr.rel (%p361) target = $region56
        $region55: #{vit_forward.4} parent=47 // pred_region
          %364 = dma.done %s357, 256
        $region56: #{vit_forward.4} parent=47 // pred_fallthru
          _
        %s365 = sand.u32 %s27, 1
        %s366 = scalar_lea.sflag [#allocation6], %s365
        %s367 = sand.u32 %s108, 1
        %s368 = smul.addr %s367, 256
        %s369 = scalar_lea.vmem [#allocation7], %s368
        // Predicated region
        $region57: #{vit_forward.4} parent=47 // pred_check
          %p370 = pneg %p121
        $region58: #{vit_forward.4} parent=47 // pred_check_branch
          %372 = sbr.rel (%p370) target = $region60
        $region59: #{vit_forward.4} parent=47 // pred_region
          %373 = dma.done %s366, 4096
        $region60: #{vit_forward.4} parent=47 // pred_fallthru
          _
        %s374 = sand.u32 %s134, 1
        %s375 = scalar_lea.sflag [#allocation9], %s374
        %s376 = sand.u32 %s134, 1
        %s377 = smul.addr %s376, 16
        %s378 = scalar_lea.vmem [#allocation8], %s377
        // Predicated region
        $region61: #{vit_forward.4} parent=47 // pred_check
          %p379 = pneg %p147
        $region62: #{vit_forward.4} parent=47 // pred_check_branch
          %381 = sbr.rel (%p379) target = $region64
        $region63: #{vit_forward.4} parent=47 // pred_region
          %382 = dma.done %s375, 256
        $region64: #{vit_forward.4} parent=47 // pred_fallthru
          _
        %p383 = pneg %p43
        %p384 = pneg %p40
        %s385 = sand.u32 %s56, 1
        %s386 = scalar_lea.sflag [#allocation4], %s385
        %s387 = sand.u32 %s56, 1
        %s388 = smul.addr %s387, 16
        %s389 = scalar_lea.vmem [#allocation3], %s388
        %p390 = pneg %p69
        %p391 = pneg %p66
        %s392 = sand.u32 %s27, 1
        %s393 = scalar_lea.sflag [#allocation6], %s392
        %s394 = sand.u32 %s82, 1
        %s395 = smul.addr %s394, 16
        %s396 = scalar_lea.vmem [#allocation5], %s395
        %p397 = pneg %p95
        %p398 = pneg %p92
        %s399 = sand.u32 %s27, 1
        %s400 = scalar_lea.sflag [#allocation6], %s399
        %s401 = sand.u32 %s108, 1
        %s402 = smul.addr %s401, 256
        %s403 = scalar_lea.vmem [#allocation7], %s402
        %p404 = pneg %p121
        %p405 = pneg %p118
        %s406 = sand.u32 %s134, 1
        %s407 = scalar_lea.sflag [#allocation9], %s406
        %s408 = sand.u32 %s134, 1
        %s409 = smul.addr %s408, 16
        %s410 = scalar_lea.vmem [#allocation8], %s409
        %p411 = pneg %p147
        %p412 = pneg %p144
        %p413 = scmp.lt.s32.totalorder %s27, 1
        %s414 = scalar_select %p413, %s27, 1
        %s415 = smul.addr %s414, 256
        %s416 = smul.addr %s415, 4
        %s417 = scalar_lea.vmem %s5, %s416
        %p418 = pneg %p173
        %p419 = pneg %p170
        %p420 = scmp.lt.s32.totalorder %s27, 1
        %s421 = scalar_select %p420, %s27, 1
        %s422 = smul.addr %s421, 2
        %s423 = smul.addr %s422, 8
        %s424 = scalar_lea.vmem %s6, %s423
        %p425 = pneg %p199
        %p426 = pneg %p196
        %p427 = pneg %p220
        %p428 = pneg %p217
        %p429 = scmp.lt.s32.totalorder %s27, 1
        %s430 = scalar_select %p429, %s27, 1
        %s431 = smul.addr %s430, 256
        %s432 = smul.addr %s431, 4
        %s433 = scalar_lea.vmem %s5, %s432
        %p434 = scmp.lt.s32.totalorder %s27, 1
        %s435 = scalar_select %p434, %s27, 1
        %s436 = smul.addr %s435, 2
        %s437 = smul.addr %s436, 8
        %s438 = scalar_lea.vmem %s6, %s437
        %p439 = scmp.eq.s32.totalorder %s27, 0
        // Predicated region
        $region65: #{vit_forward.4} parent=47 // pred_check
          %p440 = pneg %p439
        $region66: #{vit_forward.4} parent=47 // pred_check_branch
          %442 = sbr.rel (%p440) target = $region68
        $region67: #{vit_forward.4} parent=47 // pred_region
          %v443 = vld [vmem:[%s0] sm:$0x3]
          %vm444 = vcmask 254976
          %445 = vst.msk [vmem:[#allocation2] sm:$0x3] %vm444, %v443
        $region68: #{vit_forward.4} parent=47 // pred_fallthru
          _
        %v446 = vld [vmem:[#allocation2] sm:$0x3]
        %v447 = vld [vmem:[%s438] sm:$0xff]
        %v448 = vld [vmem:[%s438 + $0x8] sm:$0x1]
        %v449 = vld [vmem:[%s351] sm:$0xf]
        %v450 = vld [vmem:[%s351 + $0x4] sm:$0xf]
        %v451 = vld [vmem:[%s351 + $0x8] sm:$0xf]
        %v452 = vld [vmem:[%s351 + $0xc] sm:$0xf]
        %v453 = vunpack.c.l.bf16 %v449
        %v454 = vunpack.c.l.bf16 %v450
        %v455 = vunpack.c.l.bf16 %v451
        %v456 = vunpack.c.l.bf16 %v452
        %v457 = vlaneseq
        %v458 = vshrl.u32 %v457, 7
        %v459 = vsub.s32 0, %v458
        %v460 = vrot.slane %v447, %v459
        %vm461 = vcmask 261120
        %v463 = vsel %vm461, %v446, 0
        %465 = vmatprep.subr.mxu0 0.0
        %466 = vmatpush1.msra.mxu0 %v453
        %467 = vmatprep.subr.mxu0 0.0
        %468 = vmatpush1.msra.mxu0 %v454
        %469 = vmatprep.subr.mxu0 0.0
        %470 = vmatpush1.msra.mxu0 %v455
        %471 = vmatprep.subr.mxu0 0.0
        %472 = vmatpush1.msra.mxu0 %v456
        %473 = vmatprep.subr.mxu0 0.0
        %474 = vmatpush1.msra.mxu0 0.0
        %475 = vmatprep.subr.mxu0 0.0
        %476 = vmatpush1.msra.mxu0 0.0
        %477 = vmatprep.subr.mxu0 0.0
        %478 = vmatpush1.msra.mxu0 0.0
        %479 = vmatprep.subr.mxu0 0.0
        %480 = vmatpush1.msra.mxu0 0.0
        %481 = vmatprep.subr.mxu0 0.0
        %482 = vmatpush1.msra.mxu0 0.0
        %483 = vmatprep.subr.mxu0 0.0
        %484 = vmatpush1.msra.mxu0 0.0
        %485 = vmatprep.subr.mxu0 0.0
        %486 = vmatpush1.msra.mxu0 0.0
        %487 = vmatprep.subr.mxu0 0.0
        %488 = vmatpush1.msra.mxu0 0.0
        %489 = vmatprep.subr.mxu0 0.0
        %490 = vmatpush1.msra.mxu0 0.0
        %491 = vmatprep.subr.mxu0 0.0
        %492 = vmatpush1.msra.mxu0 0.0
        %493 = vmatprep.subr.mxu0 0.0
        %494 = vmatpush1.msra.mxu0 0.0
        %495 = vmatprep.subr.mxu0 0.0
        %496 = vmatpush1.msra.mxu0 0.0
        %497 = vmatprep.subr.mxu0 0.0
        %498 = vmatpush1.msra.mxu0 0.0
        %499 = vmatprep.subr.mxu0 0.0
        %500 = vmatpush1.msra.mxu0 0.0
        %501 = vmatprep.subr.mxu0 0.0
        %502 = vmatpush1.msra.mxu0 0.0
        %503 = vmatprep.subr.mxu0 0.0
        %504 = vmatpush1.msra.mxu0 0.0
        %505 = vmatprep.subr.mxu0 0.0
        %506 = vmatpush1.msra.mxu0 0.0
        %507 = vmatprep.subr.mxu0 0.0
        %508 = vmatpush1.msra.mxu0 0.0
        %509 = vmatprep.subr.mxu0 0.0
        %510 = vmatpush1.msra.mxu0 0.0
        %511 = vmatprep.subr.mxu0 0.0
        %512 = vmatpush1.msra.mxu0 0.0
        %513 = vmatprep.subr.mxu0 0.0
        %514 = vmatpush1.msra.mxu0 0.0
        %515 = vmatprep.subr.mxu0 0.0
        %516 = vmatpush1.msra.mxu0 0.0
        %517 = vmatprep.subr.mxu0 0.0
        %518 = vmatpush1.msra.mxu0 0.0
        %519 = vmatprep.subr.mxu0 0.0
        %520 = vmatpush1.msra.mxu0 0.0
        %521 = vmatprep.subr.mxu0 0.0
        %522 = vmatpush1.msra.mxu0 0.0
        %523 = vmatprep.subr.mxu0 0.0
        %524 = vmatpush1.msra.mxu0 0.0
        %525 = vmatprep.subr.mxu0 0.0
        %526 = vmatpush1.msra.mxu0 0.0
        %527 = vmatprep.subr.mxu0 0.0
        %528 = vmatpush1.msra.mxu0 0.0
        %529 = vmatprep.mubr.f32.mxu0 0.0
        %530 = vmatmul.mubr.f32.gmra.mrb[0].mxu0 %v463
        %v531 = vpop.f32.mrb[0].mxu0
        %v532 = vadd.f32 %v460, %v531
        %v533 = vpop.f32.mrb[0].mxu0
        %534 = vdwg.mxu0
        %v535 = vld [vmem:[%s360] sm:$0xf]
        %v536 = vld [vmem:[%s360 + $0x4] sm:$0xf]
        %v537 = vld [vmem:[%s360 + $0x8] sm:$0xf]
        %v538 = vld [vmem:[%s360 + $0xc] sm:$0xf]
        %v539 = vunpack.c.l.bf16 %v535
        %v540 = vunpack.c.l.bf16 %v536
        %v541 = vunpack.c.l.bf16 %v537
        %v542 = vunpack.c.l.bf16 %v538
        %v543 = vlaneseq
        %v544 = vshrl.u32 %v543, 7
        %v545 = vsub.s32 1, %v544
        %v546 = vrot.slane %v447, %v545
        %v548 = vsel %vm461, %v532, 0
        %550 = vmatprep.subr.mxu0 0.0
        %551 = vmatpush1.msra.mxu0 %v539
        %552 = vmatprep.subr.mxu0 0.0
        %553 = vmatpush1.msra.mxu0 %v540
        %554 = vmatprep.subr.mxu0 0.0
        %555 = vmatpush1.msra.mxu0 %v541
        %556 = vmatprep.subr.mxu0 0.0
        %557 = vmatpush1.msra.mxu0 %v542
        %558 = vmatprep.subr.mxu0 0.0
        %559 = vmatpush1.msra.mxu0 0.0
        %560 = vmatprep.subr.mxu0 0.0
        %561 = vmatpush1.msra.mxu0 0.0
        %562 = vmatprep.subr.mxu0 0.0
        %563 = vmatpush1.msra.mxu0 0.0
        %564 = vmatprep.subr.mxu0 0.0
        %565 = vmatpush1.msra.mxu0 0.0
        %566 = vmatprep.subr.mxu0 0.0
        %567 = vmatpush1.msra.mxu0 0.0
        %568 = vmatprep.subr.mxu0 0.0
        %569 = vmatpush1.msra.mxu0 0.0
        %570 = vmatprep.subr.mxu0 0.0
        %571 = vmatpush1.msra.mxu0 0.0
        %572 = vmatprep.subr.mxu0 0.0
        %573 = vmatpush1.msra.mxu0 0.0
        %574 = vmatprep.subr.mxu0 0.0
        %575 = vmatpush1.msra.mxu0 0.0
        %576 = vmatprep.subr.mxu0 0.0
        %577 = vmatpush1.msra.mxu0 0.0
        %578 = vmatprep.subr.mxu0 0.0
        %579 = vmatpush1.msra.mxu0 0.0
        %580 = vmatprep.subr.mxu0 0.0
        %581 = vmatpush1.msra.mxu0 0.0
        %582 = vmatprep.subr.mxu0 0.0
        %583 = vmatpush1.msra.mxu0 0.0
        %584 = vmatprep.subr.mxu0 0.0
        %585 = vmatpush1.msra.mxu0 0.0
        %586 = vmatprep.subr.mxu0 0.0
        %587 = vmatpush1.msra.mxu0 0.0
        %588 = vmatprep.subr.mxu0 0.0
        %589 = vmatpush1.msra.mxu0 0.0
        %590 = vmatprep.subr.mxu0 0.0
        %591 = vmatpush1.msra.mxu0 0.0
        %592 = vmatprep.subr.mxu0 0.0
        %593 = vmatpush1.msra.mxu0 0.0
        %594 = vmatprep.subr.mxu0 0.0
        %595 = vmatpush1.msra.mxu0 0.0
        %596 = vmatprep.subr.mxu0 0.0
        %597 = vmatpush1.msra.mxu0 0.0
        %598 = vmatprep.subr.mxu0 0.0
        %599 = vmatpush1.msra.mxu0 0.0
        %600 = vmatprep.subr.mxu0 0.0
        %601 = vmatpush1.msra.mxu0 0.0
        %602 = vmatprep.subr.mxu0 0.0
        %603 = vmatpush1.msra.mxu0 0.0
        %604 = vmatprep.subr.mxu0 0.0
        %605 = vmatpush1.msra.mxu0 0.0
        %606 = vmatprep.subr.mxu0 0.0
        %607 = vmatpush1.msra.mxu0 0.0
        %608 = vmatprep.subr.mxu0 0.0
        %609 = vmatpush1.msra.mxu0 0.0
        %610 = vmatprep.subr.mxu0 0.0
        %611 = vmatpush1.msra.mxu0 0.0
        %612 = vmatprep.subr.mxu0 0.0
        %613 = vmatpush1.msra.mxu0 0.0
        %614 = vmatprep.mubr.f32.mxu0 0.0
        %615 = vmatmul.mubr.f32.gmra.mrb[0].mxu0 %v548
        %v616 = vpop.f32.mrb[0].mxu0
        %v617 = vadd.f32 %v546, %v616
        %v618 = vpop.f32.mrb[0].mxu0
        %619 = vdwg.mxu0
        %v620 = vadd.f32 %v446, %v617
        %vm621 = vcmask 254976
        %v622 = vsel %vm621, %v620, 0.0
        %623 = vadd.xlane.f32.xlu0 %v622
        %v624 = vpop.xlane.xlu0 %623
        %v625 = vrcp.pop 32.0
        %v626 = vmul.f32 %v624, %v625
        %v627 = vsub.f32 %v620, %v626
        %v628 = vmul.f32 %v627, %v627
        %v629 = vsel %vm621, %v628, 0.0
        %630 = vadd.xlane.f32.xlu0 %v629
        %v631 = vpop.xlane.xlu0 %630
        %v632 = vmul.f32 %v631, %v625
        %v633 = vadd.f32 %v632, 1e-05
        %v634 = vrsqrt.pop %v633
        %v635 = vmul.f32 %v627, %v634
        %v636 = vlaneseq
        %v637 = vshrl.u32 %v636, 7
        %v638 = vsub.s32 3, %v637
        %v639 = vrot.slane %v447, %v638
        %v640 = vmul.f32 %v635, %v639
        %v641 = vlaneseq
        %v642 = vshrl.u32 %v641, 7
        %v643 = vsub.s32 4, %v642
        %v644 = vrot.slane %v447, %v643
        %v645 = vadd.f32 %v640, %v644
        %v646 = vld [vmem:[%s369] sm:$0xff]
        %v647 = vld [vmem:[%s369 + $0x8] sm:$0xff]
        %v648 = vld [vmem:[%s369 + $0x10] sm:$0xff]
        %v649 = vld [vmem:[%s369 + $0x18] sm:$0xff]
        %v650 = vld [vmem:[%s369 + $0x20] sm:$0xff]
        %v651 = vld [vmem:[%s369 + $0x28] sm:$0xff]
        %v652 = vld [vmem:[%s369 + $0x30] sm:$0xff]
        %v653 = vld [vmem:[%s369 + $0x38] sm:$0xff]
        %v654 = vld [vmem:[%s369 + $0x40] sm:$0xff]
        %v655 = vld [vmem:[%s369 + $0x48] sm:$0xff]
        %v656 = vld [vmem:[%s369 + $0x50] sm:$0xff]
        %v657 = vld [vmem:[%s369 + $0x58] sm:$0xff]
        %v658 = vld [vmem:[%s369 + $0x60] sm:$0xff]
        %v659 = vld [vmem:[%s369 + $0x68] sm:$0xff]
        %v660 = vld [vmem:[%s369 + $0x70] sm:$0xff]
        %v661 = vld [vmem:[%s369 + $0x78] sm:$0xff]
        %v662 = vld [vmem:[%s369 + $0x80] sm:$0xff]
        %v663 = vld [vmem:[%s369 + $0x88] sm:$0xff]
        %v664 = vld [vmem:[%s369 + $0x90] sm:$0xff]
        %v665 = vld [vmem:[%s369 + $0x98] sm:$0xff]
        %v666 = vld [vmem:[%s369 + $0xa0] sm:$0xff]
        %v667 = vld [vmem:[%s369 + $0xa8] sm:$0xff]
        %v668 = vld [vmem:[%s369 + $0xb0] sm:$0xff]
        %v669 = vld [vmem:[%s369 + $0xb8] sm:$0xff]
        %v670 = vld [vmem:[%s369 + $0xc0] sm:$0xff]
        %v671 = vld [vmem:[%s369 + $0xc8] sm:$0xff]
        %v672 = vld [vmem:[%s369 + $0xd0] sm:$0xff]
        %v673 = vld [vmem:[%s369 + $0xd8] sm:$0xff]
        %v674 = vld [vmem:[%s369 + $0xe0] sm:$0xff]
        %v675 = vld [vmem:[%s369 + $0xe8] sm:$0xff]
        %v676 = vld [vmem:[%s369 + $0xf0] sm:$0xff]
        %v677 = vld [vmem:[%s369 + $0xf8] sm:$0xff]
        %v678 = vunpack.c.l.bf16 %v646
        %v679 = vunpack.c.h.bf16 %v646
        %v680 = vunpack.c.l.bf16 %v647
        %v681 = vunpack.c.h.bf16 %v647
        %v682 = vunpack.c.l.bf16 %v648
        %v683 = vunpack.c.h.bf16 %v648
        %v684 = vunpack.c.l.bf16 %v649
        %v685 = vunpack.c.h.bf16 %v649
        %v686 = vunpack.c.l.bf16 %v650
        %v687 = vunpack.c.h.bf16 %v650
        %v688 = vunpack.c.l.bf16 %v651
        %v689 = vunpack.c.h.bf16 %v651
        %v690 = vunpack.c.l.bf16 %v652
        %v691 = vunpack.c.h.bf16 %v652
        %v692 = vunpack.c.l.bf16 %v653
        %v693 = vunpack.c.h.bf16 %v653
        %v694 = vunpack.c.l.bf16 %v654
        %v695 = vunpack.c.h.bf16 %v654
        %v696 = vunpack.c.l.bf16 %v655
        %v697 = vunpack.c.h.bf16 %v655
        %v698 = vunpack.c.l.bf16 %v656
        %v699 = vunpack.c.h.bf16 %v656
        %v700 = vunpack.c.l.bf16 %v657
        %v701 = vunpack.c.h.bf16 %v657
        %v702 = vunpack.c.l.bf16 %v658
        %v703 = vunpack.c.h.bf16 %v658
        %v704 = vunpack.c.l.bf16 %v659
        %v705 = vunpack.c.h.bf16 %v659
        %v706 = vunpack.c.l.bf16 %v660
        %v707 = vunpack.c.h.bf16 %v660
        %v708 = vunpack.c.l.bf16 %v661
        %v709 = vunpack.c.h.bf16 %v661
        %v710 = vunpack.c.l.bf16 %v662
        %v711 = vunpack.c.h.bf16 %v662
        %v712 = vunpack.c.l.bf16 %v663
        %v713 = vunpack.c.h.bf16 %v663
        %v714 = vunpack.c.l.bf16 %v664
        %v715 = vunpack.c.h.bf16 %v664
        %v716 = vunpack.c.l.bf16 %v665
        %v717 = vunpack.c.h.bf16 %v665
        %v718 = vunpack.c.l.bf16 %v666
        %v719 = vunpack.c.h.bf16 %v666
        %v720 = vunpack.c.l.bf16 %v667
        %v721 = vunpack.c.h.bf16 %v667
        %v722 = vunpack.c.l.bf16 %v668
        %v723 = vunpack.c.h.bf16 %v668
        %v724 = vunpack.c.l.bf16 %v669
        %v725 = vunpack.c.h.bf16 %v669
        %v726 = vunpack.c.l.bf16 %v670
        %v727 = vunpack.c.h.bf16 %v670
        %v728 = vunpack.c.l.bf16 %v671
        %v729 = vunpack.c.h.bf16 %v671
        %v730 = vunpack.c.l.bf16 %v672
        %v731 = vunpack.c.h.bf16 %v672
        %v732 = vunpack.c.l.bf16 %v673
        %v733 = vunpack.c.h.bf16 %v673
        %v734 = vunpack.c.l.bf16 %v674
        %v735 = vunpack.c.h.bf16 %v674
        %v736 = vunpack.c.l.bf16 %v675
        %v737 = vunpack.c.h.bf16 %v675
        %v738 = vunpack.c.l.bf16 %v676
        %v739 = vunpack.c.h.bf16 %v676
        %v740 = vunpack.c.l.bf16 %v677
        %v741 = vunpack.c.h.bf16 %v677
        %v742 = vld [vmem:[%s378] sm:$0xff]
        %v743 = vld [vmem:[%s378 + $0x8] sm:$0xff]
        %v746 = vlaneseq
        %v747 = vshrl.u32 %v746, 7
        %v748 = vsub.s32 0, %v747
        %v749 = vrot.slane %v742, %v748
        %v750 = vlaneseq
        %v751 = vshrl.u32 %v750, 7
        %v752 = vsub.s32 1, %v751
        %v753 = vrot.slane %v742, %v752
        %v754 = vlaneseq
        %v755 = vshrl.u32 %v754, 7
        %v756 = vsub.s32 2, %v755
        %v757 = vrot.slane %v742, %v756
        %v758 = vlaneseq
        %v759 = vshrl.u32 %v758, 7
        %v760 = vsub.s32 3, %v759
        %v761 = vrot.slane %v742, %v760
        %v762 = vlaneseq
        %v763 = vshrl.u32 %v762, 7
        %v764 = vsub.s32 4, %v763
        %v765 = vrot.slane %v742, %v764
        %v766 = vlaneseq
        %v767 = vshrl.u32 %v766, 7
        %v768 = vsub.s32 5, %v767
        %v769 = vrot.slane %v742, %v768
        %v770 = vlaneseq
        %v771 = vshrl.u32 %v770, 7
        %v772 = vsub.s32 6, %v771
        %v773 = vrot.slane %v742, %v772
        %v774 = vlaneseq
        %v775 = vshrl.u32 %v774, 7
        %v776 = vsub.s32 7, %v775
        %v777 = vrot.slane %v742, %v776
        %v778 = vlaneseq
        %v779 = vshrl.u32 %v778, 7
        %v780 = vsub.s32 0, %v779
        %v781 = vrot.slane %v743, %v780
        %v782 = vlaneseq
        %v783 = vshrl.u32 %v782, 7
        %v784 = vsub.s32 1, %v783
        %v785 = vrot.slane %v743, %v784
        %v786 = vlaneseq
        %v787 = vshrl.u32 %v786, 7
        %v788 = vsub.s32 2, %v787
        %v789 = vrot.slane %v743, %v788
        %v790 = vlaneseq
        %v791 = vshrl.u32 %v790, 7
        %v792 = vsub.s32 3, %v791
        %v793 = vrot.slane %v743, %v792
        %v794 = vlaneseq
        %v795 = vshrl.u32 %v794, 7
        %v796 = vsub.s32 4, %v795
        %v797 = vrot.slane %v743, %v796
        %v798 = vlaneseq
        %v799 = vshrl.u32 %v798, 7
        %v800 = vsub.s32 5, %v799
        %v801 = vrot.slane %v743, %v800
        %v802 = vlaneseq
        %v803 = vshrl.u32 %v802, 7
        %v804 = vsub.s32 6, %v803
        %v805 = vrot.slane %v743, %v804
        %v806 = vlaneseq
        %v807 = vshrl.u32 %v806, 7
        %v808 = vsub.s32 7, %v807
        %v809 = vrot.slane %v743, %v808
        %v827 = vsel %vm461, %v645, 0
        %829 = vmatprep.subr.mxu0 %v679
        %830 = vmatpush1.msra.mxu0 %v678
        %831 = vmatprep.subr.mxu0 %v695
        %832 = vmatpush1.msra.mxu0 %v694
        %833 = vmatprep.subr.mxu0 %v711
        %834 = vmatpush1.msra.mxu0 %v710
        %835 = vmatprep.subr.mxu0 %v727
        %836 = vmatpush1.msra.mxu0 %v726
        %837 = vmatprep.subr.mxu0 0.0
        %838 = vmatpush1.msra.mxu0 0.0
        %839 = vmatprep.subr.mxu0 0.0
        %840 = vmatpush1.msra.mxu0 0.0
        %841 = vmatprep.subr.mxu0 0.0
        %842 = vmatpush1.msra.mxu0 0.0
        %843 = vmatprep.subr.mxu0 0.0
        %844 = vmatpush1.msra.mxu0 0.0
        %845 = vmatprep.subr.mxu0 0.0
        %846 = vmatpush1.msra.mxu0 0.0
        %847 = vmatprep.subr.mxu0 0.0
        %848 = vmatpush1.msra.mxu0 0.0
        %849 = vmatprep.subr.mxu0 0.0
        %850 = vmatpush1.msra.mxu0 0.0
        %851 = vmatprep.subr.mxu0 0.0
        %852 = vmatpush1.msra.mxu0 0.0
        %853 = vmatprep.subr.mxu0 0.0
        %854 = vmatpush1.msra.mxu0 0.0
        %855 = vmatprep.subr.mxu0 0.0
        %856 = vmatpush1.msra.mxu0 0.0
        %857 = vmatprep.subr.mxu0 0.0
        %858 = vmatpush1.msra.mxu0 0.0
        %859 = vmatprep.subr.mxu0 0.0
        %860 = vmatpush1.msra.mxu0 0.0
        %861 = vmatprep.subr.mxu0 0.0
        %862 = vmatpush1.msra.mxu0 0.0
        %863 = vmatprep.subr.mxu0 0.0
        %864 = vmatpush1.msra.mxu0 0.0
        %865 = vmatprep.subr.mxu0 0.0
        %866 = vmatpush1.msra.mxu0 0.0
        %867 = vmatprep.subr.mxu0 0.0
        %868 = vmatpush1.msra.mxu0 0.0
        %869 = vmatprep.subr.mxu0 0.0
        %870 = vmatpush1.msra.mxu0 0.0
        %871 = vmatprep.subr.mxu0 0.0
        %872 = vmatpush1.msra.mxu0 0.0
        %873 = vmatprep.subr.mxu0 0.0
        %874 = vmatpush1.msra.mxu0 0.0
        %875 = vmatprep.subr.mxu0 0.0
        %876 = vmatpush1.msra.mxu0 0.0
        %877 = vmatprep.subr.mxu0 0.0
        %878 = vmatpush1.msra.mxu0 0.0
        %879 = vmatprep.subr.mxu0 0.0
        %880 = vmatpush1.msra.mxu0 0.0
        %881 = vmatprep.subr.mxu0 0.0
        %882 = vmatpush1.msra.mxu0 0.0
        %883 = vmatprep.subr.mxu0 0.0
        %884 = vmatpush1.msra.mxu0 0.0
        %885 = vmatprep.subr.mxu0 0.0
        %886 = vmatpush1.msra.mxu0 0.0
        %887 = vmatprep.subr.mxu0 0.0
        %888 = vmatpush1.msra.mxu0 0.0
        %889 = vmatprep.subr.mxu0 0.0
        %890 = vmatpush1.msra.mxu0 0.0
        %891 = vmatprep.subr.mxu0 0.0
        %892 = vmatpush1.msra.mxu0 0.0
        %893 = vmatprep.mubr.f32.mxu0 0.0
        %894 = vmatmul.mubr.f32.gmra.mrb[0].mxu0 %v827
        %v895 = vpop.f32.mrb[0].mxu0
        %v896 = vadd.f32 %v749, %v895
        %v897 = vpop.f32.mrb[0].mxu0
        %v898 = vadd.f32 %v753, %v897
        %899 = vdwg.mxu0
        %900 = vmatprep.subr.mxu0 %v681
        %901 = vmatpush1.msra.mxu0 %v680
        %902 = vmatprep.subr.mxu0 %v697
        %903 = vmatpush1.msra.mxu0 %v696
        %904 = vmatprep.subr.mxu0 %v713
        %905 = vmatpush1.msra.mxu0 %v712
        %906 = vmatprep.subr.mxu0 %v729
        %907 = vmatpush1.msra.mxu0 %v728
        %908 = vmatprep.subr.mxu0 0.0
        %909 = vmatpush1.msra.mxu0 0.0
        %910 = vmatprep.subr.mxu0 0.0
        %911 = vmatpush1.msra.mxu0 0.0
        %912 = vmatprep.subr.mxu0 0.0
        %913 = vmatpush1.msra.mxu0 0.0
        %914 = vmatprep.subr.mxu0 0.0
        %915 = vmatpush1.msra.mxu0 0.0
        %916 = vmatprep.subr.mxu0 0.0
        %917 = vmatpush1.msra.mxu0 0.0
        %918 = vmatprep.subr.mxu0 0.0
        %919 = vmatpush1.msra.mxu0 0.0
        %920 = vmatprep.subr.mxu0 0.0
        %921 = vmatpush1.msra.mxu0 0.0
        %922 = vmatprep.subr.mxu0 0.0
        %923 = vmatpush1.msra.mxu0 0.0
        %924 = vmatprep.subr.mxu0 0.0
        %925 = vmatpush1.msra.mxu0 0.0
        %926 = vmatprep.subr.mxu0 0.0
        %927 = vmatpush1.msra.mxu0 0.0
        %928 = vmatprep.subr.mxu0 0.0
        %929 = vmatpush1.msra.mxu0 0.0
        %930 = vmatprep.subr.mxu0 0.0
        %931 = vmatpush1.msra.mxu0 0.0
        %932 = vmatprep.subr.mxu0 0.0
        %933 = vmatpush1.msra.mxu0 0.0
        %934 = vmatprep.subr.mxu0 0.0
        %935 = vmatpush1.msra.mxu0 0.0
        %936 = vmatprep.subr.mxu0 0.0
        %937 = vmatpush1.msra.mxu0 0.0
        %938 = vmatprep.subr.mxu0 0.0
        %939 = vmatpush1.msra.mxu0 0.0
        %940 = vmatprep.subr.mxu0 0.0
        %941 = vmatpush1.msra.mxu0 0.0
        %942 = vmatprep.subr.mxu0 0.0
        %943 = vmatpush1.msra.mxu0 0.0
        %944 = vmatprep.subr.mxu0 0.0
        %945 = vmatpush1.msra.mxu0 0.0
        %946 = vmatprep.subr.mxu0 0.0
        %947 = vmatpush1.msra.mxu0 0.0
        %948 = vmatprep.subr.mxu0 0.0
        %949 = vmatpush1.msra.mxu0 0.0
        %950 = vmatprep.subr.mxu0 0.0
        %951 = vmatpush1.msra.mxu0 0.0
        %952 = vmatprep.subr.mxu0 0.0
        %953 = vmatpush1.msra.mxu0 0.0
        %954 = vmatprep.subr.mxu0 0.0
        %955 = vmatpush1.msra.mxu0 0.0
        %956 = vmatprep.subr.mxu0 0.0
        %957 = vmatpush1.msra.mxu0 0.0
        %958 = vmatprep.subr.mxu0 0.0
        %959 = vmatpush1.msra.mxu0 0.0
        %960 = vmatprep.subr.mxu0 0.0
        %961 = vmatpush1.msra.mxu0 0.0
        %962 = vmatprep.subr.mxu0 0.0
        %963 = vmatpush1.msra.mxu0 0.0
        %964 = vmatprep.mubr.f32.mxu0 0.0
        %965 = vmatmul.mubr.f32.gmra.mrb[0].mxu0 %v827
        %v966 = vpop.f32.mrb[0].mxu0
        %v967 = vadd.f32 %v757, %v966
        %v968 = vpop.f32.mrb[0].mxu0
        %v969 = vadd.f32 %v761, %v968
        %970 = vdwg.mxu0
        %971 = vmatprep.subr.mxu0 %v683
        %972 = vmatpush1.msra.mxu0 %v682
        %973 = vmatprep.subr.mxu0 %v699
        %974 = vmatpush1.msra.mxu0 %v698
        %975 = vmatprep.subr.mxu0 %v715
        %976 = vmatpush1.msra.mxu0 %v714
        %977 = vmatprep.subr.mxu0 %v731
        %978 = vmatpush1.msra.mxu0 %v730
        %979 = vmatprep.subr.mxu0 0.0
        %980 = vmatpush1.msra.mxu0 0.0
        %981 = vmatprep.subr.mxu0 0.0
        %982 = vmatpush1.msra.mxu0 0.0
        %983 = vmatprep.subr.mxu0 0.0
        %984 = vmatpush1.msra.mxu0 0.0
        %985 = vmatprep.subr.mxu0 0.0
        %986 = vmatpush1.msra.mxu0 0.0
        %987 = vmatprep.subr.mxu0 0.0
        %988 = vmatpush1.msra.mxu0 0.0
        %989 = vmatprep.subr.mxu0 0.0
        %990 = vmatpush1.msra.mxu0 0.0
        %991 = vmatprep.subr.mxu0 0.0
        %992 = vmatpush1.msra.mxu0 0.0
        %993 = vmatprep.subr.mxu0 0.0
        %994 = vmatpush1.msra.mxu0 0.0
        %995 = vmatprep.subr.mxu0 0.0
        %996 = vmatpush1.msra.mxu0 0.0
        %997 = vmatprep.subr.mxu0 0.0
        %998 = vmatpush1.msra.mxu0 0.0
        %999 = vmatprep.subr.mxu0 0.0
        %1000 = vmatpush1.msra.mxu0 0.0
        %1001 = vmatprep.subr.mxu0 0.0
        %1002 = vmatpush1.msra.mxu0 0.0
        %1003 = vmatprep.subr.mxu0 0.0
        %1004 = vmatpush1.msra.mxu0 0.0
        %1005 = vmatprep.subr.mxu0 0.0
        %1006 = vmatpush1.msra.mxu0 0.0
        %1007 = vmatprep.subr.mxu0 0.0
        %1008 = vmatpush1.msra.mxu0 0.0
        %1009 = vmatprep.subr.mxu0 0.0
        %1010 = vmatpush1.msra.mxu0 0.0
        %1011 = vmatprep.subr.mxu0 0.0
        %1012 = vmatpush1.msra.mxu0 0.0
        %1013 = vmatprep.subr.mxu0 0.0
        %1014 = vmatpush1.msra.mxu0 0.0
        %1015 = vmatprep.subr.mxu0 0.0
        %1016 = vmatpush1.msra.mxu0 0.0
        %1017 = vmatprep.subr.mxu0 0.0
        %1018 = vmatpush1.msra.mxu0 0.0
        %1019 = vmatprep.subr.mxu0 0.0
        %1020 = vmatpush1.msra.mxu0 0.0
        %1021 = vmatprep.subr.mxu0 0.0
        %1022 = vmatpush1.msra.mxu0 0.0
        %1023 = vmatprep.subr.mxu0 0.0
        %1024 = vmatpush1.msra.mxu0 0.0
        %1025 = vmatprep.subr.mxu0 0.0
        %1026 = vmatpush1.msra.mxu0 0.0
        %1027 = vmatprep.subr.mxu0 0.0
        %1028 = vmatpush1.msra.mxu0 0.0
        %1029 = vmatprep.subr.mxu0 0.0
        %1030 = vmatpush1.msra.mxu0 0.0
        %1031 = vmatprep.subr.mxu0 0.0
        %1032 = vmatpush1.msra.mxu0 0.0
        %1033 = vmatprep.subr.mxu0 0.0
        %1034 = vmatpush1.msra.mxu0 0.0
        %1035 = vmatprep.mubr.f32.mxu0 0.0
        %1036 = vmatmul.mubr.f32.gmra.mrb[0].mxu0 %v827
        %v1037 = vpop.f32.mrb[0].mxu0
        %v1038 = vadd.f32 %v765, %v1037
        %v1039 = vpop.f32.mrb[0].mxu0
        %v1040 = vadd.f32 %v769, %v1039
        %1041 = vdwg.mxu0
        %1042 = vmatprep.subr.mxu0 %v685
        %1043 = vmatpush1.msra.mxu0 %v684
        %1044 = vmatprep.subr.mxu0 %v701
        %1045 = vmatpush1.msra.mxu0 %v700
        %1046 = vmatprep.subr.mxu0 %v717
        %1047 = vmatpush1.msra.mxu0 %v716
        %1048 = vmatprep.subr.mxu0 %v733
        %1049 = vmatpush1.msra.mxu0 %v732
        %1050 = vmatprep.subr.mxu0 0.0
        %1051 = vmatpush1.msra.mxu0 0.0
        %1052 = vmatprep.subr.mxu0 0.0
        %1053 = vmatpush1.msra.mxu0 0.0
        %1054 = vmatprep.subr.mxu0 0.0
        %1055 = vmatpush1.msra.mxu0 0.0
        %1056 = vmatprep.subr.mxu0 0.0
        %1057 = vmatpush1.msra.mxu0 0.0
        %1058 = vmatprep.subr.mxu0 0.0
        %1059 = vmatpush1.msra.mxu0 0.0
        %1060 = vmatprep.subr.mxu0 0.0
        %1061 = vmatpush1.msra.mxu0 0.0
        %1062 = vmatprep.subr.mxu0 0.0
        %1063 = vmatpush1.msra.mxu0 0.0
        %1064 = vmatprep.subr.mxu0 0.0
        %1065 = vmatpush1.msra.mxu0 0.0
        %1066 = vmatprep.subr.mxu0 0.0
        %1067 = vmatpush1.msra.mxu0 0.0
        %1068 = vmatprep.subr.mxu0 0.0
        %1069 = vmatpush1.msra.mxu0 0.0
        %1070 = vmatprep.subr.mxu0 0.0
        %1071 = vmatpush1.msra.mxu0 0.0
        %1072 = vmatprep.subr.mxu0 0.0
        %1073 = vmatpush1.msra.mxu0 0.0
        %1074 = vmatprep.subr.mxu0 0.0
        %1075 = vmatpush1.msra.mxu0 0.0
        %1076 = vmatprep.subr.mxu0 0.0
        %1077 = vmatpush1.msra.mxu0 0.0
        %1078 = vmatprep.subr.mxu0 0.0
        %1079 = vmatpush1.msra.mxu0 0.0
        %1080 = vmatprep.subr.mxu0 0.0
        %1081 = vmatpush1.msra.mxu0 0.0
        %1082 = vmatprep.subr.mxu0 0.0
        %1083 = vmatpush1.msra.mxu0 0.0
        %1084 = vmatprep.subr.mxu0 0.0
        %1085 = vmatpush1.msra.mxu0 0.0
        %1086 = vmatprep.subr.mxu0 0.0
        %1087 = vmatpush1.msra.mxu0 0.0
        %1088 = vmatprep.subr.mxu0 0.0
        %1089 = vmatpush1.msra.mxu0 0.0
        %1090 = vmatprep.subr.mxu0 0.0
        %1091 = vmatpush1.msra.mxu0 0.0
        %1092 = vmatprep.subr.mxu0 0.0
        %1093 = vmatpush1.msra.mxu0 0.0
        %1094 = vmatprep.subr.mxu0 0.0
        %1095 = vmatpush1.msra.mxu0 0.0
        %1096 = vmatprep.subr.mxu0 0.0
        %1097 = vmatpush1.msra.mxu0 0.0
        %1098 = vmatprep.subr.mxu0 0.0
        %1099 = vmatpush1.msra.mxu0 0.0
        %1100 = vmatprep.subr.mxu0 0.0
        %1101 = vmatpush1.msra.mxu0 0.0
        %1102 = vmatprep.subr.mxu0 0.0
        %1103 = vmatpush1.msra.mxu0 0.0
        %1104 = vmatprep.subr.mxu0 0.0
        %1105 = vmatpush1.msra.mxu0 0.0
        %1106 = vmatprep.mubr.f32.mxu0 0.0
        %1107 = vmatmul.mubr.f32.gmra.mrb[0].mxu0 %v827
        %v1108 = vpop.f32.mrb[0].mxu0
        %v1109 = vadd.f32 %v773, %v1108
        %v1110 = vpop.f32.mrb[0].mxu0
        %v1111 = vadd.f32 %v777, %v1110
        %1112 = vdwg.mxu0
        %1113 = vmatprep.subr.mxu0 %v687
        %1114 = vmatpush1.msra.mxu0 %v686
        %1115 = vmatprep.subr.mxu0 %v703
        %1116 = vmatpush1.msra.mxu0 %v702
        %1117 = vmatprep.subr.mxu0 %v719
        %1118 = vmatpush1.msra.mxu0 %v718
        %1119 = vmatprep.subr.mxu0 %v735
        %1120 = vmatpush1.msra.mxu0 %v734
        %1121 = vmatprep.subr.mxu0 0.0
        %1122 = vmatpush1.msra.mxu0 0.0
        %1123 = vmatprep.subr.mxu0 0.0
        %1124 = vmatpush1.msra.mxu0 0.0
        %1125 = vmatprep.subr.mxu0 0.0
        %1126 = vmatpush1.msra.mxu0 0.0
        %1127 = vmatprep.subr.mxu0 0.0
        %1128 = vmatpush1.msra.mxu0 0.0
        %1129 = vmatprep.subr.mxu0 0.0
        %1130 = vmatpush1.msra.mxu0 0.0
        %1131 = vmatprep.subr.mxu0 0.0
        %1132 = vmatpush1.msra.mxu0 0.0
        %1133 = vmatprep.subr.mxu0 0.0
        %1134 = vmatpush1.msra.mxu0 0.0
        %1135 = vmatprep.subr.mxu0 0.0
        %1136 = vmatpush1.msra.mxu0 0.0
        %1137 = vmatprep.subr.mxu0 0.0
        %1138 = vmatpush1.msra.mxu0 0.0
        %1139 = vmatprep.subr.mxu0 0.0
        %1140 = vmatpush1.msra.mxu0 0.0
        %1141 = vmatprep.subr.mxu0 0.0
        %1142 = vmatpush1.msra.mxu0 0.0
        %1143 = vmatprep.subr.mxu0 0.0
        %1144 = vmatpush1.msra.mxu0 0.0
        %1145 = vmatprep.subr.mxu0 0.0
        %1146 = vmatpush1.msra.mxu0 0.0
        %1147 = vmatprep.subr.mxu0 0.0
        %1148 = vmatpush1.msra.mxu0 0.0
        %1149 = vmatprep.subr.mxu0 0.0
        %1150 = vmatpush1.msra.mxu0 0.0
        %1151 = vmatprep.subr.mxu0 0.0
        %1152 = vmatpush1.msra.mxu0 0.0
        %1153 = vmatprep.subr.mxu0 0.0
        %1154 = vmatpush1.msra.mxu0 0.0
        %1155 = vmatprep.subr.mxu0 0.0
        %1156 = vmatpush1.msra.mxu0 0.0
        %1157 = vmatprep.subr.mxu0 0.0
        %1158 = vmatpush1.msra.mxu0 0.0
        %1159 = vmatprep.subr.mxu0 0.0
        %1160 = vmatpush1.msra.mxu0 0.0
        %1161 = vmatprep.subr.mxu0 0.0
        %1162 = vmatpush1.msra.mxu0 0.0
        %1163 = vmatprep.subr.mxu0 0.0
        %1164 = vmatpush1.msra.mxu0 0.0
        %1165 = vmatprep.subr.mxu0 0.0
        %1166 = vmatpush1.msra.mxu0 0.0
        %1167 = vmatprep.subr.mxu0 0.0
        %1168 = vmatpush1.msra.mxu0 0.0
        %1169 = vmatprep.subr.mxu0 0.0
        %1170 = vmatpush1.msra.mxu0 0.0
        %1171 = vmatprep.subr.mxu0 0.0
        %1172 = vmatpush1.msra.mxu0 0.0
        %1173 = vmatprep.subr.mxu0 0.0
        %1174 = vmatpush1.msra.mxu0 0.0
        %1175 = vmatprep.subr.mxu0 0.0
        %1176 = vmatpush1.msra.mxu0 0.0
        %1177 = vmatprep.mubr.f32.mxu0 0.0
        %1178 = vmatmul.mubr.f32.gmra.mrb[0].mxu0 %v827
        %v1179 = vpop.f32.mrb[0].mxu0
        %v1180 = vadd.f32 %v781, %v1179
        %v1181 = vpop.f32.mrb[0].mxu0
        %v1182 = vadd.f32 %v785, %v1181
        %1183 = vdwg.mxu0
        %1184 = vmatprep.subr.mxu0 %v689
        %1185 = vmatpush1.msra.mxu0 %v688
        %1186 = vmatprep.subr.mxu0 %v705
        %1187 = vmatpush1.msra.mxu0 %v704
        %1188 = vmatprep.subr.mxu0 %v721
        %1189 = vmatpush1.msra.mxu0 %v720
        %1190 = vmatprep.subr.mxu0 %v737
        %1191 = vmatpush1.msra.mxu0 %v736
        %1192 = vmatprep.subr.mxu0 0.0
        %1193 = vmatpush1.msra.mxu0 0.0
        %1194 = vmatprep.subr.mxu0 0.0
        %1195 = vmatpush1.msra.mxu0 0.0
        %1196 = vmatprep.subr.mxu0 0.0
        %1197 = vmatpush1.msra.mxu0 0.0
        %1198 = vmatprep.subr.mxu0 0.0
        %1199 = vmatpush1.msra.mxu0 0.0
        %1200 = vmatprep.subr.mxu0 0.0
        %1201 = vmatpush1.msra.mxu0 0.0
        %1202 = vmatprep.subr.mxu0 0.0
        %1203 = vmatpush1.msra.mxu0 0.0
        %1204 = vmatprep.subr.mxu0 0.0
        %1205 = vmatpush1.msra.mxu0 0.0
        %1206 = vmatprep.subr.mxu0 0.0
        %1207 = vmatpush1.msra.mxu0 0.0
        %1208 = vmatprep.subr.mxu0 0.0
        %1209 = vmatpush1.msra.mxu0 0.0
        %1210 = vmatprep.subr.mxu0 0.0
        %1211 = vmatpush1.msra.mxu0 0.0
        %1212 = vmatprep.subr.mxu0 0.0
        %1213 = vmatpush1.msra.mxu0 0.0
        %1214 = vmatprep.subr.mxu0 0.0
        %1215 = vmatpush1.msra.mxu0 0.0
        %1216 = vmatprep.subr.mxu0 0.0
        %1217 = vmatpush1.msra.mxu0 0.0
        %1218 = vmatprep.subr.mxu0 0.0
        %1219 = vmatpush1.msra.mxu0 0.0
        %1220 = vmatprep.subr.mxu0 0.0
        %1221 = vmatpush1.msra.mxu0 0.0
        %1222 = vmatprep.subr.mxu0 0.0
        %1223 = vmatpush1.msra.mxu0 0.0
        %1224 = vmatprep.subr.mxu0 0.0
        %1225 = vmatpush1.msra.mxu0 0.0
        %1226 = vmatprep.subr.mxu0 0.0
        %1227 = vmatpush1.msra.mxu0 0.0
        %1228 = vmatprep.subr.mxu0 0.0
        %1229 = vmatpush1.msra.mxu0 0.0
        %1230 = vmatprep.subr.mxu0 0.0
        %1231 = vmatpush1.msra.mxu0 0.0
        %1232 = vmatprep.subr.mxu0 0.0
        %1233 = vmatpush1.msra.mxu0 0.0
        %1234 = vmatprep.subr.mxu0 0.0
        %1235 = vmatpush1.msra.mxu0 0.0
        %1236 = vmatprep.subr.mxu0 0.0
        %1237 = vmatpush1.msra.mxu0 0.0
        %1238 = vmatprep.subr.mxu0 0.0
        %1239 = vmatpush1.msra.mxu0 0.0
        %1240 = vmatprep.subr.mxu0 0.0
        %1241 = vmatpush1.msra.mxu0 0.0
        %1242 = vmatprep.subr.mxu0 0.0
        %1243 = vmatpush1.msra.mxu0 0.0
        %1244 = vmatprep.subr.mxu0 0.0
        %1245 = vmatpush1.msra.mxu0 0.0
        %1246 = vmatprep.subr.mxu0 0.0
        %1247 = vmatpush1.msra.mxu0 0.0
        %1248 = vmatprep.mubr.f32.mxu0 0.0
        %1249 = vmatmul.mubr.f32.gmra.mrb[0].mxu0 %v827
        %v1250 = vpop.f32.mrb[0].mxu0
        %v1251 = vadd.f32 %v789, %v1250
        %v1252 = vpop.f32.mrb[0].mxu0
        %v1253 = vadd.f32 %v793, %v1252
        %1254 = vdwg.mxu0
        %1255 = vmatprep.subr.mxu0 %v691
        %1256 = vmatpush1.msra.mxu0 %v690
        %1257 = vmatprep.subr.mxu0 %v707
        %1258 = vmatpush1.msra.mxu0 %v706
        %1259 = vmatprep.subr.mxu0 %v723
        %1260 = vmatpush1.msra.mxu0 %v722
        %1261 = vmatprep.subr.mxu0 %v739
        %1262 = vmatpush1.msra.mxu0 %v738
        %1263 = vmatprep.subr.mxu0 0.0
        %1264 = vmatpush1.msra.mxu0 0.0
        %1265 = vmatprep.subr.mxu0 0.0
        %1266 = vmatpush1.msra.mxu0 0.0
        %1267 = vmatprep.subr.mxu0 0.0
        %1268 = vmatpush1.msra.mxu0 0.0
        %1269 = vmatprep.subr.mxu0 0.0
        %1270 = vmatpush1.msra.mxu0 0.0
        %1271 = vmatprep.subr.mxu0 0.0
        %1272 = vmatpush1.msra.mxu0 0.0
        %1273 = vmatprep.subr.mxu0 0.0
        %1274 = vmatpush1.msra.mxu0 0.0
        %1275 = vmatprep.subr.mxu0 0.0
        %1276 = vmatpush1.msra.mxu0 0.0
        %1277 = vmatprep.subr.mxu0 0.0
        %1278 = vmatpush1.msra.mxu0 0.0
        %1279 = vmatprep.subr.mxu0 0.0
        %1280 = vmatpush1.msra.mxu0 0.0
        %1281 = vmatprep.subr.mxu0 0.0
        %1282 = vmatpush1.msra.mxu0 0.0
        %1283 = vmatprep.subr.mxu0 0.0
        %1284 = vmatpush1.msra.mxu0 0.0
        %1285 = vmatprep.subr.mxu0 0.0
        %1286 = vmatpush1.msra.mxu0 0.0
        %1287 = vmatprep.subr.mxu0 0.0
        %1288 = vmatpush1.msra.mxu0 0.0
        %1289 = vmatprep.subr.mxu0 0.0
        %1290 = vmatpush1.msra.mxu0 0.0
        %1291 = vmatprep.subr.mxu0 0.0
        %1292 = vmatpush1.msra.mxu0 0.0
        %1293 = vmatprep.subr.mxu0 0.0
        %1294 = vmatpush1.msra.mxu0 0.0
        %1295 = vmatprep.subr.mxu0 0.0
        %1296 = vmatpush1.msra.mxu0 0.0
        %1297 = vmatprep.subr.mxu0 0.0
        %1298 = vmatpush1.msra.mxu0 0.0
        %1299 = vmatprep.subr.mxu0 0.0
        %1300 = vmatpush1.msra.mxu0 0.0
        %1301 = vmatprep.subr.mxu0 0.0
        %1302 = vmatpush1.msra.mxu0 0.0
        %1303 = vmatprep.subr.mxu0 0.0
        %1304 = vmatpush1.msra.mxu0 0.0
        %1305 = vmatprep.subr.mxu0 0.0
        %1306 = vmatpush1.msra.mxu0 0.0
        %1307 = vmatprep.subr.mxu0 0.0
        %1308 = vmatpush1.msra.mxu0 0.0
        %1309 = vmatprep.subr.mxu0 0.0
        %1310 = vmatpush1.msra.mxu0 0.0
        %1311 = vmatprep.subr.mxu0 0.0
        %1312 = vmatpush1.msra.mxu0 0.0
        %1313 = vmatprep.subr.mxu0 0.0
        %1314 = vmatpush1.msra.mxu0 0.0
        %1315 = vmatprep.subr.mxu0 0.0
        %1316 = vmatpush1.msra.mxu0 0.0
        %1317 = vmatprep.subr.mxu0 0.0
        %1318 = vmatpush1.msra.mxu0 0.0
        %1319 = vmatprep.mubr.f32.mxu0 0.0
        %1320 = vmatmul.mubr.f32.gmra.mrb[0].mxu0 %v827
        %v1321 = vpop.f32.mrb[0].mxu0
        %v1322 = vadd.f32 %v797, %v1321
        %v1323 = vpop.f32.mrb[0].mxu0
        %v1324 = vadd.f32 %v801, %v1323
        %1325 = vdwg.mxu0
        %1326 = vmatprep.subr.mxu0 %v693
        %1327 = vmatpush1.msra.mxu0 %v692
        %1328 = vmatprep.subr.mxu0 %v709
        %1329 = vmatpush1.msra.mxu0 %v708
        %1330 = vmatprep.subr.mxu0 %v725
        %1331 = vmatpush1.msra.mxu0 %v724
        %1332 = vmatprep.subr.mxu0 %v741
        %1333 = vmatpush1.msra.mxu0 %v740
        %1334 = vmatprep.subr.mxu0 0.0
        %1335 = vmatpush1.msra.mxu0 0.0
        %1336 = vmatprep.subr.mxu0 0.0
        %1337 = vmatpush1.msra.mxu0 0.0
        %1338 = vmatprep.subr.mxu0 0.0
        %1339 = vmatpush1.msra.mxu0 0.0
        %1340 = vmatprep.subr.mxu0 0.0
        %1341 = vmatpush1.msra.mxu0 0.0
        %1342 = vmatprep.subr.mxu0 0.0
        %1343 = vmatpush1.msra.mxu0 0.0
        %1344 = vmatprep.subr.mxu0 0.0
        %1345 = vmatpush1.msra.mxu0 0.0
        %1346 = vmatprep.subr.mxu0 0.0
        %1347 = vmatpush1.msra.mxu0 0.0
        %1348 = vmatprep.subr.mxu0 0.0
        %1349 = vmatpush1.msra.mxu0 0.0
        %1350 = vmatprep.subr.mxu0 0.0
        %1351 = vmatpush1.msra.mxu0 0.0
        %1352 = vmatprep.subr.mxu0 0.0
        %1353 = vmatpush1.msra.mxu0 0.0
        %1354 = vmatprep.subr.mxu0 0.0
        %1355 = vmatpush1.msra.mxu0 0.0
        %1356 = vmatprep.subr.mxu0 0.0
        %1357 = vmatpush1.msra.mxu0 0.0
        %1358 = vmatprep.subr.mxu0 0.0
        %1359 = vmatpush1.msra.mxu0 0.0
        %1360 = vmatprep.subr.mxu0 0.0
        %1361 = vmatpush1.msra.mxu0 0.0
        %1362 = vmatprep.subr.mxu0 0.0
        %1363 = vmatpush1.msra.mxu0 0.0
        %1364 = vmatprep.subr.mxu0 0.0
        %1365 = vmatpush1.msra.mxu0 0.0
        %1366 = vmatprep.subr.mxu0 0.0
        %1367 = vmatpush1.msra.mxu0 0.0
        %1368 = vmatprep.subr.mxu0 0.0
        %1369 = vmatpush1.msra.mxu0 0.0
        %1370 = vmatprep.subr.mxu0 0.0
        %1371 = vmatpush1.msra.mxu0 0.0
        %1372 = vmatprep.subr.mxu0 0.0
        %1373 = vmatpush1.msra.mxu0 0.0
        %1374 = vmatprep.subr.mxu0 0.0
        %1375 = vmatpush1.msra.mxu0 0.0
        %1376 = vmatprep.subr.mxu0 0.0
        %1377 = vmatpush1.msra.mxu0 0.0
        %1378 = vmatprep.subr.mxu0 0.0
        %1379 = vmatpush1.msra.mxu0 0.0
        %1380 = vmatprep.subr.mxu0 0.0
        %1381 = vmatpush1.msra.mxu0 0.0
        %1382 = vmatprep.subr.mxu0 0.0
        %1383 = vmatpush1.msra.mxu0 0.0
        %1384 = vmatprep.subr.mxu0 0.0
        %1385 = vmatpush1.msra.mxu0 0.0
        %1386 = vmatprep.subr.mxu0 0.0
        %1387 = vmatpush1.msra.mxu0 0.0
        %1388 = vmatprep.subr.mxu0 0.0
        %1389 = vmatpush1.msra.mxu0 0.0
        %1390 = vmatprep.mubr.f32.mxu0 0.0
        %1391 = vmatmul.mubr.f32.gmra.mrb[0].mxu0 %v827
        %v1392 = vpop.f32.mrb[0].mxu0
        %v1393 = vadd.f32 %v805, %v1392
        %v1394 = vpop.f32.mrb[0].mxu0
        %v1395 = vadd.f32 %v809, %v1394
        %1396 = vdwg.mxu0
        %v1397 = vmax.f32 %v896, 0.0
        %v1398 = vmax.f32 %v898, 0.0
        %v1399 = vmax.f32 %v967, 0.0
        %v1400 = vmax.f32 %v969, 0.0
        %v1401 = vmax.f32 %v1038, 0.0
        %v1402 = vmax.f32 %v1040, 0.0
        %v1403 = vmax.f32 %v1109, 0.0
        %v1404 = vmax.f32 %v1111, 0.0
        %v1405 = vmax.f32 %v1180, 0.0
        %v1406 = vmax.f32 %v1182, 0.0
        %v1407 = vmax.f32 %v1251, 0.0
        %v1408 = vmax.f32 %v1253, 0.0
        %v1409 = vmax.f32 %v1322, 0.0
        %v1410 = vmax.f32 %v1324, 0.0
        %v1411 = vmax.f32 %v1393, 0.0
        %v1412 = vmax.f32 %v1395, 0.0
        %v1413 = vld [vmem:[%s433] sm:$0xf]
        %v1414 = vld [vmem:[%s433 + $0x4] sm:$0xf]
        %v1415 = vld [vmem:[%s433 + $0x8] sm:$0xf]
        %v1416 = vld [vmem:[%s433 + $0xc] sm:$0xf]
        %v1417 = vld [vmem:[%s433 + $0x10] sm:$0xf]
        %v1418 = vld [vmem:[%s433 + $0x14] sm:$0xf]
        %v1419 = vld [vmem:[%s433 + $0x18] sm:$0xf]
        %v1420 = vld [vmem:[%s433 + $0x1c] sm:$0xf]
        %v1421 = vld [vmem:[%s433 + $0x20] sm:$0xf]
        %v1422 = vld [vmem:[%s433 + $0x24] sm:$0xf]
        %v1423 = vld [vmem:[%s433 + $0x28] sm:$0xf]
        %v1424 = vld [vmem:[%s433 + $0x2c] sm:$0xf]
        %v1425 = vld [vmem:[%s433 + $0x30] sm:$0xf]
        %v1426 = vld [vmem:[%s433 + $0x34] sm:$0xf]
        %v1427 = vld [vmem:[%s433 + $0x38] sm:$0xf]
        %v1428 = vld [vmem:[%s433 + $0x3c] sm:$0xf]
        %v1429 = vld [vmem:[%s433 + $0x40] sm:$0xf]
        %v1430 = vld [vmem:[%s433 + $0x44] sm:$0xf]
        %v1431 = vld [vmem:[%s433 + $0x48] sm:$0xf]
        %v1432 = vld [vmem:[%s433 + $0x4c] sm:$0xf]
        %v1433 = vld [vmem:[%s433 + $0x50] sm:$0xf]
        %v1434 = vld [vmem:[%s433 + $0x54] sm:$0xf]
        %v1435 = vld [vmem:[%s433 + $0x58] sm:$0xf]
        %v1436 = vld [vmem:[%s433 + $0x5c] sm:$0xf]
        %v1437 = vld [vmem:[%s433 + $0x60] sm:$0xf]
        %v1438 = vld [vmem:[%s433 + $0x64] sm:$0xf]
        %v1439 = vld [vmem:[%s433 + $0x68] sm:$0xf]
        %v1440 = vld [vmem:[%s433 + $0x6c] sm:$0xf]
        %v1441 = vld [vmem:[%s433 + $0x70] sm:$0xf]
        %v1442 = vld [vmem:[%s433 + $0x74] sm:$0xf]
        %v1443 = vld [vmem:[%s433 + $0x78] sm:$0xf]
        %v1444 = vld [vmem:[%s433 + $0x7c] sm:$0xf]
        %v1445 = vld [vmem:[%s433 + $0x80] sm:$0xf]
        %v1446 = vld [vmem:[%s433 + $0x84] sm:$0xf]
        %v1447 = vld [vmem:[%s433 + $0x88] sm:$0xf]
        %v1448 = vld [vmem:[%s433 + $0x8c] sm:$0xf]
        %v1449 = vld [vmem:[%s433 + $0x90] sm:$0xf]
        %v1450 = vld [vmem:[%s433 + $0x94] sm:$0xf]
        %v1451 = vld [vmem:[%s433 + $0x98] sm:$0xf]
        %v1452 = vld [vmem:[%s433 + $0x9c] sm:$0xf]
        %v1453 = vld [vmem:[%s433 + $0xa0] sm:$0xf]
        %v1454 = vld [vmem:[%s433 + $0xa4] sm:$0xf]
        %v1455 = vld [vmem:[%s433 + $0xa8] sm:$0xf]
        %v1456 = vld [vmem:[%s433 + $0xac] sm:$0xf]
        %v1457 = vld [vmem:[%s433 + $0xb0] sm:$0xf]
        %v1458 = vld [vmem:[%s433 + $0xb4] sm:$0xf]
        %v1459 = vld [vmem:[%s433 + $0xb8] sm:$0xf]
        %v1460 = vld [vmem:[%s433 + $0xbc] sm:$0xf]
        %v1461 = vld [vmem:[%s433 + $0xc0] sm:$0xf]
        %v1462 = vld [vmem:[%s433 + $0xc4] sm:$0xf]
        %v1463 = vld [vmem:[%s433 + $0xc8] sm:$0xf]
        %v1464 = vld [vmem:[%s433 + $0xcc] sm:$0xf]
        %v1465 = vld [vmem:[%s433 + $0xd0] sm:$0xf]
        %v1466 = vld [vmem:[%s433 + $0xd4] sm:$0xf]
        %v1467 = vld [vmem:[%s433 + $0xd8] sm:$0xf]
        %v1468 = vld [vmem:[%s433 + $0xdc] sm:$0xf]
        %v1469 = vld [vmem:[%s433 + $0xe0] sm:$0xf]
        %v1470 = vld [vmem:[%s433 + $0xe4] sm:$0xf]
        %v1471 = vld [vmem:[%s433 + $0xe8] sm:$0xf]
        %v1472 = vld [vmem:[%s433 + $0xec] sm:$0xf]
        %v1473 = vld [vmem:[%s433 + $0xf0] sm:$0xf]
        %v1474 = vld [vmem:[%s433 + $0xf4] sm:$0xf]
        %v1475 = vld [vmem:[%s433 + $0xf8] sm:$0xf]
        %v1476 = vld [vmem:[%s433 + $0xfc] sm:$0xf]
        %v1477 = vld [vmem:[%s433 + $0x100] sm:$0xf]
        %v1478 = vld [vmem:[%s433 + $0x104] sm:$0xf]
        %v1479 = vld [vmem:[%s433 + $0x108] sm:$0xf]
        %v1480 = vld [vmem:[%s433 + $0x10c] sm:$0xf]
        %v1481 = vld [vmem:[%s433 + $0x110] sm:$0xf]
        %v1482 = vld [vmem:[%s433 + $0x114] sm:$0xf]
        %v1483 = vld [vmem:[%s433 + $0x118] sm:$0xf]
        %v1484 = vld [vmem:[%s433 + $0x11c] sm:$0xf]
        %v1485 = vld [vmem:[%s433 + $0x120] sm:$0xf]
        %v1486 = vld [vmem:[%s433 + $0x124] sm:$0xf]
        %v1487 = vld [vmem:[%s433 + $0x128] sm:$0xf]
        %v1488 = vld [vmem:[%s433 + $0x12c] sm:$0xf]
        %v1489 = vld [vmem:[%s433 + $0x130] sm:$0xf]
        %v1490 = vld [vmem:[%s433 + $0x134] sm:$0xf]
        %v1491 = vld [vmem:[%s433 + $0x138] sm:$0xf]
        %v1492 = vld [vmem:[%s433 + $0x13c] sm:$0xf]
        %v1493 = vld [vmem:[%s433 + $0x140] sm:$0xf]
        %v1494 = vld [vmem:[%s433 + $0x144] sm:$0xf]
        %v1495 = vld [vmem:[%s433 + $0x148] sm:$0xf]
        %v1496 = vld [vmem:[%s433 + $0x14c] sm:$0xf]
        %v1497 = vld [vmem:[%s433 + $0x150] sm:$0xf]
        %v1498 = vld [vmem:[%s433 + $0x154] sm:$0xf]
        %v1499 = vld [vmem:[%s433 + $0x158] sm:$0xf]
        %v1500 = vld [vmem:[%s433 + $0x15c] sm:$0xf]
        %v1501 = vld [vmem:[%s433 + $0x160] sm:$0xf]
        %v1502 = vld [vmem:[%s433 + $0x164] sm:$0xf]
        %v1503 = vld [vmem:[%s433 + $0x168] sm:$0xf]
        %v1504 = vld [vmem:[%s433 + $0x16c] sm:$0xf]
        %v1505 = vld [vmem:[%s433 + $0x170] sm:$0xf]
        %v1506 = vld [vmem:[%s433 + $0x174] sm:$0xf]
        %v1507 = vld [vmem:[%s433 + $0x178] sm:$0xf]
        %v1508 = vld [vmem:[%s433 + $0x17c] sm:$0xf]
        %v1509 = vld [vmem:[%s433 + $0x180] sm:$0xf]
        %v1510 = vld [vmem:[%s433 + $0x184] sm:$0xf]
        %v1511 = vld [vmem:[%s433 + $0x188] sm:$0xf]
        %v1512 = vld [vmem:[%s433 + $0x18c] sm:$0xf]
        %v1513 = vld [vmem:[%s433 + $0x190] sm:$0xf]
        %v1514 = vld [vmem:[%s433 + $0x194] sm:$0xf]
        %v1515 = vld [vmem:[%s433 + $0x198] sm:$0xf]
        %v1516 = vld [vmem:[%s433 + $0x19c] sm:$0xf]
        %v1517 = vld [vmem:[%s433 + $0x1a0] sm:$0xf]
        %v1518 = vld [vmem:[%s433 + $0x1a4] sm:$0xf]
        %v1519 = vld [vmem:[%s433 + $0x1a8] sm:$0xf]
        %v1520 = vld [vmem:[%s433 + $0x1ac] sm:$0xf]
        %v1521 = vld [vmem:[%s433 + $0x1b0] sm:$0xf]
        %v1522 = vld [vmem:[%s433 + $0x1b4] sm:$0xf]
        %v1523 = vld [vmem:[%s433 + $0x1b8] sm:$0xf]
        %v1524 = vld [vmem:[%s433 + $0x1bc] sm:$0xf]
        %v1525 = vld [vmem:[%s433 + $0x1c0] sm:$0xf]
        %v1526 = vld [vmem:[%s433 + $0x1c4] sm:$0xf]
        %v1527 = vld [vmem:[%s433 + $0x1c8] sm:$0xf]
        %v1528 = vld [vmem:[%s433 + $0x1cc] sm:$0xf]
        %v1529 = vld [vmem:[%s433 + $0x1d0] sm:$0xf]
        %v1530 = vld [vmem:[%s433 + $0x1d4] sm:$0xf]
        %v1531 = vld [vmem:[%s433 + $0x1d8] sm:$0xf]
        %v1532 = vld [vmem:[%s433 + $0x1dc] sm:$0xf]
        %v1533 = vld [vmem:[%s433 + $0x1e0] sm:$0xf]
        %v1534 = vld [vmem:[%s433 + $0x1e4] sm:$0xf]
        %v1535 = vld [vmem:[%s433 + $0x1e8] sm:$0xf]
        %v1536 = vld [vmem:[%s433 + $0x1ec] sm:$0xf]
        %v1537 = vld [vmem:[%s433 + $0x1f0] sm:$0xf]
        %v1538 = vld [vmem:[%s433 + $0x1f4] sm:$0xf]
        %v1539 = vld [vmem:[%s433 + $0x1f8] sm:$0xf]
        %v1540 = vld [vmem:[%s433 + $0x1fc] sm:$0xf]
        %v1541 = vld [vmem:[%s433 + $0x200] sm:$0xf]
        %v1542 = vld [vmem:[%s433 + $0x204] sm:$0xf]
        %v1543 = vld [vmem:[%s433 + $0x208] sm:$0xf]
        %v1544 = vld [vmem:[%s433 + $0x20c] sm:$0xf]
        %v1545 = vld [vmem:[%s433 + $0x210] sm:$0xf]
        %v1546 = vld [vmem:[%s433 + $0x214] sm:$0xf]
        %v1547 = vld [vmem:[%s433 + $0x218] sm:$0xf]
        %v1548 = vld [vmem:[%s433 + $0x21c] sm:$0xf]
        %v1549 = vld [vmem:[%s433 + $0x220] sm:$0xf]
        %v1550 = vld [vmem:[%s433 + $0x224] sm:$0xf]
        %v1551 = vld [vmem:[%s433 + $0x228] sm:$0xf]
        %v1552 = vld [vmem:[%s433 + $0x22c] sm:$0xf]
        %v1553 = vld [vmem:[%s433 + $0x230] sm:$0xf]
        %v1554 = vld [vmem:[%s433 + $0x234] sm:$0xf]
        %v1555 = vld [vmem:[%s433 + $0x238] sm:$0xf]
        %v1556 = vld [vmem:[%s433 + $0x23c] sm:$0xf]
        %v1557 = vld [vmem:[%s433 + $0x240] sm:$0xf]
        %v1558 = vld [vmem:[%s433 + $0x244] sm:$0xf]
        %v1559 = vld [vmem:[%s433 + $0x248] sm:$0xf]
        %v1560 = vld [vmem:[%s433 + $0x24c] sm:$0xf]
        %v1561 = vld [vmem:[%s433 + $0x250] sm:$0xf]
        %v1562 = vld [vmem:[%s433 + $0x254] sm:$0xf]
        %v1563 = vld [vmem:[%s433 + $0x258] sm:$0xf]
        %v1564 = vld [vmem:[%s433 + $0x25c] sm:$0xf]
        %v1565 = vld [vmem:[%s433 + $0x260] sm:$0xf]
        %v1566 = vld [vmem:[%s433 + $0x264] sm:$0xf]
        %v1567 = vld [vmem:[%s433 + $0x268] sm:$0xf]
        %v1568 = vld [vmem:[%s433 + $0x26c] sm:$0xf]
        %v1569 = vld [vmem:[%s433 + $0x270] sm:$0xf]
        %v1570 = vld [vmem:[%s433 + $0x274] sm:$0xf]
        %v1571 = vld [vmem:[%s433 + $0x278] sm:$0xf]
        %v1572 = vld [vmem:[%s433 + $0x27c] sm:$0xf]
        %v1573 = vld [vmem:[%s433 + $0x280] sm:$0xf]
        %v1574 = vld [vmem:[%s433 + $0x284] sm:$0xf]
        %v1575 = vld [vmem:[%s433 + $0x288] sm:$0xf]
        %v1576 = vld [vmem:[%s433 + $0x28c] sm:$0xf]
        %v1577 = vld [vmem:[%s433 + $0x290] sm:$0xf]
        %v1578 = vld [vmem:[%s433 + $0x294] sm:$0xf]
        %v1579 = vld [vmem:[%s433 + $0x298] sm:$0xf]
        %v1580 = vld [vmem:[%s433 + $0x29c] sm:$0xf]
        %v1581 = vld [vmem:[%s433 + $0x2a0] sm:$0xf]
        %v1582 = vld [vmem:[%s433 + $0x2a4] sm:$0xf]
        %v1583 = vld [vmem:[%s433 + $0x2a8] sm:$0xf]
        %v1584 = vld [vmem:[%s433 + $0x2ac] sm:$0xf]
        %v1585 = vld [vmem:[%s433 + $0x2b0] sm:$0xf]
        %v1586 = vld [vmem:[%s433 + $0x2b4] sm:$0xf]
        %v1587 = vld [vmem:[%s433 + $0x2b8] sm:$0xf]
        %v1588 = vld [vmem:[%s433 + $0x2bc] sm:$0xf]
        %v1589 = vld [vmem:[%s433 + $0x2c0] sm:$0xf]
        %v1590 = vld [vmem:[%s433 + $0x2c4] sm:$0xf]
        %v1591 = vld [vmem:[%s433 + $0x2c8] sm:$0xf]
        %v1592 = vld [vmem:[%s433 + $0x2cc] sm:$0xf]
        %v1593 = vld [vmem:[%s433 + $0x2d0] sm:$0xf]
        %v1594 = vld [vmem:[%s433 + $0x2d4] sm:$0xf]
        %v1595 = vld [vmem:[%s433 + $0x2d8] sm:$0xf]
        %v1596 = vld [vmem:[%s433 + $0x2dc] sm:$0xf]
        %v1597 = vld [vmem:[%s433 + $0x2e0] sm:$0xf]
        %v1598 = vld [vmem:[%s433 + $0x2e4] sm:$0xf]
        %v1599 = vld [vmem:[%s433 + $0x2e8] sm:$0xf]
        %v1600 = vld [vmem:[%s433 + $0x2ec] sm:$0xf]
        %v1601 = vld [vmem:[%s433 + $0x2f0] sm:$0xf]
        %v1602 = vld [vmem:[%s433 + $0x2f4] sm:$0xf]
        %v1603 = vld [vmem:[%s433 + $0x2f8] sm:$0xf]
        %v1604 = vld [vmem:[%s433 + $0x2fc] sm:$0xf]
        %v1605 = vld [vmem:[%s433 + $0x300] sm:$0xf]
        %v1606 = vld [vmem:[%s433 + $0x304] sm:$0xf]
        %v1607 = vld [vmem:[%s433 + $0x308] sm:$0xf]
        %v1608 = vld [vmem:[%s433 + $0x30c] sm:$0xf]
        %v1609 = vld [vmem:[%s433 + $0x310] sm:$0xf]
        %v1610 = vld [vmem:[%s433 + $0x314] sm:$0xf]
        %v1611 = vld [vmem:[%s433 + $0x318] sm:$0xf]
        %v1612 = vld [vmem:[%s433 + $0x31c] sm:$0xf]
        %v1613 = vld [vmem:[%s433 + $0x320] sm:$0xf]
        %v1614 = vld [vmem:[%s433 + $0x324] sm:$0xf]
        %v1615 = vld [vmem:[%s433 + $0x328] sm:$0xf]
        %v1616 = vld [vmem:[%s433 + $0x32c] sm:$0xf]
        %v1617 = vld [vmem:[%s433 + $0x330] sm:$0xf]
        %v1618 = vld [vmem:[%s433 + $0x334] sm:$0xf]
        %v1619 = vld [vmem:[%s433 + $0x338] sm:$0xf]
        %v1620 = vld [vmem:[%s433 + $0x33c] sm:$0xf]
        %v1621 = vld [vmem:[%s433 + $0x340] sm:$0xf]
        %v1622 = vld [vmem:[%s433 + $0x344] sm:$0xf]
        %v1623 = vld [vmem:[%s433 + $0x348] sm:$0xf]
        %v1624 = vld [vmem:[%s433 + $0x34c] sm:$0xf]
        %v1625 = vld [vmem:[%s433 + $0x350] sm:$0xf]
        %v1626 = vld [vmem:[%s433 + $0x354] sm:$0xf]
        %v1627 = vld [vmem:[%s433 + $0x358] sm:$0xf]
        %v1628 = vld [vmem:[%s433 + $0x35c] sm:$0xf]
        %v1629 = vld [vmem:[%s433 + $0x360] sm:$0xf]
        %v1630 = vld [vmem:[%s433 + $0x364] sm:$0xf]
        %v1631 = vld [vmem:[%s433 + $0x368] sm:$0xf]
        %v1632 = vld [vmem:[%s433 + $0x36c] sm:$0xf]
        %v1633 = vld [vmem:[%s433 + $0x370] sm:$0xf]
        %v1634 = vld [vmem:[%s433 + $0x374] sm:$0xf]
        %v1635 = vld [vmem:[%s433 + $0x378] sm:$0xf]
        %v1636 = vld [vmem:[%s433 + $0x37c] sm:$0xf]
        %v1637 = vld [vmem:[%s433 + $0x380] sm:$0xf]
        %v1638 = vld [vmem:[%s433 + $0x384] sm:$0xf]
        %v1639 = vld [vmem:[%s433 + $0x388] sm:$0xf]
        %v1640 = vld [vmem:[%s433 + $0x38c] sm:$0xf]
        %v1641 = vld [vmem:[%s433 + $0x390] sm:$0xf]
        %v1642 = vld [vmem:[%s433 + $0x394] sm:$0xf]
        %v1643 = vld [vmem:[%s433 + $0x398] sm:$0xf]
        %v1644 = vld [vmem:[%s433 + $0x39c] sm:$0xf]
        %v1645 = vld [vmem:[%s433 + $0x3a0] sm:$0xf]
        %v1646 = vld [vmem:[%s433 + $0x3a4] sm:$0xf]
        %v1647 = vld [vmem:[%s433 + $0x3a8] sm:$0xf]
        %v1648 = vld [vmem:[%s433 + $0x3ac] sm:$0xf]
        %v1649 = vld [vmem:[%s433 + $0x3b0] sm:$0xf]
        %v1650 = vld [vmem:[%s433 + $0x3b4] sm:$0xf]
        %v1651 = vld [vmem:[%s433 + $0x3b8] sm:$0xf]
        %v1652 = vld [vmem:[%s433 + $0x3bc] sm:$0xf]
        %v1653 = vld [vmem:[%s433 + $0x3c0] sm:$0xf]
        %v1654 = vld [vmem:[%s433 + $0x3c4] sm:$0xf]
        %v1655 = vld [vmem:[%s433 + $0x3c8] sm:$0xf]
        %v1656 = vld [vmem:[%s433 + $0x3cc] sm:$0xf]
        %v1657 = vld [vmem:[%s433 + $0x3d0] sm:$0xf]
        %v1658 = vld [vmem:[%s433 + $0x3d4] sm:$0xf]
        %v1659 = vld [vmem:[%s433 + $0x3d8] sm:$0xf]
        %v1660 = vld [vmem:[%s433 + $0x3dc] sm:$0xf]
        %v1661 = vld [vmem:[%s433 + $0x3e0] sm:$0xf]
        %v1662 = vld [vmem:[%s433 + $0x3e4] sm:$0xf]
        %v1663 = vld [vmem:[%s433 + $0x3e8] sm:$0xf]
        %v1664 = vld [vmem:[%s433 + $0x3ec] sm:$0xf]
        %v1665 = vld [vmem:[%s433 + $0x3f0] sm:$0xf]
        %v1666 = vld [vmem:[%s433 + $0x3f4] sm:$0xf]
        %v1667 = vld [vmem:[%s433 + $0x3f8] sm:$0xf]
        %v1668 = vld [vmem:[%s433 + $0x3fc] sm:$0xf]
        %v1669 = vunpack.c.l.bf16 %v1413
        %v1670 = vunpack.c.l.bf16 %v1414
        %v1671 = vunpack.c.l.bf16 %v1415
        %v1672 = vunpack.c.l.bf16 %v1416
        %v1673 = vunpack.c.l.bf16 %v1417
        %v1674 = vunpack.c.l.bf16 %v1418
        %v1675 = vunpack.c.l.bf16 %v1419
        %v1676 = vunpack.c.l.bf16 %v1420
        %v1677 = vunpack.c.l.bf16 %v1421
        %v1678 = vunpack.c.l.bf16 %v1422
        %v1679 = vunpack.c.l.bf16 %v1423
        %v1680 = vunpack.c.l.bf16 %v1424
        %v1681 = vunpack.c.l.bf16 %v1425
        %v1682 = vunpack.c.l.bf16 %v1426
        %v1683 = vunpack.c.l.bf16 %v1427
        %v1684 = vunpack.c.l.bf16 %v1428
        %v1685 = vunpack.c.l.bf16 %v1429
        %v1686 = vunpack.c.l.bf16 %v1430
        %v1687 = vunpack.c.l.bf16 %v1431
        %v1688 = vunpack.c.l.bf16 %v1432
        %v1689 = vunpack.c.l.bf16 %v1433
        %v1690 = vunpack.c.l.bf16 %v1434
        %v1691 = vunpack.c.l.bf16 %v1435
        %v1692 = vunpack.c.l.bf16 %v1436
        %v1693 = vunpack.c.l.bf16 %v1437
        %v1694 = vunpack.c.l.bf16 %v1438
        %v1695 = vunpack.c.l.bf16 %v1439
        %v1696 = vunpack.c.l.bf16 %v1440
        %v1697 = vunpack.c.l.bf16 %v1441
        %v1698 = vunpack.c.l.bf16 %v1442
        %v1699 = vunpack.c.l.bf16 %v1443
        %v1700 = vunpack.c.l.bf16 %v1444
        %v1701 = vunpack.c.l.bf16 %v1445
        %v1702 = vunpack.c.l.bf16 %v1446
        %v1703 = vunpack.c.l.bf16 %v1447
        %v1704 = vunpack.c.l.bf16 %v1448
        %v1705 = vunpack.c.l.bf16 %v1449
        %v1706 = vunpack.c.l.bf16 %v1450
        %v1707 = vunpack.c.l.bf16 %v1451
        %v1708 = vunpack.c.l.bf16 %v1452
        %v1709 = vunpack.c.l.bf16 %v1453
        %v1710 = vunpack.c.l.bf16 %v1454
        %v1711 = vunpack.c.l.bf16 %v1455
        %v1712 = vunpack.c.l.bf16 %v1456
        %v1713 = vunpack.c.l.bf16 %v1457
        %v1714 = vunpack.c.l.bf16 %v1458
        %v1715 = vunpack.c.l.bf16 %v1459
        %v1716 = vunpack.c.l.bf16 %v1460
        %v1717 = vunpack.c.l.bf16 %v1461
        %v1718 = vunpack.c.l.bf16 %v1462
        %v1719 = vunpack.c.l.bf16 %v1463
        %v1720 = vunpack.c.l.bf16 %v1464
        %v1721 = vunpack.c.l.bf16 %v1465
        %v1722 = vunpack.c.l.bf16 %v1466
        %v1723 = vunpack.c.l.bf16 %v1467
        %v1724 = vunpack.c.l.bf16 %v1468
        %v1725 = vunpack.c.l.bf16 %v1469
        %v1726 = vunpack.c.l.bf16 %v1470
        %v1727 = vunpack.c.l.bf16 %v1471
        %v1728 = vunpack.c.l.bf16 %v1472
        %v1729 = vunpack.c.l.bf16 %v1473
        %v1730 = vunpack.c.l.bf16 %v1474
        %v1731 = vunpack.c.l.bf16 %v1475
        %v1732 = vunpack.c.l.bf16 %v1476
        %v1733 = vunpack.c.l.bf16 %v1477
        %v1734 = vunpack.c.l.bf16 %v1478
        %v1735 = vunpack.c.l.bf16 %v1479
        %v1736 = vunpack.c.l.bf16 %v1480
        %v1737 = vunpack.c.l.bf16 %v1481
        %v1738 = vunpack.c.l.bf16 %v1482
        %v1739 = vunpack.c.l.bf16 %v1483
        %v1740 = vunpack.c.l.bf16 %v1484
        %v1741 = vunpack.c.l.bf16 %v1485
        %v1742 = vunpack.c.l.bf16 %v1486
        %v1743 = vunpack.c.l.bf16 %v1487
        %v1744 = vunpack.c.l.bf16 %v1488
        %v1745 = vunpack.c.l.bf16 %v1489
        %v1746 = vunpack.c.l.bf16 %v1490
        %v1747 = vunpack.c.l.bf16 %v1491
        %v1748 = vunpack.c.l.bf16 %v1492
        %v1749 = vunpack.c.l.bf16 %v1493
        %v1750 = vunpack.c.l.bf16 %v1494
        %v1751 = vunpack.c.l.bf16 %v1495
        %v1752 = vunpack.c.l.bf16 %v1496
        %v1753 = vunpack.c.l.bf16 %v1497
        %v1754 = vunpack.c.l.bf16 %v1498
        %v1755 = vunpack.c.l.bf16 %v1499
        %v1756 = vunpack.c.l.bf16 %v1500
        %v1757 = vunpack.c.l.bf16 %v1501
        %v1758 = vunpack.c.l.bf16 %v1502
        %v1759 = vunpack.c.l.bf16 %v1503
        %v1760 = vunpack.c.l.bf16 %v1504
        %v1761 = vunpack.c.l.bf16 %v1505
        %v1762 = vunpack.c.l.bf16 %v1506
        %v1763 = vunpack.c.l.bf16 %v1507
        %v1764 = vunpack.c.l.bf16 %v1508
        %v1765 = vunpack.c.l.bf16 %v1509
        %v1766 = vunpack.c.l.bf16 %v1510
        %v1767 = vunpack.c.l.bf16 %v1511
        %v1768 = vunpack.c.l.bf16 %v1512
        %v1769 = vunpack.c.l.bf16 %v1513
        %v1770 = vunpack.c.l.bf16 %v1514
        %v1771 = vunpack.c.l.bf16 %v1515
        %v1772 = vunpack.c.l.bf16 %v1516
        %v1773 = vunpack.c.l.bf16 %v1517
        %v1774 = vunpack.c.l.bf16 %v1518
        %v1775 = vunpack.c.l.bf16 %v1519
        %v1776 = vunpack.c.l.bf16 %v1520
        %v1777 = vunpack.c.l.bf16 %v1521
        %v1778 = vunpack.c.l.bf16 %v1522
        %v1779 = vunpack.c.l.bf16 %v1523
        %v1780 = vunpack.c.l.bf16 %v1524
        %v1781 = vunpack.c.l.bf16 %v1525
        %v1782 = vunpack.c.l.bf16 %v1526
        %v1783 = vunpack.c.l.bf16 %v1527
        %v1784 = vunpack.c.l.bf16 %v1528
        %v1785 = vunpack.c.l.bf16 %v1529
        %v1786 = vunpack.c.l.bf16 %v1530
        %v1787 = vunpack.c.l.bf16 %v1531
        %v1788 = vunpack.c.l.bf16 %v1532
        %v1789 = vunpack.c.l.bf16 %v1533
        %v1790 = vunpack.c.l.bf16 %v1534
        %v1791 = vunpack.c.l.bf16 %v1535
        %v1792 = vunpack.c.l.bf16 %v1536
        %v1793 = vunpack.c.l.bf16 %v1537
        %v1794 = vunpack.c.l.bf16 %v1538
        %v1795 = vunpack.c.l.bf16 %v1539
        %v1796 = vunpack.c.l.bf16 %v1540
        %v1797 = vunpack.c.l.bf16 %v1541
        %v1798 = vunpack.c.l.bf16 %v1542
        %v1799 = vunpack.c.l.bf16 %v1543
        %v1800 = vunpack.c.l.bf16 %v1544
        %v1801 = vunpack.c.l.bf16 %v1545
        %v1802 = vunpack.c.l.bf16 %v1546
        %v1803 = vunpack.c.l.bf16 %v1547
        %v1804 = vunpack.c.l.bf16 %v1548
        %v1805 = vunpack.c.l.bf16 %v1549
        %v1806 = vunpack.c.l.bf16 %v1550
        %v1807 = vunpack.c.l.bf16 %v1551
        %v1808 = vunpack.c.l.bf16 %v1552
        %v1809 = vunpack.c.l.bf16 %v1553
        %v1810 = vunpack.c.l.bf16 %v1554
        %v1811 = vunpack.c.l.bf16 %v1555
        %v1812 = vunpack.c.l.bf16 %v1556
        %v1813 = vunpack.c.l.bf16 %v1557
        %v1814 = vunpack.c.l.bf16 %v1558
        %v1815 = vunpack.c.l.bf16 %v1559
        %v1816 = vunpack.c.l.bf16 %v1560
        %v1817 = vunpack.c.l.bf16 %v1561
        %v1818 = vunpack.c.l.bf16 %v1562
        %v1819 = vunpack.c.l.bf16 %v1563
        %v1820 = vunpack.c.l.bf16 %v1564
        %v1821 = vunpack.c.l.bf16 %v1565
        %v1822 = vunpack.c.l.bf16 %v1566
        %v1823 = vunpack.c.l.bf16 %v1567
        %v1824 = vunpack.c.l.bf16 %v1568
        %v1825 = vunpack.c.l.bf16 %v1569
        %v1826 = vunpack.c.l.bf16 %v1570
        %v1827 = vunpack.c.l.bf16 %v1571
        %v1828 = vunpack.c.l.bf16 %v1572
        %v1829 = vunpack.c.l.bf16 %v1573
        %v1830 = vunpack.c.l.bf16 %v1574
        %v1831 = vunpack.c.l.bf16 %v1575
        %v1832 = vunpack.c.l.bf16 %v1576
        %v1833 = vunpack.c.l.bf16 %v1577
        %v1834 = vunpack.c.l.bf16 %v1578
        %v1835 = vunpack.c.l.bf16 %v1579
        %v1836 = vunpack.c.l.bf16 %v1580
        %v1837 = vunpack.c.l.bf16 %v1581
        %v1838 = vunpack.c.l.bf16 %v1582
        %v1839 = vunpack.c.l.bf16 %v1583
        %v1840 = vunpack.c.l.bf16 %v1584
        %v1841 = vunpack.c.l.bf16 %v1585
        %v1842 = vunpack.c.l.bf16 %v1586
        %v1843 = vunpack.c.l.bf16 %v1587
        %v1844 = vunpack.c.l.bf16 %v1588
        %v1845 = vunpack.c.l.bf16 %v1589
        %v1846 = vunpack.c.l.bf16 %v1590
        %v1847 = vunpack.c.l.bf16 %v1591
        %v1848 = vunpack.c.l.bf16 %v1592
        %v1849 = vunpack.c.l.bf16 %v1593
        %v1850 = vunpack.c.l.bf16 %v1594
        %v1851 = vunpack.c.l.bf16 %v1595
        %v1852 = vunpack.c.l.bf16 %v1596
        %v1853 = vunpack.c.l.bf16 %v1597
        %v1854 = vunpack.c.l.bf16 %v1598
        %v1855 = vunpack.c.l.bf16 %v1599
        %v1856 = vunpack.c.l.bf16 %v1600
        %v1857 = vunpack.c.l.bf16 %v1601
        %v1858 = vunpack.c.l.bf16 %v1602
        %v1859 = vunpack.c.l.bf16 %v1603
        %v1860 = vunpack.c.l.bf16 %v1604
        %v1861 = vunpack.c.l.bf16 %v1605
        %v1862 = vunpack.c.l.bf16 %v1606
        %v1863 = vunpack.c.l.bf16 %v1607
        %v1864 = vunpack.c.l.bf16 %v1608
        %v1865 = vunpack.c.l.bf16 %v1609
        %v1866 = vunpack.c.l.bf16 %v1610
        %v1867 = vunpack.c.l.bf16 %v1611
        %v1868 = vunpack.c.l.bf16 %v1612
        %v1869 = vunpack.c.l.bf16 %v1613
        %v1870 = vunpack.c.l.bf16 %v1614
        %v1871 = vunpack.c.l.bf16 %v1615
        %v1872 = vunpack.c.l.bf16 %v1616
        %v1873 = vunpack.c.l.bf16 %v1617
        %v1874 = vunpack.c.l.bf16 %v1618
        %v1875 = vunpack.c.l.bf16 %v1619
        %v1876 = vunpack.c.l.bf16 %v1620
        %v1877 = vunpack.c.l.bf16 %v1621
        %v1878 = vunpack.c.l.bf16 %v1622
        %v1879 = vunpack.c.l.bf16 %v1623
        %v1880 = vunpack.c.l.bf16 %v1624
        %v1881 = vunpack.c.l.bf16 %v1625
        %v1882 = vunpack.c.l.bf16 %v1626
        %v1883 = vunpack.c.l.bf16 %v1627
        %v1884 = vunpack.c.l.bf16 %v1628
        %v1885 = vunpack.c.l.bf16 %v1629
        %v1886 = vunpack.c.l.bf16 %v1630
        %v1887 = vunpack.c.l.bf16 %v1631
        %v1888 = vunpack.c.l.bf16 %v1632
        %v1889 = vunpack.c.l.bf16 %v1633
        %v1890 = vunpack.c.l.bf16 %v1634
        %v1891 = vunpack.c.l.bf16 %v1635
        %v1892 = vunpack.c.l.bf16 %v1636
        %v1893 = vunpack.c.l.bf16 %v1637
        %v1894 = vunpack.c.l.bf16 %v1638
        %v1895 = vunpack.c.l.bf16 %v1639
        %v1896 = vunpack.c.l.bf16 %v1640
        %v1897 = vunpack.c.l.bf16 %v1641
        %v1898 = vunpack.c.l.bf16 %v1642
        %v1899 = vunpack.c.l.bf16 %v1643
        %v1900 = vunpack.c.l.bf16 %v1644
        %v1901 = vunpack.c.l.bf16 %v1645
        %v1902 = vunpack.c.l.bf16 %v1646
        %v1903 = vunpack.c.l.bf16 %v1647
        %v1904 = vunpack.c.l.bf16 %v1648
        %v1905 = vunpack.c.l.bf16 %v1649
        %v1906 = vunpack.c.l.bf16 %v1650
        %v1907 = vunpack.c.l.bf16 %v1651
        %v1908 = vunpack.c.l.bf16 %v1652
        %v1909 = vunpack.c.l.bf16 %v1653
        %v1910 = vunpack.c.l.bf16 %v1654
        %v1911 = vunpack.c.l.bf16 %v1655
        %v1912 = vunpack.c.l.bf16 %v1656
        %v1913 = vunpack.c.l.bf16 %v1657
        %v1914 = vunpack.c.l.bf16 %v1658
        %v1915 = vunpack.c.l.bf16 %v1659
        %v1916 = vunpack.c.l.bf16 %v1660
        %v1917 = vunpack.c.l.bf16 %v1661
        %v1918 = vunpack.c.l.bf16 %v1662
        %v1919 = vunpack.c.l.bf16 %v1663
        %v1920 = vunpack.c.l.bf16 %v1664
        %v1921 = vunpack.c.l.bf16 %v1665
        %v1922 = vunpack.c.l.bf16 %v1666
        %v1923 = vunpack.c.l.bf16 %v1667
        %v1924 = vunpack.c.l.bf16 %v1668
        %v1925 = vlaneseq
        %v1926 = vshrl.u32 %v1925, 7
        %v1927 = vsub.s32 2, %v1926
        %v1928 = vrot.slane %v447, %v1927
        %1929 = vmatprep.subr.mxu0 0.0
        %1930 = vmatpush1.msra.mxu0 %v1669
        %1931 = vmatprep.subr.mxu0 0.0
        %1932 = vmatpush1.msra.mxu0 %v1670
        %1933 = vmatprep.subr.mxu0 0.0
        %1934 = vmatpush1.msra.mxu0 %v1671
        %1935 = vmatprep.subr.mxu0 0.0
        %1936 = vmatpush1.msra.mxu0 %v1672
        %1937 = vmatprep.subr.mxu0 0.0
        %1938 = vmatpush1.msra.mxu0 %v1673
        %1939 = vmatprep.subr.mxu0 0.0
        %1940 = vmatpush1.msra.mxu0 %v1674
        %1941 = vmatprep.subr.mxu0 0.0
        %1942 = vmatpush1.msra.mxu0 %v1675
        %1943 = vmatprep.subr.mxu0 0.0
        %1944 = vmatpush1.msra.mxu0 %v1676
        %1945 = vmatprep.subr.mxu0 0.0
        %1946 = vmatpush1.msra.mxu0 %v1677
        %1947 = vmatprep.subr.mxu0 0.0
        %1948 = vmatpush1.msra.mxu0 %v1678
        %1949 = vmatprep.subr.mxu0 0.0
        %1950 = vmatpush1.msra.mxu0 %v1679
        %1951 = vmatprep.subr.mxu0 0.0
        %1952 = vmatpush1.msra.mxu0 %v1680
        %1953 = vmatprep.subr.mxu0 0.0
        %1954 = vmatpush1.msra.mxu0 %v1681
        %1955 = vmatprep.subr.mxu0 0.0
        %1956 = vmatpush1.msra.mxu0 %v1682
        %1957 = vmatprep.subr.mxu0 0.0
        %1958 = vmatpush1.msra.mxu0 %v1683
        %1959 = vmatprep.subr.mxu0 0.0
        %1960 = vmatpush1.msra.mxu0 %v1684
        %1961 = vmatprep.subr.mxu0 0.0
        %1962 = vmatpush1.msra.mxu0 %v1685
        %1963 = vmatprep.subr.mxu0 0.0
        %1964 = vmatpush1.msra.mxu0 %v1686
        %1965 = vmatprep.subr.mxu0 0.0
        %1966 = vmatpush1.msra.mxu0 %v1687
        %1967 = vmatprep.subr.mxu0 0.0
        %1968 = vmatpush1.msra.mxu0 %v1688
        %1969 = vmatprep.subr.mxu0 0.0
        %1970 = vmatpush1.msra.mxu0 %v1689
        %1971 = vmatprep.subr.mxu0 0.0
        %1972 = vmatpush1.msra.mxu0 %v1690
        %1973 = vmatprep.subr.mxu0 0.0
        %1974 = vmatpush1.msra.mxu0 %v1691
        %1975 = vmatprep.subr.mxu0 0.0
        %1976 = vmatpush1.msra.mxu0 %v1692
        %1977 = vmatprep.subr.mxu0 0.0
        %1978 = vmatpush1.msra.mxu0 %v1693
        %1979 = vmatprep.subr.mxu0 0.0
        %1980 = vmatpush1.msra.mxu0 %v1694
        %1981 = vmatprep.subr.mxu0 0.0
        %1982 = vmatpush1.msra.mxu0 %v1695
        %1983 = vmatprep.subr.mxu0 0.0
        %1984 = vmatpush1.msra.mxu0 %v1696
        %1985 = vmatprep.subr.mxu0 0.0
        %1986 = vmatpush1.msra.mxu0 %v1697
        %1987 = vmatprep.subr.mxu0 0.0
        %1988 = vmatpush1.msra.mxu0 %v1698
        %1989 = vmatprep.subr.mxu0 0.0
        %1990 = vmatpush1.msra.mxu0 %v1699
        %1991 = vmatprep.subr.mxu0 0.0
        %1992 = vmatpush1.msra.mxu0 %v1700
        %1993 = vmatprep.mubr.f32.mxu0 %v1398
        %1994 = vmatmul.mubr.f32.gmra.mrb[0].mxu0 %v1397
        %v1995 = vpop.f32.mrb[0].mxu0
        %v1996 = vadd.f32 %v1928, %v1995
        %v1997 = vpop.f32.mrb[0].mxu0
        %1998 = vdwg.mxu0
        %1999 = vmatprep.subr.mxu0 0.0
        %2000 = vmatpush1.msra.mxu0 %v1701
        %2001 = vmatprep.subr.mxu0 0.0
        %2002 = vmatpush1.msra.mxu0 %v1702
        %2003 = vmatprep.subr.mxu0 0.0
        %2004 = vmatpush1.msra.mxu0 %v1703
        %2005 = vmatprep.subr.mxu0 0.0
        %2006 = vmatpush1.msra.mxu0 %v1704
        %2007 = vmatprep.subr.mxu0 0.0
        %2008 = vmatpush1.msra.mxu0 %v1705
        %2009 = vmatprep.subr.mxu0 0.0
        %2010 = vmatpush1.msra.mxu0 %v1706
        %2011 = vmatprep.subr.mxu0 0.0
        %2012 = vmatpush1.msra.mxu0 %v1707
        %2013 = vmatprep.subr.mxu0 0.0
        %2014 = vmatpush1.msra.mxu0 %v1708
        %2015 = vmatprep.subr.mxu0 0.0
        %2016 = vmatpush1.msra.mxu0 %v1709
        %2017 = vmatprep.subr.mxu0 0.0
        %2018 = vmatpush1.msra.mxu0 %v1710
        %2019 = vmatprep.subr.mxu0 0.0
        %2020 = vmatpush1.msra.mxu0 %v1711
        %2021 = vmatprep.subr.mxu0 0.0
        %2022 = vmatpush1.msra.mxu0 %v1712
        %2023 = vmatprep.subr.mxu0 0.0
        %2024 = vmatpush1.msra.mxu0 %v1713
        %2025 = vmatprep.subr.mxu0 0.0
        %2026 = vmatpush1.msra.mxu0 %v1714
        %2027 = vmatprep.subr.mxu0 0.0
        %2028 = vmatpush1.msra.mxu0 %v1715
        %2029 = vmatprep.subr.mxu0 0.0
        %2030 = vmatpush1.msra.mxu0 %v1716
        %2031 = vmatprep.subr.mxu0 0.0
        %2032 = vmatpush1.msra.mxu0 %v1717
        %2033 = vmatprep.subr.mxu0 0.0
        %2034 = vmatpush1.msra.mxu0 %v1718
        %2035 = vmatprep.subr.mxu0 0.0
        %2036 = vmatpush1.msra.mxu0 %v1719
        %2037 = vmatprep.subr.mxu0 0.0
        %2038 = vmatpush1.msra.mxu0 %v1720
        %2039 = vmatprep.subr.mxu0 0.0
        %2040 = vmatpush1.msra.mxu0 %v1721
        %2041 = vmatprep.subr.mxu0 0.0
        %2042 = vmatpush1.msra.mxu0 %v1722
        %2043 = vmatprep.subr.mxu0 0.0
        %2044 = vmatpush1.msra.mxu0 %v1723
        %2045 = vmatprep.subr.mxu0 0.0
        %2046 = vmatpush1.msra.mxu0 %v1724
        %2047 = vmatprep.subr.mxu0 0.0
        %2048 = vmatpush1.msra.mxu0 %v1725
        %2049 = vmatprep.subr.mxu0 0.0
        %2050 = vmatpush1.msra.mxu0 %v1726
        %2051 = vmatprep.subr.mxu0 0.0
        %2052 = vmatpush1.msra.mxu0 %v1727
        %2053 = vmatprep.subr.mxu0 0.0
        %2054 = vmatpush1.msra.mxu0 %v1728
        %2055 = vmatprep.subr.mxu0 0.0
        %2056 = vmatpush1.msra.mxu0 %v1729
        %2057 = vmatprep.subr.mxu0 0.0
        %2058 = vmatpush1.msra.mxu0 %v1730
        %2059 = vmatprep.subr.mxu0 0.0
        %2060 = vmatpush1.msra.mxu0 %v1731
        %2061 = vmatprep.subr.mxu0 0.0
        %2062 = vmatpush1.msra.mxu0 %v1732
        %2063 = vmatprep.mubr.f32.mxu0 %v1400
        %2064 = vmatmul.mubr.f32.gmra.mrb[0].mxu0 %v1399
        %v2065 = vpop.f32.mrb[0].mxu0
        %v2066 = vadd.f32 %v1996, %v2065
        %v2067 = vpop.f32.mrb[0].mxu0
        %2068 = vdwg.mxu0
        %2069 = vmatprep.subr.mxu0 0.0
        %2070 = vmatpush1.msra.mxu0 %v1733
        %2071 = vmatprep.subr.mxu0 0.0
        %2072 = vmatpush1.msra.mxu0 %v1734
        %2073 = vmatprep.subr.mxu0 0.0
        %2074 = vmatpush1.msra.mxu0 %v1735
        %2075 = vmatprep.subr.mxu0 0.0
        %2076 = vmatpush1.msra.mxu0 %v1736
        %2077 = vmatprep.subr.mxu0 0.0
        %2078 = vmatpush1.msra.mxu0 %v1737
        %2079 = vmatprep.subr.mxu0 0.0
        %2080 = vmatpush1.msra.mxu0 %v1738
        %2081 = vmatprep.subr.mxu0 0.0
        %2082 = vmatpush1.msra.mxu0 %v1739
        %2083 = vmatprep.subr.mxu0 0.0
        %2084 = vmatpush1.msra.mxu0 %v1740
        %2085 = vmatprep.subr.mxu0 0.0
        %2086 = vmatpush1.msra.mxu0 %v1741
        %2087 = vmatprep.subr.mxu0 0.0
        %2088 = vmatpush1.msra.mxu0 %v1742
        %2089 = vmatprep.subr.mxu0 0.0
        %2090 = vmatpush1.msra.mxu0 %v1743
        %2091 = vmatprep.subr.mxu0 0.0
        %2092 = vmatpush1.msra.mxu0 %v1744
        %2093 = vmatprep.subr.mxu0 0.0
        %2094 = vmatpush1.msra.mxu0 %v1745
        %2095 = vmatprep.subr.mxu0 0.0
        %2096 = vmatpush1.msra.mxu0 %v1746
        %2097 = vmatprep.subr.mxu0 0.0
        %2098 = vmatpush1.msra.mxu0 %v1747
        %2099 = vmatprep.subr.mxu0 0.0
        %2100 = vmatpush1.msra.mxu0 %v1748
        %2101 = vmatprep.subr.mxu0 0.0
        %2102 = vmatpush1.msra.mxu0 %v1749
        %2103 = vmatprep.subr.mxu0 0.0
        %2104 = vmatpush1.msra.mxu0 %v1750
        %2105 = vmatprep.subr.mxu0 0.0
        %2106 = vmatpush1.msra.mxu0 %v1751
        %2107 = vmatprep.subr.mxu0 0.0
        %2108 = vmatpush1.msra.mxu0 %v1752
        %2109 = vmatprep.subr.mxu0 0.0
        %2110 = vmatpush1.msra.mxu0 %v1753
        %2111 = vmatprep.subr.mxu0 0.0
        %2112 = vmatpush1.msra.mxu0 %v1754
        %2113 = vmatprep.subr.mxu0 0.0
        %2114 = vmatpush1.msra.mxu0 %v1755
        %2115 = vmatprep.subr.mxu0 0.0
        %2116 = vmatpush1.msra.mxu0 %v1756
        %2117 = vmatprep.subr.mxu0 0.0
        %2118 = vmatpush1.msra.mxu0 %v1757
        %2119 = vmatprep.subr.mxu0 0.0
        %2120 = vmatpush1.msra.mxu0 %v1758
        %2121 = vmatprep.subr.mxu0 0.0
        %2122 = vmatpush1.msra.mxu0 %v1759
        %2123 = vmatprep.subr.mxu0 0.0
        %2124 = vmatpush1.msra.mxu0 %v1760
        %2125 = vmatprep.subr.mxu0 0.0
        %2126 = vmatpush1.msra.mxu0 %v1761
        %2127 = vmatprep.subr.mxu0 0.0
        %2128 = vmatpush1.msra.mxu0 %v1762
        %2129 = vmatprep.subr.mxu0 0.0
        %2130 = vmatpush1.msra.mxu0 %v1763
        %2131 = vmatprep.subr.mxu0 0.0
        %2132 = vmatpush1.msra.mxu0 %v1764
        %2133 = vmatprep.mubr.f32.mxu0 %v1402
        %2134 = vmatmul.mubr.f32.gmra.mrb[0].mxu0 %v1401
        %v2135 = vpop.f32.mrb[0].mxu0
        %v2136 = vadd.f32 %v2066, %v2135
        %v2137 = vpop.f32.mrb[0].mxu0
        %2138 = vdwg.mxu0
        %2139 = vmatprep.subr.mxu0 0.0
        %2140 = vmatpush1.msra.mxu0 %v1765
        %2141 = vmatprep.subr.mxu0 0.0
        %2142 = vmatpush1.msra.mxu0 %v1766
        %2143 = vmatprep.subr.mxu0 0.0
        %2144 = vmatpush1.msra.mxu0 %v1767
        %2145 = vmatprep.subr.mxu0 0.0
        %2146 = vmatpush1.msra.mxu0 %v1768
        %2147 = vmatprep.subr.mxu0 0.0
        %2148 = vmatpush1.msra.mxu0 %v1769
        %2149 = vmatprep.subr.mxu0 0.0
        %2150 = vmatpush1.msra.mxu0 %v1770
        %2151 = vmatprep.subr.mxu0 0.0
        %2152 = vmatpush1.msra.mxu0 %v1771
        %2153 = vmatprep.subr.mxu0 0.0
        %2154 = vmatpush1.msra.mxu0 %v1772
        %2155 = vmatprep.subr.mxu0 0.0
        %2156 = vmatpush1.msra.mxu0 %v1773
        %2157 = vmatprep.subr.mxu0 0.0
        %2158 = vmatpush1.msra.mxu0 %v1774
        %2159 = vmatprep.subr.mxu0 0.0
        %2160 = vmatpush1.msra.mxu0 %v1775
        %2161 = vmatprep.subr.mxu0 0.0
        %2162 = vmatpush1.msra.mxu0 %v1776
        %2163 = vmatprep.subr.mxu0 0.0
        %2164 = vmatpush1.msra.mxu0 %v1777
        %2165 = vmatprep.subr.mxu0 0.0
        %2166 = vmatpush1.msra.mxu0 %v1778
        %2167 = vmatprep.subr.mxu0 0.0
        %2168 = vmatpush1.msra.mxu0 %v1779
        %2169 = vmatprep.subr.mxu0 0.0
        %2170 = vmatpush1.msra.mxu0 %v1780
        %2171 = vmatprep.subr.mxu0 0.0
        %2172 = vmatpush1.msra.mxu0 %v1781
        %2173 = vmatprep.subr.mxu0 0.0
        %2174 = vmatpush1.msra.mxu0 %v1782
        %2175 = vmatprep.subr.mxu0 0.0
        %2176 = vmatpush1.msra.mxu0 %v1783
        %2177 = vmatprep.subr.mxu0 0.0
        %2178 = vmatpush1.msra.mxu0 %v1784
        %2179 = vmatprep.subr.mxu0 0.0
        %2180 = vmatpush1.msra.mxu0 %v1785
        %2181 = vmatprep.subr.mxu0 0.0
        %2182 = vmatpush1.msra.mxu0 %v1786
        %2183 = vmatprep.subr.mxu0 0.0
        %2184 = vmatpush1.msra.mxu0 %v1787
        %2185 = vmatprep.subr.mxu0 0.0
        %2186 = vmatpush1.msra.mxu0 %v1788
        %2187 = vmatprep.subr.mxu0 0.0
        %2188 = vmatpush1.msra.mxu0 %v1789
        %2189 = vmatprep.subr.mxu0 0.0
        %2190 = vmatpush1.msra.mxu0 %v1790
        %2191 = vmatprep.subr.mxu0 0.0
        %2192 = vmatpush1.msra.mxu0 %v1791
        %2193 = vmatprep.subr.mxu0 0.0
        %2194 = vmatpush1.msra.mxu0 %v1792
        %2195 = vmatprep.subr.mxu0 0.0
        %2196 = vmatpush1.msra.mxu0 %v1793
        %2197 = vmatprep.subr.mxu0 0.0
        %2198 = vmatpush1.msra.mxu0 %v1794
        %2199 = vmatprep.subr.mxu0 0.0
        %2200 = vmatpush1.msra.mxu0 %v1795
        %2201 = vmatprep.subr.mxu0 0.0
        %2202 = vmatpush1.msra.mxu0 %v1796
        %2203 = vmatprep.mubr.f32.mxu0 %v1404
        %2204 = vmatmul.mubr.f32.gmra.mrb[0].mxu0 %v1403
        %v2205 = vpop.f32.mrb[0].mxu0
        %v2206 = vadd.f32 %v2136, %v2205
        %v2207 = vpop.f32.mrb[0].mxu0
        %2208 = vdwg.mxu0
        %2209 = vmatprep.subr.mxu0 0.0
        %2210 = vmatpush1.msra.mxu0 %v1797
        %2211 = vmatprep.subr.mxu0 0.0
        %2212 = vmatpush1.msra.mxu0 %v1798
        %2213 = vmatprep.subr.mxu0 0.0
        %2214 = vmatpush1.msra.mxu0 %v1799
        %2215 = vmatprep.subr.mxu0 0.0
        %2216 = vmatpush1.msra.mxu0 %v1800
        %2217 = vmatprep.subr.mxu0 0.0
        %2218 = vmatpush1.msra.mxu0 %v1801
        %2219 = vmatprep.subr.mxu0 0.0
        %2220 = vmatpush1.msra.mxu0 %v1802
        %2221 = vmatprep.subr.mxu0 0.0
        %2222 = vmatpush1.msra.mxu0 %v1803
        %2223 = vmatprep.subr.mxu0 0.0
        %2224 = vmatpush1.msra.mxu0 %v1804
        %2225 = vmatprep.subr.mxu0 0.0
        %2226 = vmatpush1.msra.mxu0 %v1805
        %2227 = vmatprep.subr.mxu0 0.0
        %2228 = vmatpush1.msra.mxu0 %v1806
        %2229 = vmatprep.subr.mxu0 0.0
        %2230 = vmatpush1.msra.mxu0 %v1807
        %2231 = vmatprep.subr.mxu0 0.0
        %2232 = vmatpush1.msra.mxu0 %v1808
        %2233 = vmatprep.subr.mxu0 0.0
        %2234 = vmatpush1.msra.mxu0 %v1809
        %2235 = vmatprep.subr.mxu0 0.0
        %2236 = vmatpush1.msra.mxu0 %v1810
        %2237 = vmatprep.subr.mxu0 0.0
        %2238 = vmatpush1.msra.mxu0 %v1811
        %2239 = vmatprep.subr.mxu0 0.0
        %2240 = vmatpush1.msra.mxu0 %v1812
        %2241 = vmatprep.subr.mxu0 0.0
        %2242 = vmatpush1.msra.mxu0 %v1813
        %2243 = vmatprep.subr.mxu0 0.0
        %2244 = vmatpush1.msra.mxu0 %v1814
        %2245 = vmatprep.subr.mxu0 0.0
        %2246 = vmatpush1.msra.mxu0 %v1815
        %2247 = vmatprep.subr.mxu0 0.0
        %2248 = vmatpush1.msra.mxu0 %v1816
        %2249 = vmatprep.subr.mxu0 0.0
        %2250 = vmatpush1.msra.mxu0 %v1817
        %2251 = vmatprep.subr.mxu0 0.0
        %2252 = vmatpush1.msra.mxu0 %v1818
        %2253 = vmatprep.subr.mxu0 0.0
        %2254 = vmatpush1.msra.mxu0 %v1819
        %2255 = vmatprep.subr.mxu0 0.0
        %2256 = vmatpush1.msra.mxu0 %v1820
        %2257 = vmatprep.subr.mxu0 0.0
        %2258 = vmatpush1.msra.mxu0 %v1821
        %2259 = vmatprep.subr.mxu0 0.0
        %2260 = vmatpush1.msra.mxu0 %v1822
        %2261 = vmatprep.subr.mxu0 0.0
        %2262 = vmatpush1.msra.mxu0 %v1823
        %2263 = vmatprep.subr.mxu0 0.0
        %2264 = vmatpush1.msra.mxu0 %v1824
        %2265 = vmatprep.subr.mxu0 0.0
        %2266 = vmatpush1.msra.mxu0 %v1825
        %2267 = vmatprep.subr.mxu0 0.0
        %2268 = vmatpush1.msra.mxu0 %v1826
        %2269 = vmatprep.subr.mxu0 0.0
        %2270 = vmatpush1.msra.mxu0 %v1827
        %2271 = vmatprep.subr.mxu0 0.0
        %2272 = vmatpush1.msra.mxu0 %v1828
        %2273 = vmatprep.mubr.f32.mxu0 %v1406
        %2274 = vmatmul.mubr.f32.gmra.mrb[0].mxu0 %v1405
        %v2275 = vpop.f32.mrb[0].mxu0
        %v2276 = vadd.f32 %v2206, %v2275
        %v2277 = vpop.f32.mrb[0].mxu0
        %2278 = vdwg.mxu0
        %2279 = vmatprep.subr.mxu0 0.0
        %2280 = vmatpush1.msra.mxu0 %v1829
        %2281 = vmatprep.subr.mxu0 0.0
        %2282 = vmatpush1.msra.mxu0 %v1830
        %2283 = vmatprep.subr.mxu0 0.0
        %2284 = vmatpush1.msra.mxu0 %v1831
        %2285 = vmatprep.subr.mxu0 0.0
        %2286 = vmatpush1.msra.mxu0 %v1832
        %2287 = vmatprep.subr.mxu0 0.0
        %2288 = vmatpush1.msra.mxu0 %v1833
        %2289 = vmatprep.subr.mxu0 0.0
        %2290 = vmatpush1.msra.mxu0 %v1834
        %2291 = vmatprep.subr.mxu0 0.0
        %2292 = vmatpush1.msra.mxu0 %v1835
        %2293 = vmatprep.subr.mxu0 0.0
        %2294 = vmatpush1.msra.mxu0 %v1836
        %2295 = vmatprep.subr.mxu0 0.0
        %2296 = vmatpush1.msra.mxu0 %v1837
        %2297 = vmatprep.subr.mxu0 0.0
        %2298 = vmatpush1.msra.mxu0 %v1838
        %2299 = vmatprep.subr.mxu0 0.0
        %2300 = vmatpush1.msra.mxu0 %v1839
        %2301 = vmatprep.subr.mxu0 0.0
        %2302 = vmatpush1.msra.mxu0 %v1840
        %2303 = vmatprep.subr.mxu0 0.0
        %2304 = vmatpush1.msra.mxu0 %v1841
        %2305 = vmatprep.subr.mxu0 0.0
        %2306 = vmatpush1.msra.mxu0 %v1842
        %2307 = vmatprep.subr.mxu0 0.0
        %2308 = vmatpush1.msra.mxu0 %v1843
        %2309 = vmatprep.subr.mxu0 0.0
        %2310 = vmatpush1.msra.mxu0 %v1844
        %2311 = vmatprep.subr.mxu0 0.0
        %2312 = vmatpush1.msra.mxu0 %v1845
        %2313 = vmatprep.subr.mxu0 0.0
        %2314 = vmatpush1.msra.mxu0 %v1846
        %2315 = vmatprep.subr.mxu0 0.0
        %2316 = vmatpush1.msra.mxu0 %v1847
        %2317 = vmatprep.subr.mxu0 0.0
        %2318 = vmatpush1.msra.mxu0 %v1848
        %2319 = vmatprep.subr.mxu0 0.0
        %2320 = vmatpush1.msra.mxu0 %v1849
        %2321 = vmatprep.subr.mxu0 0.0
        %2322 = vmatpush1.msra.mxu0 %v1850
        %2323 = vmatprep.subr.mxu0 0.0
        %2324 = vmatpush1.msra.mxu0 %v1851
        %2325 = vmatprep.subr.mxu0 0.0
        %2326 = vmatpush1.msra.mxu0 %v1852
        %2327 = vmatprep.subr.mxu0 0.0
        %2328 = vmatpush1.msra.mxu0 %v1853
        %2329 = vmatprep.subr.mxu0 0.0
        %2330 = vmatpush1.msra.mxu0 %v1854
        %2331 = vmatprep.subr.mxu0 0.0
        %2332 = vmatpush1.msra.mxu0 %v1855
        %2333 = vmatprep.subr.mxu0 0.0
        %2334 = vmatpush1.msra.mxu0 %v1856
        %2335 = vmatprep.subr.mxu0 0.0
        %2336 = vmatpush1.msra.mxu0 %v1857
        %2337 = vmatprep.subr.mxu0 0.0
        %2338 = vmatpush1.msra.mxu0 %v1858
        %2339 = vmatprep.subr.mxu0 0.0
        %2340 = vmatpush1.msra.mxu0 %v1859
        %2341 = vmatprep.subr.mxu0 0.0
        %2342 = vmatpush1.msra.mxu0 %v1860
        %2343 = vmatprep.mubr.f32.mxu0 %v1408
        %2344 = vmatmul.mubr.f32.gmra.mrb[0].mxu0 %v1407
        %v2345 = vpop.f32.mrb[0].mxu0
        %v2346 = vadd.f32 %v2276, %v2345
        %v2347 = vpop.f32.mrb[0].mxu0
        %2348 = vdwg.mxu0
        %2349 = vmatprep.subr.mxu0 0.0
        %2350 = vmatpush1.msra.mxu0 %v1861
        %2351 = vmatprep.subr.mxu0 0.0
        %2352 = vmatpush1.msra.mxu0 %v1862
        %2353 = vmatprep.subr.mxu0 0.0
        %2354 = vmatpush1.msra.mxu0 %v1863
        %2355 = vmatprep.subr.mxu0 0.0
        %2356 = vmatpush1.msra.mxu0 %v1864
        %2357 = vmatprep.subr.mxu0 0.0
        %2358 = vmatpush1.msra.mxu0 %v1865
        %2359 = vmatprep.subr.mxu0 0.0
        %2360 = vmatpush1.msra.mxu0 %v1866
        %2361 = vmatprep.subr.mxu0 0.0
        %2362 = vmatpush1.msra.mxu0 %v1867
        %2363 = vmatprep.subr.mxu0 0.0
        %2364 = vmatpush1.msra.mxu0 %v1868
        %2365 = vmatprep.subr.mxu0 0.0
        %2366 = vmatpush1.msra.mxu0 %v1869
        %2367 = vmatprep.subr.mxu0 0.0
        %2368 = vmatpush1.msra.mxu0 %v1870
        %2369 = vmatprep.subr.mxu0 0.0
        %2370 = vmatpush1.msra.mxu0 %v1871
        %2371 = vmatprep.subr.mxu0 0.0
        %2372 = vmatpush1.msra.mxu0 %v1872
        %2373 = vmatprep.subr.mxu0 0.0
        %2374 = vmatpush1.msra.mxu0 %v1873
        %2375 = vmatprep.subr.mxu0 0.0
        %2376 = vmatpush1.msra.mxu0 %v1874
        %2377 = vmatprep.subr.mxu0 0.0
        %2378 = vmatpush1.msra.mxu0 %v1875
        %2379 = vmatprep.subr.mxu0 0.0
        %2380 = vmatpush1.msra.mxu0 %v1876
        %2381 = vmatprep.subr.mxu0 0.0
        %2382 = vmatpush1.msra.mxu0 %v1877
        %2383 = vmatprep.subr.mxu0 0.0
        %2384 = vmatpush1.msra.mxu0 %v1878
        %2385 = vmatprep.subr.mxu0 0.0
        %2386 = vmatpush1.msra.mxu0 %v1879
        %2387 = vmatprep.subr.mxu0 0.0
        %2388 = vmatpush1.msra.mxu0 %v1880
        %2389 = vmatprep.subr.mxu0 0.0
        %2390 = vmatpush1.msra.mxu0 %v1881
        %2391 = vmatprep.subr.mxu0 0.0
        %2392 = vmatpush1.msra.mxu0 %v1882
        %2393 = vmatprep.subr.mxu0 0.0
        %2394 = vmatpush1.msra.mxu0 %v1883
        %2395 = vmatprep.subr.mxu0 0.0
        %2396 = vmatpush1.msra.mxu0 %v1884
        %2397 = vmatprep.subr.mxu0 0.0
        %2398 = vmatpush1.msra.mxu0 %v1885
        %2399 = vmatprep.subr.mxu0 0.0
        %2400 = vmatpush1.msra.mxu0 %v1886
        %2401 = vmatprep.subr.mxu0 0.0
        %2402 = vmatpush1.msra.mxu0 %v1887
        %2403 = vmatprep.subr.mxu0 0.0
        %2404 = vmatpush1.msra.mxu0 %v1888
        %2405 = vmatprep.subr.mxu0 0.0
        %2406 = vmatpush1.msra.mxu0 %v1889
        %2407 = vmatprep.subr.mxu0 0.0
        %2408 = vmatpush1.msra.mxu0 %v1890
        %2409 = vmatprep.subr.mxu0 0.0
        %2410 = vmatpush1.msra.mxu0 %v1891
        %2411 = vmatprep.subr.mxu0 0.0
        %2412 = vmatpush1.msra.mxu0 %v1892
        %2413 = vmatprep.mubr.f32.mxu0 %v1410
        %2414 = vmatmul.mubr.f32.gmra.mrb[0].mxu0 %v1409
        %v2415 = vpop.f32.mrb[0].mxu0
        %v2416 = vadd.f32 %v2346, %v2415
        %v2417 = vpop.f32.mrb[0].mxu0
        %2418 = vdwg.mxu0
        %2419 = vmatprep.subr.mxu0 0.0
        %2420 = vmatpush1.msra.mxu0 %v1893
        %2421 = vmatprep.subr.mxu0 0.0
        %2422 = vmatpush1.msra.mxu0 %v1894
        %2423 = vmatprep.subr.mxu0 0.0
        %2424 = vmatpush1.msra.mxu0 %v1895
        %2425 = vmatprep.subr.mxu0 0.0
        %2426 = vmatpush1.msra.mxu0 %v1896
        %2427 = vmatprep.subr.mxu0 0.0
        %2428 = vmatpush1.msra.mxu0 %v1897
        %2429 = vmatprep.subr.mxu0 0.0
        %2430 = vmatpush1.msra.mxu0 %v1898
        %2431 = vmatprep.subr.mxu0 0.0
        %2432 = vmatpush1.msra.mxu0 %v1899
        %2433 = vmatprep.subr.mxu0 0.0
        %2434 = vmatpush1.msra.mxu0 %v1900
        %2435 = vmatprep.subr.mxu0 0.0
        %2436 = vmatpush1.msra.mxu0 %v1901
        %2437 = vmatprep.subr.mxu0 0.0
        %2438 = vmatpush1.msra.mxu0 %v1902
        %2439 = vmatprep.subr.mxu0 0.0
        %2440 = vmatpush1.msra.mxu0 %v1903
        %2441 = vmatprep.subr.mxu0 0.0
        %2442 = vmatpush1.msra.mxu0 %v1904
        %2443 = vmatprep.subr.mxu0 0.0
        %2444 = vmatpush1.msra.mxu0 %v1905
        %2445 = vmatprep.subr.mxu0 0.0
        %2446 = vmatpush1.msra.mxu0 %v1906
        %2447 = vmatprep.subr.mxu0 0.0
        %2448 = vmatpush1.msra.mxu0 %v1907
        %2449 = vmatprep.subr.mxu0 0.0
        %2450 = vmatpush1.msra.mxu0 %v1908
        %2451 = vmatprep.subr.mxu0 0.0
        %2452 = vmatpush1.msra.mxu0 %v1909
        %2453 = vmatprep.subr.mxu0 0.0
        %2454 = vmatpush1.msra.mxu0 %v1910
        %2455 = vmatprep.subr.mxu0 0.0
        %2456 = vmatpush1.msra.mxu0 %v1911
        %2457 = vmatprep.subr.mxu0 0.0
        %2458 = vmatpush1.msra.mxu0 %v1912
        %2459 = vmatprep.subr.mxu0 0.0
        %2460 = vmatpush1.msra.mxu0 %v1913
        %2461 = vmatprep.subr.mxu0 0.0
        %2462 = vmatpush1.msra.mxu0 %v1914
        %2463 = vmatprep.subr.mxu0 0.0
        %2464 = vmatpush1.msra.mxu0 %v1915
        %2465 = vmatprep.subr.mxu0 0.0
        %2466 = vmatpush1.msra.mxu0 %v1916
        %2467 = vmatprep.subr.mxu0 0.0
        %2468 = vmatpush1.msra.mxu0 %v1917
        %2469 = vmatprep.subr.mxu0 0.0
        %2470 = vmatpush1.msra.mxu0 %v1918
        %2471 = vmatprep.subr.mxu0 0.0
        %2472 = vmatpush1.msra.mxu0 %v1919
        %2473 = vmatprep.subr.mxu0 0.0
        %2474 = vmatpush1.msra.mxu0 %v1920
        %2475 = vmatprep.subr.mxu0 0.0
        %2476 = vmatpush1.msra.mxu0 %v1921
        %2477 = vmatprep.subr.mxu0 0.0
        %2478 = vmatpush1.msra.mxu0 %v1922
        %2479 = vmatprep.subr.mxu0 0.0
        %2480 = vmatpush1.msra.mxu0 %v1923
        %2481 = vmatprep.subr.mxu0 0.0
        %2482 = vmatpush1.msra.mxu0 %v1924
        %2483 = vmatprep.mubr.f32.mxu0 %v1412
        %2484 = vmatmul.mubr.f32.gmra.mrb[0].mxu0 %v1411
        %v2485 = vpop.f32.mrb[0].mxu0
        %v2486 = vadd.f32 %v2416, %v2485
        %v2487 = vpop.f32.mrb[0].mxu0
        %2488 = vdwg.mxu0
        %v2489 = vadd.f32 %v645, %v2486
        %v2490 = vsel %vm621, %v2489, 0.0
        %2491 = vadd.xlane.f32.xlu0 %v2490
        %v2492 = vpop.xlane.xlu0 %2491
        %v2493 = vmul.f32 %v2492, %v625
        %v2494 = vsub.f32 %v2489, %v2493
        %v2495 = vmul.f32 %v2494, %v2494
        %v2496 = vsel %vm621, %v2495, 0.0
        %2497 = vadd.xlane.f32.xlu0 %v2496
        %v2498 = vpop.xlane.xlu0 %2497
        %v2499 = vmul.f32 %v2498, %v625
        %v2500 = vadd.f32 %v2499, 1e-05
        %v2501 = vrsqrt.pop %v2500
        %v2502 = vmul.f32 %v2494, %v2501
        %v2503 = vlaneseq
        %v2504 = vshrl.u32 %v2503, 7
        %v2505 = vsub.s32 5, %v2504
        %v2506 = vrot.slane %v447, %v2505
        %v2507 = vmul.f32 %v2502, %v2506
        %v2508 = vlaneseq
        %v2509 = vshrl.u32 %v2508, 7
        %v2510 = vsub.s32 6, %v2509
        %v2511 = vrot.slane %v447, %v2510
        %v2512 = vadd.f32 %v2507, %v2511
        %2513 = vst.msk [vmem:[#allocation2] sm:$0x3] %vm621, %v2512
        %p2514 = scmp.eq.s32.totalorder %s27, 1
        // Predicated region
        $region69: #{vit_forward.4} parent=47 // pred_check
          %p2515 = pneg %p2514
        $region70: #{vit_forward.4} parent=47 // pred_check_branch
          %2517 = sbr.rel (%p2515) target = $region72
        $region71: #{vit_forward.4} parent=47 // pred_region
          %v2518 = vld [vmem:[#allocation2] sm:$0x3]
          %v2519 = vsel %vm621, %v2518, 0.0
          %2520 = vadd.xlane.f32.xlu0 %v2519
          %v2521 = vpop.xlane.xlu0 %2520
          %v2522 = vmul.f32 %v2521, %v625
          %v2523 = vsub.f32 %v2518, %v2522
          %v2524 = vmul.f32 %v2523, %v2523
          %v2525 = vsel %vm621, %v2524, 0.0
          %2526 = vadd.xlane.f32.xlu0 %v2525
          %v2527 = vpop.xlane.xlu0 %2526
          %v2528 = vmul.f32 %v2527, %v625
          %v2529 = vadd.f32 %v2528, 1e-05
          %v2530 = vrsqrt.pop %v2529
          %v2531 = vmul.f32 %v2523, %v2530
          %v2532 = vlaneseq
          %v2533 = vshrl.u32 %v2532, 7
          %v2534 = vsub.s32 7, %v2533
          %v2535 = vrot.slane %v447, %v2534
          %v2536 = vmul.f32 %v2531, %v2535
          %v2537 = vlaneseq
          %v2538 = vshrl.u32 %v2537, 7
          %v2539 = vsub.s32 0, %v2538
          %v2540 = vrot.slane %v448, %v2539
          %v2541 = vadd.f32 %v2536, %v2540
          %2542 = vst.msk [vmem:[%s7] sm:$0x3] %vm621, %v2541
        $region72: #{vit_forward.4} parent=47 // pred_fallthru
          _
        // Predicated region
        $region73: #{vit_forward.4} parent=47 // pred_check
          %p2543 = pneg %p217
        $region74: #{vit_forward.4} parent=47 // pred_check_branch
          %2545 = sbr.rel (%p2543) target = $region76
        $region75: #{vit_forward.4} parent=47 // pred_region
          _
        $region76: #{vit_forward.4} parent=47 // pred_fallthru
          _
        // Predicated region
        $region77: #{vit_forward.4} parent=47 // pred_check
          %p2546 = pneg %p217
        $region78: #{vit_forward.4} parent=47 // pred_check_branch
          %2548 = sbr.rel (%p2546) target = $region80
        $region79: #{vit_forward.4} parent=47 // pred_region
          _
        $region80: #{vit_forward.4} parent=47 // pred_fallthru
          _
      $region48: #{vit_forward.4} parent=5 // pred_fallthru
        _
      %p2549 = scmp.le.s32.totalorder 2, %s22
      // Predicated region
      $region81: #{vit_forward.4} parent=5 // pred_check
        %p2550 = pneg %p2549
      $region82: #{vit_forward.4} parent=5 // pred_check_branch
        %2552 = sbr.rel (%p2550) target = $region84
      $region83: #{vit_forward.4} parent=5 // pred_region
        %s2553 = ssub.s32 %s22, 2
      $region84: #{vit_forward.4} parent=5 // pred_fallthru
        _
    $region6: #{vit_forward.4} parent=1 // loop_footer
      %s26 = sadd.s32 1, %s22
    $region7: #{vit_forward.4} parent=1 // loop_footer_branch
      %21 = sbr.rel target = $region3
    $region8: #{vit_forward.4} parent=1 // loop_exit
      _
    %2554 = vsyncpa [#allocation4], 1
    %s2555 = scalar_lea.sflag [#allocation4], 1
    %2556 = vsyncpa %s2555, 1
    %2557 = vsyncpa [#allocation6], 1
    %s2558 = scalar_lea.sflag [#allocation6], 1
    %2559 = vsyncpa %s2558, 1
    %2560 = vsyncpa [#allocation9], 1
    %s2561 = scalar_lea.sflag [#allocation9], 1
    %2562 = vsyncpa %s2561, 1

// kernel: vit_forward.5
$region0: #{vit_forward.5}
  #allocation0 [shape = 'u32[]', space=smem, size = 0x4, offset = 0x4, fixed_abs, tag = 'smem constant byte address 0x4 - core index']
  #allocation1 [shape = 'u32[144,128]{1,0:T(1,128)}', space=vmem, size = 0x12000, scoped, tag = 'internal scratch']
  #allocation2 [shape = 'f32[2,32]{1,0:T(2,128)}', space=vmem, size = 0x400, scoped, tag = 'scratch operand']
  %s0 = inlined_call_operand.vmem [shape: f32[2,32], index: 0, kind: input, shape index: {}]
  %s1 = inlined_call_operand.vmem [shape: f32[2,32], index: 1, kind: input, shape index: {}]
  %s2 = inlined_call_operand.vmem [shape: bf16[6,32,32], index: 2, kind: input, shape index: {}]
  %s3 = inlined_call_operand.vmem [shape: bf16[6,32,32], index: 3, kind: input, shape index: {}]
  %s4 = inlined_call_operand.vmem [shape: bf16[6,32,32], index: 4, kind: input, shape index: {}]
  %s5 = inlined_call_operand.vmem [shape: bf16[6,32,32], index: 5, kind: input, shape index: {}]
  %s6 = inlined_call_operand.vmem [shape: bf16[6,32,2048], index: 6, kind: input, shape index: {}]
  %s7 = inlined_call_operand.vmem [shape: f32[6,1,2048], index: 7, kind: input, shape index: {}]
  %s8 = inlined_call_operand.vmem [shape: bf16[6,2048,32], index: 8, kind: input, shape index: {}]
  %s9 = inlined_call_operand.vmem [shape: f32[6,13,32], index: 9, kind: input, shape index: {}]
  %s10 = inlined_call_operand.vmem [shape: f32[32,10], index: 10, kind: input, shape index: {}]
  %s11 = inlined_call_operand.vmem [shape: f32[1,10], index: 11, kind: input, shape index: {}]
  %s12 = inlined_call_operand.hbm [shape: f32[2,10], index: 12, kind: output, shape index: {}]
  %s13 = sld [smem:[#allocation0]]
  $region89: #{vit_forward.5} parent=0
    _
  %s15 = ssub.s32 1, %s13
  %s16 = scalar_select 0, %s15, %s13
  $region1: #{vit_forward.5} parent=0
    #allocation3 [shape = 'u8[1024]{0}', space=vmem, size = 0x400, scoped, tag = 'output window, operand 0, single buffered']
    #allocation4 [shape = 's32[2]{0}', space=sflag, size = 0x8, scoped, tag = 'scoped memory for vit_forward.5']
    %17 = vsyncpa [#allocation4], 0
    loop: start=0, step=1, limit=8
    $region2: #{vit_forward.5} parent=1 // loop_pre_header
      _
    $region3: #{vit_forward.5} parent=1 // loop_header
      %s19 = sphi 0, %s23
      %p20 = scmp.ge.s32.totalorder %s19, 8
      %s27 = sphi 0, %s27
      %s29 = sphi 0, %s27
      %s30 = sphi 0, %s29
      %s44 = sphi 0, %s30
      %s48 = sphi 0, %s48
      %s50 = sphi 0, %s48
      %s51 = sphi 0, %s50
      %s65 = sphi 0, %s51
      %s71 = sphi 0, %s73
      %s74 = sphi 0, %s71
      %s75 = sphi 0, %s74
      %s91 = sphi 0, %s75
      %s97 = sphi 0, %s99
      %s100 = sphi 0, %s97
      %s101 = sphi 0, %s100
      %s117 = sphi 0, %s101
      %s123 = sphi 0, %s125
      %s126 = sphi 0, %s123
      %s127 = sphi 0, %s126
      %s143 = sphi 0, %s127
      %s149 = sphi 0, %s151
      %s152 = sphi 0, %s149
      %s153 = sphi 0, %s152
      %s169 = sphi 0, %s153
      %s175 = sphi 0, %s177
      %s178 = sphi 0, %s175
      %s179 = sphi 0, %s178
      %s195 = sphi 0, %s179
      %s201 = sphi 0, %s203
      %s204 = sphi 0, %s201
      %s205 = sphi 0, %s204
      %s221 = sphi 0, %s205
      %s227 = sphi 0, %s229
      %s230 = sphi 0, %s227
      %s231 = sphi 0, %s230
      %s247 = sphi 0, %s231
      %s253 = sphi 0, %s255
      %s256 = sphi 0, %s253
      %s257 = sphi 0, %s256
      %s273 = sphi 0, %s257
      %s277 = sphi 0, %s277
      %s279 = sphi 0, %s277
      %s280 = sphi 0, %s279
      %s294 = sphi 0, %s280
      %s298 = sphi 0, %s298
      %s300 = sphi 0, %s298
      %s301 = sphi 0, %s300
      %s315 = sphi 0, %s301
      %s319 = sphi 0, %s319
      %s321 = sphi 0, %s319
      %s322 = sphi 0, %s321
      %s336 = sphi 0, %s322
    $region4: #{vit_forward.5} parent=1 // loop_header_branch
      %22 = sbr.rel (%p20) target = $region8
    $region5: #{vit_forward.5} parent=1 // loop_body
      %s24 = ssub.s32 %s19, 1
      %s25 = ssub.s32 %s19, 2
      %s26 = sadd.s32 %s19, 1
      %s28 = sadd.s32 %s27, 1
      %p31 = scmp.eq.s32.totalorder %s19, 5
      %p32 = scmp.ne.s32.totalorder %s27, %s29
      %p33 = scmp.eq.s32.totalorder %s19, 0
      %p34 = por %p32, %p33
      %p35 = scmp.ne.s32.totalorder %s27, %s29
      %p36 = scmp.eq.s32.totalorder %s24, 5
      %p37 = por %p35, %p36
      %p38 = scmp.ne.s32.totalorder %s29, %s30
      %p39 = scmp.eq.s32.totalorder %s24, 0
      %p40 = por %p38, %p39
      %p41 = scmp.ne.s32.totalorder %s29, %s30
      %p42 = scmp.eq.s32.totalorder %s25, 5
      %p43 = por %p41, %p42
      %p45 = scmp.ne.s32.totalorder %s30, %s44
      %p46 = scmp.eq.s32.totalorder %s25, 0
      %p47 = por %p45, %p46
      %s49 = sadd.s32 %s48, 1
      %p52 = scmp.eq.s32.totalorder %s19, 5
      %p53 = scmp.ne.s32.totalorder %s48, %s50
      %p54 = scmp.eq.s32.totalorder %s19, 0
      %p55 = por %p53, %p54
      %p56 = scmp.ne.s32.totalorder %s48, %s50
      %p57 = scmp.eq.s32.totalorder %s24, 5
      %p58 = por %p56, %p57
      %p59 = scmp.ne.s32.totalorder %s50, %s51
      %p60 = scmp.eq.s32.totalorder %s24, 0
      %p61 = por %p59, %p60
      %p62 = scmp.ne.s32.totalorder %s50, %s51
      %p63 = scmp.eq.s32.totalorder %s25, 5
      %p64 = por %p62, %p63
      %p66 = scmp.ne.s32.totalorder %s51, %s65
      %p67 = scmp.eq.s32.totalorder %s25, 0
      %p68 = por %p66, %p67
      %s69 = ssub.s32 %s19, %s26
      %p70 = scmp.eq.s32.totalorder %s69, 0
      %s72 = sadd.s32 %s71, 1
      %s73 = scalar_select %p70, %s71, %s72
      %p76 = pneg %p70
      %p77 = scmp.eq.s32.totalorder %s19, 5
      %p78 = por %p76, %p77
      %p79 = scmp.ne.s32.totalorder %s71, %s74
      %p80 = scmp.eq.s32.totalorder %s19, 0
      %p81 = por %p79, %p80
      %p82 = scmp.ne.s32.totalorder %s71, %s74
      %p83 = scmp.eq.s32.totalorder %s24, 5
      %p84 = por %p82, %p83
      %p85 = scmp.ne.s32.totalorder %s74, %s75
      %p86 = scmp.eq.s32.totalorder %s24, 0
      %p87 = por %p85, %p86
      %p88 = scmp.ne.s32.totalorder %s74, %s75
      %p89 = scmp.eq.s32.totalorder %s25, 5
      %p90 = por %p88, %p89
      %p92 = scmp.ne.s32.totalorder %s75, %s91
      %p93 = scmp.eq.s32.totalorder %s25, 0
      %p94 = por %p92, %p93
      %s95 = ssub.s32 %s19, %s26
      %p96 = scmp.eq.s32.totalorder %s95, 0
      %s98 = sadd.s32 %s97, 1
      %s99 = scalar_select %p96, %s97, %s98
      %p102 = pneg %p96
      %p103 = scmp.eq.s32.totalorder %s19, 5
      %p104 = por %p102, %p103
      %p105 = scmp.ne.s32.totalorder %s97, %s100
      %p106 = scmp.eq.s32.totalorder %s19, 0
      %p107 = por %p105, %p106
      %p108 = scmp.ne.s32.totalorder %s97, %s100
      %p109 = scmp.eq.s32.totalorder %s24, 5
      %p110 = por %p108, %p109
      %p111 = scmp.ne.s32.totalorder %s100, %s101
      %p112 = scmp.eq.s32.totalorder %s24, 0
      %p113 = por %p111, %p112
      %p114 = scmp.ne.s32.totalorder %s100, %s101
      %p115 = scmp.eq.s32.totalorder %s25, 5
      %p116 = por %p114, %p115
      %p118 = scmp.ne.s32.totalorder %s101, %s117
      %p119 = scmp.eq.s32.totalorder %s25, 0
      %p120 = por %p118, %p119
      %s121 = ssub.s32 %s19, %s26
      %p122 = scmp.eq.s32.totalorder %s121, 0
      %s124 = sadd.s32 %s123, 1
      %s125 = scalar_select %p122, %s123, %s124
      %p128 = pneg %p122
      %p129 = scmp.eq.s32.totalorder %s19, 5
      %p130 = por %p128, %p129
      %p131 = scmp.ne.s32.totalorder %s123, %s126
      %p132 = scmp.eq.s32.totalorder %s19, 0
      %p133 = por %p131, %p132
      %p134 = scmp.ne.s32.totalorder %s123, %s126
      %p135 = scmp.eq.s32.totalorder %s24, 5
      %p136 = por %p134, %p135
      %p137 = scmp.ne.s32.totalorder %s126, %s127
      %p138 = scmp.eq.s32.totalorder %s24, 0
      %p139 = por %p137, %p138
      %p140 = scmp.ne.s32.totalorder %s126, %s127
      %p141 = scmp.eq.s32.totalorder %s25, 5
      %p142 = por %p140, %p141
      %p144 = scmp.ne.s32.totalorder %s127, %s143
      %p145 = scmp.eq.s32.totalorder %s25, 0
      %p146 = por %p144, %p145
      %s147 = ssub.s32 %s19, %s26
      %p148 = scmp.eq.s32.totalorder %s147, 0
      %s150 = sadd.s32 %s149, 1
      %s151 = scalar_select %p148, %s149, %s150
      %p154 = pneg %p148
      %p155 = scmp.eq.s32.totalorder %s19, 5
      %p156 = por %p154, %p155
      %p157 = scmp.ne.s32.totalorder %s149, %s152
      %p158 = scmp.eq.s32.totalorder %s19, 0
      %p159 = por %p157, %p158
      %p160 = scmp.ne.s32.totalorder %s149, %s152
      %p161 = scmp.eq.s32.totalorder %s24, 5
      %p162 = por %p160, %p161
      %p163 = scmp.ne.s32.totalorder %s152, %s153
      %p164 = scmp.eq.s32.totalorder %s24, 0
      %p165 = por %p163, %p164
      %p166 = scmp.ne.s32.totalorder %s152, %s153
      %p167 = scmp.eq.s32.totalorder %s25, 5
      %p168 = por %p166, %p167
      %p170 = scmp.ne.s32.totalorder %s153, %s169
      %p171 = scmp.eq.s32.totalorder %s25, 0
      %p172 = por %p170, %p171
      %s173 = ssub.s32 %s19, %s26
      %p174 = scmp.eq.s32.totalorder %s173, 0
      %s176 = sadd.s32 %s175, 1
      %s177 = scalar_select %p174, %s175, %s176
      %p180 = pneg %p174
      %p181 = scmp.eq.s32.totalorder %s19, 5
      %p182 = por %p180, %p181
      %p183 = scmp.ne.s32.totalorder %s175, %s178
      %p184 = scmp.eq.s32.totalorder %s19, 0
      %p185 = por %p183, %p184
      %p186 = scmp.ne.s32.totalorder %s175, %s178
      %p187 = scmp.eq.s32.totalorder %s24, 5
      %p188 = por %p186, %p187
      %p189 = scmp.ne.s32.totalorder %s178, %s179
      %p190 = scmp.eq.s32.totalorder %s24, 0
      %p191 = por %p189, %p190
      %p192 = scmp.ne.s32.totalorder %s178, %s179
      %p193 = scmp.eq.s32.totalorder %s25, 5
      %p194 = por %p192, %p193
      %p196 = scmp.ne.s32.totalorder %s179, %s195
      %p197 = scmp.eq.s32.totalorder %s25, 0
      %p198 = por %p196, %p197
      %s199 = ssub.s32 %s19, %s26
      %p200 = scmp.eq.s32.totalorder %s199, 0
      %s202 = sadd.s32 %s201, 1
      %s203 = scalar_select %p200, %s201, %s202
      %p206 = pneg %p200
      %p207 = scmp.eq.s32.totalorder %s19, 5
      %p208 = por %p206, %p207
      %p209 = scmp.ne.s32.totalorder %s201, %s204
      %p210 = scmp.eq.s32.totalorder %s19, 0
      %p211 = por %p209, %p210
      %p212 = scmp.ne.s32.totalorder %s201, %s204
      %p213 = scmp.eq.s32.totalorder %s24, 5
      %p214 = por %p212, %p213
      %p215 = scmp.ne.s32.totalorder %s204, %s205
      %p216 = scmp.eq.s32.totalorder %s24, 0
      %p217 = por %p215, %p216
      %p218 = scmp.ne.s32.totalorder %s204, %s205
      %p219 = scmp.eq.s32.totalorder %s25, 5
      %p220 = por %p218, %p219
      %p222 = scmp.ne.s32.totalorder %s205, %s221
      %p223 = scmp.eq.s32.totalorder %s25, 0
      %p224 = por %p222, %p223
      %s225 = ssub.s32 %s19, %s26
      %p226 = scmp.eq.s32.totalorder %s225, 0
      %s228 = sadd.s32 %s227, 1
      %s229 = scalar_select %p226, %s227, %s228
      %p232 = pneg %p226
      %p233 = scmp.eq.s32.totalorder %s19, 5
      %p234 = por %p232, %p233
      %p235 = scmp.ne.s32.totalorder %s227, %s230
      %p236 = scmp.eq.s32.totalorder %s19, 0
      %p237 = por %p235, %p236
      %p238 = scmp.ne.s32.totalorder %s227, %s230
      %p239 = scmp.eq.s32.totalorder %s24, 5
      %p240 = por %p238, %p239
      %p241 = scmp.ne.s32.totalorder %s230, %s231
      %p242 = scmp.eq.s32.totalorder %s24, 0
      %p243 = por %p241, %p242
      %p244 = scmp.ne.s32.totalorder %s230, %s231
      %p245 = scmp.eq.s32.totalorder %s25, 5
      %p246 = por %p244, %p245
      %p248 = scmp.ne.s32.totalorder %s231, %s247
      %p249 = scmp.eq.s32.totalorder %s25, 0
      %p250 = por %p248, %p249
      %s251 = ssub.s32 %s19, %s26
      %p252 = scmp.eq.s32.totalorder %s251, 0
      %s254 = sadd.s32 %s253, 1
      %s255 = scalar_select %p252, %s253, %s254
      %p258 = pneg %p252
      %p259 = scmp.eq.s32.totalorder %s19, 5
      %p260 = por %p258, %p259
      %p261 = scmp.ne.s32.totalorder %s253, %s256
      %p262 = scmp.eq.s32.totalorder %s19, 0
      %p263 = por %p261, %p262
      %p264 = scmp.ne.s32.totalorder %s253, %s256
      %p265 = scmp.eq.s32.totalorder %s24, 5
      %p266 = por %p264, %p265
      %p267 = scmp.ne.s32.totalorder %s256, %s257
      %p268 = scmp.eq.s32.totalorder %s24, 0
      %p269 = por %p267, %p268
      %p270 = scmp.ne.s32.totalorder %s256, %s257
      %p271 = scmp.eq.s32.totalorder %s25, 5
      %p272 = por %p270, %p271
      %p274 = scmp.ne.s32.totalorder %s257, %s273
      %p275 = scmp.eq.s32.totalorder %s25, 0
      %p276 = por %p274, %p275
      %s278 = sadd.s32 %s277, 1
      %p281 = scmp.eq.s32.totalorder %s19, 5
      %p282 = scmp.ne.s32.totalorder %s277, %s279
      %p283 = scmp.eq.s32.totalorder %s19, 0
      %p284 = por %p282, %p283
      %p285 = scmp.ne.s32.totalorder %s277, %s279
      %p286 = scmp.eq.s32.totalorder %s24, 5
      %p287 = por %p285, %p286
      %p288 = scmp.ne.s32.totalorder %s279, %s280
      %p289 = scmp.eq.s32.totalorder %s24, 0
      %p290 = por %p288, %p289
      %p291 = scmp.ne.s32.totalorder %s279, %s280
      %p292 = scmp.eq.s32.totalorder %s25, 5
      %p293 = por %p291, %p292
      %p295 = scmp.ne.s32.totalorder %s280, %s294
      %p296 = scmp.eq.s32.totalorder %s25, 0
      %p297 = por %p295, %p296
      %s299 = sadd.s32 %s298, 1
      %p302 = scmp.eq.s32.totalorder %s19, 5
      %p303 = scmp.ne.s32.totalorder %s298, %s300
      %p304 = scmp.eq.s32.totalorder %s19, 0
      %p305 = por %p303, %p304
      %p306 = scmp.ne.s32.totalorder %s298, %s300
      %p307 = scmp.eq.s32.totalorder %s24, 5
      %p308 = por %p306, %p307
      %p309 = scmp.ne.s32.totalorder %s300, %s301
      %p310 = scmp.eq.s32.totalorder %s24, 0
      %p311 = por %p309, %p310
      %p312 = scmp.ne.s32.totalorder %s300, %s301
      %p313 = scmp.eq.s32.totalorder %s25, 5
      %p314 = por %p312, %p313
      %p316 = scmp.ne.s32.totalorder %s301, %s315
      %p317 = scmp.eq.s32.totalorder %s25, 0
      %p318 = por %p316, %p317
      %s320 = sadd.s32 %s319, 1
      %p323 = scmp.eq.s32.totalorder %s19, 5
      %p324 = scmp.ne.s32.totalorder %s319, %s321
      %p325 = scmp.eq.s32.totalorder %s19, 0
      %p326 = por %p324, %p325
      %p327 = scmp.ne.s32.totalorder %s319, %s321
      %p328 = scmp.eq.s32.totalorder %s24, 5
      %p329 = por %p327, %p328
      %p330 = scmp.ne.s32.totalorder %s321, %s322
      %p331 = scmp.eq.s32.totalorder %s24, 0
      %p332 = por %p330, %p331
      %p333 = scmp.ne.s32.totalorder %s321, %s322
      %p334 = scmp.eq.s32.totalorder %s25, 5
      %p335 = por %p333, %p334
      %p337 = scmp.ne.s32.totalorder %s322, %s336
      %p338 = scmp.eq.s32.totalorder %s25, 0
      %p339 = por %p337, %p338
      %p340 = scmp.le.s32.totalorder 1, %s19
      %p341 = scmp.lt.s32.totalorder %s19, 7
      %p342 = pnand %p340, %p341
      %p343 = pneg %p342
      // Predicated region
      $region9: #{vit_forward.5} parent=5 // pred_check
        _
      $region10: #{vit_forward.5} parent=5 // pred_check_branch
        %345 = sbr.rel (%p342) target = $region12
      $region11: #{vit_forward.5} parent=5 // pred_region
        %s346 = ssub.s32 %s19, 1
        // Predicated region
        $region13: #{vit_forward.5} parent=11 // pred_check
          %p347 = pneg %p40
        $region14: #{vit_forward.5} parent=11 // pred_check_branch
          %349 = sbr.rel (%p347) target = $region16
        $region15: #{vit_forward.5} parent=11 // pred_region
          _
        $region16: #{vit_forward.5} parent=11 // pred_fallthru
          _
        // Predicated region
        $region17: #{vit_forward.5} parent=11 // pred_check
          %p350 = pneg %p61
        $region18: #{vit_forward.5} parent=11 // pred_check_branch
          %352 = sbr.rel (%p350) target = $region20
        $region19: #{vit_forward.5} parent=11 // pred_region
          _
        $region20: #{vit_forward.5} parent=11 // pred_fallthru
          _
        // Predicated region
        $region21: #{vit_forward.5} parent=11 // pred_check
          %p353 = pneg %p290
        $region22: #{vit_forward.5} parent=11 // pred_check_branch
          %355 = sbr.rel (%p353) target = $region24
        $region23: #{vit_forward.5} parent=11 // pred_region
          _
        $region24: #{vit_forward.5} parent=11 // pred_fallthru
          _
        // Predicated region
        $region25: #{vit_forward.5} parent=11 // pred_check
          %p356 = pneg %p311
        $region26: #{vit_forward.5} parent=11 // pred_check_branch
          %358 = sbr.rel (%p356) target = $region28
        $region27: #{vit_forward.5} parent=11 // pred_region
          _
        $region28: #{vit_forward.5} parent=11 // pred_fallthru
          _
      $region12: #{vit_forward.5} parent=5 // pred_fallthru
        _
      %p359 = scmp.lt.s32.totalorder %s19, 6
      // Predicated region
      $region29: #{vit_forward.5} parent=5 // pred_check
        %p360 = pneg %p359
      $region30: #{vit_forward.5} parent=5 // pred_check_branch
        %362 = sbr.rel (%p360) target = $region32
      $region31: #{vit_forward.5} parent=5 // pred_region
        // Predicated region
        $region33: #{vit_forward.5} parent=31 // pred_check
          %p363 = pneg %p81
        $region34: #{vit_forward.5} parent=31 // pred_check_branch
          %365 = sbr.rel (%p363) target = $region36
        $region35: #{vit_forward.5} parent=31 // pred_region
          %p366 = scmp.lt.s32.totalorder %s19, 5
          %s367 = scalar_select %p366, %s19, 5
          %s368 = smul.addr %s367, 4
          %s369 = smul.addr %s368, 4
          %s370 = scalar_lea.vmem %s2, %s369
        $region36: #{vit_forward.5} parent=31 // pred_fallthru
          _
        // Predicated region
        $region37: #{vit_forward.5} parent=31 // pred_check
          %p371 = pneg %p107
        $region38: #{vit_forward.5} parent=31 // pred_check_branch
          %373 = sbr.rel (%p371) target = $region40
        $region39: #{vit_forward.5} parent=31 // pred_region
          %p374 = scmp.lt.s32.totalorder %s19, 5
          %s375 = scalar_select %p374, %s19, 5
          %s376 = smul.addr %s375, 4
          %s377 = smul.addr %s376, 4
          %s378 = scalar_lea.vmem %s3, %s377
        $region40: #{vit_forward.5} parent=31 // pred_fallthru
          _
        // Predicated region
        $region41: #{vit_forward.5} parent=31 // pred_check
          %p379 = pneg %p133
        $region42: #{vit_forward.5} parent=31 // pred_check_branch
          %381 = sbr.rel (%p379) target = $region44
        $region43: #{vit_forward.5} parent=31 // pred_region
          %p382 = scmp.lt.s32.totalorder %s19, 5
          %s383 = scalar_select %p382, %s19, 5
          %s384 = smul.addr %s383, 4
          %s385 = smul.addr %s384, 4
          %s386 = scalar_lea.vmem %s4, %s385
        $region44: #{vit_forward.5} parent=31 // pred_fallthru
          _
        // Predicated region
        $region45: #{vit_forward.5} parent=31 // pred_check
          %p387 = pneg %p159
        $region46: #{vit_forward.5} parent=31 // pred_check_branch
          %389 = sbr.rel (%p387) target = $region48
        $region47: #{vit_forward.5} parent=31 // pred_region
          %p390 = scmp.lt.s32.totalorder %s19, 5
          %s391 = scalar_select %p390, %s19, 5
          %s392 = smul.addr %s391, 4
          %s393 = smul.addr %s392, 4
          %s394 = scalar_lea.vmem %s5, %s393
        $region48: #{vit_forward.5} parent=31 // pred_fallthru
          _
        // Predicated region
        $region49: #{vit_forward.5} parent=31 // pred_check
          %p395 = pneg %p185
        $region50: #{vit_forward.5} parent=31 // pred_check_branch
          %397 = sbr.rel (%p395) target = $region52
        $region51: #{vit_forward.5} parent=31 // pred_region
          %p398 = scmp.lt.s32.totalorder %s19, 5
          %s399 = scalar_select %p398, %s19, 5
          %s400 = smul.addr %s399, 64
          %s401 = smul.addr %s400, 4
          %s402 = scalar_lea.vmem %s6, %s401
        $region52: #{vit_forward.5} parent=31 // pred_fallthru
          _
        // Predicated region
        $region53: #{vit_forward.5} parent=31 // pred_check
          %p403 = pneg %p211
        $region54: #{vit_forward.5} parent=31 // pred_check_branch
          %405 = sbr.rel (%p403) target = $region56
        $region55: #{vit_forward.5} parent=31 // pred_region
          %p406 = scmp.lt.s32.totalorder %s19, 5
          %s407 = scalar_select %p406, %s19, 5
          %s408 = smul.addr %s407, 16
          %s409 = scalar_lea.vmem %s7, %s408
        $region56: #{vit_forward.5} parent=31 // pred_fallthru
          _
        // Predicated region
        $region57: #{vit_forward.5} parent=31 // pred_check
          %p410 = pneg %p237
        $region58: #{vit_forward.5} parent=31 // pred_check_branch
          %412 = sbr.rel (%p410) target = $region60
        $region59: #{vit_forward.5} parent=31 // pred_region
          %p413 = scmp.lt.s32.totalorder %s19, 5
          %s414 = scalar_select %p413, %s19, 5
          %s415 = smul.addr %s414, 256
          %s416 = smul.addr %s415, 4
          %s417 = scalar_lea.vmem %s8, %s416
        $region60: #{vit_forward.5} parent=31 // pred_fallthru
          _
        // Predicated region
        $region61: #{vit_forward.5} parent=31 // pred_check
          %p418 = pneg %p263
        $region62: #{vit_forward.5} parent=31 // pred_check_branch
          %420 = sbr.rel (%p418) target = $region64
        $region63: #{vit_forward.5} parent=31 // pred_region
          %p421 = scmp.lt.s32.totalorder %s19, 5
          %s422 = scalar_select %p421, %s19, 5
          %s423 = smul.addr %s422, 2
          %s424 = smul.addr %s423, 8
          %s425 = scalar_lea.vmem %s9, %s424
        $region64: #{vit_forward.5} parent=31 // pred_fallthru
          _
      $region32: #{vit_forward.5} parent=5 // pred_fallthru
        _
      %p426 = scmp.le.s32.totalorder 1, %s19
      %p427 = scmp.lt.s32.totalorder %s19, 7
      %p428 = pnand %p426, %p427
      %p429 = pneg %p428
      // Predicated region
      $region65: #{vit_forward.5} parent=5 // pred_check
        _
      $region66: #{vit_forward.5} parent=5 // pred_check_branch
        %431 = sbr.rel (%p428) target = $region68
      $region67: #{vit_forward.5} parent=5 // pred_region
        %s432 = ssub.s32 %s19, 1
        %p433 = pneg %p40
        %p434 = pneg %p37
        %p435 = pneg %p61
        %p436 = pneg %p58
        %p437 = scmp.lt.s32.totalorder %s24, 5
        %s438 = scalar_select %p437, %s24, 5
        %s439 = smul.addr %s438, 4
        %s440 = smul.addr %s439, 4
        %s441 = scalar_lea.vmem %s2, %s440
        %p442 = pneg %p87
        %p443 = pneg %p84
        %p444 = scmp.lt.s32.totalorder %s24, 5
        %s445 = scalar_select %p444, %s24, 5
        %s446 = smul.addr %s445, 4
        %s447 = smul.addr %s446, 4
        %s448 = scalar_lea.vmem %s3, %s447
        %p449 = pneg %p113
        %p450 = pneg %p110
        %p451 = scmp.lt.s32.totalorder %s24, 5
        %s452 = scalar_select %p451, %s24, 5
        %s453 = smul.addr %s452, 4
        %s454 = smul.addr %s453, 4
        %s455 = scalar_lea.vmem %s4, %s454
        %p456 = pneg %p139
        %p457 = pneg %p136
        %p458 = scmp.lt.s32.totalorder %s24, 5
        %s459 = scalar_select %p458, %s24, 5
        %s460 = smul.addr %s459, 4
        %s461 = smul.addr %s460, 4
        %s462 = scalar_lea.vmem %s5, %s461
        %p463 = pneg %p165
        %p464 = pneg %p162
        %p465 = scmp.lt.s32.totalorder %s24, 5
        %s466 = scalar_select %p465, %s24, 5
        %s467 = smul.addr %s466, 64
        %s468 = smul.addr %s467, 4
        %s469 = scalar_lea.vmem %s6, %s468
        %p470 = pneg %p191
        %p471 = pneg %p188
        %p472 = scmp.lt.s32.totalorder %s24, 5
        %s473 = scalar_select %p472, %s24, 5
        %s474 = smul.addr %s473, 16
        %s475 = scalar_lea.vmem %s7, %s474
        %p476 = pneg %p217
        %p477 = pneg %p214
        %p478 = scmp.lt.s32.totalorder %s24, 5
        %s479 = scalar_select %p478, %s24, 5
        %s480 = smul.addr %s479, 256
        %s481 = smul.addr %s480, 4
        %s482 = scalar_lea.vmem %s8, %s481
        %p483 = pneg %p243
        %p484 = pneg %p240
        %p485 = scmp.lt.s32.totalorder %s24, 5
        %s486 = scalar_select %p485, %s24, 5
        %s487 = smul.addr %s486, 2
        %s488 = smul.addr %s487, 8
        %s489 = scalar_lea.vmem %s9, %s488
        %p490 = pneg %p269
        %p491 = pneg %p266
        %p492 = pneg %p290
        %p493 = pneg %p287
        %p494 = pneg %p311
        %p495 = pneg %p308
        %p496 = pneg %p332
        %p497 = pneg %p329
        %p498 = scmp.lt.s32.totalorder %s24, 5
        %s499 = scalar_select %p498, %s24, 5
        %s500 = smul.addr %s499, 4
        %s501 = smul.addr %s500, 4
        %s502 = scalar_lea.vmem %s2, %s501
        %p503 = scmp.lt.s32.totalorder %s24, 5
        %s504 = scalar_select %p503, %s24, 5
        %s505 = smul.addr %s504, 4
        %s506 = smul.addr %s505, 4
        %s507 = scalar_lea.vmem %s3, %s506
        %p508 = scmp.lt.s32.totalorder %s24, 5
        %s509 = scalar_select %p508, %s24, 5
        %s510 = smul.addr %s509, 4
        %s511 = smul.addr %s510, 4
        %s512 = scalar_lea.vmem %s4, %s511
        %p513 = scmp.lt.s32.totalorder %s24, 5
        %s514 = scalar_select %p513, %s24, 5
        %s515 = smul.addr %s514, 4
        %s516 = smul.addr %s515, 4
        %s517 = scalar_lea.vmem %s5, %s516
        %p518 = scmp.lt.s32.totalorder %s24, 5
        %s519 = scalar_select %p518, %s24, 5
        %s520 = smul.addr %s519, 64
        %s521 = smul.addr %s520, 4
        %s522 = scalar_lea.vmem %s6, %s521
        %p523 = scmp.lt.s32.totalorder %s24, 5
        %s524 = scalar_select %p523, %s24, 5
        %s525 = smul.addr %s524, 16
        %s526 = scalar_lea.vmem %s7, %s525
        %p527 = scmp.lt.s32.totalorder %s24, 5
        %s528 = scalar_select %p527, %s24, 5
        %s529 = smul.addr %s528, 256
        %s530 = smul.addr %s529, 4
        %s531 = scalar_lea.vmem %s8, %s530
        %p532 = scmp.lt.s32.totalorder %s24, 5
        %s533 = scalar_select %p532, %s24, 5
        %s534 = smul.addr %s533, 2
        %s535 = smul.addr %s534, 8
        %s536 = scalar_lea.vmem %s9, %s535
        %p537 = scmp.eq.s32.totalorder %s24, 0
        // Predicated region
        $region69: #{vit_forward.5} parent=67 // pred_check
          %p538 = pneg %p537
        $region70: #{vit_forward.5} parent=67 // pred_check_branch
          %540 = sbr.rel (%p538) target = $region72
        $region71: #{vit_forward.5} parent=67 // pred_region
          %v541 = vld [vmem:[%s0] sm:$0x3]
          %vm542 = vcmask 254976
          %543 = vst.msk [vmem:[#allocation2] sm:$0x3] %vm542, %v541
        $region72: #{vit_forward.5} parent=67 // pred_fallthru
          _
        %v544 = vld [vmem:[#allocation2] sm:$0x3]
        %v545 = vld [vmem:[%s1] sm:$0x3]
        %v546 = vld [vmem:[%s536] sm:$0xff]
        %v547 = vld [vmem:[%s536 + $0x8] sm:$0x1f]
        %v548 = vld [vmem:[%s502] sm:$0xf]
        %v549 = vld [vmem:[%s502 + $0x4] sm:$0xf]
        %v550 = vld [vmem:[%s502 + $0x8] sm:$0xf]
        %v551 = vld [vmem:[%s502 + $0xc] sm:$0xf]
        %v552 = vunpack.c.l.bf16 %v548
        %v553 = vunpack.c.l.bf16 %v549
        %v554 = vunpack.c.l.bf16 %v550
        %v555 = vunpack.c.l.bf16 %v551
        %v556 = vlaneseq
        %v557 = vshrl.u32 %v556, 7
        %v558 = vsub.s32 0, %v557
        %v559 = vrot.slane %v546, %v558
        %vm560 = vcmask 261120
        %v562 = vsel %vm560, %v544, 0
        %564 = vmatprep.subr.mxu0 0.0
        %565 = vmatpush1.msra.mxu0 %v552
        %566 = vmatprep.subr.mxu0 0.0
        %567 = vmatpush1.msra.mxu0 %v553
        %568 = vmatprep.subr.mxu0 0.0
        %569 = vmatpush1.msra.mxu0 %v554
        %570 = vmatprep.subr.mxu0 0.0
        %571 = vmatpush1.msra.mxu0 %v555
        %572 = vmatprep.subr.mxu0 0.0
        %573 = vmatpush1.msra.mxu0 0.0
        %574 = vmatprep.subr.mxu0 0.0
        %575 = vmatpush1.msra.mxu0 0.0
        %576 = vmatprep.subr.mxu0 0.0
        %577 = vmatpush1.msra.mxu0 0.0
        %578 = vmatprep.subr.mxu0 0.0
        %579 = vmatpush1.msra.mxu0 0.0
        %580 = vmatprep.subr.mxu0 0.0
        %581 = vmatpush1.msra.mxu0 0.0
        %582 = vmatprep.subr.mxu0 0.0
        %583 = vmatpush1.msra.mxu0 0.0
        %584 = vmatprep.subr.mxu0 0.0
        %585 = vmatpush1.msra.mxu0 0.0
        %586 = vmatprep.subr.mxu0 0.0
        %587 = vmatpush1.msra.mxu0 0.0
        %588 = vmatprep.subr.mxu0 0.0
        %589 = vmatpush1.msra.mxu0 0.0
        %590 = vmatprep.subr.mxu0 0.0
        %591 = vmatpush1.msra.mxu0 0.0
        %592 = vmatprep.subr.mxu0 0.0
        %593 = vmatpush1.msra.mxu0 0.0
        %594 = vmatprep.subr.mxu0 0.0
        %595 = vmatpush1.msra.mxu0 0.0
        %596 = vmatprep.subr.mxu0 0.0
        %597 = vmatpush1.msra.mxu0 0.0
        %598 = vmatprep.subr.mxu0 0.0
        %599 = vmatpush1.msra.mxu0 0.0
        %600 = vmatprep.subr.mxu0 0.0
        %601 = vmatpush1.msra.mxu0 0.0
        %602 = vmatprep.subr.mxu0 0.0
        %603 = vmatpush1.msra.mxu0 0.0
        %604 = vmatprep.subr.mxu0 0.0
        %605 = vmatpush1.msra.mxu0 0.0
        %606 = vmatprep.subr.mxu0 0.0
        %607 = vmatpush1.msra.mxu0 0.0
        %608 = vmatprep.subr.mxu0 0.0
        %609 = vmatpush1.msra.mxu0 0.0
        %610 = vmatprep.subr.mxu0 0.0
        %611 = vmatpush1.msra.mxu0 0.0
        %612 = vmatprep.subr.mxu0 0.0
        %613 = vmatpush1.msra.mxu0 0.0
        %614 = vmatprep.subr.mxu0 0.0
        %615 = vmatpush1.msra.mxu0 0.0
        %616 = vmatprep.subr.mxu0 0.0
        %617 = vmatpush1.msra.mxu0 0.0
        %618 = vmatprep.subr.mxu0 0.0
        %619 = vmatpush1.msra.mxu0 0.0
        %620 = vmatprep.subr.mxu0 0.0
        %621 = vmatpush1.msra.mxu0 0.0
        %622 = vmatprep.subr.mxu0 0.0
        %623 = vmatpush1.msra.mxu0 0.0
        %624 = vmatprep.subr.mxu0 0.0
        %625 = vmatpush1.msra.mxu0 0.0
        %626 = vmatprep.subr.mxu0 0.0
        %627 = vmatpush1.msra.mxu0 0.0
        %628 = vmatprep.mubr.f32.mxu0 0.0
        %629 = vmatmul.mubr.f32.gmra.mrb[0].mxu0 %v562
        %v630 = vpop.f32.mrb[0].mxu0
        %v631 = vadd.f32 %v559, %v630
        %v632 = vpop.f32.mrb[0].mxu0
        %633 = vdwg.mxu0
        %v634 = vld [vmem:[%s507] sm:$0xf]
        %v635 = vld [vmem:[%s507 + $0x4] sm:$0xf]
        %v636 = vld [vmem:[%s507 + $0x8] sm:$0xf]
        %v637 = vld [vmem:[%s507 + $0xc] sm:$0xf]
        %v638 = vunpack.c.l.bf16 %v634
        %v639 = vunpack.c.l.bf16 %v635
        %v640 = vunpack.c.l.bf16 %v636
        %v641 = vunpack.c.l.bf16 %v637
        %v642 = vlaneseq
        %v643 = vshrl.u32 %v642, 7
        %v644 = vsub.s32 1, %v643
        %v645 = vrot.slane %v546, %v644
        %v647 = vsel %vm560, %v631, 0
        %649 = vmatprep.subr.mxu0 0.0
        %650 = vmatpush1.msra.mxu0 %v638
        %651 = vmatprep.subr.mxu0 0.0
        %652 = vmatpush1.msra.mxu0 %v639
        %653 = vmatprep.subr.mxu0 0.0
        %654 = vmatpush1.msra.mxu0 %v640
        %655 = vmatprep.subr.mxu0 0.0
        %656 = vmatpush1.msra.mxu0 %v641
        %657 = vmatprep.subr.mxu0 0.0
        %658 = vmatpush1.msra.mxu0 0.0
        %659 = vmatprep.subr.mxu0 0.0
        %660 = vmatpush1.msra.mxu0 0.0
        %661 = vmatprep.subr.mxu0 0.0
        %662 = vmatpush1.msra.mxu0 0.0
        %663 = vmatprep.subr.mxu0 0.0
        %664 = vmatpush1.msra.mxu0 0.0
        %665 = vmatprep.subr.mxu0 0.0
        %666 = vmatpush1.msra.mxu0 0.0
        %667 = vmatprep.subr.mxu0 0.0
        %668 = vmatpush1.msra.mxu0 0.0
        %669 = vmatprep.subr.mxu0 0.0
        %670 = vmatpush1.msra.mxu0 0.0
        %671 = vmatprep.subr.mxu0 0.0
        %672 = vmatpush1.msra.mxu0 0.0
        %673 = vmatprep.subr.mxu0 0.0
        %674 = vmatpush1.msra.mxu0 0.0
        %675 = vmatprep.subr.mxu0 0.0
        %676 = vmatpush1.msra.mxu0 0.0
        %677 = vmatprep.subr.mxu0 0.0
        %678 = vmatpush1.msra.mxu0 0.0
        %679 = vmatprep.subr.mxu0 0.0
        %680 = vmatpush1.msra.mxu0 0.0
        %681 = vmatprep.subr.mxu0 0.0
        %682 = vmatpush1.msra.mxu0 0.0
        %683 = vmatprep.subr.mxu0 0.0
        %684 = vmatpush1.msra.mxu0 0.0
        %685 = vmatprep.subr.mxu0 0.0
        %686 = vmatpush1.msra.mxu0 0.0
        %687 = vmatprep.subr.mxu0 0.0
        %688 = vmatpush1.msra.mxu0 0.0
        %689 = vmatprep.subr.mxu0 0.0
        %690 = vmatpush1.msra.mxu0 0.0
        %691 = vmatprep.subr.mxu0 0.0
        %692 = vmatpush1.msra.mxu0 0.0
        %693 = vmatprep.subr.mxu0 0.0
        %694 = vmatpush1.msra.mxu0 0.0
        %695 = vmatprep.subr.mxu0 0.0
        %696 = vmatpush1.msra.mxu0 0.0
        %697 = vmatprep.subr.mxu0 0.0
        %698 = vmatpush1.msra.mxu0 0.0
        %699 = vmatprep.subr.mxu0 0.0
        %700 = vmatpush1.msra.mxu0 0.0
        %701 = vmatprep.subr.mxu0 0.0
        %702 = vmatpush1.msra.mxu0 0.0
        %703 = vmatprep.subr.mxu0 0.0
        %704 = vmatpush1.msra.mxu0 0.0
        %705 = vmatprep.subr.mxu0 0.0
        %706 = vmatpush1.msra.mxu0 0.0
        %707 = vmatprep.subr.mxu0 0.0
        %708 = vmatpush1.msra.mxu0 0.0
        %709 = vmatprep.subr.mxu0 0.0
        %710 = vmatpush1.msra.mxu0 0.0
        %711 = vmatprep.subr.mxu0 0.0
        %712 = vmatpush1.msra.mxu0 0.0
        %713 = vmatprep.mubr.f32.mxu0 0.0
        %714 = vmatmul.mubr.f32.gmra.mrb[0].mxu0 %v647
        %v715 = vpop.f32.mrb[0].mxu0
        %v716 = vadd.f32 %v645, %v715
        %v717 = vpop.f32.mrb[0].mxu0
        %718 = vdwg.mxu0
        %v719 = vadd.f32 %v544, %v716
        %vm720 = vcmask 254976
        %v721 = vsel %vm720, %v719, 0.0
        %722 = vadd.xlane.f32.xlu0 %v721
        %v723 = vpop.xlane.xlu0 %722
        %v724 = vrcp.pop 32.0
        %v725 = vmul.f32 %v723, %v724
        %v726 = vsub.f32 %v719, %v725
        %v727 = vmul.f32 %v726, %v726
        %v728 = vsel %vm720, %v727, 0.0
        %729 = vadd.xlane.f32.xlu0 %v728
        %v730 = vpop.xlane.xlu0 %729
        %v731 = vmul.f32 %v730, %v724
        %v732 = vadd.f32 %v731, 1e-05
        %v733 = vrsqrt.pop %v732
        %v734 = vmul.f32 %v726, %v733
        %v735 = vlaneseq
        %v736 = vshrl.u32 %v735, 7
        %v737 = vsub.s32 5, %v736
        %v738 = vrot.slane %v546, %v737
        %v739 = vmul.f32 %v734, %v738
        %v740 = vlaneseq
        %v741 = vshrl.u32 %v740, 7
        %v742 = vsub.s32 6, %v741
        %v743 = vrot.slane %v546, %v742
        %v744 = vadd.f32 %v739, %v743
        %v745 = vld [vmem:[%s512] sm:$0xf]
        %v746 = vld [vmem:[%s512 + $0x4] sm:$0xf]
        %v747 = vld [vmem:[%s512 + $0x8] sm:$0xf]
        %v748 = vld [vmem:[%s512 + $0xc] sm:$0xf]
        %v749 = vunpack.c.l.bf16 %v745
        %v750 = vunpack.c.l.bf16 %v746
        %v751 = vunpack.c.l.bf16 %v747
        %v752 = vunpack.c.l.bf16 %v748
        %v753 = vlaneseq
        %v754 = vshrl.u32 %v753, 7
        %v755 = vsub.s32 2, %v754
        %v756 = vrot.slane %v546, %v755
        %v758 = vsel %vm560, %v545, 0
        %760 = vmatprep.subr.mxu0 0.0
        %761 = vmatpush1.msra.mxu0 %v749
        %762 = vmatprep.subr.mxu0 0.0
        %763 = vmatpush1.msra.mxu0 %v750
        %764 = vmatprep.subr.mxu0 0.0
        %765 = vmatpush1.msra.mxu0 %v751
        %766 = vmatprep.subr.mxu0 0.0
        %767 = vmatpush1.msra.mxu0 %v752
        %768 = vmatprep.subr.mxu0 0.0
        %769 = vmatpush1.msra.mxu0 0.0
        %770 = vmatprep.subr.mxu0 0.0
        %771 = vmatpush1.msra.mxu0 0.0
        %772 = vmatprep.subr.mxu0 0.0
        %773 = vmatpush1.msra.mxu0 0.0
        %774 = vmatprep.subr.mxu0 0.0
        %775 = vmatpush1.msra.mxu0 0.0
        %776 = vmatprep.subr.mxu0 0.0
        %777 = vmatpush1.msra.mxu0 0.0
        %778 = vmatprep.subr.mxu0 0.0
        %779 = vmatpush1.msra.mxu0 0.0
        %780 = vmatprep.subr.mxu0 0.0
        %781 = vmatpush1.msra.mxu0 0.0
        %782 = vmatprep.subr.mxu0 0.0
        %783 = vmatpush1.msra.mxu0 0.0
        %784 = vmatprep.subr.mxu0 0.0
        %785 = vmatpush1.msra.mxu0 0.0
        %786 = vmatprep.subr.mxu0 0.0
        %787 = vmatpush1.msra.mxu0 0.0
        %788 = vmatprep.subr.mxu0 0.0
        %789 = vmatpush1.msra.mxu0 0.0
        %790 = vmatprep.subr.mxu0 0.0
        %791 = vmatpush1.msra.mxu0 0.0
        %792 = vmatprep.subr.mxu0 0.0
        %793 = vmatpush1.msra.mxu0 0.0
        %794 = vmatprep.subr.mxu0 0.0
        %795 = vmatpush1.msra.mxu0 0.0
        %796 = vmatprep.subr.mxu0 0.0
        %797 = vmatpush1.msra.mxu0 0.0
        %798 = vmatprep.subr.mxu0 0.0
        %799 = vmatpush1.msra.mxu0 0.0
        %800 = vmatprep.subr.mxu0 0.0
        %801 = vmatpush1.msra.mxu0 0.0
        %802 = vmatprep.subr.mxu0 0.0
        %803 = vmatpush1.msra.mxu0 0.0
        %804 = vmatprep.subr.mxu0 0.0
        %805 = vmatpush1.msra.mxu0 0.0
        %806 = vmatprep.subr.mxu0 0.0
        %807 = vmatpush1.msra.mxu0 0.0
        %808 = vmatprep.subr.mxu0 0.0
        %809 = vmatpush1.msra.mxu0 0.0
        %810 = vmatprep.subr.mxu0 0.0
        %811 = vmatpush1.msra.mxu0 0.0
        %812 = vmatprep.subr.mxu0 0.0
        %813 = vmatpush1.msra.mxu0 0.0
        %814 = vmatprep.subr.mxu0 0.0
        %815 = vmatpush1.msra.mxu0 0.0
        %816 = vmatprep.subr.mxu0 0.0
        %817 = vmatpush1.msra.mxu0 0.0
        %818 = vmatprep.subr.mxu0 0.0
        %819 = vmatpush1.msra.mxu0 0.0
        %820 = vmatprep.subr.mxu0 0.0
        %821 = vmatpush1.msra.mxu0 0.0
        %822 = vmatprep.subr.mxu0 0.0
        %823 = vmatpush1.msra.mxu0 0.0
        %824 = vmatprep.mubr.f32.mxu0 0.0
        %825 = vmatmul.mubr.f32.gmra.mrb[0].mxu0 %v758
        %v826 = vpop.f32.mrb[0].mxu0
        %v827 = vadd.f32 %v756, %v826
        %v828 = vpop.f32.mrb[0].mxu0
        %829 = vdwg.mxu0
        %v830 = vld [vmem:[%s517] sm:$0xf]
        %v831 = vld [vmem:[%s517 + $0x4] sm:$0xf]
        %v832 = vld [vmem:[%s517 + $0x8] sm:$0xf]
        %v833 = vld [vmem:[%s517 + $0xc] sm:$0xf]
        %v834 = vunpack.c.l.bf16 %v830
        %v835 = vunpack.c.l.bf16 %v831
        %v836 = vunpack.c.l.bf16 %v832
        %v837 = vunpack.c.l.bf16 %v833
        %v838 = vlaneseq
        %v839 = vshrl.u32 %v838, 7
        %v840 = vsub.s32 3, %v839
        %v841 = vrot.slane %v546, %v840
        %v843 = vsel %vm560, %v827, 0
        %845 = vmatprep.subr.mxu0 0.0
        %846 = vmatpush1.msra.mxu0 %v834
        %847 = vmatprep.subr.mxu0 0.0
        %848 = vmatpush1.msra.mxu0 %v835
        %849 = vmatprep.subr.mxu0 0.0
        %850 = vmatpush1.msra.mxu0 %v836
        %851 = vmatprep.subr.mxu0 0.0
        %852 = vmatpush1.msra.mxu0 %v837
        %853 = vmatprep.subr.mxu0 0.0
        %854 = vmatpush1.msra.mxu0 0.0
        %855 = vmatprep.subr.mxu0 0.0
        %856 = vmatpush1.msra.mxu0 0.0
        %857 = vmatprep.subr.mxu0 0.0
        %858 = vmatpush1.msra.mxu0 0.0
        %859 = vmatprep.subr.mxu0 0.0
        %860 = vmatpush1.msra.mxu0 0.0
        %861 = vmatprep.subr.mxu0 0.0
        %862 = vmatpush1.msra.mxu0 0.0
        %863 = vmatprep.subr.mxu0 0.0
        %864 = vmatpush1.msra.mxu0 0.0
        %865 = vmatprep.subr.mxu0 0.0
        %866 = vmatpush1.msra.mxu0 0.0
        %867 = vmatprep.subr.mxu0 0.0
        %868 = vmatpush1.msra.mxu0 0.0
        %869 = vmatprep.subr.mxu0 0.0
        %870 = vmatpush1.msra.mxu0 0.0
        %871 = vmatprep.subr.mxu0 0.0
        %872 = vmatpush1.msra.mxu0 0.0
        %873 = vmatprep.subr.mxu0 0.0
        %874 = vmatpush1.msra.mxu0 0.0
        %875 = vmatprep.subr.mxu0 0.0
        %876 = vmatpush1.msra.mxu0 0.0
        %877 = vmatprep.subr.mxu0 0.0
        %878 = vmatpush1.msra.mxu0 0.0
        %879 = vmatprep.subr.mxu0 0.0
        %880 = vmatpush1.msra.mxu0 0.0
        %881 = vmatprep.subr.mxu0 0.0
        %882 = vmatpush1.msra.mxu0 0.0
        %883 = vmatprep.subr.mxu0 0.0
        %884 = vmatpush1.msra.mxu0 0.0
        %885 = vmatprep.subr.mxu0 0.0
        %886 = vmatpush1.msra.mxu0 0.0
        %887 = vmatprep.subr.mxu0 0.0
        %888 = vmatpush1.msra.mxu0 0.0
        %889 = vmatprep.subr.mxu0 0.0
        %890 = vmatpush1.msra.mxu0 0.0
        %891 = vmatprep.subr.mxu0 0.0
        %892 = vmatpush1.msra.mxu0 0.0
        %893 = vmatprep.subr.mxu0 0.0
        %894 = vmatpush1.msra.mxu0 0.0
        %895 = vmatprep.subr.mxu0 0.0
        %896 = vmatpush1.msra.mxu0 0.0
        %897 = vmatprep.subr.mxu0 0.0
        %898 = vmatpush1.msra.mxu0 0.0
        %899 = vmatprep.subr.mxu0 0.0
        %900 = vmatpush1.msra.mxu0 0.0
        %901 = vmatprep.subr.mxu0 0.0
        %902 = vmatpush1.msra.mxu0 0.0
        %903 = vmatprep.subr.mxu0 0.0
        %904 = vmatpush1.msra.mxu0 0.0
        %905 = vmatprep.subr.mxu0 0.0
        %906 = vmatpush1.msra.mxu0 0.0
        %907 = vmatprep.subr.mxu0 0.0
        %908 = vmatpush1.msra.mxu0 0.0
        %909 = vmatprep.mubr.f32.mxu0 0.0
        %910 = vmatmul.mubr.f32.gmra.mrb[0].mxu0 %v843
        %v911 = vpop.f32.mrb[0].mxu0
        %v912 = vadd.f32 %v841, %v911
        %v913 = vpop.f32.mrb[0].mxu0
        %914 = vdwg.mxu0
        %v915 = vadd.f32 %v744, %v912
        %v916 = vsel %vm720, %v915, 0.0
        %917 = vadd.xlane.f32.xlu0 %v916
        %v918 = vpop.xlane.xlu0 %917
        %v919 = vmul.f32 %v918, %v724
        %v920 = vsub.f32 %v915, %v919
        %v921 = vmul.f32 %v920, %v920
        %v922 = vsel %vm720, %v921, 0.0
        %923 = vadd.xlane.f32.xlu0 %v922
        %v924 = vpop.xlane.xlu0 %923
        %v925 = vmul.f32 %v924, %v724
        %v926 = vadd.f32 %v925, 1e-05
        %v927 = vrsqrt.pop %v926
        %v928 = vmul.f32 %v920, %v927
        %v929 = vlaneseq
        %v930 = vshrl.u32 %v929, 7
        %v931 = vsub.s32 7, %v930
        %v932 = vrot.slane %v546, %v931
        %v933 = vmul.f32 %v928, %v932
        %v934 = vlaneseq
        %v935 = vshrl.u32 %v934, 7
        %v936 = vsub.s32 0, %v935
        %v937 = vrot.slane %v547, %v936
        %v938 = vadd.f32 %v933, %v937
        %v939 = vld [vmem:[%s522] sm:$0xff]
        %v940 = vld [vmem:[%s522 + $0x8] sm:$0xff]
        %v941 = vld [vmem:[%s522 + $0x10] sm:$0xff]
        %v942 = vld [vmem:[%s522 + $0x18] sm:$0xff]
        %v943 = vld [vmem:[%s522 + $0x20] sm:$0xff]
        %v944 = vld [vmem:[%s522 + $0x28] sm:$0xff]
        %v945 = vld [vmem:[%s522 + $0x30] sm:$0xff]
        %v946 = vld [vmem:[%s522 + $0x38] sm:$0xff]
        %v947 = vld [vmem:[%s522 + $0x40] sm:$0xff]
        %v948 = vld [vmem:[%s522 + $0x48] sm:$0xff]
        %v949 = vld [vmem:[%s522 + $0x50] sm:$0xff]
        %v950 = vld [vmem:[%s522 + $0x58] sm:$0xff]
        %v951 = vld [vmem:[%s522 + $0x60] sm:$0xff]
        %v952 = vld [vmem:[%s522 + $0x68] sm:$0xff]
        %v953 = vld [vmem:[%s522 + $0x70] sm:$0xff]
        %v954 = vld [vmem:[%s522 + $0x78] sm:$0xff]
        %v955 = vld [vmem:[%s522 + $0x80] sm:$0xff]
        %v956 = vld [vmem:[%s522 + $0x88] sm:$0xff]
        %v957 = vld [vmem:[%s522 + $0x90] sm:$0xff]
        %v958 = vld [vmem:[%s522 + $0x98] sm:$0xff]
        %v959 = vld [vmem:[%s522 + $0xa0] sm:$0xff]
        %v960 = vld [vmem:[%s522 + $0xa8] sm:$0xff]
        %v961 = vld [vmem:[%s522 + $0xb0] sm:$0xff]
        %v962 = vld [vmem:[%s522 + $0xb8] sm:$0xff]
        %v963 = vld [vmem:[%s522 + $0xc0] sm:$0xff]
        %v964 = vld [vmem:[%s522 + $0xc8] sm:$0xff]
        %v965 = vld [vmem:[%s522 + $0xd0] sm:$0xff]
        %v966 = vld [vmem:[%s522 + $0xd8] sm:$0xff]
        %v967 = vld [vmem:[%s522 + $0xe0] sm:$0xff]
        %v968 = vld [vmem:[%s522 + $0xe8] sm:$0xff]
        %v969 = vld [vmem:[%s522 + $0xf0] sm:$0xff]
        %v970 = vld [vmem:[%s522 + $0xf8] sm:$0xff]
        %v971 = vunpack.c.l.bf16 %v939
        %v972 = vunpack.c.h.bf16 %v939
        %v973 = vunpack.c.l.bf16 %v940
        %v974 = vunpack.c.h.bf16 %v940
        %v975 = vunpack.c.l.bf16 %v941
        %v976 = vunpack.c.h.bf16 %v941
        %v977 = vunpack.c.l.bf16 %v942
        %v978 = vunpack.c.h.bf16 %v942
        %v979 = vunpack.c.l.bf16 %v943
        %v980 = vunpack.c.h.bf16 %v943
        %v981 = vunpack.c.l.bf16 %v944
        %v982 = vunpack.c.h.bf16 %v944
        %v983 = vunpack.c.l.bf16 %v945
        %v984 = vunpack.c.h.bf16 %v945
        %v985 = vunpack.c.l.bf16 %v946
        %v986 = vunpack.c.h.bf16 %v946
        %v987 = vunpack.c.l.bf16 %v947
        %v988 = vunpack.c.h.bf16 %v947
        %v989 = vunpack.c.l.bf16 %v948
        %v990 = vunpack.c.h.bf16 %v948
        %v991 = vunpack.c.l.bf16 %v949
        %v992 = vunpack.c.h.bf16 %v949
        %v993 = vunpack.c.l.bf16 %v950
        %v994 = vunpack.c.h.bf16 %v950
        %v995 = vunpack.c.l.bf16 %v951
        %v996 = vunpack.c.h.bf16 %v951
        %v997 = vunpack.c.l.bf16 %v952
        %v998 = vunpack.c.h.bf16 %v952
        %v999 = vunpack.c.l.bf16 %v953
        %v1000 = vunpack.c.h.bf16 %v953
        %v1001 = vunpack.c.l.bf16 %v954
        %v1002 = vunpack.c.h.bf16 %v954
        %v1003 = vunpack.c.l.bf16 %v955
        %v1004 = vunpack.c.h.bf16 %v955
        %v1005 = vunpack.c.l.bf16 %v956
        %v1006 = vunpack.c.h.bf16 %v956
        %v1007 = vunpack.c.l.bf16 %v957
        %v1008 = vunpack.c.h.bf16 %v957
        %v1009 = vunpack.c.l.bf16 %v958
        %v1010 = vunpack.c.h.bf16 %v958
        %v1011 = vunpack.c.l.bf16 %v959
        %v1012 = vunpack.c.h.bf16 %v959
        %v1013 = vunpack.c.l.bf16 %v960
        %v1014 = vunpack.c.h.bf16 %v960
        %v1015 = vunpack.c.l.bf16 %v961
        %v1016 = vunpack.c.h.bf16 %v961
        %v1017 = vunpack.c.l.bf16 %v962
        %v1018 = vunpack.c.h.bf16 %v962
        %v1019 = vunpack.c.l.bf16 %v963
        %v1020 = vunpack.c.h.bf16 %v963
        %v1021 = vunpack.c.l.bf16 %v964
        %v1022 = vunpack.c.h.bf16 %v964
        %v1023 = vunpack.c.l.bf16 %v965
        %v1024 = vunpack.c.h.bf16 %v965
        %v1025 = vunpack.c.l.bf16 %v966
        %v1026 = vunpack.c.h.bf16 %v966
        %v1027 = vunpack.c.l.bf16 %v967
        %v1028 = vunpack.c.h.bf16 %v967
        %v1029 = vunpack.c.l.bf16 %v968
        %v1030 = vunpack.c.h.bf16 %v968
        %v1031 = vunpack.c.l.bf16 %v969
        %v1032 = vunpack.c.h.bf16 %v969
        %v1033 = vunpack.c.l.bf16 %v970
        %v1034 = vunpack.c.h.bf16 %v970
        %v1035 = vld [vmem:[%s526] sm:$0xff]
        %v1036 = vld [vmem:[%s526 + $0x8] sm:$0xff]
        %v1039 = vlaneseq
        %v1040 = vshrl.u32 %v1039, 7
        %v1041 = vsub.s32 0, %v1040
        %v1042 = vrot.slane %v1035, %v1041
        %v1043 = vlaneseq
        %v1044 = vshrl.u32 %v1043, 7
        %v1045 = vsub.s32 1, %v1044
        %v1046 = vrot.slane %v1035, %v1045
        %v1047 = vlaneseq
        %v1048 = vshrl.u32 %v1047, 7
        %v1049 = vsub.s32 2, %v1048
        %v1050 = vrot.slane %v1035, %v1049
        %v1051 = vlaneseq
        %v1052 = vshrl.u32 %v1051, 7
        %v1053 = vsub.s32 3, %v1052
        %v1054 = vrot.slane %v1035, %v1053
        %v1055 = vlaneseq
        %v1056 = vshrl.u32 %v1055, 7
        %v1057 = vsub.s32 4, %v1056
        %v1058 = vrot.slane %v1035, %v1057
        %v1059 = vlaneseq
        %v1060 = vshrl.u32 %v1059, 7
        %v1061 = vsub.s32 5, %v1060
        %v1062 = vrot.slane %v1035, %v1061
        %v1063 = vlaneseq
        %v1064 = vshrl.u32 %v1063, 7
        %v1065 = vsub.s32 6, %v1064
        %v1066 = vrot.slane %v1035, %v1065
        %v1067 = vlaneseq
        %v1068 = vshrl.u32 %v1067, 7
        %v1069 = vsub.s32 7, %v1068
        %v1070 = vrot.slane %v1035, %v1069
        %v1071 = vlaneseq
        %v1072 = vshrl.u32 %v1071, 7
        %v1073 = vsub.s32 0, %v1072
        %v1074 = vrot.slane %v1036, %v1073
        %v1075 = vlaneseq
        %v1076 = vshrl.u32 %v1075, 7
        %v1077 = vsub.s32 1, %v1076
        %v1078 = vrot.slane %v1036, %v1077
        %v1079 = vlaneseq
        %v1080 = vshrl.u32 %v1079, 7
        %v1081 = vsub.s32 2, %v1080
        %v1082 = vrot.slane %v1036, %v1081
        %v1083 = vlaneseq
        %v1084 = vshrl.u32 %v1083, 7
        %v1085 = vsub.s32 3, %v1084
        %v1086 = vrot.slane %v1036, %v1085
        %v1087 = vlaneseq
        %v1088 = vshrl.u32 %v1087, 7
        %v1089 = vsub.s32 4, %v1088
        %v1090 = vrot.slane %v1036, %v1089
        %v1091 = vlaneseq
        %v1092 = vshrl.u32 %v1091, 7
        %v1093 = vsub.s32 5, %v1092
        %v1094 = vrot.slane %v1036, %v1093
        %v1095 = vlaneseq
        %v1096 = vshrl.u32 %v1095, 7
        %v1097 = vsub.s32 6, %v1096
        %v1098 = vrot.slane %v1036, %v1097
        %v1099 = vlaneseq
        %v1100 = vshrl.u32 %v1099, 7
        %v1101 = vsub.s32 7, %v1100
        %v1102 = vrot.slane %v1036, %v1101
        %v1120 = vsel %vm560, %v938, 0
        %1122 = vmatprep.subr.mxu0 %v972
        %1123 = vmatpush1.msra.mxu0 %v971
        %1124 = vmatprep.subr.mxu0 %v988
        %1125 = vmatpush1.msra.mxu0 %v987
        %1126 = vmatprep.subr.mxu0 %v1004
        %1127 = vmatpush1.msra.mxu0 %v1003
        %1128 = vmatprep.subr.mxu0 %v1020
        %1129 = vmatpush1.msra.mxu0 %v1019
        %1130 = vmatprep.subr.mxu0 0.0
        %1131 = vmatpush1.msra.mxu0 0.0
        %1132 = vmatprep.subr.mxu0 0.0
        %1133 = vmatpush1.msra.mxu0 0.0
        %1134 = vmatprep.subr.mxu0 0.0
        %1135 = vmatpush1.msra.mxu0 0.0
        %1136 = vmatprep.subr.mxu0 0.0
        %1137 = vmatpush1.msra.mxu0 0.0
        %1138 = vmatprep.subr.mxu0 0.0
        %1139 = vmatpush1.msra.mxu0 0.0
        %1140 = vmatprep.subr.mxu0 0.0
        %1141 = vmatpush1.msra.mxu0 0.0
        %1142 = vmatprep.subr.mxu0 0.0
        %1143 = vmatpush1.msra.mxu0 0.0
        %1144 = vmatprep.subr.mxu0 0.0
        %1145 = vmatpush1.msra.mxu0 0.0
        %1146 = vmatprep.subr.mxu0 0.0
        %1147 = vmatpush1.msra.mxu0 0.0
        %1148 = vmatprep.subr.mxu0 0.0
        %1149 = vmatpush1.msra.mxu0 0.0
        %1150 = vmatprep.subr.mxu0 0.0
        %1151 = vmatpush1.msra.mxu0 0.0
        %1152 = vmatprep.subr.mxu0 0.0
        %1153 = vmatpush1.msra.mxu0 0.0
        %1154 = vmatprep.subr.mxu0 0.0
        %1155 = vmatpush1.msra.mxu0 0.0
        %1156 = vmatprep.subr.mxu0 0.0
        %1157 = vmatpush1.msra.mxu0 0.0
        %1158 = vmatprep.subr.mxu0 0.0
        %1159 = vmatpush1.msra.mxu0 0.0
        %1160 = vmatprep.subr.mxu0 0.0
        %1161 = vmatpush1.msra.mxu0 0.0
        %1162 = vmatprep.subr.mxu0 0.0
        %1163 = vmatpush1.msra.mxu0 0.0
        %1164 = vmatprep.subr.mxu0 0.0
        %1165 = vmatpush1.msra.mxu0 0.0
        %1166 = vmatprep.subr.mxu0 0.0
        %1167 = vmatpush1.msra.mxu0 0.0
        %1168 = vmatprep.subr.mxu0 0.0
        %1169 = vmatpush1.msra.mxu0 0.0
        %1170 = vmatprep.subr.mxu0 0.0
        %1171 = vmatpush1.msra.mxu0 0.0
        %1172 = vmatprep.subr.mxu0 0.0
        %1173 = vmatpush1.msra.mxu0 0.0
        %1174 = vmatprep.subr.mxu0 0.0
        %1175 = vmatpush1.msra.mxu0 0.0
        %1176 = vmatprep.subr.mxu0 0.0
        %1177 = vmatpush1.msra.mxu0 0.0
        %1178 = vmatprep.subr.mxu0 0.0
        %1179 = vmatpush1.msra.mxu0 0.0
        %1180 = vmatprep.subr.mxu0 0.0
        %1181 = vmatpush1.msra.mxu0 0.0
        %1182 = vmatprep.subr.mxu0 0.0
        %1183 = vmatpush1.msra.mxu0 0.0
        %1184 = vmatprep.subr.mxu0 0.0
        %1185 = vmatpush1.msra.mxu0 0.0
        %1186 = vmatprep.mubr.f32.mxu0 0.0
        %1187 = vmatmul.mubr.f32.gmra.mrb[0].mxu0 %v1120
        %v1188 = vpop.f32.mrb[0].mxu0
        %v1189 = vadd.f32 %v1042, %v1188
        %v1190 = vpop.f32.mrb[0].mxu0
        %v1191 = vadd.f32 %v1046, %v1190
        %1192 = vdwg.mxu0
        %1193 = vmatprep.subr.mxu0 %v974
        %1194 = vmatpush1.msra.mxu0 %v973
        %1195 = vmatprep.subr.mxu0 %v990
        %1196 = vmatpush1.msra.mxu0 %v989
        %1197 = vmatprep.subr.mxu0 %v1006
        %1198 = vmatpush1.msra.mxu0 %v1005
        %1199 = vmatprep.subr.mxu0 %v1022
        %1200 = vmatpush1.msra.mxu0 %v1021
        %1201 = vmatprep.subr.mxu0 0.0
        %1202 = vmatpush1.msra.mxu0 0.0
        %1203 = vmatprep.subr.mxu0 0.0
        %1204 = vmatpush1.msra.mxu0 0.0
        %1205 = vmatprep.subr.mxu0 0.0
        %1206 = vmatpush1.msra.mxu0 0.0
        %1207 = vmatprep.subr.mxu0 0.0
        %1208 = vmatpush1.msra.mxu0 0.0
        %1209 = vmatprep.subr.mxu0 0.0
        %1210 = vmatpush1.msra.mxu0 0.0
        %1211 = vmatprep.subr.mxu0 0.0
        %1212 = vmatpush1.msra.mxu0 0.0
        %1213 = vmatprep.subr.mxu0 0.0
        %1214 = vmatpush1.msra.mxu0 0.0
        %1215 = vmatprep.subr.mxu0 0.0
        %1216 = vmatpush1.msra.mxu0 0.0
        %1217 = vmatprep.subr.mxu0 0.0
        %1218 = vmatpush1.msra.mxu0 0.0
        %1219 = vmatprep.subr.mxu0 0.0
        %1220 = vmatpush1.msra.mxu0 0.0
        %1221 = vmatprep.subr.mxu0 0.0
        %1222 = vmatpush1.msra.mxu0 0.0
        %1223 = vmatprep.subr.mxu0 0.0
        %1224 = vmatpush1.msra.mxu0 0.0
        %1225 = vmatprep.subr.mxu0 0.0
        %1226 = vmatpush1.msra.mxu0 0.0
        %1227 = vmatprep.subr.mxu0 0.0
        %1228 = vmatpush1.msra.mxu0 0.0
        %1229 = vmatprep.subr.mxu0 0.0
        %1230 = vmatpush1.msra.mxu0 0.0
        %1231 = vmatprep.subr.mxu0 0.0
        %1232 = vmatpush1.msra.mxu0 0.0
        %1233 = vmatprep.subr.mxu0 0.0
        %1234 = vmatpush1.msra.mxu0 0.0
        %1235 = vmatprep.subr.mxu0 0.0
        %1236 = vmatpush1.msra.mxu0 0.0
        %1237 = vmatprep.subr.mxu0 0.0
        %1238 = vmatpush1.msra.mxu0 0.0
        %1239 = vmatprep.subr.mxu0 0.0
        %1240 = vmatpush1.msra.mxu0 0.0
        %1241 = vmatprep.subr.mxu0 0.0
        %1242 = vmatpush1.msra.mxu0 0.0
        %1243 = vmatprep.subr.mxu0 0.0
        %1244 = vmatpush1.msra.mxu0 0.0
        %1245 = vmatprep.subr.mxu0 0.0
        %1246 = vmatpush1.msra.mxu0 0.0
        %1247 = vmatprep.subr.mxu0 0.0
        %1248 = vmatpush1.msra.mxu0 0.0
        %1249 = vmatprep.subr.mxu0 0.0
        %1250 = vmatpush1.msra.mxu0 0.0
        %1251 = vmatprep.subr.mxu0 0.0
        %1252 = vmatpush1.msra.mxu0 0.0
        %1253 = vmatprep.subr.mxu0 0.0
        %1254 = vmatpush1.msra.mxu0 0.0
        %1255 = vmatprep.subr.mxu0 0.0
        %1256 = vmatpush1.msra.mxu0 0.0
        %1257 = vmatprep.mubr.f32.mxu0 0.0
        %1258 = vmatmul.mubr.f32.gmra.mrb[0].mxu0 %v1120
        %v1259 = vpop.f32.mrb[0].mxu0
        %v1260 = vadd.f32 %v1050, %v1259
        %v1261 = vpop.f32.mrb[0].mxu0
        %v1262 = vadd.f32 %v1054, %v1261
        %1263 = vdwg.mxu0
        %1264 = vmatprep.subr.mxu0 %v976
        %1265 = vmatpush1.msra.mxu0 %v975
        %1266 = vmatprep.subr.mxu0 %v992
        %1267 = vmatpush1.msra.mxu0 %v991
        %1268 = vmatprep.subr.mxu0 %v1008
        %1269 = vmatpush1.msra.mxu0 %v1007
        %1270 = vmatprep.subr.mxu0 %v1024
        %1271 = vmatpush1.msra.mxu0 %v1023
        %1272 = vmatprep.subr.mxu0 0.0
        %1273 = vmatpush1.msra.mxu0 0.0
        %1274 = vmatprep.subr.mxu0 0.0
        %1275 = vmatpush1.msra.mxu0 0.0
        %1276 = vmatprep.subr.mxu0 0.0
        %1277 = vmatpush1.msra.mxu0 0.0
        %1278 = vmatprep.subr.mxu0 0.0
        %1279 = vmatpush1.msra.mxu0 0.0
        %1280 = vmatprep.subr.mxu0 0.0
        %1281 = vmatpush1.msra.mxu0 0.0
        %1282 = vmatprep.subr.mxu0 0.0
        %1283 = vmatpush1.msra.mxu0 0.0
        %1284 = vmatprep.subr.mxu0 0.0
        %1285 = vmatpush1.msra.mxu0 0.0
        %1286 = vmatprep.subr.mxu0 0.0
        %1287 = vmatpush1.msra.mxu0 0.0
        %1288 = vmatprep.subr.mxu0 0.0
        %1289 = vmatpush1.msra.mxu0 0.0
        %1290 = vmatprep.subr.mxu0 0.0
        %1291 = vmatpush1.msra.mxu0 0.0
        %1292 = vmatprep.subr.mxu0 0.0
        %1293 = vmatpush1.msra.mxu0 0.0
        %1294 = vmatprep.subr.mxu0 0.0
        %1295 = vmatpush1.msra.mxu0 0.0
        %1296 = vmatprep.subr.mxu0 0.0
        %1297 = vmatpush1.msra.mxu0 0.0
        %1298 = vmatprep.subr.mxu0 0.0
        %1299 = vmatpush1.msra.mxu0 0.0
        %1300 = vmatprep.subr.mxu0 0.0
        %1301 = vmatpush1.msra.mxu0 0.0
        %1302 = vmatprep.subr.mxu0 0.0
        %1303 = vmatpush1.msra.mxu0 0.0
        %1304 = vmatprep.subr.mxu0 0.0
        %1305 = vmatpush1.msra.mxu0 0.0
        %1306 = vmatprep.subr.mxu0 0.0
        %1307 = vmatpush1.msra.mxu0 0.0
        %1308 = vmatprep.subr.mxu0 0.0
        %1309 = vmatpush1.msra.mxu0 0.0
        %1310 = vmatprep.subr.mxu0 0.0
        %1311 = vmatpush1.msra.mxu0 0.0
        %1312 = vmatprep.subr.mxu0 0.0
        %1313 = vmatpush1.msra.mxu0 0.0
        %1314 = vmatprep.subr.mxu0 0.0
        %1315 = vmatpush1.msra.mxu0 0.0
        %1316 = vmatprep.subr.mxu0 0.0
        %1317 = vmatpush1.msra.mxu0 0.0
        %1318 = vmatprep.subr.mxu0 0.0
        %1319 = vmatpush1.msra.mxu0 0.0
        %1320 = vmatprep.subr.mxu0 0.0
        %1321 = vmatpush1.msra.mxu0 0.0
        %1322 = vmatprep.subr.mxu0 0.0
        %1323 = vmatpush1.msra.mxu0 0.0
        %1324 = vmatprep.subr.mxu0 0.0
        %1325 = vmatpush1.msra.mxu0 0.0
        %1326 = vmatprep.subr.mxu0 0.0
        %1327 = vmatpush1.msra.mxu0 0.0
        %1328 = vmatprep.mubr.f32.mxu0 0.0
        %1329 = vmatmul.mubr.f32.gmra.mrb[0].mxu0 %v1120
        %v1330 = vpop.f32.mrb[0].mxu0
        %v1331 = vadd.f32 %v1058, %v1330
        %v1332 = vpop.f32.mrb[0].mxu0
        %v1333 = vadd.f32 %v1062, %v1332
        %1334 = vdwg.mxu0
        %1335 = vmatprep.subr.mxu0 %v978
        %1336 = vmatpush1.msra.mxu0 %v977
        %1337 = vmatprep.subr.mxu0 %v994
        %1338 = vmatpush1.msra.mxu0 %v993
        %1339 = vmatprep.subr.mxu0 %v1010
        %1340 = vmatpush1.msra.mxu0 %v1009
        %1341 = vmatprep.subr.mxu0 %v1026
        %1342 = vmatpush1.msra.mxu0 %v1025
        %1343 = vmatprep.subr.mxu0 0.0
        %1344 = vmatpush1.msra.mxu0 0.0
        %1345 = vmatprep.subr.mxu0 0.0
        %1346 = vmatpush1.msra.mxu0 0.0
        %1347 = vmatprep.subr.mxu0 0.0
        %1348 = vmatpush1.msra.mxu0 0.0
        %1349 = vmatprep.subr.mxu0 0.0
        %1350 = vmatpush1.msra.mxu0 0.0
        %1351 = vmatprep.subr.mxu0 0.0
        %1352 = vmatpush1.msra.mxu0 0.0
        %1353 = vmatprep.subr.mxu0 0.0
        %1354 = vmatpush1.msra.mxu0 0.0
        %1355 = vmatprep.subr.mxu0 0.0
        %1356 = vmatpush1.msra.mxu0 0.0
        %1357 = vmatprep.subr.mxu0 0.0
        %1358 = vmatpush1.msra.mxu0 0.0
        %1359 = vmatprep.subr.mxu0 0.0
        %1360 = vmatpush1.msra.mxu0 0.0
        %1361 = vmatprep.subr.mxu0 0.0
        %1362 = vmatpush1.msra.mxu0 0.0
        %1363 = vmatprep.subr.mxu0 0.0
        %1364 = vmatpush1.msra.mxu0 0.0
        %1365 = vmatprep.subr.mxu0 0.0
        %1366 = vmatpush1.msra.mxu0 0.0
        %1367 = vmatprep.subr.mxu0 0.0
        %1368 = vmatpush1.msra.mxu0 0.0
        %1369 = vmatprep.subr.mxu0 0.0
        %1370 = vmatpush1.msra.mxu0 0.0
        %1371 = vmatprep.subr.mxu0 0.0
        %1372 = vmatpush1.msra.mxu0 0.0
        %1373 = vmatprep.subr.mxu0 0.0
        %1374 = vmatpush1.msra.mxu0 0.0
        %1375 = vmatprep.subr.mxu0 0.0
        %1376 = vmatpush1.msra.mxu0 0.0
        %1377 = vmatprep.subr.mxu0 0.0
        %1378 = vmatpush1.msra.mxu0 0.0
        %1379 = vmatprep.subr.mxu0 0.0
        %1380 = vmatpush1.msra.mxu0 0.0
        %1381 = vmatprep.subr.mxu0 0.0
        %1382 = vmatpush1.msra.mxu0 0.0
        %1383 = vmatprep.subr.mxu0 0.0
        %1384 = vmatpush1.msra.mxu0 0.0
        %1385 = vmatprep.subr.mxu0 0.0
        %1386 = vmatpush1.msra.mxu0 0.0
        %1387 = vmatprep.subr.mxu0 0.0
        %1388 = vmatpush1.msra.mxu0 0.0
        %1389 = vmatprep.subr.mxu0 0.0
        %1390 = vmatpush1.msra.mxu0 0.0
        %1391 = vmatprep.subr.mxu0 0.0
        %1392 = vmatpush1.msra.mxu0 0.0
        %1393 = vmatprep.subr.mxu0 0.0
        %1394 = vmatpush1.msra.mxu0 0.0
        %1395 = vmatprep.subr.mxu0 0.0
        %1396 = vmatpush1.msra.mxu0 0.0
        %1397 = vmatprep.subr.mxu0 0.0
        %1398 = vmatpush1.msra.mxu0 0.0
        %1399 = vmatprep.mubr.f32.mxu0 0.0
        %1400 = vmatmul.mubr.f32.gmra.mrb[0].mxu0 %v1120
        %v1401 = vpop.f32.mrb[0].mxu0
        %v1402 = vadd.f32 %v1066, %v1401
        %v1403 = vpop.f32.mrb[0].mxu0
        %v1404 = vadd.f32 %v1070, %v1403
        %1405 = vdwg.mxu0
        %1406 = vmatprep.subr.mxu0 %v980
        %1407 = vmatpush1.msra.mxu0 %v979
        %1408 = vmatprep.subr.mxu0 %v996
        %1409 = vmatpush1.msra.mxu0 %v995
        %1410 = vmatprep.subr.mxu0 %v1012
        %1411 = vmatpush1.msra.mxu0 %v1011
        %1412 = vmatprep.subr.mxu0 %v1028
        %1413 = vmatpush1.msra.mxu0 %v1027
        %1414 = vmatprep.subr.mxu0 0.0
        %1415 = vmatpush1.msra.mxu0 0.0
        %1416 = vmatprep.subr.mxu0 0.0
        %1417 = vmatpush1.msra.mxu0 0.0
        %1418 = vmatprep.subr.mxu0 0.0
        %1419 = vmatpush1.msra.mxu0 0.0
        %1420 = vmatprep.subr.mxu0 0.0
        %1421 = vmatpush1.msra.mxu0 0.0
        %1422 = vmatprep.subr.mxu0 0.0
        %1423 = vmatpush1.msra.mxu0 0.0
        %1424 = vmatprep.subr.mxu0 0.0
        %1425 = vmatpush1.msra.mxu0 0.0
        %1426 = vmatprep.subr.mxu0 0.0
        %1427 = vmatpush1.msra.mxu0 0.0
        %1428 = vmatprep.subr.mxu0 0.0
        %1429 = vmatpush1.msra.mxu0 0.0
        %1430 = vmatprep.subr.mxu0 0.0
        %1431 = vmatpush1.msra.mxu0 0.0
        %1432 = vmatprep.subr.mxu0 0.0
        %1433 = vmatpush1.msra.mxu0 0.0
        %1434 = vmatprep.subr.mxu0 0.0
        %1435 = vmatpush1.msra.mxu0 0.0
        %1436 = vmatprep.subr.mxu0 0.0
        %1437 = vmatpush1.msra.mxu0 0.0
        %1438 = vmatprep.subr.mxu0 0.0
        %1439 = vmatpush1.msra.mxu0 0.0
        %1440 = vmatprep.subr.mxu0 0.0
        %1441 = vmatpush1.msra.mxu0 0.0
        %1442 = vmatprep.subr.mxu0 0.0
        %1443 = vmatpush1.msra.mxu0 0.0
        %1444 = vmatprep.subr.mxu0 0.0
        %1445 = vmatpush1.msra.mxu0 0.0
        %1446 = vmatprep.subr.mxu0 0.0
        %1447 = vmatpush1.msra.mxu0 0.0
        %1448 = vmatprep.subr.mxu0 0.0
        %1449 = vmatpush1.msra.mxu0 0.0
        %1450 = vmatprep.subr.mxu0 0.0
        %1451 = vmatpush1.msra.mxu0 0.0
        %1452 = vmatprep.subr.mxu0 0.0
        %1453 = vmatpush1.msra.mxu0 0.0
        %1454 = vmatprep.subr.mxu0 0.0
        %1455 = vmatpush1.msra.mxu0 0.0
        %1456 = vmatprep.subr.mxu0 0.0
        %1457 = vmatpush1.msra.mxu0 0.0
        %1458 = vmatprep.subr.mxu0 0.0
        %1459 = vmatpush1.msra.mxu0 0.0
        %1460 = vmatprep.subr.mxu0 0.0
        %1461 = vmatpush1.msra.mxu0 0.0
        %1462 = vmatprep.subr.mxu0 0.0
        %1463 = vmatpush1.msra.mxu0 0.0
        %1464 = vmatprep.subr.mxu0 0.0
        %1465 = vmatpush1.msra.mxu0 0.0
        %1466 = vmatprep.subr.mxu0 0.0
        %1467 = vmatpush1.msra.mxu0 0.0
        %1468 = vmatprep.subr.mxu0 0.0
        %1469 = vmatpush1.msra.mxu0 0.0
        %1470 = vmatprep.mubr.f32.mxu0 0.0
        %1471 = vmatmul.mubr.f32.gmra.mrb[0].mxu0 %v1120
        %v1472 = vpop.f32.mrb[0].mxu0
        %v1473 = vadd.f32 %v1074, %v1472
        %v1474 = vpop.f32.mrb[0].mxu0
        %v1475 = vadd.f32 %v1078, %v1474
        %1476 = vdwg.mxu0
        %1477 = vmatprep.subr.mxu0 %v982
        %1478 = vmatpush1.msra.mxu0 %v981
        %1479 = vmatprep.subr.mxu0 %v998
        %1480 = vmatpush1.msra.mxu0 %v997
        %1481 = vmatprep.subr.mxu0 %v1014
        %1482 = vmatpush1.msra.mxu0 %v1013
        %1483 = vmatprep.subr.mxu0 %v1030
        %1484 = vmatpush1.msra.mxu0 %v1029
        %1485 = vmatprep.subr.mxu0 0.0
        %1486 = vmatpush1.msra.mxu0 0.0
        %1487 = vmatprep.subr.mxu0 0.0
        %1488 = vmatpush1.msra.mxu0 0.0
        %1489 = vmatprep.subr.mxu0 0.0
        %1490 = vmatpush1.msra.mxu0 0.0
        %1491 = vmatprep.subr.mxu0 0.0
        %1492 = vmatpush1.msra.mxu0 0.0
        %1493 = vmatprep.subr.mxu0 0.0
        %1494 = vmatpush1.msra.mxu0 0.0
        %1495 = vmatprep.subr.mxu0 0.0
        %1496 = vmatpush1.msra.mxu0 0.0
        %1497 = vmatprep.subr.mxu0 0.0
        %1498 = vmatpush1.msra.mxu0 0.0
        %1499 = vmatprep.subr.mxu0 0.0
        %1500 = vmatpush1.msra.mxu0 0.0
        %1501 = vmatprep.subr.mxu0 0.0
        %1502 = vmatpush1.msra.mxu0 0.0
        %1503 = vmatprep.subr.mxu0 0.0
        %1504 = vmatpush1.msra.mxu0 0.0
        %1505 = vmatprep.subr.mxu0 0.0
        %1506 = vmatpush1.msra.mxu0 0.0
        %1507 = vmatprep.subr.mxu0 0.0
        %1508 = vmatpush1.msra.mxu0 0.0
        %1509 = vmatprep.subr.mxu0 0.0
        %1510 = vmatpush1.msra.mxu0 0.0
        %1511 = vmatprep.subr.mxu0 0.0
        %1512 = vmatpush1.msra.mxu0 0.0
        %1513 = vmatprep.subr.mxu0 0.0
        %1514 = vmatpush1.msra.mxu0 0.0
        %1515 = vmatprep.subr.mxu0 0.0
        %1516 = vmatpush1.msra.mxu0 0.0
        %1517 = vmatprep.subr.mxu0 0.0
        %1518 = vmatpush1.msra.mxu0 0.0
        %1519 = vmatprep.subr.mxu0 0.0
        %1520 = vmatpush1.msra.mxu0 0.0
        %1521 = vmatprep.subr.mxu0 0.0
        %1522 = vmatpush1.msra.mxu0 0.0
        %1523 = vmatprep.subr.mxu0 0.0
        %1524 = vmatpush1.msra.mxu0 0.0
        %1525 = vmatprep.subr.mxu0 0.0
        %1526 = vmatpush1.msra.mxu0 0.0
        %1527 = vmatprep.subr.mxu0 0.0
        %1528 = vmatpush1.msra.mxu0 0.0
        %1529 = vmatprep.subr.mxu0 0.0
        %1530 = vmatpush1.msra.mxu0 0.0
        %1531 = vmatprep.subr.mxu0 0.0
        %1532 = vmatpush1.msra.mxu0 0.0
        %1533 = vmatprep.subr.mxu0 0.0
        %1534 = vmatpush1.msra.mxu0 0.0
        %1535 = vmatprep.subr.mxu0 0.0
        %1536 = vmatpush1.msra.mxu0 0.0
        %1537 = vmatprep.subr.mxu0 0.0
        %1538 = vmatpush1.msra.mxu0 0.0
        %1539 = vmatprep.subr.mxu0 0.0
        %1540 = vmatpush1.msra.mxu0 0.0
        %1541 = vmatprep.mubr.f32.mxu0 0.0
        %1542 = vmatmul.mubr.f32.gmra.mrb[0].mxu0 %v1120
        %v1543 = vpop.f32.mrb[0].mxu0
        %v1544 = vadd.f32 %v1082, %v1543
        %v1545 = vpop.f32.mrb[0].mxu0
        %v1546 = vadd.f32 %v1086, %v1545
        %1547 = vdwg.mxu0
        %1548 = vmatprep.subr.mxu0 %v984
        %1549 = vmatpush1.msra.mxu0 %v983
        %1550 = vmatprep.subr.mxu0 %v1000
        %1551 = vmatpush1.msra.mxu0 %v999
        %1552 = vmatprep.subr.mxu0 %v1016
        %1553 = vmatpush1.msra.mxu0 %v1015
        %1554 = vmatprep.subr.mxu0 %v1032
        %1555 = vmatpush1.msra.mxu0 %v1031
        %1556 = vmatprep.subr.mxu0 0.0
        %1557 = vmatpush1.msra.mxu0 0.0
        %1558 = vmatprep.subr.mxu0 0.0
        %1559 = vmatpush1.msra.mxu0 0.0
        %1560 = vmatprep.subr.mxu0 0.0
        %1561 = vmatpush1.msra.mxu0 0.0
        %1562 = vmatprep.subr.mxu0 0.0
        %1563 = vmatpush1.msra.mxu0 0.0
        %1564 = vmatprep.subr.mxu0 0.0
        %1565 = vmatpush1.msra.mxu0 0.0
        %1566 = vmatprep.subr.mxu0 0.0
        %1567 = vmatpush1.msra.mxu0 0.0
        %1568 = vmatprep.subr.mxu0 0.0
        %1569 = vmatpush1.msra.mxu0 0.0
        %1570 = vmatprep.subr.mxu0 0.0
        %1571 = vmatpush1.msra.mxu0 0.0
        %1572 = vmatprep.subr.mxu0 0.0
        %1573 = vmatpush1.msra.mxu0 0.0
        %1574 = vmatprep.subr.mxu0 0.0
        %1575 = vmatpush1.msra.mxu0 0.0
        %1576 = vmatprep.subr.mxu0 0.0
        %1577 = vmatpush1.msra.mxu0 0.0
        %1578 = vmatprep.subr.mxu0 0.0
        %1579 = vmatpush1.msra.mxu0 0.0
        %1580 = vmatprep.subr.mxu0 0.0
        %1581 = vmatpush1.msra.mxu0 0.0
        %1582 = vmatprep.subr.mxu0 0.0
        %1583 = vmatpush1.msra.mxu0 0.0
        %1584 = vmatprep.subr.mxu0 0.0
        %1585 = vmatpush1.msra.mxu0 0.0
        %1586 = vmatprep.subr.mxu0 0.0
        %1587 = vmatpush1.msra.mxu0 0.0
        %1588 = vmatprep.subr.mxu0 0.0
        %1589 = vmatpush1.msra.mxu0 0.0
        %1590 = vmatprep.subr.mxu0 0.0
        %1591 = vmatpush1.msra.mxu0 0.0
        %1592 = vmatprep.subr.mxu0 0.0
        %1593 = vmatpush1.msra.mxu0 0.0
        %1594 = vmatprep.subr.mxu0 0.0
        %1595 = vmatpush1.msra.mxu0 0.0
        %1596 = vmatprep.subr.mxu0 0.0
        %1597 = vmatpush1.msra.mxu0 0.0
        %1598 = vmatprep.subr.mxu0 0.0
        %1599 = vmatpush1.msra.mxu0 0.0
        %1600 = vmatprep.subr.mxu0 0.0
        %1601 = vmatpush1.msra.mxu0 0.0
        %1602 = vmatprep.subr.mxu0 0.0
        %1603 = vmatpush1.msra.mxu0 0.0
        %1604 = vmatprep.subr.mxu0 0.0
        %1605 = vmatpush1.msra.mxu0 0.0
        %1606 = vmatprep.subr.mxu0 0.0
        %1607 = vmatpush1.msra.mxu0 0.0
        %1608 = vmatprep.subr.mxu0 0.0
        %1609 = vmatpush1.msra.mxu0 0.0
        %1610 = vmatprep.subr.mxu0 0.0
        %1611 = vmatpush1.msra.mxu0 0.0
        %1612 = vmatprep.mubr.f32.mxu0 0.0
        %1613 = vmatmul.mubr.f32.gmra.mrb[0].mxu0 %v1120
        %v1614 = vpop.f32.mrb[0].mxu0
        %v1615 = vadd.f32 %v1090, %v1614
        %v1616 = vpop.f32.mrb[0].mxu0
        %v1617 = vadd.f32 %v1094, %v1616
        %1618 = vdwg.mxu0
        %1619 = vmatprep.subr.mxu0 %v986
        %1620 = vmatpush1.msra.mxu0 %v985
        %1621 = vmatprep.subr.mxu0 %v1002
        %1622 = vmatpush1.msra.mxu0 %v1001
        %1623 = vmatprep.subr.mxu0 %v1018
        %1624 = vmatpush1.msra.mxu0 %v1017
        %1625 = vmatprep.subr.mxu0 %v1034
        %1626 = vmatpush1.msra.mxu0 %v1033
        %1627 = vmatprep.subr.mxu0 0.0
        %1628 = vmatpush1.msra.mxu0 0.0
        %1629 = vmatprep.subr.mxu0 0.0
        %1630 = vmatpush1.msra.mxu0 0.0
        %1631 = vmatprep.subr.mxu0 0.0
        %1632 = vmatpush1.msra.mxu0 0.0
        %1633 = vmatprep.subr.mxu0 0.0
        %1634 = vmatpush1.msra.mxu0 0.0
        %1635 = vmatprep.subr.mxu0 0.0
        %1636 = vmatpush1.msra.mxu0 0.0
        %1637 = vmatprep.subr.mxu0 0.0
        %1638 = vmatpush1.msra.mxu0 0.0
        %1639 = vmatprep.subr.mxu0 0.0
        %1640 = vmatpush1.msra.mxu0 0.0
        %1641 = vmatprep.subr.mxu0 0.0
        %1642 = vmatpush1.msra.mxu0 0.0
        %1643 = vmatprep.subr.mxu0 0.0
        %1644 = vmatpush1.msra.mxu0 0.0
        %1645 = vmatprep.subr.mxu0 0.0
        %1646 = vmatpush1.msra.mxu0 0.0
        %1647 = vmatprep.subr.mxu0 0.0
        %1648 = vmatpush1.msra.mxu0 0.0
        %1649 = vmatprep.subr.mxu0 0.0
        %1650 = vmatpush1.msra.mxu0 0.0
        %1651 = vmatprep.subr.mxu0 0.0
        %1652 = vmatpush1.msra.mxu0 0.0
        %1653 = vmatprep.subr.mxu0 0.0
        %1654 = vmatpush1.msra.mxu0 0.0
        %1655 = vmatprep.subr.mxu0 0.0
        %1656 = vmatpush1.msra.mxu0 0.0
        %1657 = vmatprep.subr.mxu0 0.0
        %1658 = vmatpush1.msra.mxu0 0.0
        %1659 = vmatprep.subr.mxu0 0.0
        %1660 = vmatpush1.msra.mxu0 0.0
        %1661 = vmatprep.subr.mxu0 0.0
        %1662 = vmatpush1.msra.mxu0 0.0
        %1663 = vmatprep.subr.mxu0 0.0
        %1664 = vmatpush1.msra.mxu0 0.0
        %1665 = vmatprep.subr.mxu0 0.0
        %1666 = vmatpush1.msra.mxu0 0.0
        %1667 = vmatprep.subr.mxu0 0.0
        %1668 = vmatpush1.msra.mxu0 0.0
        %1669 = vmatprep.subr.mxu0 0.0
        %1670 = vmatpush1.msra.mxu0 0.0
        %1671 = vmatprep.subr.mxu0 0.0
        %1672 = vmatpush1.msra.mxu0 0.0
        %1673 = vmatprep.subr.mxu0 0.0
        %1674 = vmatpush1.msra.mxu0 0.0
        %1675 = vmatprep.subr.mxu0 0.0
        %1676 = vmatpush1.msra.mxu0 0.0
        %1677 = vmatprep.subr.mxu0 0.0
        %1678 = vmatpush1.msra.mxu0 0.0
        %1679 = vmatprep.subr.mxu0 0.0
        %1680 = vmatpush1.msra.mxu0 0.0
        %1681 = vmatprep.subr.mxu0 0.0
        %1682 = vmatpush1.msra.mxu0 0.0
        %1683 = vmatprep.mubr.f32.mxu0 0.0
        %1684 = vmatmul.mubr.f32.gmra.mrb[0].mxu0 %v1120
        %v1685 = vpop.f32.mrb[0].mxu0
        %v1686 = vadd.f32 %v1098, %v1685
        %v1687 = vpop.f32.mrb[0].mxu0
        %v1688 = vadd.f32 %v1102, %v1687
        %1689 = vdwg.mxu0
        %v1690 = vmax.f32 %v1189, 0.0
        %v1691 = vmax.f32 %v1191, 0.0
        %v1692 = vmax.f32 %v1260, 0.0
        %v1693 = vmax.f32 %v1262, 0.0
        %v1694 = vmax.f32 %v1331, 0.0
        %v1695 = vmax.f32 %v1333, 0.0
        %v1696 = vmax.f32 %v1402, 0.0
        %v1697 = vmax.f32 %v1404, 0.0
        %v1698 = vmax.f32 %v1473, 0.0
        %v1699 = vmax.f32 %v1475, 0.0
        %v1700 = vmax.f32 %v1544, 0.0
        %v1701 = vmax.f32 %v1546, 0.0
        %v1702 = vmax.f32 %v1615, 0.0
        %v1703 = vmax.f32 %v1617, 0.0
        %v1704 = vmax.f32 %v1686, 0.0
        %v1705 = vmax.f32 %v1688, 0.0
        %v1706 = vld [vmem:[%s531] sm:$0xf]
        %v1707 = vld [vmem:[%s531 + $0x4] sm:$0xf]
        %v1708 = vld [vmem:[%s531 + $0x8] sm:$0xf]
        %v1709 = vld [vmem:[%s531 + $0xc] sm:$0xf]
        %v1710 = vld [vmem:[%s531 + $0x10] sm:$0xf]
        %v1711 = vld [vmem:[%s531 + $0x14] sm:$0xf]
        %v1712 = vld [vmem:[%s531 + $0x18] sm:$0xf]
        %v1713 = vld [vmem:[%s531 + $0x1c] sm:$0xf]
        %v1714 = vld [vmem:[%s531 + $0x20] sm:$0xf]
        %v1715 = vld [vmem:[%s531 + $0x24] sm:$0xf]
        %v1716 = vld [vmem:[%s531 + $0x28] sm:$0xf]
        %v1717 = vld [vmem:[%s531 + $0x2c] sm:$0xf]
        %v1718 = vld [vmem:[%s531 + $0x30] sm:$0xf]
        %v1719 = vld [vmem:[%s531 + $0x34] sm:$0xf]
        %v1720 = vld [vmem:[%s531 + $0x38] sm:$0xf]
        %v1721 = vld [vmem:[%s531 + $0x3c] sm:$0xf]
        %v1722 = vld [vmem:[%s531 + $0x40] sm:$0xf]
        %v1723 = vld [vmem:[%s531 + $0x44] sm:$0xf]
        %v1724 = vld [vmem:[%s531 + $0x48] sm:$0xf]
        %v1725 = vld [vmem:[%s531 + $0x4c] sm:$0xf]
        %v1726 = vld [vmem:[%s531 + $0x50] sm:$0xf]
        %v1727 = vld [vmem:[%s531 + $0x54] sm:$0xf]
        %v1728 = vld [vmem:[%s531 + $0x58] sm:$0xf]
        %v1729 = vld [vmem:[%s531 + $0x5c] sm:$0xf]
        %v1730 = vld [vmem:[%s531 + $0x60] sm:$0xf]
        %v1731 = vld [vmem:[%s531 + $0x64] sm:$0xf]
        %v1732 = vld [vmem:[%s531 + $0x68] sm:$0xf]
        %v1733 = vld [vmem:[%s531 + $0x6c] sm:$0xf]
        %v1734 = vld [vmem:[%s531 + $0x70] sm:$0xf]
        %v1735 = vld [vmem:[%s531 + $0x74] sm:$0xf]
        %v1736 = vld [vmem:[%s531 + $0x78] sm:$0xf]
        %v1737 = vld [vmem:[%s531 + $0x7c] sm:$0xf]
        %v1738 = vld [vmem:[%s531 + $0x80] sm:$0xf]
        %v1739 = vld [vmem:[%s531 + $0x84] sm:$0xf]
        %v1740 = vld [vmem:[%s531 + $0x88] sm:$0xf]
        %v1741 = vld [vmem:[%s531 + $0x8c] sm:$0xf]
        %v1742 = vld [vmem:[%s531 + $0x90] sm:$0xf]
        %v1743 = vld [vmem:[%s531 + $0x94] sm:$0xf]
        %v1744 = vld [vmem:[%s531 + $0x98] sm:$0xf]
        %v1745 = vld [vmem:[%s531 + $0x9c] sm:$0xf]
        %v1746 = vld [vmem:[%s531 + $0xa0] sm:$0xf]
        %v1747 = vld [vmem:[%s531 + $0xa4] sm:$0xf]
        %v1748 = vld [vmem:[%s531 + $0xa8] sm:$0xf]
        %v1749 = vld [vmem:[%s531 + $0xac] sm:$0xf]
        %v1750 = vld [vmem:[%s531 + $0xb0] sm:$0xf]
        %v1751 = vld [vmem:[%s531 + $0xb4] sm:$0xf]
        %v1752 = vld [vmem:[%s531 + $0xb8] sm:$0xf]
        %v1753 = vld [vmem:[%s531 + $0xbc] sm:$0xf]
        %v1754 = vld [vmem:[%s531 + $0xc0] sm:$0xf]
        %v1755 = vld [vmem:[%s531 + $0xc4] sm:$0xf]
        %v1756 = vld [vmem:[%s531 + $0xc8] sm:$0xf]
        %v1757 = vld [vmem:[%s531 + $0xcc] sm:$0xf]
        %v1758 = vld [vmem:[%s531 + $0xd0] sm:$0xf]
        %v1759 = vld [vmem:[%s531 + $0xd4] sm:$0xf]
        %v1760 = vld [vmem:[%s531 + $0xd8] sm:$0xf]
        %v1761 = vld [vmem:[%s531 + $0xdc] sm:$0xf]
        %v1762 = vld [vmem:[%s531 + $0xe0] sm:$0xf]
        %v1763 = vld [vmem:[%s531 + $0xe4] sm:$0xf]
        %v1764 = vld [vmem:[%s531 + $0xe8] sm:$0xf]
        %v1765 = vld [vmem:[%s531 + $0xec] sm:$0xf]
        %v1766 = vld [vmem:[%s531 + $0xf0] sm:$0xf]
        %v1767 = vld [vmem:[%s531 + $0xf4] sm:$0xf]
        %v1768 = vld [vmem:[%s531 + $0xf8] sm:$0xf]
        %v1769 = vld [vmem:[%s531 + $0xfc] sm:$0xf]
        %v1770 = vld [vmem:[%s531 + $0x100] sm:$0xf]
        %v1771 = vld [vmem:[%s531 + $0x104] sm:$0xf]
        %v1772 = vld [vmem:[%s531 + $0x108] sm:$0xf]
        %v1773 = vld [vmem:[%s531 + $0x10c] sm:$0xf]
        %v1774 = vld [vmem:[%s531 + $0x110] sm:$0xf]
        %v1775 = vld [vmem:[%s531 + $0x114] sm:$0xf]
        %v1776 = vld [vmem:[%s531 + $0x118] sm:$0xf]
        %v1777 = vld [vmem:[%s531 + $0x11c] sm:$0xf]
        %v1778 = vld [vmem:[%s531 + $0x120] sm:$0xf]
        %v1779 = vld [vmem:[%s531 + $0x124] sm:$0xf]
        %v1780 = vld [vmem:[%s531 + $0x128] sm:$0xf]
        %v1781 = vld [vmem:[%s531 + $0x12c] sm:$0xf]
        %v1782 = vld [vmem:[%s531 + $0x130] sm:$0xf]
        %v1783 = vld [vmem:[%s531 + $0x134] sm:$0xf]
        %v1784 = vld [vmem:[%s531 + $0x138] sm:$0xf]
        %v1785 = vld [vmem:[%s531 + $0x13c] sm:$0xf]
        %v1786 = vld [vmem:[%s531 + $0x140] sm:$0xf]
        %v1787 = vld [vmem:[%s531 + $0x144] sm:$0xf]
        %v1788 = vld [vmem:[%s531 + $0x148] sm:$0xf]
        %v1789 = vld [vmem:[%s531 + $0x14c] sm:$0xf]
        %v1790 = vld [vmem:[%s531 + $0x150] sm:$0xf]
        %v1791 = vld [vmem:[%s531 + $0x154] sm:$0xf]
        %v1792 = vld [vmem:[%s531 + $0x158] sm:$0xf]
        %v1793 = vld [vmem:[%s531 + $0x15c] sm:$0xf]
        %v1794 = vld [vmem:[%s531 + $0x160] sm:$0xf]
        %v1795 = vld [vmem:[%s531 + $0x164] sm:$0xf]
        %v1796 = vld [vmem:[%s531 + $0x168] sm:$0xf]
        %v1797 = vld [vmem:[%s531 + $0x16c] sm:$0xf]
        %v1798 = vld [vmem:[%s531 + $0x170] sm:$0xf]
        %v1799 = vld [vmem:[%s531 + $0x174] sm:$0xf]
        %v1800 = vld [vmem:[%s531 + $0x178] sm:$0xf]
        %v1801 = vld [vmem:[%s531 + $0x17c] sm:$0xf]
        %v1802 = vld [vmem:[%s531 + $0x180] sm:$0xf]
        %v1803 = vld [vmem:[%s531 + $0x184] sm:$0xf]
        %v1804 = vld [vmem:[%s531 + $0x188] sm:$0xf]
        %v1805 = vld [vmem:[%s531 + $0x18c] sm:$0xf]
        %v1806 = vld [vmem:[%s531 + $0x190] sm:$0xf]
        %v1807 = vld [vmem:[%s531 + $0x194] sm:$0xf]
        %v1808 = vld [vmem:[%s531 + $0x198] sm:$0xf]
        %v1809 = vld [vmem:[%s531 + $0x19c] sm:$0xf]
        %v1810 = vld [vmem:[%s531 + $0x1a0] sm:$0xf]
        %v1811 = vld [vmem:[%s531 + $0x1a4] sm:$0xf]
        %v1812 = vld [vmem:[%s531 + $0x1a8] sm:$0xf]
        %v1813 = vld [vmem:[%s531 + $0x1ac] sm:$0xf]
        %v1814 = vld [vmem:[%s531 + $0x1b0] sm:$0xf]
        %v1815 = vld [vmem:[%s531 + $0x1b4] sm:$0xf]
        %v1816 = vld [vmem:[%s531 + $0x1b8] sm:$0xf]
        %v1817 = vld [vmem:[%s531 + $0x1bc] sm:$0xf]
        %v1818 = vld [vmem:[%s531 + $0x1c0] sm:$0xf]
        %v1819 = vld [vmem:[%s531 + $0x1c4] sm:$0xf]
        %v1820 = vld [vmem:[%s531 + $0x1c8] sm:$0xf]
        %v1821 = vld [vmem:[%s531 + $0x1cc] sm:$0xf]
        %v1822 = vld [vmem:[%s531 + $0x1d0] sm:$0xf]
        %v1823 = vld [vmem:[%s531 + $0x1d4] sm:$0xf]
        %v1824 = vld [vmem:[%s531 + $0x1d8] sm:$0xf]
        %v1825 = vld [vmem:[%s531 + $0x1dc] sm:$0xf]
        %v1826 = vld [vmem:[%s531 + $0x1e0] sm:$0xf]
        %v1827 = vld [vmem:[%s531 + $0x1e4] sm:$0xf]
        %v1828 = vld [vmem:[%s531 + $0x1e8] sm:$0xf]
        %v1829 = vld [vmem:[%s531 + $0x1ec] sm:$0xf]
        %v1830 = vld [vmem:[%s531 + $0x1f0] sm:$0xf]
        %v1831 = vld [vmem:[%s531 + $0x1f4] sm:$0xf]
        %v1832 = vld [vmem:[%s531 + $0x1f8] sm:$0xf]
        %v1833 = vld [vmem:[%s531 + $0x1fc] sm:$0xf]
        %v1834 = vld [vmem:[%s531 + $0x200] sm:$0xf]
        %v1835 = vld [vmem:[%s531 + $0x204] sm:$0xf]
        %v1836 = vld [vmem:[%s531 + $0x208] sm:$0xf]
        %v1837 = vld [vmem:[%s531 + $0x20c] sm:$0xf]
        %v1838 = vld [vmem:[%s531 + $0x210] sm:$0xf]
        %v1839 = vld [vmem:[%s531 + $0x214] sm:$0xf]
        %v1840 = vld [vmem:[%s531 + $0x218] sm:$0xf]
        %v1841 = vld [vmem:[%s531 + $0x21c] sm:$0xf]
        %v1842 = vld [vmem:[%s531 + $0x220] sm:$0xf]
        %v1843 = vld [vmem:[%s531 + $0x224] sm:$0xf]
        %v1844 = vld [vmem:[%s531 + $0x228] sm:$0xf]
        %v1845 = vld [vmem:[%s531 + $0x22c] sm:$0xf]
        %v1846 = vld [vmem:[%s531 + $0x230] sm:$0xf]
        %v1847 = vld [vmem:[%s531 + $0x234] sm:$0xf]
        %v1848 = vld [vmem:[%s531 + $0x238] sm:$0xf]
        %v1849 = vld [vmem:[%s531 + $0x23c] sm:$0xf]
        %v1850 = vld [vmem:[%s531 + $0x240] sm:$0xf]
        %v1851 = vld [vmem:[%s531 + $0x244] sm:$0xf]
        %v1852 = vld [vmem:[%s531 + $0x248] sm:$0xf]
        %v1853 = vld [vmem:[%s531 + $0x24c] sm:$0xf]
        %v1854 = vld [vmem:[%s531 + $0x250] sm:$0xf]
        %v1855 = vld [vmem:[%s531 + $0x254] sm:$0xf]
        %v1856 = vld [vmem:[%s531 + $0x258] sm:$0xf]
        %v1857 = vld [vmem:[%s531 + $0x25c] sm:$0xf]
        %v1858 = vld [vmem:[%s531 + $0x260] sm:$0xf]
        %v1859 = vld [vmem:[%s531 + $0x264] sm:$0xf]
        %v1860 = vld [vmem:[%s531 + $0x268] sm:$0xf]
        %v1861 = vld [vmem:[%s531 + $0x26c] sm:$0xf]
        %v1862 = vld [vmem:[%s531 + $0x270] sm:$0xf]
        %v1863 = vld [vmem:[%s531 + $0x274] sm:$0xf]
        %v1864 = vld [vmem:[%s531 + $0x278] sm:$0xf]
        %v1865 = vld [vmem:[%s531 + $0x27c] sm:$0xf]
        %v1866 = vld [vmem:[%s531 + $0x280] sm:$0xf]
        %v1867 = vld [vmem:[%s531 + $0x284] sm:$0xf]
        %v1868 = vld [vmem:[%s531 + $0x288] sm:$0xf]
        %v1869 = vld [vmem:[%s531 + $0x28c] sm:$0xf]
        %v1870 = vld [vmem:[%s531 + $0x290] sm:$0xf]
        %v1871 = vld [vmem:[%s531 + $0x294] sm:$0xf]
        %v1872 = vld [vmem:[%s531 + $0x298] sm:$0xf]
        %v1873 = vld [vmem:[%s531 + $0x29c] sm:$0xf]
        %v1874 = vld [vmem:[%s531 + $0x2a0] sm:$0xf]
        %v1875 = vld [vmem:[%s531 + $0x2a4] sm:$0xf]
        %v1876 = vld [vmem:[%s531 + $0x2a8] sm:$0xf]
        %v1877 = vld [vmem:[%s531 + $0x2ac] sm:$0xf]
        %v1878 = vld [vmem:[%s531 + $0x2b0] sm:$0xf]
        %v1879 = vld [vmem:[%s531 + $0x2b4] sm:$0xf]
        %v1880 = vld [vmem:[%s531 + $0x2b8] sm:$0xf]
        %v1881 = vld [vmem:[%s531 + $0x2bc] sm:$0xf]
        %v1882 = vld [vmem:[%s531 + $0x2c0] sm:$0xf]
        %v1883 = vld [vmem:[%s531 + $0x2c4] sm:$0xf]
        %v1884 = vld [vmem:[%s531 + $0x2c8] sm:$0xf]
        %v1885 = vld [vmem:[%s531 + $0x2cc] sm:$0xf]
        %v1886 = vld [vmem:[%s531 + $0x2d0] sm:$0xf]
        %v1887 = vld [vmem:[%s531 + $0x2d4] sm:$0xf]
        %v1888 = vld [vmem:[%s531 + $0x2d8] sm:$0xf]
        %v1889 = vld [vmem:[%s531 + $0x2dc] sm:$0xf]
        %v1890 = vld [vmem:[%s531 + $0x2e0] sm:$0xf]
        %v1891 = vld [vmem:[%s531 + $0x2e4] sm:$0xf]
        %v1892 = vld [vmem:[%s531 + $0x2e8] sm:$0xf]
        %v1893 = vld [vmem:[%s531 + $0x2ec] sm:$0xf]
        %v1894 = vld [vmem:[%s531 + $0x2f0] sm:$0xf]
        %v1895 = vld [vmem:[%s531 + $0x2f4] sm:$0xf]
        %v1896 = vld [vmem:[%s531 + $0x2f8] sm:$0xf]
        %v1897 = vld [vmem:[%s531 + $0x2fc] sm:$0xf]
        %v1898 = vld [vmem:[%s531 + $0x300] sm:$0xf]
        %v1899 = vld [vmem:[%s531 + $0x304] sm:$0xf]
        %v1900 = vld [vmem:[%s531 + $0x308] sm:$0xf]
        %v1901 = vld [vmem:[%s531 + $0x30c] sm:$0xf]
        %v1902 = vld [vmem:[%s531 + $0x310] sm:$0xf]
        %v1903 = vld [vmem:[%s531 + $0x314] sm:$0xf]
        %v1904 = vld [vmem:[%s531 + $0x318] sm:$0xf]
        %v1905 = vld [vmem:[%s531 + $0x31c] sm:$0xf]
        %v1906 = vld [vmem:[%s531 + $0x320] sm:$0xf]
        %v1907 = vld [vmem:[%s531 + $0x324] sm:$0xf]
        %v1908 = vld [vmem:[%s531 + $0x328] sm:$0xf]
        %v1909 = vld [vmem:[%s531 + $0x32c] sm:$0xf]
        %v1910 = vld [vmem:[%s531 + $0x330] sm:$0xf]
        %v1911 = vld [vmem:[%s531 + $0x334] sm:$0xf]
        %v1912 = vld [vmem:[%s531 + $0x338] sm:$0xf]
        %v1913 = vld [vmem:[%s531 + $0x33c] sm:$0xf]
        %v1914 = vld [vmem:[%s531 + $0x340] sm:$0xf]
        %v1915 = vld [vmem:[%s531 + $0x344] sm:$0xf]
        %v1916 = vld [vmem:[%s531 + $0x348] sm:$0xf]
        %v1917 = vld [vmem:[%s531 + $0x34c] sm:$0xf]
        %v1918 = vld [vmem:[%s531 + $0x350] sm:$0xf]
        %v1919 = vld [vmem:[%s531 + $0x354] sm:$0xf]
        %v1920 = vld [vmem:[%s531 + $0x358] sm:$0xf]
        %v1921 = vld [vmem:[%s531 + $0x35c] sm:$0xf]
        %v1922 = vld [vmem:[%s531 + $0x360] sm:$0xf]
        %v1923 = vld [vmem:[%s531 + $0x364] sm:$0xf]
        %v1924 = vld [vmem:[%s531 + $0x368] sm:$0xf]
        %v1925 = vld [vmem:[%s531 + $0x36c] sm:$0xf]
        %v1926 = vld [vmem:[%s531 + $0x370] sm:$0xf]
        %v1927 = vld [vmem:[%s531 + $0x374] sm:$0xf]
        %v1928 = vld [vmem:[%s531 + $0x378] sm:$0xf]
        %v1929 = vld [vmem:[%s531 + $0x37c] sm:$0xf]
        %v1930 = vld [vmem:[%s531 + $0x380] sm:$0xf]
        %v1931 = vld [vmem:[%s531 + $0x384] sm:$0xf]
        %v1932 = vld [vmem:[%s531 + $0x388] sm:$0xf]
        %v1933 = vld [vmem:[%s531 + $0x38c] sm:$0xf]
        %v1934 = vld [vmem:[%s531 + $0x390] sm:$0xf]
        %v1935 = vld [vmem:[%s531 + $0x394] sm:$0xf]
        %v1936 = vld [vmem:[%s531 + $0x398] sm:$0xf]
        %v1937 = vld [vmem:[%s531 + $0x39c] sm:$0xf]
        %v1938 = vld [vmem:[%s531 + $0x3a0] sm:$0xf]
        %v1939 = vld [vmem:[%s531 + $0x3a4] sm:$0xf]
        %v1940 = vld [vmem:[%s531 + $0x3a8] sm:$0xf]
        %v1941 = vld [vmem:[%s531 + $0x3ac] sm:$0xf]
        %v1942 = vld [vmem:[%s531 + $0x3b0] sm:$0xf]
        %v1943 = vld [vmem:[%s531 + $0x3b4] sm:$0xf]
        %v1944 = vld [vmem:[%s531 + $0x3b8] sm:$0xf]
        %v1945 = vld [vmem:[%s531 + $0x3bc] sm:$0xf]
        %v1946 = vld [vmem:[%s531 + $0x3c0] sm:$0xf]
        %v1947 = vld [vmem:[%s531 + $0x3c4] sm:$0xf]
        %v1948 = vld [vmem:[%s531 + $0x3c8] sm:$0xf]
        %v1949 = vld [vmem:[%s531 + $0x3cc] sm:$0xf]
        %v1950 = vld [vmem:[%s531 + $0x3d0] sm:$0xf]
        %v1951 = vld [vmem:[%s531 + $0x3d4] sm:$0xf]
        %v1952 = vld [vmem:[%s531 + $0x3d8] sm:$0xf]
        %v1953 = vld [vmem:[%s531 + $0x3dc] sm:$0xf]
        %v1954 = vld [vmem:[%s531 + $0x3e0] sm:$0xf]
        %v1955 = vld [vmem:[%s531 + $0x3e4] sm:$0xf]
        %v1956 = vld [vmem:[%s531 + $0x3e8] sm:$0xf]
        %v1957 = vld [vmem:[%s531 + $0x3ec] sm:$0xf]
        %v1958 = vld [vmem:[%s531 + $0x3f0] sm:$0xf]
        %v1959 = vld [vmem:[%s531 + $0x3f4] sm:$0xf]
        %v1960 = vld [vmem:[%s531 + $0x3f8] sm:$0xf]
        %v1961 = vld [vmem:[%s531 + $0x3fc] sm:$0xf]
        %v1962 = vunpack.c.l.bf16 %v1706
        %v1963 = vunpack.c.l.bf16 %v1707
        %v1964 = vunpack.c.l.bf16 %v1708
        %v1965 = vunpack.c.l.bf16 %v1709
        %v1966 = vunpack.c.l.bf16 %v1710
        %v1967 = vunpack.c.l.bf16 %v1711
        %v1968 = vunpack.c.l.bf16 %v1712
        %v1969 = vunpack.c.l.bf16 %v1713
        %v1970 = vunpack.c.l.bf16 %v1714
        %v1971 = vunpack.c.l.bf16 %v1715
        %v1972 = vunpack.c.l.bf16 %v1716
        %v1973 = vunpack.c.l.bf16 %v1717
        %v1974 = vunpack.c.l.bf16 %v1718
        %v1975 = vunpack.c.l.bf16 %v1719
        %v1976 = vunpack.c.l.bf16 %v1720
        %v1977 = vunpack.c.l.bf16 %v1721
        %v1978 = vunpack.c.l.bf16 %v1722
        %v1979 = vunpack.c.l.bf16 %v1723
        %v1980 = vunpack.c.l.bf16 %v1724
        %v1981 = vunpack.c.l.bf16 %v1725
        %v1982 = vunpack.c.l.bf16 %v1726
        %v1983 = vunpack.c.l.bf16 %v1727
        %v1984 = vunpack.c.l.bf16 %v1728
        %v1985 = vunpack.c.l.bf16 %v1729
        %v1986 = vunpack.c.l.bf16 %v1730
        %v1987 = vunpack.c.l.bf16 %v1731
        %v1988 = vunpack.c.l.bf16 %v1732
        %v1989 = vunpack.c.l.bf16 %v1733
        %v1990 = vunpack.c.l.bf16 %v1734
        %v1991 = vunpack.c.l.bf16 %v1735
        %v1992 = vunpack.c.l.bf16 %v1736
        %v1993 = vunpack.c.l.bf16 %v1737
        %v1994 = vunpack.c.l.bf16 %v1738
        %v1995 = vunpack.c.l.bf16 %v1739
        %v1996 = vunpack.c.l.bf16 %v1740
        %v1997 = vunpack.c.l.bf16 %v1741
        %v1998 = vunpack.c.l.bf16 %v1742
        %v1999 = vunpack.c.l.bf16 %v1743
        %v2000 = vunpack.c.l.bf16 %v1744
        %v2001 = vunpack.c.l.bf16 %v1745
        %v2002 = vunpack.c.l.bf16 %v1746
        %v2003 = vunpack.c.l.bf16 %v1747
        %v2004 = vunpack.c.l.bf16 %v1748
        %v2005 = vunpack.c.l.bf16 %v1749
        %v2006 = vunpack.c.l.bf16 %v1750
        %v2007 = vunpack.c.l.bf16 %v1751
        %v2008 = vunpack.c.l.bf16 %v1752
        %v2009 = vunpack.c.l.bf16 %v1753
        %v2010 = vunpack.c.l.bf16 %v1754
        %v2011 = vunpack.c.l.bf16 %v1755
        %v2012 = vunpack.c.l.bf16 %v1756
        %v2013 = vunpack.c.l.bf16 %v1757
        %v2014 = vunpack.c.l.bf16 %v1758
        %v2015 = vunpack.c.l.bf16 %v1759
        %v2016 = vunpack.c.l.bf16 %v1760
        %v2017 = vunpack.c.l.bf16 %v1761
        %v2018 = vunpack.c.l.bf16 %v1762
        %v2019 = vunpack.c.l.bf16 %v1763
        %v2020 = vunpack.c.l.bf16 %v1764
        %v2021 = vunpack.c.l.bf16 %v1765
        %v2022 = vunpack.c.l.bf16 %v1766
        %v2023 = vunpack.c.l.bf16 %v1767
        %v2024 = vunpack.c.l.bf16 %v1768
        %v2025 = vunpack.c.l.bf16 %v1769
        %v2026 = vunpack.c.l.bf16 %v1770
        %v2027 = vunpack.c.l.bf16 %v1771
        %v2028 = vunpack.c.l.bf16 %v1772
        %v2029 = vunpack.c.l.bf16 %v1773
        %v2030 = vunpack.c.l.bf16 %v1774
        %v2031 = vunpack.c.l.bf16 %v1775
        %v2032 = vunpack.c.l.bf16 %v1776
        %v2033 = vunpack.c.l.bf16 %v1777
        %v2034 = vunpack.c.l.bf16 %v1778
        %v2035 = vunpack.c.l.bf16 %v1779
        %v2036 = vunpack.c.l.bf16 %v1780
        %v2037 = vunpack.c.l.bf16 %v1781
        %v2038 = vunpack.c.l.bf16 %v1782
        %v2039 = vunpack.c.l.bf16 %v1783
        %v2040 = vunpack.c.l.bf16 %v1784
        %v2041 = vunpack.c.l.bf16 %v1785
        %v2042 = vunpack.c.l.bf16 %v1786
        %v2043 = vunpack.c.l.bf16 %v1787
        %v2044 = vunpack.c.l.bf16 %v1788
        %v2045 = vunpack.c.l.bf16 %v1789
        %v2046 = vunpack.c.l.bf16 %v1790
        %v2047 = vunpack.c.l.bf16 %v1791
        %v2048 = vunpack.c.l.bf16 %v1792
        %v2049 = vunpack.c.l.bf16 %v1793
        %v2050 = vunpack.c.l.bf16 %v1794
        %v2051 = vunpack.c.l.bf16 %v1795
        %v2052 = vunpack.c.l.bf16 %v1796
        %v2053 = vunpack.c.l.bf16 %v1797
        %v2054 = vunpack.c.l.bf16 %v1798
        %v2055 = vunpack.c.l.bf16 %v1799
        %v2056 = vunpack.c.l.bf16 %v1800
        %v2057 = vunpack.c.l.bf16 %v1801
        %v2058 = vunpack.c.l.bf16 %v1802
        %v2059 = vunpack.c.l.bf16 %v1803
        %v2060 = vunpack.c.l.bf16 %v1804
        %v2061 = vunpack.c.l.bf16 %v1805
        %v2062 = vunpack.c.l.bf16 %v1806
        %v2063 = vunpack.c.l.bf16 %v1807
        %v2064 = vunpack.c.l.bf16 %v1808
        %v2065 = vunpack.c.l.bf16 %v1809
        %v2066 = vunpack.c.l.bf16 %v1810
        %v2067 = vunpack.c.l.bf16 %v1811
        %v2068 = vunpack.c.l.bf16 %v1812
        %v2069 = vunpack.c.l.bf16 %v1813
        %v2070 = vunpack.c.l.bf16 %v1814
        %v2071 = vunpack.c.l.bf16 %v1815
        %v2072 = vunpack.c.l.bf16 %v1816
        %v2073 = vunpack.c.l.bf16 %v1817
        %v2074 = vunpack.c.l.bf16 %v1818
        %v2075 = vunpack.c.l.bf16 %v1819
        %v2076 = vunpack.c.l.bf16 %v1820
        %v2077 = vunpack.c.l.bf16 %v1821
        %v2078 = vunpack.c.l.bf16 %v1822
        %v2079 = vunpack.c.l.bf16 %v1823
        %v2080 = vunpack.c.l.bf16 %v1824
        %v2081 = vunpack.c.l.bf16 %v1825
        %v2082 = vunpack.c.l.bf16 %v1826
        %v2083 = vunpack.c.l.bf16 %v1827
        %v2084 = vunpack.c.l.bf16 %v1828
        %v2085 = vunpack.c.l.bf16 %v1829
        %v2086 = vunpack.c.l.bf16 %v1830
        %v2087 = vunpack.c.l.bf16 %v1831
        %v2088 = vunpack.c.l.bf16 %v1832
        %v2089 = vunpack.c.l.bf16 %v1833
        %v2090 = vunpack.c.l.bf16 %v1834
        %v2091 = vunpack.c.l.bf16 %v1835
        %v2092 = vunpack.c.l.bf16 %v1836
        %v2093 = vunpack.c.l.bf16 %v1837
        %v2094 = vunpack.c.l.bf16 %v1838
        %v2095 = vunpack.c.l.bf16 %v1839
        %v2096 = vunpack.c.l.bf16 %v1840
        %v2097 = vunpack.c.l.bf16 %v1841
        %v2098 = vunpack.c.l.bf16 %v1842
        %v2099 = vunpack.c.l.bf16 %v1843
        %v2100 = vunpack.c.l.bf16 %v1844
        %v2101 = vunpack.c.l.bf16 %v1845
        %v2102 = vunpack.c.l.bf16 %v1846
        %v2103 = vunpack.c.l.bf16 %v1847
        %v2104 = vunpack.c.l.bf16 %v1848
        %v2105 = vunpack.c.l.bf16 %v1849
        %v2106 = vunpack.c.l.bf16 %v1850
        %v2107 = vunpack.c.l.bf16 %v1851
        %v2108 = vunpack.c.l.bf16 %v1852
        %v2109 = vunpack.c.l.bf16 %v1853
        %v2110 = vunpack.c.l.bf16 %v1854
        %v2111 = vunpack.c.l.bf16 %v1855
        %v2112 = vunpack.c.l.bf16 %v1856
        %v2113 = vunpack.c.l.bf16 %v1857
        %v2114 = vunpack.c.l.bf16 %v1858
        %v2115 = vunpack.c.l.bf16 %v1859
        %v2116 = vunpack.c.l.bf16 %v1860
        %v2117 = vunpack.c.l.bf16 %v1861
        %v2118 = vunpack.c.l.bf16 %v1862
        %v2119 = vunpack.c.l.bf16 %v1863
        %v2120 = vunpack.c.l.bf16 %v1864
        %v2121 = vunpack.c.l.bf16 %v1865
        %v2122 = vunpack.c.l.bf16 %v1866
        %v2123 = vunpack.c.l.bf16 %v1867
        %v2124 = vunpack.c.l.bf16 %v1868
        %v2125 = vunpack.c.l.bf16 %v1869
        %v2126 = vunpack.c.l.bf16 %v1870
        %v2127 = vunpack.c.l.bf16 %v1871
        %v2128 = vunpack.c.l.bf16 %v1872
        %v2129 = vunpack.c.l.bf16 %v1873
        %v2130 = vunpack.c.l.bf16 %v1874
        %v2131 = vunpack.c.l.bf16 %v1875
        %v2132 = vunpack.c.l.bf16 %v1876
        %v2133 = vunpack.c.l.bf16 %v1877
        %v2134 = vunpack.c.l.bf16 %v1878
        %v2135 = vunpack.c.l.bf16 %v1879
        %v2136 = vunpack.c.l.bf16 %v1880
        %v2137 = vunpack.c.l.bf16 %v1881
        %v2138 = vunpack.c.l.bf16 %v1882
        %v2139 = vunpack.c.l.bf16 %v1883
        %v2140 = vunpack.c.l.bf16 %v1884
        %v2141 = vunpack.c.l.bf16 %v1885
        %v2142 = vunpack.c.l.bf16 %v1886
        %v2143 = vunpack.c.l.bf16 %v1887
        %v2144 = vunpack.c.l.bf16 %v1888
        %v2145 = vunpack.c.l.bf16 %v1889
        %v2146 = vunpack.c.l.bf16 %v1890
        %v2147 = vunpack.c.l.bf16 %v1891
        %v2148 = vunpack.c.l.bf16 %v1892
        %v2149 = vunpack.c.l.bf16 %v1893
        %v2150 = vunpack.c.l.bf16 %v1894
        %v2151 = vunpack.c.l.bf16 %v1895
        %v2152 = vunpack.c.l.bf16 %v1896
        %v2153 = vunpack.c.l.bf16 %v1897
        %v2154 = vunpack.c.l.bf16 %v1898
        %v2155 = vunpack.c.l.bf16 %v1899
        %v2156 = vunpack.c.l.bf16 %v1900
        %v2157 = vunpack.c.l.bf16 %v1901
        %v2158 = vunpack.c.l.bf16 %v1902
        %v2159 = vunpack.c.l.bf16 %v1903
        %v2160 = vunpack.c.l.bf16 %v1904
        %v2161 = vunpack.c.l.bf16 %v1905
        %v2162 = vunpack.c.l.bf16 %v1906
        %v2163 = vunpack.c.l.bf16 %v1907
        %v2164 = vunpack.c.l.bf16 %v1908
        %v2165 = vunpack.c.l.bf16 %v1909
        %v2166 = vunpack.c.l.bf16 %v1910
        %v2167 = vunpack.c.l.bf16 %v1911
        %v2168 = vunpack.c.l.bf16 %v1912
        %v2169 = vunpack.c.l.bf16 %v1913
        %v2170 = vunpack.c.l.bf16 %v1914
        %v2171 = vunpack.c.l.bf16 %v1915
        %v2172 = vunpack.c.l.bf16 %v1916
        %v2173 = vunpack.c.l.bf16 %v1917
        %v2174 = vunpack.c.l.bf16 %v1918
        %v2175 = vunpack.c.l.bf16 %v1919
        %v2176 = vunpack.c.l.bf16 %v1920
        %v2177 = vunpack.c.l.bf16 %v1921
        %v2178 = vunpack.c.l.bf16 %v1922
        %v2179 = vunpack.c.l.bf16 %v1923
        %v2180 = vunpack.c.l.bf16 %v1924
        %v2181 = vunpack.c.l.bf16 %v1925
        %v2182 = vunpack.c.l.bf16 %v1926
        %v2183 = vunpack.c.l.bf16 %v1927
        %v2184 = vunpack.c.l.bf16 %v1928
        %v2185 = vunpack.c.l.bf16 %v1929
        %v2186 = vunpack.c.l.bf16 %v1930
        %v2187 = vunpack.c.l.bf16 %v1931
        %v2188 = vunpack.c.l.bf16 %v1932
        %v2189 = vunpack.c.l.bf16 %v1933
        %v2190 = vunpack.c.l.bf16 %v1934
        %v2191 = vunpack.c.l.bf16 %v1935
        %v2192 = vunpack.c.l.bf16 %v1936
        %v2193 = vunpack.c.l.bf16 %v1937
        %v2194 = vunpack.c.l.bf16 %v1938
        %v2195 = vunpack.c.l.bf16 %v1939
        %v2196 = vunpack.c.l.bf16 %v1940
        %v2197 = vunpack.c.l.bf16 %v1941
        %v2198 = vunpack.c.l.bf16 %v1942
        %v2199 = vunpack.c.l.bf16 %v1943
        %v2200 = vunpack.c.l.bf16 %v1944
        %v2201 = vunpack.c.l.bf16 %v1945
        %v2202 = vunpack.c.l.bf16 %v1946
        %v2203 = vunpack.c.l.bf16 %v1947
        %v2204 = vunpack.c.l.bf16 %v1948
        %v2205 = vunpack.c.l.bf16 %v1949
        %v2206 = vunpack.c.l.bf16 %v1950
        %v2207 = vunpack.c.l.bf16 %v1951
        %v2208 = vunpack.c.l.bf16 %v1952
        %v2209 = vunpack.c.l.bf16 %v1953
        %v2210 = vunpack.c.l.bf16 %v1954
        %v2211 = vunpack.c.l.bf16 %v1955
        %v2212 = vunpack.c.l.bf16 %v1956
        %v2213 = vunpack.c.l.bf16 %v1957
        %v2214 = vunpack.c.l.bf16 %v1958
        %v2215 = vunpack.c.l.bf16 %v1959
        %v2216 = vunpack.c.l.bf16 %v1960
        %v2217 = vunpack.c.l.bf16 %v1961
        %v2218 = vlaneseq
        %v2219 = vshrl.u32 %v2218, 7
        %v2220 = vsub.s32 4, %v2219
        %v2221 = vrot.slane %v546, %v2220
        %2222 = vmatprep.subr.mxu0 0.0
        %2223 = vmatpush1.msra.mxu0 %v1962
        %2224 = vmatprep.subr.mxu0 0.0
        %2225 = vmatpush1.msra.mxu0 %v1963
        %2226 = vmatprep.subr.mxu0 0.0
        %2227 = vmatpush1.msra.mxu0 %v1964
        %2228 = vmatprep.subr.mxu0 0.0
        %2229 = vmatpush1.msra.mxu0 %v1965
        %2230 = vmatprep.subr.mxu0 0.0
        %2231 = vmatpush1.msra.mxu0 %v1966
        %2232 = vmatprep.subr.mxu0 0.0
        %2233 = vmatpush1.msra.mxu0 %v1967
        %2234 = vmatprep.subr.mxu0 0.0
        %2235 = vmatpush1.msra.mxu0 %v1968
        %2236 = vmatprep.subr.mxu0 0.0
        %2237 = vmatpush1.msra.mxu0 %v1969
        %2238 = vmatprep.subr.mxu0 0.0
        %2239 = vmatpush1.msra.mxu0 %v1970
        %2240 = vmatprep.subr.mxu0 0.0
        %2241 = vmatpush1.msra.mxu0 %v1971
        %2242 = vmatprep.subr.mxu0 0.0
        %2243 = vmatpush1.msra.mxu0 %v1972
        %2244 = vmatprep.subr.mxu0 0.0
        %2245 = vmatpush1.msra.mxu0 %v1973
        %2246 = vmatprep.subr.mxu0 0.0
        %2247 = vmatpush1.msra.mxu0 %v1974
        %2248 = vmatprep.subr.mxu0 0.0
        %2249 = vmatpush1.msra.mxu0 %v1975
        %2250 = vmatprep.subr.mxu0 0.0
        %2251 = vmatpush1.msra.mxu0 %v1976
        %2252 = vmatprep.subr.mxu0 0.0
        %2253 = vmatpush1.msra.mxu0 %v1977
        %2254 = vmatprep.subr.mxu0 0.0
        %2255 = vmatpush1.msra.mxu0 %v1978
        %2256 = vmatprep.subr.mxu0 0.0
        %2257 = vmatpush1.msra.mxu0 %v1979
        %2258 = vmatprep.subr.mxu0 0.0
        %2259 = vmatpush1.msra.mxu0 %v1980
        %2260 = vmatprep.subr.mxu0 0.0
        %2261 = vmatpush1.msra.mxu0 %v1981
        %2262 = vmatprep.subr.mxu0 0.0
        %2263 = vmatpush1.msra.mxu0 %v1982
        %2264 = vmatprep.subr.mxu0 0.0
        %2265 = vmatpush1.msra.mxu0 %v1983
        %2266 = vmatprep.subr.mxu0 0.0
        %2267 = vmatpush1.msra.mxu0 %v1984
        %2268 = vmatprep.subr.mxu0 0.0
        %2269 = vmatpush1.msra.mxu0 %v1985
        %2270 = vmatprep.subr.mxu0 0.0
        %2271 = vmatpush1.msra.mxu0 %v1986
        %2272 = vmatprep.subr.mxu0 0.0
        %2273 = vmatpush1.msra.mxu0 %v1987
        %2274 = vmatprep.subr.mxu0 0.0
        %2275 = vmatpush1.msra.mxu0 %v1988
        %2276 = vmatprep.subr.mxu0 0.0
        %2277 = vmatpush1.msra.mxu0 %v1989
        %2278 = vmatprep.subr.mxu0 0.0
        %2279 = vmatpush1.msra.mxu0 %v1990
        %2280 = vmatprep.subr.mxu0 0.0
        %2281 = vmatpush1.msra.mxu0 %v1991
        %2282 = vmatprep.subr.mxu0 0.0
        %2283 = vmatpush1.msra.mxu0 %v1992
        %2284 = vmatprep.subr.mxu0 0.0
        %2285 = vmatpush1.msra.mxu0 %v1993
        %2286 = vmatprep.mubr.f32.mxu0 %v1691
        %2287 = vmatmul.mubr.f32.gmra.mrb[0].mxu0 %v1690
        %v2288 = vpop.f32.mrb[0].mxu0
        %v2289 = vadd.f32 %v2221, %v2288
        %v2290 = vpop.f32.mrb[0].mxu0
        %2291 = vdwg.mxu0
        %2292 = vmatprep.subr.mxu0 0.0
        %2293 = vmatpush1.msra.mxu0 %v1994
        %2294 = vmatprep.subr.mxu0 0.0
        %2295 = vmatpush1.msra.mxu0 %v1995
        %2296 = vmatprep.subr.mxu0 0.0
        %2297 = vmatpush1.msra.mxu0 %v1996
        %2298 = vmatprep.subr.mxu0 0.0
        %2299 = vmatpush1.msra.mxu0 %v1997
        %2300 = vmatprep.subr.mxu0 0.0
        %2301 = vmatpush1.msra.mxu0 %v1998
        %2302 = vmatprep.subr.mxu0 0.0
        %2303 = vmatpush1.msra.mxu0 %v1999
        %2304 = vmatprep.subr.mxu0 0.0
        %2305 = vmatpush1.msra.mxu0 %v2000
        %2306 = vmatprep.subr.mxu0 0.0
        %2307 = vmatpush1.msra.mxu0 %v2001
        %2308 = vmatprep.subr.mxu0 0.0
        %2309 = vmatpush1.msra.mxu0 %v2002
        %2310 = vmatprep.subr.mxu0 0.0
        %2311 = vmatpush1.msra.mxu0 %v2003
        %2312 = vmatprep.subr.mxu0 0.0
        %2313 = vmatpush1.msra.mxu0 %v2004
        %2314 = vmatprep.subr.mxu0 0.0
        %2315 = vmatpush1.msra.mxu0 %v2005
        %2316 = vmatprep.subr.mxu0 0.0
        %2317 = vmatpush1.msra.mxu0 %v2006
        %2318 = vmatprep.subr.mxu0 0.0
        %2319 = vmatpush1.msra.mxu0 %v2007
        %2320 = vmatprep.subr.mxu0 0.0
        %2321 = vmatpush1.msra.mxu0 %v2008
        %2322 = vmatprep.subr.mxu0 0.0
        %2323 = vmatpush1.msra.mxu0 %v2009
        %2324 = vmatprep.subr.mxu0 0.0
        %2325 = vmatpush1.msra.mxu0 %v2010
        %2326 = vmatprep.subr.mxu0 0.0
        %2327 = vmatpush1.msra.mxu0 %v2011
        %2328 = vmatprep.subr.mxu0 0.0
        %2329 = vmatpush1.msra.mxu0 %v2012
        %2330 = vmatprep.subr.mxu0 0.0
        %2331 = vmatpush1.msra.mxu0 %v2013
        %2332 = vmatprep.subr.mxu0 0.0
        %2333 = vmatpush1.msra.mxu0 %v2014
        %2334 = vmatprep.subr.mxu0 0.0
        %2335 = vmatpush1.msra.mxu0 %v2015
        %2336 = vmatprep.subr.mxu0 0.0
        %2337 = vmatpush1.msra.mxu0 %v2016
        %2338 = vmatprep.subr.mxu0 0.0
        %2339 = vmatpush1.msra.mxu0 %v2017
        %2340 = vmatprep.subr.mxu0 0.0
        %2341 = vmatpush1.msra.mxu0 %v2018
        %2342 = vmatprep.subr.mxu0 0.0
        %2343 = vmatpush1.msra.mxu0 %v2019
        %2344 = vmatprep.subr.mxu0 0.0
        %2345 = vmatpush1.msra.mxu0 %v2020
        %2346 = vmatprep.subr.mxu0 0.0
        %2347 = vmatpush1.msra.mxu0 %v2021
        %2348 = vmatprep.subr.mxu0 0.0
        %2349 = vmatpush1.msra.mxu0 %v2022
        %2350 = vmatprep.subr.mxu0 0.0
        %2351 = vmatpush1.msra.mxu0 %v2023
        %2352 = vmatprep.subr.mxu0 0.0
        %2353 = vmatpush1.msra.mxu0 %v2024
        %2354 = vmatprep.subr.mxu0 0.0
        %2355 = vmatpush1.msra.mxu0 %v2025
        %2356 = vmatprep.mubr.f32.mxu0 %v1693
        %2357 = vmatmul.mubr.f32.gmra.mrb[0].mxu0 %v1692
        %v2358 = vpop.f32.mrb[0].mxu0
        %v2359 = vadd.f32 %v2289, %v2358
        %v2360 = vpop.f32.mrb[0].mxu0
        %2361 = vdwg.mxu0
        %2362 = vmatprep.subr.mxu0 0.0
        %2363 = vmatpush1.msra.mxu0 %v2026
        %2364 = vmatprep.subr.mxu0 0.0
        %2365 = vmatpush1.msra.mxu0 %v2027
        %2366 = vmatprep.subr.mxu0 0.0
        %2367 = vmatpush1.msra.mxu0 %v2028
        %2368 = vmatprep.subr.mxu0 0.0
        %2369 = vmatpush1.msra.mxu0 %v2029
        %2370 = vmatprep.subr.mxu0 0.0
        %2371 = vmatpush1.msra.mxu0 %v2030
        %2372 = vmatprep.subr.mxu0 0.0
        %2373 = vmatpush1.msra.mxu0 %v2031
        %2374 = vmatprep.subr.mxu0 0.0
        %2375 = vmatpush1.msra.mxu0 %v2032
        %2376 = vmatprep.subr.mxu0 0.0
        %2377 = vmatpush1.msra.mxu0 %v2033
        %2378 = vmatprep.subr.mxu0 0.0
        %2379 = vmatpush1.msra.mxu0 %v2034
        %2380 = vmatprep.subr.mxu0 0.0
        %2381 = vmatpush1.msra.mxu0 %v2035
        %2382 = vmatprep.subr.mxu0 0.0
        %2383 = vmatpush1.msra.mxu0 %v2036
        %2384 = vmatprep.subr.mxu0 0.0
        %2385 = vmatpush1.msra.mxu0 %v2037
        %2386 = vmatprep.subr.mxu0 0.0
        %2387 = vmatpush1.msra.mxu0 %v2038
        %2388 = vmatprep.subr.mxu0 0.0
        %2389 = vmatpush1.msra.mxu0 %v2039
        %2390 = vmatprep.subr.mxu0 0.0
        %2391 = vmatpush1.msra.mxu0 %v2040
        %2392 = vmatprep.subr.mxu0 0.0
        %2393 = vmatpush1.msra.mxu0 %v2041
        %2394 = vmatprep.subr.mxu0 0.0
        %2395 = vmatpush1.msra.mxu0 %v2042
        %2396 = vmatprep.subr.mxu0 0.0
        %2397 = vmatpush1.msra.mxu0 %v2043
        %2398 = vmatprep.subr.mxu0 0.0
        %2399 = vmatpush1.msra.mxu0 %v2044
        %2400 = vmatprep.subr.mxu0 0.0
        %2401 = vmatpush1.msra.mxu0 %v2045
        %2402 = vmatprep.subr.mxu0 0.0
        %2403 = vmatpush1.msra.mxu0 %v2046
        %2404 = vmatprep.subr.mxu0 0.0
        %2405 = vmatpush1.msra.mxu0 %v2047
        %2406 = vmatprep.subr.mxu0 0.0
        %2407 = vmatpush1.msra.mxu0 %v2048
        %2408 = vmatprep.subr.mxu0 0.0
        %2409 = vmatpush1.msra.mxu0 %v2049
        %2410 = vmatprep.subr.mxu0 0.0
        %2411 = vmatpush1.msra.mxu0 %v2050
        %2412 = vmatprep.subr.mxu0 0.0
        %2413 = vmatpush1.msra.mxu0 %v2051
        %2414 = vmatprep.subr.mxu0 0.0
        %2415 = vmatpush1.msra.mxu0 %v2052
        %2416 = vmatprep.subr.mxu0 0.0
        %2417 = vmatpush1.msra.mxu0 %v2053
        %2418 = vmatprep.subr.mxu0 0.0
        %2419 = vmatpush1.msra.mxu0 %v2054
        %2420 = vmatprep.subr.mxu0 0.0
        %2421 = vmatpush1.msra.mxu0 %v2055
        %2422 = vmatprep.subr.mxu0 0.0
        %2423 = vmatpush1.msra.mxu0 %v2056
        %2424 = vmatprep.subr.mxu0 0.0
        %2425 = vmatpush1.msra.mxu0 %v2057
        %2426 = vmatprep.mubr.f32.mxu0 %v1695
        %2427 = vmatmul.mubr.f32.gmra.mrb[0].mxu0 %v1694
        %v2428 = vpop.f32.mrb[0].mxu0
        %v2429 = vadd.f32 %v2359, %v2428
        %v2430 = vpop.f32.mrb[0].mxu0
        %2431 = vdwg.mxu0
        %2432 = vmatprep.subr.mxu0 0.0
        %2433 = vmatpush1.msra.mxu0 %v2058
        %2434 = vmatprep.subr.mxu0 0.0
        %2435 = vmatpush1.msra.mxu0 %v2059
        %2436 = vmatprep.subr.mxu0 0.0
        %2437 = vmatpush1.msra.mxu0 %v2060
        %2438 = vmatprep.subr.mxu0 0.0
        %2439 = vmatpush1.msra.mxu0 %v2061
        %2440 = vmatprep.subr.mxu0 0.0
        %2441 = vmatpush1.msra.mxu0 %v2062
        %2442 = vmatprep.subr.mxu0 0.0
        %2443 = vmatpush1.msra.mxu0 %v2063
        %2444 = vmatprep.subr.mxu0 0.0
        %2445 = vmatpush1.msra.mxu0 %v2064
        %2446 = vmatprep.subr.mxu0 0.0
        %2447 = vmatpush1.msra.mxu0 %v2065
        %2448 = vmatprep.subr.mxu0 0.0
        %2449 = vmatpush1.msra.mxu0 %v2066
        %2450 = vmatprep.subr.mxu0 0.0
        %2451 = vmatpush1.msra.mxu0 %v2067
        %2452 = vmatprep.subr.mxu0 0.0
        %2453 = vmatpush1.msra.mxu0 %v2068
        %2454 = vmatprep.subr.mxu0 0.0
        %2455 = vmatpush1.msra.mxu0 %v2069
        %2456 = vmatprep.subr.mxu0 0.0
        %2457 = vmatpush1.msra.mxu0 %v2070
        %2458 = vmatprep.subr.mxu0 0.0
        %2459 = vmatpush1.msra.mxu0 %v2071
        %2460 = vmatprep.subr.mxu0 0.0
        %2461 = vmatpush1.msra.mxu0 %v2072
        %2462 = vmatprep.subr.mxu0 0.0
        %2463 = vmatpush1.msra.mxu0 %v2073
        %2464 = vmatprep.subr.mxu0 0.0
        %2465 = vmatpush1.msra.mxu0 %v2074
        %2466 = vmatprep.subr.mxu0 0.0
        %2467 = vmatpush1.msra.mxu0 %v2075
        %2468 = vmatprep.subr.mxu0 0.0
        %2469 = vmatpush1.msra.mxu0 %v2076
        %2470 = vmatprep.subr.mxu0 0.0
        %2471 = vmatpush1.msra.mxu0 %v2077
        %2472 = vmatprep.subr.mxu0 0.0
        %2473 = vmatpush1.msra.mxu0 %v2078
        %2474 = vmatprep.subr.mxu0 0.0
        %2475 = vmatpush1.msra.mxu0 %v2079
        %2476 = vmatprep.subr.mxu0 0.0
        %2477 = vmatpush1.msra.mxu0 %v2080
        %2478 = vmatprep.subr.mxu0 0.0
        %2479 = vmatpush1.msra.mxu0 %v2081
        %2480 = vmatprep.subr.mxu0 0.0
        %2481 = vmatpush1.msra.mxu0 %v2082
        %2482 = vmatprep.subr.mxu0 0.0
        %2483 = vmatpush1.msra.mxu0 %v2083
        %2484 = vmatprep.subr.mxu0 0.0
        %2485 = vmatpush1.msra.mxu0 %v2084
        %2486 = vmatprep.subr.mxu0 0.0
        %2487 = vmatpush1.msra.mxu0 %v2085
        %2488 = vmatprep.subr.mxu0 0.0
        %2489 = vmatpush1.msra.mxu0 %v2086
        %2490 = vmatprep.subr.mxu0 0.0
        %2491 = vmatpush1.msra.mxu0 %v2087
        %2492 = vmatprep.subr.mxu0 0.0
        %2493 = vmatpush1.msra.mxu0 %v2088
        %2494 = vmatprep.subr.mxu0 0.0
        %2495 = vmatpush1.msra.mxu0 %v2089
        %2496 = vmatprep.mubr.f32.mxu0 %v1697
        %2497 = vmatmul.mubr.f32.gmra.mrb[0].mxu0 %v1696
        %v2498 = vpop.f32.mrb[0].mxu0
        %v2499 = vadd.f32 %v2429, %v2498
        %v2500 = vpop.f32.mrb[0].mxu0
        %2501 = vdwg.mxu0
        %2502 = vmatprep.subr.mxu0 0.0
        %2503 = vmatpush1.msra.mxu0 %v2090
        %2504 = vmatprep.subr.mxu0 0.0
        %2505 = vmatpush1.msra.mxu0 %v2091
        %2506 = vmatprep.subr.mxu0 0.0
        %2507 = vmatpush1.msra.mxu0 %v2092
        %2508 = vmatprep.subr.mxu0 0.0
        %2509 = vmatpush1.msra.mxu0 %v2093
        %2510 = vmatprep.subr.mxu0 0.0
        %2511 = vmatpush1.msra.mxu0 %v2094
        %2512 = vmatprep.subr.mxu0 0.0
        %2513 = vmatpush1.msra.mxu0 %v2095
        %2514 = vmatprep.subr.mxu0 0.0
        %2515 = vmatpush1.msra.mxu0 %v2096
        %2516 = vmatprep.subr.mxu0 0.0
        %2517 = vmatpush1.msra.mxu0 %v2097
        %2518 = vmatprep.subr.mxu0 0.0
        %2519 = vmatpush1.msra.mxu0 %v2098
        %2520 = vmatprep.subr.mxu0 0.0
        %2521 = vmatpush1.msra.mxu0 %v2099
        %2522 = vmatprep.subr.mxu0 0.0
        %2523 = vmatpush1.msra.mxu0 %v2100
        %2524 = vmatprep.subr.mxu0 0.0
        %2525 = vmatpush1.msra.mxu0 %v2101
        %2526 = vmatprep.subr.mxu0 0.0
        %2527 = vmatpush1.msra.mxu0 %v2102
        %2528 = vmatprep.subr.mxu0 0.0
        %2529 = vmatpush1.msra.mxu0 %v2103
        %2530 = vmatprep.subr.mxu0 0.0
        %2531 = vmatpush1.msra.mxu0 %v2104
        %2532 = vmatprep.subr.mxu0 0.0
        %2533 = vmatpush1.msra.mxu0 %v2105
        %2534 = vmatprep.subr.mxu0 0.0
        %2535 = vmatpush1.msra.mxu0 %v2106
        %2536 = vmatprep.subr.mxu0 0.0
        %2537 = vmatpush1.msra.mxu0 %v2107
        %2538 = vmatprep.subr.mxu0 0.0
        %2539 = vmatpush1.msra.mxu0 %v2108
        %2540 = vmatprep.subr.mxu0 0.0
        %2541 = vmatpush1.msra.mxu0 %v2109
        %2542 = vmatprep.subr.mxu0 0.0
        %2543 = vmatpush1.msra.mxu0 %v2110
        %2544 = vmatprep.subr.mxu0 0.0
        %2545 = vmatpush1.msra.mxu0 %v2111
        %2546 = vmatprep.subr.mxu0 0.0
        %2547 = vmatpush1.msra.mxu0 %v2112
        %2548 = vmatprep.subr.mxu0 0.0
        %2549 = vmatpush1.msra.mxu0 %v2113
        %2550 = vmatprep.subr.mxu0 0.0
        %2551 = vmatpush1.msra.mxu0 %v2114
        %2552 = vmatprep.subr.mxu0 0.0
        %2553 = vmatpush1.msra.mxu0 %v2115
        %2554 = vmatprep.subr.mxu0 0.0
        %2555 = vmatpush1.msra.mxu0 %v2116
        %2556 = vmatprep.subr.mxu0 0.0
        %2557 = vmatpush1.msra.mxu0 %v2117
        %2558 = vmatprep.subr.mxu0 0.0
        %2559 = vmatpush1.msra.mxu0 %v2118
        %2560 = vmatprep.subr.mxu0 0.0
        %2561 = vmatpush1.msra.mxu0 %v2119
        %2562 = vmatprep.subr.mxu0 0.0
        %2563 = vmatpush1.msra.mxu0 %v2120
        %2564 = vmatprep.subr.mxu0 0.0
        %2565 = vmatpush1.msra.mxu0 %v2121
        %2566 = vmatprep.mubr.f32.mxu0 %v1699
        %2567 = vmatmul.mubr.f32.gmra.mrb[0].mxu0 %v1698
        %v2568 = vpop.f32.mrb[0].mxu0
        %v2569 = vadd.f32 %v2499, %v2568
        %v2570 = vpop.f32.mrb[0].mxu0
        %2571 = vdwg.mxu0
        %2572 = vmatprep.subr.mxu0 0.0
        %2573 = vmatpush1.msra.mxu0 %v2122
        %2574 = vmatprep.subr.mxu0 0.0
        %2575 = vmatpush1.msra.mxu0 %v2123
        %2576 = vmatprep.subr.mxu0 0.0
        %2577 = vmatpush1.msra.mxu0 %v2124
        %2578 = vmatprep.subr.mxu0 0.0
        %2579 = vmatpush1.msra.mxu0 %v2125
        %2580 = vmatprep.subr.mxu0 0.0
        %2581 = vmatpush1.msra.mxu0 %v2126
        %2582 = vmatprep.subr.mxu0 0.0
        %2583 = vmatpush1.msra.mxu0 %v2127
        %2584 = vmatprep.subr.mxu0 0.0
        %2585 = vmatpush1.msra.mxu0 %v2128
        %2586 = vmatprep.subr.mxu0 0.0
        %2587 = vmatpush1.msra.mxu0 %v2129
        %2588 = vmatprep.subr.mxu0 0.0
        %2589 = vmatpush1.msra.mxu0 %v2130
        %2590 = vmatprep.subr.mxu0 0.0
        %2591 = vmatpush1.msra.mxu0 %v2131
        %2592 = vmatprep.subr.mxu0 0.0
        %2593 = vmatpush1.msra.mxu0 %v2132
        %2594 = vmatprep.subr.mxu0 0.0
        %2595 = vmatpush1.msra.mxu0 %v2133
        %2596 = vmatprep.subr.mxu0 0.0
        %2597 = vmatpush1.msra.mxu0 %v2134
        %2598 = vmatprep.subr.mxu0 0.0
        %2599 = vmatpush1.msra.mxu0 %v2135
        %2600 = vmatprep.subr.mxu0 0.0
        %2601 = vmatpush1.msra.mxu0 %v2136
        %2602 = vmatprep.subr.mxu0 0.0
        %2603 = vmatpush1.msra.mxu0 %v2137
        %2604 = vmatprep.subr.mxu0 0.0
        %2605 = vmatpush1.msra.mxu0 %v2138
        %2606 = vmatprep.subr.mxu0 0.0
        %2607 = vmatpush1.msra.mxu0 %v2139
        %2608 = vmatprep.subr.mxu0 0.0
        %2609 = vmatpush1.msra.mxu0 %v2140
        %2610 = vmatprep.subr.mxu0 0.0
        %2611 = vmatpush1.msra.mxu0 %v2141
        %2612 = vmatprep.subr.mxu0 0.0
        %2613 = vmatpush1.msra.mxu0 %v2142
        %2614 = vmatprep.subr.mxu0 0.0
        %2615 = vmatpush1.msra.mxu0 %v2143
        %2616 = vmatprep.subr.mxu0 0.0
        %2617 = vmatpush1.msra.mxu0 %v2144
        %2618 = vmatprep.subr.mxu0 0.0
        %2619 = vmatpush1.msra.mxu0 %v2145
        %2620 = vmatprep.subr.mxu0 0.0
        %2621 = vmatpush1.msra.mxu0 %v2146
        %2622 = vmatprep.subr.mxu0 0.0
        %2623 = vmatpush1.msra.mxu0 %v2147
        %2624 = vmatprep.subr.mxu0 0.0
        %2625 = vmatpush1.msra.mxu0 %v2148
        %2626 = vmatprep.subr.mxu0 0.0
        %2627 = vmatpush1.msra.mxu0 %v2149
        %2628 = vmatprep.subr.mxu0 0.0
        %2629 = vmatpush1.msra.mxu0 %v2150
        %2630 = vmatprep.subr.mxu0 0.0
        %2631 = vmatpush1.msra.mxu0 %v2151
        %2632 = vmatprep.subr.mxu0 0.0
        %2633 = vmatpush1.msra.mxu0 %v2152
        %2634 = vmatprep.subr.mxu0 0.0
        %2635 = vmatpush1.msra.mxu0 %v2153
        %2636 = vmatprep.mubr.f32.mxu0 %v1701
        %2637 = vmatmul.mubr.f32.gmra.mrb[0].mxu0 %v1700
        %v2638 = vpop.f32.mrb[0].mxu0
        %v2639 = vadd.f32 %v2569, %v2638
        %v2640 = vpop.f32.mrb[0].mxu0
        %2641 = vdwg.mxu0
        %2642 = vmatprep.subr.mxu0 0.0
        %2643 = vmatpush1.msra.mxu0 %v2154
        %2644 = vmatprep.subr.mxu0 0.0
        %2645 = vmatpush1.msra.mxu0 %v2155
        %2646 = vmatprep.subr.mxu0 0.0
        %2647 = vmatpush1.msra.mxu0 %v2156
        %2648 = vmatprep.subr.mxu0 0.0
        %2649 = vmatpush1.msra.mxu0 %v2157
        %2650 = vmatprep.subr.mxu0 0.0
        %2651 = vmatpush1.msra.mxu0 %v2158
        %2652 = vmatprep.subr.mxu0 0.0
        %2653 = vmatpush1.msra.mxu0 %v2159
        %2654 = vmatprep.subr.mxu0 0.0
        %2655 = vmatpush1.msra.mxu0 %v2160
        %2656 = vmatprep.subr.mxu0 0.0
        %2657 = vmatpush1.msra.mxu0 %v2161
        %2658 = vmatprep.subr.mxu0 0.0
        %2659 = vmatpush1.msra.mxu0 %v2162
        %2660 = vmatprep.subr.mxu0 0.0
        %2661 = vmatpush1.msra.mxu0 %v2163
        %2662 = vmatprep.subr.mxu0 0.0
        %2663 = vmatpush1.msra.mxu0 %v2164
        %2664 = vmatprep.subr.mxu0 0.0
        %2665 = vmatpush1.msra.mxu0 %v2165
        %2666 = vmatprep.subr.mxu0 0.0
        %2667 = vmatpush1.msra.mxu0 %v2166
        %2668 = vmatprep.subr.mxu0 0.0
        %2669 = vmatpush1.msra.mxu0 %v2167
        %2670 = vmatprep.subr.mxu0 0.0
        %2671 = vmatpush1.msra.mxu0 %v2168
        %2672 = vmatprep.subr.mxu0 0.0
        %2673 = vmatpush1.msra.mxu0 %v2169
        %2674 = vmatprep.subr.mxu0 0.0
        %2675 = vmatpush1.msra.mxu0 %v2170
        %2676 = vmatprep.subr.mxu0 0.0
        %2677 = vmatpush1.msra.mxu0 %v2171
        %2678 = vmatprep.subr.mxu0 0.0
        %2679 = vmatpush1.msra.mxu0 %v2172
        %2680 = vmatprep.subr.mxu0 0.0
        %2681 = vmatpush1.msra.mxu0 %v2173
        %2682 = vmatprep.subr.mxu0 0.0
        %2683 = vmatpush1.msra.mxu0 %v2174
        %2684 = vmatprep.subr.mxu0 0.0
        %2685 = vmatpush1.msra.mxu0 %v2175
        %2686 = vmatprep.subr.mxu0 0.0
        %2687 = vmatpush1.msra.mxu0 %v2176
        %2688 = vmatprep.subr.mxu0 0.0
        %2689 = vmatpush1.msra.mxu0 %v2177
        %2690 = vmatprep.subr.mxu0 0.0
        %2691 = vmatpush1.msra.mxu0 %v2178
        %2692 = vmatprep.subr.mxu0 0.0
        %2693 = vmatpush1.msra.mxu0 %v2179
        %2694 = vmatprep.subr.mxu0 0.0
        %2695 = vmatpush1.msra.mxu0 %v2180
        %2696 = vmatprep.subr.mxu0 0.0
        %2697 = vmatpush1.msra.mxu0 %v2181
        %2698 = vmatprep.subr.mxu0 0.0
        %2699 = vmatpush1.msra.mxu0 %v2182
        %2700 = vmatprep.subr.mxu0 0.0
        %2701 = vmatpush1.msra.mxu0 %v2183
        %2702 = vmatprep.subr.mxu0 0.0
        %2703 = vmatpush1.msra.mxu0 %v2184
        %2704 = vmatprep.subr.mxu0 0.0
        %2705 = vmatpush1.msra.mxu0 %v2185
        %2706 = vmatprep.mubr.f32.mxu0 %v1703
        %2707 = vmatmul.mubr.f32.gmra.mrb[0].mxu0 %v1702
        %v2708 = vpop.f32.mrb[0].mxu0
        %v2709 = vadd.f32 %v2639, %v2708
        %v2710 = vpop.f32.mrb[0].mxu0
        %2711 = vdwg.mxu0
        %2712 = vmatprep.subr.mxu0 0.0
        %2713 = vmatpush1.msra.mxu0 %v2186
        %2714 = vmatprep.subr.mxu0 0.0
        %2715 = vmatpush1.msra.mxu0 %v2187
        %2716 = vmatprep.subr.mxu0 0.0
        %2717 = vmatpush1.msra.mxu0 %v2188
        %2718 = vmatprep.subr.mxu0 0.0
        %2719 = vmatpush1.msra.mxu0 %v2189
        %2720 = vmatprep.subr.mxu0 0.0
        %2721 = vmatpush1.msra.mxu0 %v2190
        %2722 = vmatprep.subr.mxu0 0.0
        %2723 = vmatpush1.msra.mxu0 %v2191
        %2724 = vmatprep.subr.mxu0 0.0
        %2725 = vmatpush1.msra.mxu0 %v2192
        %2726 = vmatprep.subr.mxu0 0.0
        %2727 = vmatpush1.msra.mxu0 %v2193
        %2728 = vmatprep.subr.mxu0 0.0
        %2729 = vmatpush1.msra.mxu0 %v2194
        %2730 = vmatprep.subr.mxu0 0.0
        %2731 = vmatpush1.msra.mxu0 %v2195
        %2732 = vmatprep.subr.mxu0 0.0
        %2733 = vmatpush1.msra.mxu0 %v2196
        %2734 = vmatprep.subr.mxu0 0.0
        %2735 = vmatpush1.msra.mxu0 %v2197
        %2736 = vmatprep.subr.mxu0 0.0
        %2737 = vmatpush1.msra.mxu0 %v2198
        %2738 = vmatprep.subr.mxu0 0.0
        %2739 = vmatpush1.msra.mxu0 %v2199
        %2740 = vmatprep.subr.mxu0 0.0
        %2741 = vmatpush1.msra.mxu0 %v2200
        %2742 = vmatprep.subr.mxu0 0.0
        %2743 = vmatpush1.msra.mxu0 %v2201
        %2744 = vmatprep.subr.mxu0 0.0
        %2745 = vmatpush1.msra.mxu0 %v2202
        %2746 = vmatprep.subr.mxu0 0.0
        %2747 = vmatpush1.msra.mxu0 %v2203
        %2748 = vmatprep.subr.mxu0 0.0
        %2749 = vmatpush1.msra.mxu0 %v2204
        %2750 = vmatprep.subr.mxu0 0.0
        %2751 = vmatpush1.msra.mxu0 %v2205
        %2752 = vmatprep.subr.mxu0 0.0
        %2753 = vmatpush1.msra.mxu0 %v2206
        %2754 = vmatprep.subr.mxu0 0.0
        %2755 = vmatpush1.msra.mxu0 %v2207
        %2756 = vmatprep.subr.mxu0 0.0
        %2757 = vmatpush1.msra.mxu0 %v2208
        %2758 = vmatprep.subr.mxu0 0.0
        %2759 = vmatpush1.msra.mxu0 %v2209
        %2760 = vmatprep.subr.mxu0 0.0
        %2761 = vmatpush1.msra.mxu0 %v2210
        %2762 = vmatprep.subr.mxu0 0.0
        %2763 = vmatpush1.msra.mxu0 %v2211
        %2764 = vmatprep.subr.mxu0 0.0
        %2765 = vmatpush1.msra.mxu0 %v2212
        %2766 = vmatprep.subr.mxu0 0.0
        %2767 = vmatpush1.msra.mxu0 %v2213
        %2768 = vmatprep.subr.mxu0 0.0
        %2769 = vmatpush1.msra.mxu0 %v2214
        %2770 = vmatprep.subr.mxu0 0.0
        %2771 = vmatpush1.msra.mxu0 %v2215
        %2772 = vmatprep.subr.mxu0 0.0
        %2773 = vmatpush1.msra.mxu0 %v2216
        %2774 = vmatprep.subr.mxu0 0.0
        %2775 = vmatpush1.msra.mxu0 %v2217
        %2776 = vmatprep.mubr.f32.mxu0 %v1705
        %2777 = vmatmul.mubr.f32.gmra.mrb[0].mxu0 %v1704
        %v2778 = vpop.f32.mrb[0].mxu0
        %v2779 = vadd.f32 %v2709, %v2778
        %v2780 = vpop.f32.mrb[0].mxu0
        %2781 = vdwg.mxu0
        %v2782 = vadd.f32 %v938, %v2779
        %v2783 = vsel %vm720, %v2782, 0.0
        %2784 = vadd.xlane.f32.xlu0 %v2783
        %v2785 = vpop.xlane.xlu0 %2784
        %v2786 = vmul.f32 %v2785, %v724
        %v2787 = vsub.f32 %v2782, %v2786
        %v2788 = vmul.f32 %v2787, %v2787
        %v2789 = vsel %vm720, %v2788, 0.0
        %2790 = vadd.xlane.f32.xlu0 %v2789
        %v2791 = vpop.xlane.xlu0 %2790
        %v2792 = vmul.f32 %v2791, %v724
        %v2793 = vadd.f32 %v2792, 1e-05
        %v2794 = vrsqrt.pop %v2793
        %v2795 = vmul.f32 %v2787, %v2794
        %v2796 = vlaneseq
        %v2797 = vshrl.u32 %v2796, 7
        %v2798 = vsub.s32 1, %v2797
        %v2799 = vrot.slane %v547, %v2798
        %v2800 = vmul.f32 %v2795, %v2799
        %v2801 = vlaneseq
        %v2802 = vshrl.u32 %v2801, 7
        %v2803 = vsub.s32 2, %v2802
        %v2804 = vrot.slane %v547, %v2803
        %v2805 = vadd.f32 %v2800, %v2804
        %2806 = vst.msk [vmem:[#allocation2] sm:$0x3] %vm720, %v2805
        %p2807 = scmp.eq.s32.totalorder %s24, 5
        // Predicated region
        $region73: #{vit_forward.5} parent=67 // pred_check
          %p2808 = pneg %p2807
        $region74: #{vit_forward.5} parent=67 // pred_check_branch
          %2810 = sbr.rel (%p2808) target = $region76
        $region75: #{vit_forward.5} parent=67 // pred_region
          %v2811 = vld [vmem:[#allocation2] sm:$0x3]
          %v2812 = vsel %vm720, %v2811, 0.0
          %2813 = vadd.xlane.f32.xlu0 %v2812
          %v2814 = vpop.xlane.xlu0 %2813
          %v2815 = vmul.f32 %v2814, %v724
          %v2816 = vsub.f32 %v2811, %v2815
          %v2817 = vmul.f32 %v2816, %v2816
          %v2818 = vsel %vm720, %v2817, 0.0
          %2819 = vadd.xlane.f32.xlu0 %v2818
          %v2820 = vpop.xlane.xlu0 %2819
          %v2821 = vmul.f32 %v2820, %v724
          %v2822 = vadd.f32 %v2821, 1e-05
          %v2823 = vrsqrt.pop %v2822
          %v2824 = vmul.f32 %v2816, %v2823
          %v2825 = vlaneseq
          %v2826 = vshrl.u32 %v2825, 7
          %v2827 = vsub.s32 3, %v2826
          %v2828 = vrot.slane %v547, %v2827
          %v2829 = vmul.f32 %v2824, %v2828
          %v2830 = vlaneseq
          %v2831 = vshrl.u32 %v2830, 7
          %v2832 = vsub.s32 4, %v2831
          %v2833 = vrot.slane %v547, %v2832
          %v2834 = vadd.f32 %v2829, %v2833
          %v2835 = vld [vmem:[%s10] sm:$0xff]
          %v2836 = vld [vmem:[%s10 + $0x8] sm:$0xff]
          %v2837 = vld [vmem:[%s10 + $0x10] sm:$0xff]
          %v2838 = vld [vmem:[%s10 + $0x18] sm:$0xff]
          %v2839 = vld [vmem:[%s11] sm:$0x1]
          %v2841 = vlaneseq
          %v2842 = vshrl.u32 %v2841, 7
          %v2843 = vsub.s32 0, %v2842
          %v2844 = vrot.slane %v2839, %v2843
          %v2847 = vsel %vm560, %v2834, 0
          %2849 = vmatprep.subr.mxu0 0.0
          %2850 = vmatpush1.msra.mxu0 %v2835
          %2851 = vmatprep.subr.mxu0 0.0
          %2852 = vmatpush1.msra.mxu0 %v2836
          %2853 = vmatprep.subr.mxu0 0.0
          %2854 = vmatpush1.msra.mxu0 %v2837
          %2855 = vmatprep.subr.mxu0 0.0
          %2856 = vmatpush1.msra.mxu0 %v2838
          %2857 = vmatprep.subr.mxu0 0.0
          %2858 = vmatpush1.msra.mxu0 0.0
          %2859 = vmatprep.subr.mxu0 0.0
          %2860 = vmatpush1.msra.mxu0 0.0
          %2861 = vmatprep.subr.mxu0 0.0
          %2862 = vmatpush1.msra.mxu0 0.0
          %2863 = vmatprep.subr.mxu0 0.0
          %2864 = vmatpush1.msra.mxu0 0.0
          %2865 = vmatprep.subr.mxu0 0.0
          %2866 = vmatpush1.msra.mxu0 0.0
          %2867 = vmatprep.subr.mxu0 0.0
          %2868 = vmatpush1.msra.mxu0 0.0
          %2869 = vmatprep.subr.mxu0 0.0
          %2870 = vmatpush1.msra.mxu0 0.0
          %2871 = vmatprep.subr.mxu0 0.0
          %2872 = vmatpush1.msra.mxu0 0.0
          %2873 = vmatprep.subr.mxu0 0.0
          %2874 = vmatpush1.msra.mxu0 0.0
          %2875 = vmatprep.subr.mxu0 0.0
          %2876 = vmatpush1.msra.mxu0 0.0
          %2877 = vmatprep.subr.mxu0 0.0
          %2878 = vmatpush1.msra.mxu0 0.0
          %2879 = vmatprep.subr.mxu0 0.0
          %2880 = vmatpush1.msra.mxu0 0.0
          %2881 = vmatprep.subr.mxu0 0.0
          %2882 = vmatpush1.msra.mxu0 0.0
          %2883 = vmatprep.subr.mxu0 0.0
          %2884 = vmatpush1.msra.mxu0 0.0
          %2885 = vmatprep.subr.mxu0 0.0
          %2886 = vmatpush1.msra.mxu0 0.0
          %2887 = vmatprep.subr.mxu0 0.0
          %2888 = vmatpush1.msra.mxu0 0.0
          %2889 = vmatprep.subr.mxu0 0.0
          %2890 = vmatpush1.msra.mxu0 0.0
          %2891 = vmatprep.subr.mxu0 0.0
          %2892 = vmatpush1.msra.mxu0 0.0
          %2893 = vmatprep.subr.mxu0 0.0
          %2894 = vmatpush1.msra.mxu0 0.0
          %2895 = vmatprep.subr.mxu0 0.0
          %2896 = vmatpush1.msra.mxu0 0.0
          %2897 = vmatprep.subr.mxu0 0.0
          %2898 = vmatpush1.msra.mxu0 0.0
          %2899 = vmatprep.subr.mxu0 0.0
          %2900 = vmatpush1.msra.mxu0 0.0
          %2901 = vmatprep.subr.mxu0 0.0
          %2902 = vmatpush1.msra.mxu0 0.0
          %2903 = vmatprep.subr.mxu0 0.0
          %2904 = vmatpush1.msra.mxu0 0.0
          %2905 = vmatprep.subr.mxu0 0.0
          %2906 = vmatpush1.msra.mxu0 0.0
          %2907 = vmatprep.subr.mxu0 0.0
          %2908 = vmatpush1.msra.mxu0 0.0
          %2909 = vmatprep.subr.mxu0 0.0
          %2910 = vmatpush1.msra.mxu0 0.0
          %2911 = vmatprep.subr.mxu0 0.0
          %2912 = vmatpush1.msra.mxu0 0.0
          %2913 = vmatprep.mubr.f32.mxu0 0.0
          %2914 = vmatmul.mubr.f32.gmra.mrb[0].mxu0 %v2847
          %v2915 = vpop.f32.mrb[0].mxu0
          %v2916 = vadd.f32 %v2844, %v2915
          %v2917 = vpop.f32.mrb[0].mxu0
          %2918 = vdwg.mxu0
          %vm2919 = vcmask 74752
          %2920 = vst.msk [vmem:[#allocation3] sm:$0x3] %vm2919, %v2916
        $region76: #{vit_forward.5} parent=67 // pred_fallthru
          _
        // Predicated region
        $region77: #{vit_forward.5} parent=67 // pred_check
          %p2921 = pneg %p329
        $region78: #{vit_forward.5} parent=67 // pred_check_branch
          %2923 = sbr.rel (%p2921) target = $region80
        $region79: #{vit_forward.5} parent=67 // pred_region
          %s2925 = ssub.s32 32, 32
          %2926 = vsyncadd [#allocation4], %s2925
          %s2928 = sshll.u32 [#allocation3], 4
          %s2929 = int_to_ptr.vmem [resolvable:$true] %s2928
          %2931 = dma.vmem_to_hbm [thread:$0]  %s2929, 32, %s12, [#allocation4]
        $region80: #{vit_forward.5} parent=67 // pred_fallthru
          _
        // Predicated region
        $region81: #{vit_forward.5} parent=67 // pred_check
          %p2932 = pneg %p329
        $region82: #{vit_forward.5} parent=67 // pred_check_branch
          %2934 = sbr.rel (%p2932) target = $region84
        $region83: #{vit_forward.5} parent=67 // pred_region
          %2935 = dma.done [#allocation4], 32
        $region84: #{vit_forward.5} parent=67 // pred_fallthru
          _
      $region68: #{vit_forward.5} parent=5 // pred_fallthru
        _
      %p2936 = scmp.le.s32.totalorder 2, %s19
      // Predicated region
      $region85: #{vit_forward.5} parent=5 // pred_check
        %p2937 = pneg %p2936
      $region86: #{vit_forward.5} parent=5 // pred_check_branch
        %2939 = sbr.rel (%p2937) target = $region88
      $region87: #{vit_forward.5} parent=5 // pred_region
        %s2940 = ssub.s32 %s19, 2
      $region88: #{vit_forward.5} parent=5 // pred_fallthru
        _
    $region6: #{vit_forward.5} parent=1 // loop_footer
      %s23 = sadd.s32 1, %s19
    $region7: #{vit_forward.5} parent=1 // loop_footer_branch
      %18 = sbr.rel target = $region3
    $region8: #{vit_forward.5} parent=1 // loop_exit
      _
    %2941 = vsyncpa [#allocation4], 1
    %s2942 = scalar_lea.sflag [#allocation4], 1
    %2943 = vsyncpa %s2942, 1

</llo_original>
